<compile_context>
chip_gen: v5e
topology: v5e:2x2
jax: 0.10.0
libtpu: 0.0.40
codegen_flags: <defaults>
</compile_context>

<pallas_src>
import math
from functools import lru_cache, partial

import numpy as np
import jax
import jax.numpy as jnp
from jax.experimental import pallas as pl
from jax.experimental.pallas import tpu as pltpu

_K = 3          # every conv in this model is 3x3
_LANE = 128     # all per-layer H*W sizes are padded to a multiple of this


def _round_up(n, m=_LANE):
    return ((n + m - 1) // m) * m


# ----------------------------------------------------------------------------
# Constant gather-matrix construction (numpy, runs only at trace time)
# ----------------------------------------------------------------------------

def _taps_concat(idx_pad, hw_in, sh, sw):
    """Concatenated gather matrix (HW_in_pad, 9*HW_out_pad) from a padded map.

    idx_pad[h, w] in {0, 1..HW_in}: 0 -> structural zero (zero pad / dilation),
    q+1 -> value comes from flat input position q.  Column block t holds tap
    t = kh*3+kw; padded rows/columns are all-zero so they are inert.
    """
    Hp, Wp = idx_pad.shape
    Ho = (Hp - _K) // sh + 1
    Wo = (Wp - _K) // sw + 1
    hw_out = Ho * Wo
    hwi_pad, hwo_pad = _round_up(hw_in), _round_up(hw_out)
    g = np.zeros((hwi_pad, _K * _K * hwo_pad), np.float32)
    for kh in range(_K):
        for kw in range(_K):
            t = kh * _K + kw
            src = idx_pad[kh:kh + sh * (Ho - 1) + 1:sh,
                          kw:kw + sw * (Wo - 1) + 1:sw].reshape(-1)
            for p, s in enumerate(src):
                if s > 0:
                    g[s - 1, t * hwo_pad + p] = 1.0
    return g, (Ho, Wo)


def _conv_gather(hw, pads, stride):
    """Gather matrix for Conv2d preceded by the given padding layers."""
    H, W = hw
    idx = np.arange(1, H * W + 1, dtype=np.int64).reshape(H, W)
    for mode, amt in pads:
        if mode == 'edge':            # ReplicationPad2d
            idx = np.pad(idx, amt, mode='edge')
        elif mode == 'reflect':       # ReflectionPad2d
            idx = np.pad(idx, amt, mode='reflect')
        else:                         # Conv2d zero padding (ph, pw)
            ph, pw = amt
            idx = np.pad(idx, ((ph, ph), (pw, pw)), mode='constant')
    return _taps_concat(idx, H * W, stride[0], stride[1])


def _deconv_gather(hw, stride, padding, output_padding):
    """Gather matrix for ConvTranspose2d (zero-dilation folded in)."""
    H, W = hw
    sh, sw = stride
    ph, pw = padding
    oph, opw = output_padding
    idx = np.arange(1, H * W + 1, dtype=np.int64).reshape(H, W)
    dil = np.zeros(((H - 1) * sh + 1, (W - 1) * sw + 1), np.int64)
    dil[::sh, ::sw] = idx
    dil = np.pad(dil, ((_K - 1 - ph, _K - 1 - ph + oph),
                       (_K - 1 - pw, _K - 1 - pw + opw)), mode='constant')
    return _taps_concat(dil, H * W, 1, 1)


@lru_cache(maxsize=None)
def _build_geometry(H0, W0):
    """All gather matrices + per-layer real output sizes for input (H0, W0).

    Requires H0 % 4 == 3 and W0 % 4 == 0 (like SEQ_LEN x 40 in the module) so
    that the generator output matches the input spatial size.
    """
    gs, hws = [], []

    def add(g_hw):
        g, hw = g_hw
        gs.append(g)
        hws.append(hw[0] * hw[1])
        return hw

    hw = add(_conv_gather((H0, W0), (('edge', 1), ('zero', (0, 2))), (1, 1)))
    hw = add(_conv_gather(hw, (('zero', (1, 1)),), (2, 2)))
    hw = add(_conv_gather(hw, (('zero', (1, 0)),), (2, 2)))
    hw_r = add(_conv_gather(hw, (('reflect', 1),), (1, 1)))
    assert hw_r == hw
    hw = add(_deconv_gather(hw, (2, 2), (1, 1), (1, 1)))
    hw = add(_deconv_gather(hw, (2, 2), (1, 1), (0, 1)))
    hw = add(_conv_gather(hw, (('edge', 1),), (1, 1)))
    assert hw == (H0, W0), hw
    return tuple(gs), tuple(hws)


# ----------------------------------------------------------------------------
# The single fused Pallas kernel
# ----------------------------------------------------------------------------

def _conv_apply(act, g_ref, w, b, hw_out, *, norm, relu):
    """One conv layer on one sample.

    act:  (C_in, HW_in_pad) f32 activation
    g_ref: VMEM ref (HW_in_pad, 9*HW_out_pad) bf16, concatenated 0/1 gather
    w:    (C_out, 9*C_in) bf16 lane-dense tap-stacked weights
    b:    (C_out, 1) f32 bias
    Optional masked InstanceNorm2d (affine=False, biased var) and ReLU.
    """
    cin = act.shape[0]
    hwo_pad = g_ref.shape[1] // (_K * _K)

    # Gather step: one bf16 matmul per layer; padded rows/cols of G are zero.
    ga = jnp.dot(act.astype(jnp.bfloat16), g_ref[...],
                 preferred_element_type=jnp.float32)        # (cin, 9*hwo_pad)

    if cin == 1:
        # K = 9 only: cheaper on the VPU than a 1-row stack + MXU matmul.
        y = b
        for t in range(_K * _K):
            y = y + (w[:, t:t + 1].astype(jnp.float32)
                     * ga[:, t * hwo_pad:(t + 1) * hwo_pad])
    else:
        # Tap-stack (aligned lane slices + sublane concat), then one matmul
        # with contraction depth K = 9 * C_in.
        a_big = jnp.concatenate(
            [ga[:, t * hwo_pad:(t + 1) * hwo_pad] for t in range(_K * _K)],
            axis=0)                                          # (9*cin, hwo_pad)
        y = jnp.dot(w, a_big.astype(jnp.bfloat16),
                    preferred_element_type=jnp.float32) + b  # (cout, hwo_pad)

    if norm:
        # InstanceNorm2d over the real columns only (padding masked out), f32.
        mask = (jax.lax.broadcasted_iota(jnp.int32, (1, hwo_pad), 1)
                < hw_out).astype(jnp.float32)
        inv = 1.0 / hw_out
        mean = jnp.sum(y * mask, axis=1, keepdims=True) * inv
        d = y - mean
        var = jnp.sum(d * d * mask, axis=1, keepdims=True) * inv
        y = d * jax.lax.rsqrt(var + 1e-5)
    if relu:
        y = jnp.maximum(y, 0.0)
    return y


def _convgen_kernel(x_ref,
                    g0, g1, g2, gres, gd1, gd2, gL,
                    w0, b0, w1, b1, w2, b2,
                    wr1, br1, wr2, br2,
                    wd1, bd1, wd2, bd2,
                    wL, bL,
                    o_ref, *, num_res_blocks, hw_outs):
    hw1, hw2, hw3, hw3r, hw4, hw5, hw_last = hw_outs

    x = x_ref[0]                                            # (C0, HW0_pad) f32

    h = _conv_apply(x, g0, w0[...], b0[...], hw1, norm=False, relu=True)
    h = _conv_apply(h, g1, w1[...], b1[...], hw2, norm=True, relu=True)
    h = _conv_apply(h, g2, w2[...], b2[...], hw3, norm=True, relu=True)

    def res_body(r, hcur):
        u = _conv_apply(hcur, gres, wr1[r], br1[r], hw3r, norm=True, relu=True)
        u = _conv_apply(u, gres, wr2[r], br2[r], hw3r, norm=True, relu=False)
        return jnp.maximum(hcur + u, 0.0)                   # residual + outer ReLU

    h = jax.lax.fori_loop(0, num_res_blocks, res_body, h)

    h = _conv_apply(h, gd1, wd1[...], bd1[...], hw4, norm=True, relu=True)
    h = _conv_apply(h, gd2, wd2[...], bd2[...], hw5, norm=True, relu=True)
    h = _conv_apply(h, gL, wL[...], bL[...], hw_last, norm=False, relu=False)

    o_ref[0] = (x + h).astype(o_ref.dtype)                  # o = x + model(x)


# ----------------------------------------------------------------------------
# Wrapper
# ----------------------------------------------------------------------------

def _stack_conv_w(w):
    """(O, C, 3, 3) -> lane-dense (O, 9*C), index [o, (kh*3+kw)*C + c]."""
    O, C = w.shape[0], w.shape[1]
    return jnp.transpose(w, (0, 2, 3, 1)).reshape(O, _K * _K * C).astype(jnp.bfloat16)


def _stack_deconv_w(w):
    """ConvTranspose2d weight (Cin, Cout, 3, 3) -> equivalent conv taps (Cout, 9*Cin)."""
    wc = jnp.transpose(w, (1, 0, 2, 3))[:, :, ::-1, ::-1]
    return _stack_conv_w(wc)


def _bias(b):
    return b.reshape(-1, 1).astype(jnp.float32)


def convgennet_forward(x, params, num_res_blocks):
    """x: (N, 1, H, W) NCHW float32; requires H % 4 == 3 and W % 4 == 0."""
    N, C0, H0, W0 = x.shape
    HW0 = H0 * W0
    HW0_pad = _round_up(HW0)

    gmats_np, hw_outs = _build_geometry(H0, W0)
    gmats = [jnp.asarray(g, jnp.bfloat16) for g in gmats_np]

    res = params['res'][:num_res_blocks]
    wr1 = jnp.stack([_stack_conv_w(rp['w1']) for rp in res])   # (R, 4F, 36F) bf16
    br1 = jnp.stack([_bias(rp['b1']) for rp in res])           # (R, 4F, 1)  f32
    wr2 = jnp.stack([_stack_conv_w(rp['w2']) for rp in res])
    br2 = jnp.stack([_bias(rp['b2']) for rp in res])

    consts = gmats + [
        _stack_conv_w(params['conv0_w']), _bias(params['conv0_b']),
        _stack_conv_w(params['conv1_w']), _bias(params['conv1_b']),
        _stack_conv_w(params['conv2_w']), _bias(params['conv2_b']),
        wr1, br1, wr2, br2,
        _stack_deconv_w(params['deconv1_w']), _bias(params['deconv1_b']),
        _stack_deconv_w(params['deconv2_w']), _bias(params['deconv2_b']),
        _stack_conv_w(params['convL_w']), _bias(params['convL_b']),
    ]

    # Lane-pad the input once; padded columns are zero and inert in the kernel.
    x3 = jnp.pad(x.reshape(N, C0, HW0).astype(jnp.float32),
                 ((0, 0), (0, 0), (0, HW0_pad - HW0)))

    def _full(arr):
        nd = arr.ndim
        return pl.BlockSpec(tuple(arr.shape), lambda n, _nd=nd: (0,) * _nd)

    in_specs = ([pl.BlockSpec((1, C0, HW0_pad), lambda n: (n, 0, 0))]
                + [_full(a) for a in consts])
    out_specs = pl.BlockSpec((1, C0, HW0_pad), lambda n: (n, 0, 0))

    out = pl.pallas_call(
        partial(_convgen_kernel, num_res_blocks=num_res_blocks, hw_outs=hw_outs),
        out_shape=jax.ShapeDtypeStruct((N, C0, HW0_pad), jnp.float32),
        grid_spec=pltpu.PrefetchScalarGridSpec(
            num_scalar_prefetch=0,
            grid=(N,),
            in_specs=in_specs,
            out_specs=out_specs),
        compiler_params=pltpu.CompilerParams(
            dimension_semantics=("parallel",),
            vmem_limit_bytes=48 * 1024 * 1024),
    )(x3, *consts)
    return out[..., :HW0].reshape(N, C0, H0, W0)


# TODO(synk): dropout layers (reg_type='dropout'/'dropout2d') are not built
# because the module default reg_type=None produces no dropout in the graph.

# ----------------------------------------------------------------------------
# Plain-JAX reference (for correctness check only)
# ----------------------------------------------------------------------------

def _ref_conv(x, w, b, stride, pad):
    y = jax.lax.conv_general_dilated(
        x, w, window_strides=stride,
        padding=[(pad[0], pad[0]), (pad[1], pad[1])],
        dimension_numbers=('NCHW', 'OIHW', 'NCHW'),
        precision=jax.lax.Precision.HIGHEST)
    return y + b[None, :, None, None]


def _ref_deconv(x, w, b, stride, padding, output_padding):
    wc = jnp.transpose(w, (1, 0, 2, 3))[:, :, ::-1, ::-1]
    y = jax.lax.conv_general_dilated(
        x, wc, window_strides=(1, 1),
        padding=[(_K - 1 - padding[0], _K - 1 - padding[0] + output_padding[0]),
                 (_K - 1 - padding[1], _K - 1 - padding[1] + output_padding[1])],
        lhs_dilation=stride,
        dimension_numbers=('NCHW', 'OIHW', 'NCHW'),
        precision=jax.lax.Precision.HIGHEST)
    return y + b[None, :, None, None]


def _ref_in(x, relu):
    m = jnp.mean(x, axis=(2, 3), keepdims=True)
    v = jnp.mean((x - m) ** 2, axis=(2, 3), keepdims=True)
    y = (x - m) * jax.lax.rsqrt(v + 1e-5)
    return jnp.maximum(y, 0.0) if relu else y


def convgennet_reference(x, params, num_res_blocks):
    h = jnp.pad(x, ((0, 0), (0, 0), (1, 1), (1, 1)), mode='edge')
    h = jnp.maximum(_ref_conv(h, params['conv0_w'], params['conv0_b'], (1, 1), (0, 2)), 0.0)
    h = _ref_in(_ref_conv(h, params['conv1_w'], params['conv1_b'], (2, 2), (1, 1)), True)
    h = _ref_in(_ref_conv(h, params['conv2_w'], params['conv2_b'], (2, 2), (1, 0)), True)
    for r in range(num_res_blocks):
        rp = params['res'][r]
        t = jnp.pad(h, ((0, 0), (0, 0), (1, 1), (1, 1)), mode='reflect')
        t = _ref_in(_ref_conv(t, rp['w1'], rp['b1'], (1, 1), (0, 0)), True)
        t = jnp.pad(t, ((0, 0), (0, 0), (1, 1), (1, 1)), mode='reflect')
        t = _ref_in(_ref_conv(t, rp['w2'], rp['b2'], (1, 1), (0, 0)), False)
        h = jnp.maximum(h + t, 0.0)
    h = _ref_in(_ref_deconv(h, params['deconv1_w'], params['deconv1_b'],
                            (2, 2), (1, 1), (1, 1)), True)
    h = _ref_in(_ref_deconv(h, params['deconv2_w'], params['deconv2_b'],
                            (2, 2), (1, 1), (0, 1)), True)
    h = jnp.pad(h, ((0, 0), (0, 0), (1, 1), (1, 1)), mode='edge')
    h = _ref_conv(h, params['convL_w'], params['convL_b'], (1, 1), (0, 0))
    return x + h


# ----------------------------------------------------------------------------
# Parameters & main
# ----------------------------------------------------------------------------

def _init_w(key, shape):
    fan_in = math.prod(shape[1:])
    return jax.random.normal(key, shape, jnp.float32) / math.sqrt(fan_in)


def init_params(key, nfilter, num_res_blocks, input_nc=1, output_nc=1):
    F = nfilter
    ks = iter(jax.random.split(key, 64))
    p = {
        'conv0_w': _init_w(next(ks), (F, input_nc, 3, 3)),
        'conv0_b': jnp.zeros((F,), jnp.float32),
        'conv1_w': _init_w(next(ks), (2 * F, F, 3, 3)),
        'conv1_b': jnp.zeros((2 * F,), jnp.float32),
        'conv2_w': _init_w(next(ks), (4 * F, 2 * F, 3, 3)),
        'conv2_b': jnp.zeros((4 * F,), jnp.float32),
        # ConvTranspose2d weight shape: (in_channels, out_channels, Kh, Kw)
        'deconv1_w': _init_w(next(ks), (4 * F, 2 * F, 3, 3)),
        'deconv1_b': jnp.zeros((2 * F,), jnp.float32),
        'deconv2_w': _init_w(next(ks), (2 * F, F, 3, 3)),
        'deconv2_b': jnp.zeros((F,), jnp.float32),
        'convL_w': _init_w(next(ks), (output_nc, F, 3, 3)),
        'convL_b': jnp.zeros((output_nc,), jnp.float32),
        'res': [],
    }
    for _ in range(num_res_blocks):
        p['res'].append({
            'w1': _init_w(next(ks), (4 * F, 4 * F, 3, 3)),
            'b1': jnp.zeros((4 * F,), jnp.float32),
            'w2': _init_w(next(ks), (4 * F, 4 * F, 3, 3)),
            'b2': jnp.zeros((4 * F,), jnp.float32),
        })
    return p


if __name__ == "__main__":
    key = jax.random.PRNGKey(0)
    kx, kp = jax.random.split(key)

    # Small shapes consistent with the module: (N, 1, SEQ_LEN, FEAT) with
    # SEQ_LEN % 4 == 3 and FEAT % 4 == 0 (original uses FEAT = 40).
    N, H, W = 2, 11, 16
    nfilter, num_res_blocks = 8, 2

    x = jax.random.normal(kx, (N, 1, H, W), jnp.float32)
    params = init_params(kp, nfilter, num_res_blocks)

    fwd = jax.jit(lambda xx, pp: convgennet_forward(xx, pp, num_res_blocks))
    out = jax.block_until_ready(fwd(x, params))

    ref_fn = jax.jit(lambda xx, pp: convgennet_reference(xx, pp, num_res_blocks))
    ref = jax.block_until_ready(ref_fn(x, params))

    assert out.shape == x.shape, (out.shape, x.shape)
    assert bool(jnp.all(jnp.isfinite(out)))
    # Kernel matmuls use bf16 operands with f32 accumulation, so deviation vs
    # the f32 HIGHEST-precision reference is expected to be O(1e-2) over ~10
    # conv layers; the mean-error bound keeps the check meaningful.
    max_err = float(jnp.max(jnp.abs(out - ref)))
    mean_err = float(jnp.mean(jnp.abs(out - ref)))
    assert max_err < 1.5e-1, (max_err, mean_err)
    assert mean_err < 2e-2, (max_err, mean_err)
    print("KERNEL_OK")
</pallas_src>

<mosaic_0001>
module attributes {stable_mosaic.version = 11 : i64} {
  func.func @_convgen_kernel(%arg0: i32, %arg1: memref<1x1x256xf32, #tpu.memory_space<vmem>>, %arg2: memref<256x2304xbf16, #tpu.memory_space<vmem>>, %arg3: memref<256x1152xbf16, #tpu.memory_space<vmem>>, %arg4: memref<128x1152xbf16, #tpu.memory_space<vmem>>, %arg5: memref<128x1152xbf16, #tpu.memory_space<vmem>>, %arg6: memref<128x1152xbf16, #tpu.memory_space<vmem>>, %arg7: memref<128x2304xbf16, #tpu.memory_space<vmem>>, %arg8: memref<256x2304xbf16, #tpu.memory_space<vmem>>, %arg9: memref<8x9xbf16, #tpu.memory_space<vmem>>, %arg10: memref<8x1xf32, #tpu.memory_space<vmem>>, %arg11: memref<16x72xbf16, #tpu.memory_space<vmem>>, %arg12: memref<16x1xf32, #tpu.memory_space<vmem>>, %arg13: memref<32x144xbf16, #tpu.memory_space<vmem>>, %arg14: memref<32x1xf32, #tpu.memory_space<vmem>>, %arg15: memref<2x32x288xbf16, #tpu.memory_space<vmem>>, %arg16: memref<2x32x1xf32, #tpu.memory_space<vmem>>, %arg17: memref<2x32x288xbf16, #tpu.memory_space<vmem>>, %arg18: memref<2x32x1xf32, #tpu.memory_space<vmem>>, %arg19: memref<16x288xbf16, #tpu.memory_space<vmem>>, %arg20: memref<16x1xf32, #tpu.memory_space<vmem>>, %arg21: memref<8x144xbf16, #tpu.memory_space<vmem>>, %arg22: memref<8x1xf32, #tpu.memory_space<vmem>>, %arg23: memref<1x72xbf16, #tpu.memory_space<vmem>>, %arg24: memref<1x1xf32, #tpu.memory_space<vmem>>, %arg25: memref<1x1x256xf32, #tpu.memory_space<vmem>>) attributes {dimension_semantics = [#tpu.dimension_semantics<parallel>], iteration_bounds = array<i64: 2>, scalar_prefetch = 0 : i64, scratch_operands = 0 : i64, tpu.core_type = #tpu.core_type<tc>, window_params = [{transform_indices = @transform_0, window_bounds = array<i64: 1, 1, 256>}, {pipeline_mode = #tpu.pipeline_mode<synchronous>, transform_indices = @transform_1, window_bounds = array<i64: 256, 2304>}, {pipeline_mode = #tpu.pipeline_mode<synchronous>, transform_indices = @transform_2, window_bounds = array<i64: 256, 1152>}, {pipeline_mode = #tpu.pipeline_mode<synchronous>, transform_indices = @transform_3, window_bounds = array<i64: 128, 1152>}, {pipeline_mode = #tpu.pipeline_mode<synchronous>, transform_indices = @transform_4, window_bounds = array<i64: 128, 1152>}, {pipeline_mode = #tpu.pipeline_mode<synchronous>, transform_indices = @transform_5, window_bounds = array<i64: 128, 1152>}, {pipeline_mode = #tpu.pipeline_mode<synchronous>, transform_indices = @transform_6, window_bounds = array<i64: 128, 2304>}, {pipeline_mode = #tpu.pipeline_mode<synchronous>, transform_indices = @transform_7, window_bounds = array<i64: 256, 2304>}, {pipeline_mode = #tpu.pipeline_mode<synchronous>, transform_indices = @transform_8, window_bounds = array<i64: 8, 9>}, {pipeline_mode = #tpu.pipeline_mode<synchronous>, transform_indices = @transform_9, window_bounds = array<i64: 8, 1>}, {pipeline_mode = #tpu.pipeline_mode<synchronous>, transform_indices = @transform_10, window_bounds = array<i64: 16, 72>}, {pipeline_mode = #tpu.pipeline_mode<synchronous>, transform_indices = @transform_11, window_bounds = array<i64: 16, 1>}, {pipeline_mode = #tpu.pipeline_mode<synchronous>, transform_indices = @transform_12, window_bounds = array<i64: 32, 144>}, {pipeline_mode = #tpu.pipeline_mode<synchronous>, transform_indices = @transform_13, window_bounds = array<i64: 32, 1>}, {pipeline_mode = #tpu.pipeline_mode<synchronous>, transform_indices = @transform_14, window_bounds = array<i64: 2, 32, 288>}, {pipeline_mode = #tpu.pipeline_mode<synchronous>, transform_indices = @transform_15, window_bounds = array<i64: 2, 32, 1>}, {pipeline_mode = #tpu.pipeline_mode<synchronous>, transform_indices = @transform_16, window_bounds = array<i64: 2, 32, 288>}, {pipeline_mode = #tpu.pipeline_mode<synchronous>, transform_indices = @transform_17, window_bounds = array<i64: 2, 32, 1>}, {pipeline_mode = #tpu.pipeline_mode<synchronous>, transform_indices = @transform_18, window_bounds = array<i64: 16, 288>}, {pipeline_mode = #tpu.pipeline_mode<synchronous>, transform_indices = @transform_19, window_bounds = array<i64: 16, 1>}, {pipeline_mode = #tpu.pipeline_mode<synchronous>, transform_indices = @transform_20, window_bounds = array<i64: 8, 144>}, {pipeline_mode = #tpu.pipeline_mode<synchronous>, transform_indices = @transform_21, window_bounds = array<i64: 8, 1>}, {pipeline_mode = #tpu.pipeline_mode<synchronous>, transform_indices = @transform_22, window_bounds = array<i64: 1, 72>}, {pipeline_mode = #tpu.pipeline_mode<synchronous>, transform_indices = @transform_23, window_bounds = array<i64: 1, 1>}, {transform_indices = @transform_24, window_bounds = array<i64: 1, 1, 256>}]} {
    %c0 = arith.constant 0 : index
    %c0_0 = arith.constant 0 : index
    %c0_1 = arith.constant 0 : index
    %0 = vector.load %arg1[%c0, %c0_0, %c0_1] : memref<1x1x256xf32, #tpu.memory_space<vmem>>, vector<1x1x256xf32>
    %1 = vector.shape_cast %0 : vector<1x1x256xf32> to vector<1x256xf32>
    %c0_2 = arith.constant 0 : index
    %c0_3 = arith.constant 0 : index
    %2 = vector.load %arg9[%c0_2, %c0_3] : memref<8x9xbf16, #tpu.memory_space<vmem>>, vector<8x9xbf16>
    %c0_4 = arith.constant 0 : index
    %c0_5 = arith.constant 0 : index
    %3 = vector.load %arg10[%c0_4, %c0_5] : memref<8x1xf32, #tpu.memory_space<vmem>>, vector<8x1xf32>
    %4 = arith.truncf %1 : vector<1x256xf32> to vector<1x256xbf16>
    %c0_6 = arith.constant 0 : index
    %c0_7 = arith.constant 0 : index
    %5 = vector.load %arg2[%c0_6, %c0_7] : memref<256x2304xbf16, #tpu.memory_space<vmem>>, vector<256x2304xbf16>
    %cst = arith.constant dense<0.000000e+00> : vector<1x2304xf32>
    %6 = tpu.matmul %4, %5, %cst {dimension_numbers = #tpu.dot_dimension_numbers<[1], [0], [0], [1], [0, 0, 1, 1], [], []>} : vector<1x256xbf16>, vector<256x2304xbf16>, vector<1x2304xf32> -> vector<1x2304xf32>
    %7 = vector.extract_strided_slice %2 {offsets = [0, 0], sizes = [8, 1], strides = [1, 1]} : vector<8x9xbf16> to vector<8x1xbf16>
    %8 = arith.extf %7 : vector<8x1xbf16> to vector<8x1xf32>
    %9 = vector.extract_strided_slice %6 {offsets = [0, 0], sizes = [1, 256], strides = [1, 1]} : vector<1x2304xf32> to vector<1x256xf32>
    %10 = vector.broadcast %8 : vector<8x1xf32> to vector<8x256xf32>
    %11 = vector.broadcast %9 : vector<1x256xf32> to vector<8x256xf32>
    %12 = arith.mulf %10, %11 : vector<8x256xf32>
    %13 = vector.broadcast %3 : vector<8x1xf32> to vector<8x256xf32>
    %14 = arith.addf %13, %12 : vector<8x256xf32>
    %15 = vector.extract_strided_slice %2 {offsets = [0, 1], sizes = [8, 1], strides = [1, 1]} : vector<8x9xbf16> to vector<8x1xbf16>
    %16 = arith.extf %15 : vector<8x1xbf16> to vector<8x1xf32>
    %17 = vector.extract_strided_slice %6 {offsets = [0, 256], sizes = [1, 256], strides = [1, 1]} : vector<1x2304xf32> to vector<1x256xf32>
    %18 = vector.broadcast %16 : vector<8x1xf32> to vector<8x256xf32>
    %19 = vector.broadcast %17 : vector<1x256xf32> to vector<8x256xf32>
    %20 = arith.mulf %18, %19 : vector<8x256xf32>
    %21 = arith.addf %14, %20 : vector<8x256xf32>
    %22 = vector.extract_strided_slice %2 {offsets = [0, 2], sizes = [8, 1], strides = [1, 1]} : vector<8x9xbf16> to vector<8x1xbf16>
    %23 = arith.extf %22 : vector<8x1xbf16> to vector<8x1xf32>
    %24 = vector.extract_strided_slice %6 {offsets = [0, 512], sizes = [1, 256], strides = [1, 1]} : vector<1x2304xf32> to vector<1x256xf32>
    %25 = vector.broadcast %23 : vector<8x1xf32> to vector<8x256xf32>
    %26 = vector.broadcast %24 : vector<1x256xf32> to vector<8x256xf32>
    %27 = arith.mulf %25, %26 : vector<8x256xf32>
    %28 = arith.addf %21, %27 : vector<8x256xf32>
    %29 = vector.extract_strided_slice %2 {offsets = [0, 3], sizes = [8, 1], strides = [1, 1]} : vector<8x9xbf16> to vector<8x1xbf16>
    %30 = arith.extf %29 : vector<8x1xbf16> to vector<8x1xf32>
    %31 = vector.extract_strided_slice %6 {offsets = [0, 768], sizes = [1, 256], strides = [1, 1]} : vector<1x2304xf32> to vector<1x256xf32>
    %32 = vector.broadcast %30 : vector<8x1xf32> to vector<8x256xf32>
    %33 = vector.broadcast %31 : vector<1x256xf32> to vector<8x256xf32>
    %34 = arith.mulf %32, %33 : vector<8x256xf32>
    %35 = arith.addf %28, %34 : vector<8x256xf32>
    %36 = vector.extract_strided_slice %2 {offsets = [0, 4], sizes = [8, 1], strides = [1, 1]} : vector<8x9xbf16> to vector<8x1xbf16>
    %37 = arith.extf %36 : vector<8x1xbf16> to vector<8x1xf32>
    %38 = vector.extract_strided_slice %6 {offsets = [0, 1024], sizes = [1, 256], strides = [1, 1]} : vector<1x2304xf32> to vector<1x256xf32>
    %39 = vector.broadcast %37 : vector<8x1xf32> to vector<8x256xf32>
    %40 = vector.broadcast %38 : vector<1x256xf32> to vector<8x256xf32>
    %41 = arith.mulf %39, %40 : vector<8x256xf32>
    %42 = arith.addf %35, %41 : vector<8x256xf32>
    %43 = vector.extract_strided_slice %2 {offsets = [0, 5], sizes = [8, 1], strides = [1, 1]} : vector<8x9xbf16> to vector<8x1xbf16>
    %44 = arith.extf %43 : vector<8x1xbf16> to vector<8x1xf32>
    %45 = vector.extract_strided_slice %6 {offsets = [0, 1280], sizes = [1, 256], strides = [1, 1]} : vector<1x2304xf32> to vector<1x256xf32>
    %46 = vector.broadcast %44 : vector<8x1xf32> to vector<8x256xf32>
    %47 = vector.broadcast %45 : vector<1x256xf32> to vector<8x256xf32>
    %48 = arith.mulf %46, %47 : vector<8x256xf32>
    %49 = arith.addf %42, %48 : vector<8x256xf32>
    %50 = vector.extract_strided_slice %2 {offsets = [0, 6], sizes = [8, 1], strides = [1, 1]} : vector<8x9xbf16> to vector<8x1xbf16>
    %51 = arith.extf %50 : vector<8x1xbf16> to vector<8x1xf32>
    %52 = vector.extract_strided_slice %6 {offsets = [0, 1536], sizes = [1, 256], strides = [1, 1]} : vector<1x2304xf32> to vector<1x256xf32>
    %53 = vector.broadcast %51 : vector<8x1xf32> to vector<8x256xf32>
    %54 = vector.broadcast %52 : vector<1x256xf32> to vector<8x256xf32>
    %55 = arith.mulf %53, %54 : vector<8x256xf32>
    %56 = arith.addf %49, %55 : vector<8x256xf32>
    %57 = vector.extract_strided_slice %2 {offsets = [0, 7], sizes = [8, 1], strides = [1, 1]} : vector<8x9xbf16> to vector<8x1xbf16>
    %58 = arith.extf %57 : vector<8x1xbf16> to vector<8x1xf32>
    %59 = vector.extract_strided_slice %6 {offsets = [0, 1792], sizes = [1, 256], strides = [1, 1]} : vector<1x2304xf32> to vector<1x256xf32>
    %60 = vector.broadcast %58 : vector<8x1xf32> to vector<8x256xf32>
    %61 = vector.broadcast %59 : vector<1x256xf32> to vector<8x256xf32>
    %62 = arith.mulf %60, %61 : vector<8x256xf32>
    %63 = arith.addf %56, %62 : vector<8x256xf32>
    %64 = vector.extract_strided_slice %2 {offsets = [0, 8], sizes = [8, 1], strides = [1, 1]} : vector<8x9xbf16> to vector<8x1xbf16>
    %65 = arith.extf %64 : vector<8x1xbf16> to vector<8x1xf32>
    %66 = vector.extract_strided_slice %6 {offsets = [0, 2048], sizes = [1, 256], strides = [1, 1]} : vector<1x2304xf32> to vector<1x256xf32>
    %67 = vector.broadcast %65 : vector<8x1xf32> to vector<8x256xf32>
    %68 = vector.broadcast %66 : vector<1x256xf32> to vector<8x256xf32>
    %69 = arith.mulf %67, %68 : vector<8x256xf32>
    %70 = arith.addf %63, %69 : vector<8x256xf32>
    %cst_8 = arith.constant 0.000000e+00 : f32
    %71 = vector.broadcast %cst_8 : f32 to vector<8x256xf32>
    %72 = arith.maximumf %70, %71 : vector<8x256xf32>
    %c0_9 = arith.constant 0 : index
    %c0_10 = arith.constant 0 : index
    %73 = vector.load %arg11[%c0_9, %c0_10] : memref<16x72xbf16, #tpu.memory_space<vmem>>, vector<16x72xbf16>
    %c0_11 = arith.constant 0 : index
    %c0_12 = arith.constant 0 : index
    %74 = vector.load %arg12[%c0_11, %c0_12] : memref<16x1xf32, #tpu.memory_space<vmem>>, vector<16x1xf32>
    %75 = arith.truncf %72 : vector<8x256xf32> to vector<8x256xbf16>
    %c0_13 = arith.constant 0 : index
    %c0_14 = arith.constant 0 : index
    %76 = vector.load %arg3[%c0_13, %c0_14] : memref<256x1152xbf16, #tpu.memory_space<vmem>>, vector<256x1152xbf16>
    %cst_15 = arith.constant dense<0.000000e+00> : vector<8x1152xf32>
    %77 = tpu.matmul %75, %76, %cst_15 {dimension_numbers = #tpu.dot_dimension_numbers<[1], [0], [0], [1], [0, 0, 1, 1], [], []>} : vector<8x256xbf16>, vector<256x1152xbf16>, vector<8x1152xf32> -> vector<8x1152xf32>
    %78 = vector.extract_strided_slice %77 {offsets = [0, 0], sizes = [8, 128], strides = [1, 1]} : vector<8x1152xf32> to vector<8x128xf32>
    %79 = vector.extract_strided_slice %77 {offsets = [0, 128], sizes = [8, 128], strides = [1, 1]} : vector<8x1152xf32> to vector<8x128xf32>
    %80 = vector.extract_strided_slice %77 {offsets = [0, 256], sizes = [8, 128], strides = [1, 1]} : vector<8x1152xf32> to vector<8x128xf32>
    %81 = vector.extract_strided_slice %77 {offsets = [0, 384], sizes = [8, 128], strides = [1, 1]} : vector<8x1152xf32> to vector<8x128xf32>
    %82 = vector.extract_strided_slice %77 {offsets = [0, 512], sizes = [8, 128], strides = [1, 1]} : vector<8x1152xf32> to vector<8x128xf32>
    %83 = vector.extract_strided_slice %77 {offsets = [0, 640], sizes = [8, 128], strides = [1, 1]} : vector<8x1152xf32> to vector<8x128xf32>
    %84 = vector.extract_strided_slice %77 {offsets = [0, 768], sizes = [8, 128], strides = [1, 1]} : vector<8x1152xf32> to vector<8x128xf32>
    %85 = vector.extract_strided_slice %77 {offsets = [0, 896], sizes = [8, 128], strides = [1, 1]} : vector<8x1152xf32> to vector<8x128xf32>
    %86 = vector.extract_strided_slice %77 {offsets = [0, 1024], sizes = [8, 128], strides = [1, 1]} : vector<8x1152xf32> to vector<8x128xf32>
    %87 = tpu.concatenate %78, %79, %80, %81, %82, %83, %84, %85, %86 in 0 : vector<8x128xf32>, vector<8x128xf32>, vector<8x128xf32>, vector<8x128xf32>, vector<8x128xf32>, vector<8x128xf32>, vector<8x128xf32>, vector<8x128xf32>, vector<8x128xf32> -> vector<72x128xf32>
    %88 = arith.truncf %87 : vector<72x128xf32> to vector<72x128xbf16>
    %cst_16 = arith.constant dense<0.000000e+00> : vector<16x128xf32>
    %89 = tpu.matmul %73, %88, %cst_16 {dimension_numbers = #tpu.dot_dimension_numbers<[1], [0], [0], [1], [0, 0, 1, 1], [], []>} : vector<16x72xbf16>, vector<72x128xbf16>, vector<16x128xf32> -> vector<16x128xf32>
    %90 = vector.broadcast %74 : vector<16x1xf32> to vector<16x128xf32>
    %91 = arith.addf %89, %90 : vector<16x128xf32>
    %92 = tpu.iota {dimensions = array<i32: 1>} : vector<1x128xi32>
    %c60_i32 = arith.constant 60 : i32
    %93 = vector.broadcast %c60_i32 : i32 to vector<1x128xi32>
    %94 = arith.cmpi slt, %92, %93 : vector<1x128xi32>
    %95 = arith.extui %94 : vector<1x128xi1> to vector<1x128xi32>
    %96 = arith.sitofp %95 : vector<1x128xi32> to vector<1x128xf32>
    %97 = vector.broadcast %96 : vector<1x128xf32> to vector<16x128xf32>
    %98 = arith.mulf %91, %97 : vector<16x128xf32>
    %cst_17 = arith.constant dense<0.000000e+00> : vector<16xf32>
    %99 = vector.multi_reduction <add>, %98, %cst_17 [1] : vector<16x128xf32> to vector<16xf32>
    %100 = vector.shape_cast %99 : vector<16xf32> to vector<16x1xf32>
    %cst_18 = arith.constant 0.0166666675 : f32
    %101 = vector.broadcast %cst_18 : f32 to vector<16x1xf32>
    %102 = arith.mulf %100, %101 : vector<16x1xf32>
    %103 = vector.broadcast %102 : vector<16x1xf32> to vector<16x128xf32>
    %104 = arith.subf %91, %103 : vector<16x128xf32>
    %105 = arith.mulf %104, %104 : vector<16x128xf32>
    %106 = vector.broadcast %96 : vector<1x128xf32> to vector<16x128xf32>
    %107 = arith.mulf %105, %106 : vector<16x128xf32>
    %cst_19 = arith.constant dense<0.000000e+00> : vector<16xf32>
    %108 = vector.multi_reduction <add>, %107, %cst_19 [1] : vector<16x128xf32> to vector<16xf32>
    %109 = vector.shape_cast %108 : vector<16xf32> to vector<16x1xf32>
    %cst_20 = arith.constant 0.0166666675 : f32
    %110 = vector.broadcast %cst_20 : f32 to vector<16x1xf32>
    %111 = arith.mulf %109, %110 : vector<16x1xf32>
    %cst_21 = arith.constant 9.99999974E-6 : f32
    %112 = vector.broadcast %cst_21 : f32 to vector<16x1xf32>
    %113 = arith.addf %111, %112 : vector<16x1xf32>
    %114 = math.rsqrt %113 : vector<16x1xf32>
    %115 = vector.broadcast %114 : vector<16x1xf32> to vector<16x128xf32>
    %116 = arith.mulf %104, %115 : vector<16x128xf32>
    %cst_22 = arith.constant 0.000000e+00 : f32
    %117 = vector.broadcast %cst_22 : f32 to vector<16x128xf32>
    %118 = arith.maximumf %116, %117 : vector<16x128xf32>
    %c0_23 = arith.constant 0 : index
    %c0_24 = arith.constant 0 : index
    %119 = vector.load %arg13[%c0_23, %c0_24] : memref<32x144xbf16, #tpu.memory_space<vmem>>, vector<32x144xbf16>
    %c0_25 = arith.constant 0 : index
    %c0_26 = arith.constant 0 : index
    %120 = vector.load %arg14[%c0_25, %c0_26] : memref<32x1xf32, #tpu.memory_space<vmem>>, vector<32x1xf32>
    %121 = arith.truncf %118 : vector<16x128xf32> to vector<16x128xbf16>
    %c0_27 = arith.constant 0 : index
    %c0_28 = arith.constant 0 : index
    %122 = vector.load %arg4[%c0_27, %c0_28] : memref<128x1152xbf16, #tpu.memory_space<vmem>>, vector<128x1152xbf16>
    %cst_29 = arith.constant dense<0.000000e+00> : vector<16x1152xf32>
    %123 = tpu.matmul %121, %122, %cst_29 {dimension_numbers = #tpu.dot_dimension_numbers<[1], [0], [0], [1], [0, 0, 1, 1], [], []>} : vector<16x128xbf16>, vector<128x1152xbf16>, vector<16x1152xf32> -> vector<16x1152xf32>
    %124 = vector.extract_strided_slice %123 {offsets = [0, 0], sizes = [16, 128], strides = [1, 1]} : vector<16x1152xf32> to vector<16x128xf32>
    %125 = vector.extract_strided_slice %123 {offsets = [0, 128], sizes = [16, 128], strides = [1, 1]} : vector<16x1152xf32> to vector<16x128xf32>
    %126 = vector.extract_strided_slice %123 {offsets = [0, 256], sizes = [16, 128], strides = [1, 1]} : vector<16x1152xf32> to vector<16x128xf32>
    %127 = vector.extract_strided_slice %123 {offsets = [0, 384], sizes = [16, 128], strides = [1, 1]} : vector<16x1152xf32> to vector<16x128xf32>
    %128 = vector.extract_strided_slice %123 {offsets = [0, 512], sizes = [16, 128], strides = [1, 1]} : vector<16x1152xf32> to vector<16x128xf32>
    %129 = vector.extract_strided_slice %123 {offsets = [0, 640], sizes = [16, 128], strides = [1, 1]} : vector<16x1152xf32> to vector<16x128xf32>
    %130 = vector.extract_strided_slice %123 {offsets = [0, 768], sizes = [16, 128], strides = [1, 1]} : vector<16x1152xf32> to vector<16x128xf32>
    %131 = vector.extract_strided_slice %123 {offsets = [0, 896], sizes = [16, 128], strides = [1, 1]} : vector<16x1152xf32> to vector<16x128xf32>
    %132 = vector.extract_strided_slice %123 {offsets = [0, 1024], sizes = [16, 128], strides = [1, 1]} : vector<16x1152xf32> to vector<16x128xf32>
    %133 = tpu.concatenate %124, %125, %126, %127, %128, %129, %130, %131, %132 in 0 : vector<16x128xf32>, vector<16x128xf32>, vector<16x128xf32>, vector<16x128xf32>, vector<16x128xf32>, vector<16x128xf32>, vector<16x128xf32>, vector<16x128xf32>, vector<16x128xf32> -> vector<144x128xf32>
    %134 = arith.truncf %133 : vector<144x128xf32> to vector<144x128xbf16>
    %cst_30 = arith.constant dense<0.000000e+00> : vector<32x128xf32>
    %135 = tpu.matmul %119, %134, %cst_30 {dimension_numbers = #tpu.dot_dimension_numbers<[1], [0], [0], [1], [0, 0, 1, 1], [], []>} : vector<32x144xbf16>, vector<144x128xbf16>, vector<32x128xf32> -> vector<32x128xf32>
    %136 = vector.broadcast %120 : vector<32x1xf32> to vector<32x128xf32>
    %137 = arith.addf %135, %136 : vector<32x128xf32>
    %138 = tpu.iota {dimensions = array<i32: 1>} : vector<1x128xi32>
    %c12_i32 = arith.constant 12 : i32
    %139 = vector.broadcast %c12_i32 : i32 to vector<1x128xi32>
    %140 = arith.cmpi slt, %138, %139 : vector<1x128xi32>
    %141 = arith.extui %140 : vector<1x128xi1> to vector<1x128xi32>
    %142 = arith.sitofp %141 : vector<1x128xi32> to vector<1x128xf32>
    %143 = vector.broadcast %142 : vector<1x128xf32> to vector<32x128xf32>
    %144 = arith.mulf %137, %143 : vector<32x128xf32>
    %cst_31 = arith.constant dense<0.000000e+00> : vector<32xf32>
    %145 = vector.multi_reduction <add>, %144, %cst_31 [1] : vector<32x128xf32> to vector<32xf32>
    %146 = vector.shape_cast %145 : vector<32xf32> to vector<32x1xf32>
    %cst_32 = arith.constant 0.0833333358 : f32
    %147 = vector.broadcast %cst_32 : f32 to vector<32x1xf32>
    %148 = arith.mulf %146, %147 : vector<32x1xf32>
    %149 = vector.broadcast %148 : vector<32x1xf32> to vector<32x128xf32>
    %150 = arith.subf %137, %149 : vector<32x128xf32>
    %151 = arith.mulf %150, %150 : vector<32x128xf32>
    %152 = vector.broadcast %142 : vector<1x128xf32> to vector<32x128xf32>
    %153 = arith.mulf %151, %152 : vector<32x128xf32>
    %cst_33 = arith.constant dense<0.000000e+00> : vector<32xf32>
    %154 = vector.multi_reduction <add>, %153, %cst_33 [1] : vector<32x128xf32> to vector<32xf32>
    %155 = vector.shape_cast %154 : vector<32xf32> to vector<32x1xf32>
    %cst_34 = arith.constant 0.0833333358 : f32
    %156 = vector.broadcast %cst_34 : f32 to vector<32x1xf32>
    %157 = arith.mulf %155, %156 : vector<32x1xf32>
    %cst_35 = arith.constant 9.99999974E-6 : f32
    %158 = vector.broadcast %cst_35 : f32 to vector<32x1xf32>
    %159 = arith.addf %157, %158 : vector<32x1xf32>
    %160 = math.rsqrt %159 : vector<32x1xf32>
    %161 = vector.broadcast %160 : vector<32x1xf32> to vector<32x128xf32>
    %162 = arith.mulf %150, %161 : vector<32x128xf32>
    %cst_36 = arith.constant 0.000000e+00 : f32
    %163 = vector.broadcast %cst_36 : f32 to vector<32x128xf32>
    %164 = arith.maximumf %162, %163 : vector<32x128xf32>
    %c0_i32 = arith.constant 0 : i32
    %c2_i32 = arith.constant 2 : i32
    %165 = arith.addi %c0_i32, %c2_i32 : i32
    %c1_i32 = arith.constant 1 : i32
    %166 = scf.for %arg26 = %c0_i32 to %165 step %c1_i32 iter_args(%arg27 = %164) -> (vector<32x128xf32>)  : i32 {
      %282 = arith.index_cast %arg26 : i32 to index
      %c0_77 = arith.constant 0 : index
      %c0_78 = arith.constant 0 : index
      %283 = vector.load %arg15[%282, %c0_77, %c0_78] : memref<2x32x288xbf16, #tpu.memory_space<vmem>>, vector<1x32x288xbf16>
      %284 = vector.shape_cast %283 : vector<1x32x288xbf16> to vector<32x288xbf16>
      %285 = arith.index_cast %arg26 : i32 to index
      %c0_79 = arith.constant 0 : index
      %c0_80 = arith.constant 0 : index
      %286 = vector.load %arg16[%285, %c0_79, %c0_80] : memref<2x32x1xf32, #tpu.memory_space<vmem>>, vector<1x32x1xf32>
      %287 = vector.shape_cast %286 : vector<1x32x1xf32> to vector<32x1xf32>
      %288 = arith.truncf %arg27 : vector<32x128xf32> to vector<32x128xbf16>
      %c0_81 = arith.constant 0 : index
      %c0_82 = arith.constant 0 : index
      %289 = vector.load %arg5[%c0_81, %c0_82] : memref<128x1152xbf16, #tpu.memory_space<vmem>>, vector<128x1152xbf16>
      %cst_83 = arith.constant dense<0.000000e+00> : vector<32x1152xf32>
      %290 = tpu.matmul %288, %289, %cst_83 {dimension_numbers = #tpu.dot_dimension_numbers<[1], [0], [0], [1], [0, 0, 1, 1], [], []>} : vector<32x128xbf16>, vector<128x1152xbf16>, vector<32x1152xf32> -> vector<32x1152xf32>
      %291 = vector.extract_strided_slice %290 {offsets = [0, 0], sizes = [32, 128], strides = [1, 1]} : vector<32x1152xf32> to vector<32x128xf32>
      %292 = vector.extract_strided_slice %290 {offsets = [0, 128], sizes = [32, 128], strides = [1, 1]} : vector<32x1152xf32> to vector<32x128xf32>
      %293 = vector.extract_strided_slice %290 {offsets = [0, 256], sizes = [32, 128], strides = [1, 1]} : vector<32x1152xf32> to vector<32x128xf32>
      %294 = vector.extract_strided_slice %290 {offsets = [0, 384], sizes = [32, 128], strides = [1, 1]} : vector<32x1152xf32> to vector<32x128xf32>
      %295 = vector.extract_strided_slice %290 {offsets = [0, 512], sizes = [32, 128], strides = [1, 1]} : vector<32x1152xf32> to vector<32x128xf32>
      %296 = vector.extract_strided_slice %290 {offsets = [0, 640], sizes = [32, 128], strides = [1, 1]} : vector<32x1152xf32> to vector<32x128xf32>
      %297 = vector.extract_strided_slice %290 {offsets = [0, 768], sizes = [32, 128], strides = [1, 1]} : vector<32x1152xf32> to vector<32x128xf32>
      %298 = vector.extract_strided_slice %290 {offsets = [0, 896], sizes = [32, 128], strides = [1, 1]} : vector<32x1152xf32> to vector<32x128xf32>
      %299 = vector.extract_strided_slice %290 {offsets = [0, 1024], sizes = [32, 128], strides = [1, 1]} : vector<32x1152xf32> to vector<32x128xf32>
      %300 = tpu.concatenate %291, %292, %293, %294, %295, %296, %297, %298, %299 in 0 : vector<32x128xf32>, vector<32x128xf32>, vector<32x128xf32>, vector<32x128xf32>, vector<32x128xf32>, vector<32x128xf32>, vector<32x128xf32>, vector<32x128xf32>, vector<32x128xf32> -> vector<288x128xf32>
      %301 = arith.truncf %300 : vector<288x128xf32> to vector<288x128xbf16>
      %cst_84 = arith.constant dense<0.000000e+00> : vector<32x128xf32>
      %302 = tpu.matmul %284, %301, %cst_84 {dimension_numbers = #tpu.dot_dimension_numbers<[1], [0], [0], [1], [0, 0, 1, 1], [], []>} : vector<32x288xbf16>, vector<288x128xbf16>, vector<32x128xf32> -> vector<32x128xf32>
      %303 = vector.broadcast %287 : vector<32x1xf32> to vector<32x128xf32>
      %304 = arith.addf %302, %303 : vector<32x128xf32>
      %305 = tpu.iota {dimensions = array<i32: 1>} : vector<1x128xi32>
      %c12_i32_85 = arith.constant 12 : i32
      %306 = vector.broadcast %c12_i32_85 : i32 to vector<1x128xi32>
      %307 = arith.cmpi slt, %305, %306 : vector<1x128xi32>
      %308 = arith.extui %307 : vector<1x128xi1> to vector<1x128xi32>
      %309 = arith.sitofp %308 : vector<1x128xi32> to vector<1x128xf32>
      %310 = vector.broadcast %309 : vector<1x128xf32> to vector<32x128xf32>
      %311 = arith.mulf %304, %310 : vector<32x128xf32>
      %cst_86 = arith.constant dense<0.000000e+00> : vector<32xf32>
      %312 = vector.multi_reduction <add>, %311, %cst_86 [1] : vector<32x128xf32> to vector<32xf32>
      %313 = vector.shape_cast %312 : vector<32xf32> to vector<32x1xf32>
      %cst_87 = arith.constant 0.0833333358 : f32
      %314 = vector.broadcast %cst_87 : f32 to vector<32x1xf32>
      %315 = arith.mulf %313, %314 : vector<32x1xf32>
      %316 = vector.broadcast %315 : vector<32x1xf32> to vector<32x128xf32>
      %317 = arith.subf %304, %316 : vector<32x128xf32>
      %318 = arith.mulf %317, %317 : vector<32x128xf32>
      %319 = vector.broadcast %309 : vector<1x128xf32> to vector<32x128xf32>
      %320 = arith.mulf %318, %319 : vector<32x128xf32>
      %cst_88 = arith.constant dense<0.000000e+00> : vector<32xf32>
      %321 = vector.multi_reduction <add>, %320, %cst_88 [1] : vector<32x128xf32> to vector<32xf32>
      %322 = vector.shape_cast %321 : vector<32xf32> to vector<32x1xf32>
      %cst_89 = arith.constant 0.0833333358 : f32
      %323 = vector.broadcast %cst_89 : f32 to vector<32x1xf32>
      %324 = arith.mulf %322, %323 : vector<32x1xf32>
      %cst_90 = arith.constant 9.99999974E-6 : f32
      %325 = vector.broadcast %cst_90 : f32 to vector<32x1xf32>
      %326 = arith.addf %324, %325 : vector<32x1xf32>
      %327 = math.rsqrt %326 : vector<32x1xf32>
      %328 = vector.broadcast %327 : vector<32x1xf32> to vector<32x128xf32>
      %329 = arith.mulf %317, %328 : vector<32x128xf32>
      %cst_91 = arith.constant 0.000000e+00 : f32
      %330 = vector.broadcast %cst_91 : f32 to vector<32x128xf32>
      %331 = arith.maximumf %329, %330 : vector<32x128xf32>
      %332 = arith.index_cast %arg26 : i32 to index
      %c0_92 = arith.constant 0 : index
      %c0_93 = arith.constant 0 : index
      %333 = vector.load %arg17[%332, %c0_92, %c0_93] : memref<2x32x288xbf16, #tpu.memory_space<vmem>>, vector<1x32x288xbf16>
      %334 = vector.shape_cast %333 : vector<1x32x288xbf16> to vector<32x288xbf16>
      %335 = arith.index_cast %arg26 : i32 to index
      %c0_94 = arith.constant 0 : index
      %c0_95 = arith.constant 0 : index
      %336 = vector.load %arg18[%335, %c0_94, %c0_95] : memref<2x32x1xf32, #tpu.memory_space<vmem>>, vector<1x32x1xf32>
      %337 = vector.shape_cast %336 : vector<1x32x1xf32> to vector<32x1xf32>
      %338 = arith.truncf %331 : vector<32x128xf32> to vector<32x128xbf16>
      %c0_96 = arith.constant 0 : index
      %c0_97 = arith.constant 0 : index
      %339 = vector.load %arg5[%c0_96, %c0_97] : memref<128x1152xbf16, #tpu.memory_space<vmem>>, vector<128x1152xbf16>
      %cst_98 = arith.constant dense<0.000000e+00> : vector<32x1152xf32>
      %340 = tpu.matmul %338, %339, %cst_98 {dimension_numbers = #tpu.dot_dimension_numbers<[1], [0], [0], [1], [0, 0, 1, 1], [], []>} : vector<32x128xbf16>, vector<128x1152xbf16>, vector<32x1152xf32> -> vector<32x1152xf32>
      %341 = vector.extract_strided_slice %340 {offsets = [0, 0], sizes = [32, 128], strides = [1, 1]} : vector<32x1152xf32> to vector<32x128xf32>
      %342 = vector.extract_strided_slice %340 {offsets = [0, 128], sizes = [32, 128], strides = [1, 1]} : vector<32x1152xf32> to vector<32x128xf32>
      %343 = vector.extract_strided_slice %340 {offsets = [0, 256], sizes = [32, 128], strides = [1, 1]} : vector<32x1152xf32> to vector<32x128xf32>
      %344 = vector.extract_strided_slice %340 {offsets = [0, 384], sizes = [32, 128], strides = [1, 1]} : vector<32x1152xf32> to vector<32x128xf32>
      %345 = vector.extract_strided_slice %340 {offsets = [0, 512], sizes = [32, 128], strides = [1, 1]} : vector<32x1152xf32> to vector<32x128xf32>
      %346 = vector.extract_strided_slice %340 {offsets = [0, 640], sizes = [32, 128], strides = [1, 1]} : vector<32x1152xf32> to vector<32x128xf32>
      %347 = vector.extract_strided_slice %340 {offsets = [0, 768], sizes = [32, 128], strides = [1, 1]} : vector<32x1152xf32> to vector<32x128xf32>
      %348 = vector.extract_strided_slice %340 {offsets = [0, 896], sizes = [32, 128], strides = [1, 1]} : vector<32x1152xf32> to vector<32x128xf32>
      %349 = vector.extract_strided_slice %340 {offsets = [0, 1024], sizes = [32, 128], strides = [1, 1]} : vector<32x1152xf32> to vector<32x128xf32>
      %350 = tpu.concatenate %341, %342, %343, %344, %345, %346, %347, %348, %349 in 0 : vector<32x128xf32>, vector<32x128xf32>, vector<32x128xf32>, vector<32x128xf32>, vector<32x128xf32>, vector<32x128xf32>, vector<32x128xf32>, vector<32x128xf32>, vector<32x128xf32> -> vector<288x128xf32>
      %351 = arith.truncf %350 : vector<288x128xf32> to vector<288x128xbf16>
      %cst_99 = arith.constant dense<0.000000e+00> : vector<32x128xf32>
      %352 = tpu.matmul %334, %351, %cst_99 {dimension_numbers = #tpu.dot_dimension_numbers<[1], [0], [0], [1], [0, 0, 1, 1], [], []>} : vector<32x288xbf16>, vector<288x128xbf16>, vector<32x128xf32> -> vector<32x128xf32>
      %353 = vector.broadcast %337 : vector<32x1xf32> to vector<32x128xf32>
      %354 = arith.addf %352, %353 : vector<32x128xf32>
      %355 = tpu.iota {dimensions = array<i32: 1>} : vector<1x128xi32>
      %c12_i32_100 = arith.constant 12 : i32
      %356 = vector.broadcast %c12_i32_100 : i32 to vector<1x128xi32>
      %357 = arith.cmpi slt, %355, %356 : vector<1x128xi32>
      %358 = arith.extui %357 : vector<1x128xi1> to vector<1x128xi32>
      %359 = arith.sitofp %358 : vector<1x128xi32> to vector<1x128xf32>
      %360 = vector.broadcast %359 : vector<1x128xf32> to vector<32x128xf32>
      %361 = arith.mulf %354, %360 : vector<32x128xf32>
      %cst_101 = arith.constant dense<0.000000e+00> : vector<32xf32>
      %362 = vector.multi_reduction <add>, %361, %cst_101 [1] : vector<32x128xf32> to vector<32xf32>
      %363 = vector.shape_cast %362 : vector<32xf32> to vector<32x1xf32>
      %cst_102 = arith.constant 0.0833333358 : f32
      %364 = vector.broadcast %cst_102 : f32 to vector<32x1xf32>
      %365 = arith.mulf %363, %364 : vector<32x1xf32>
      %366 = vector.broadcast %365 : vector<32x1xf32> to vector<32x128xf32>
      %367 = arith.subf %354, %366 : vector<32x128xf32>
      %368 = arith.mulf %367, %367 : vector<32x128xf32>
      %369 = vector.broadcast %359 : vector<1x128xf32> to vector<32x128xf32>
      %370 = arith.mulf %368, %369 : vector<32x128xf32>
      %cst_103 = arith.constant dense<0.000000e+00> : vector<32xf32>
      %371 = vector.multi_reduction <add>, %370, %cst_103 [1] : vector<32x128xf32> to vector<32xf32>
      %372 = vector.shape_cast %371 : vector<32xf32> to vector<32x1xf32>
      %cst_104 = arith.constant 0.0833333358 : f32
      %373 = vector.broadcast %cst_104 : f32 to vector<32x1xf32>
      %374 = arith.mulf %372, %373 : vector<32x1xf32>
      %cst_105 = arith.constant 9.99999974E-6 : f32
      %375 = vector.broadcast %cst_105 : f32 to vector<32x1xf32>
      %376 = arith.addf %374, %375 : vector<32x1xf32>
      %377 = math.rsqrt %376 : vector<32x1xf32>
      %378 = vector.broadcast %377 : vector<32x1xf32> to vector<32x128xf32>
      %379 = arith.mulf %367, %378 : vector<32x128xf32>
      %380 = arith.addf %arg27, %379 : vector<32x128xf32>
      %cst_106 = arith.constant 0.000000e+00 : f32
      %381 = vector.broadcast %cst_106 : f32 to vector<32x128xf32>
      %382 = arith.maximumf %380, %381 : vector<32x128xf32>
      scf.yield %382 : vector<32x128xf32>
    }
    %c2_i32_37 = arith.constant 2 : i32
    %c0_38 = arith.constant 0 : index
    %c0_39 = arith.constant 0 : index
    %167 = vector.load %arg19[%c0_38, %c0_39] : memref<16x288xbf16, #tpu.memory_space<vmem>>, vector<16x288xbf16>
    %c0_40 = arith.constant 0 : index
    %c0_41 = arith.constant 0 : index
    %168 = vector.load %arg20[%c0_40, %c0_41] : memref<16x1xf32, #tpu.memory_space<vmem>>, vector<16x1xf32>
    %169 = arith.truncf %166 : vector<32x128xf32> to vector<32x128xbf16>
    %c0_42 = arith.constant 0 : index
    %c0_43 = arith.constant 0 : index
    %170 = vector.load %arg6[%c0_42, %c0_43] : memref<128x1152xbf16, #tpu.memory_space<vmem>>, vector<128x1152xbf16>
    %cst_44 = arith.constant dense<0.000000e+00> : vector<32x1152xf32>
    %171 = tpu.matmul %169, %170, %cst_44 {dimension_numbers = #tpu.dot_dimension_numbers<[1], [0], [0], [1], [0, 0, 1, 1], [], []>} : vector<32x128xbf16>, vector<128x1152xbf16>, vector<32x1152xf32> -> vector<32x1152xf32>
    %172 = vector.extract_strided_slice %171 {offsets = [0, 0], sizes = [32, 128], strides = [1, 1]} : vector<32x1152xf32> to vector<32x128xf32>
    %173 = vector.extract_strided_slice %171 {offsets = [0, 128], sizes = [32, 128], strides = [1, 1]} : vector<32x1152xf32> to vector<32x128xf32>
    %174 = vector.extract_strided_slice %171 {offsets = [0, 256], sizes = [32, 128], strides = [1, 1]} : vector<32x1152xf32> to vector<32x128xf32>
    %175 = vector.extract_strided_slice %171 {offsets = [0, 384], sizes = [32, 128], strides = [1, 1]} : vector<32x1152xf32> to vector<32x128xf32>
    %176 = vector.extract_strided_slice %171 {offsets = [0, 512], sizes = [32, 128], strides = [1, 1]} : vector<32x1152xf32> to vector<32x128xf32>
    %177 = vector.extract_strided_slice %171 {offsets = [0, 640], sizes = [32, 128], strides = [1, 1]} : vector<32x1152xf32> to vector<32x128xf32>
    %178 = vector.extract_strided_slice %171 {offsets = [0, 768], sizes = [32, 128], strides = [1, 1]} : vector<32x1152xf32> to vector<32x128xf32>
    %179 = vector.extract_strided_slice %171 {offsets = [0, 896], sizes = [32, 128], strides = [1, 1]} : vector<32x1152xf32> to vector<32x128xf32>
    %180 = vector.extract_strided_slice %171 {offsets = [0, 1024], sizes = [32, 128], strides = [1, 1]} : vector<32x1152xf32> to vector<32x128xf32>
    %181 = tpu.concatenate %172, %173, %174, %175, %176, %177, %178, %179, %180 in 0 : vector<32x128xf32>, vector<32x128xf32>, vector<32x128xf32>, vector<32x128xf32>, vector<32x128xf32>, vector<32x128xf32>, vector<32x128xf32>, vector<32x128xf32>, vector<32x128xf32> -> vector<288x128xf32>
    %182 = arith.truncf %181 : vector<288x128xf32> to vector<288x128xbf16>
    %cst_45 = arith.constant dense<0.000000e+00> : vector<16x128xf32>
    %183 = tpu.matmul %167, %182, %cst_45 {dimension_numbers = #tpu.dot_dimension_numbers<[1], [0], [0], [1], [0, 0, 1, 1], [], []>} : vector<16x288xbf16>, vector<288x128xbf16>, vector<16x128xf32> -> vector<16x128xf32>
    %184 = vector.broadcast %168 : vector<16x1xf32> to vector<16x128xf32>
    %185 = arith.addf %183, %184 : vector<16x128xf32>
    %186 = tpu.iota {dimensions = array<i32: 1>} : vector<1x128xi32>
    %c48_i32 = arith.constant 48 : i32
    %187 = vector.broadcast %c48_i32 : i32 to vector<1x128xi32>
    %188 = arith.cmpi slt, %186, %187 : vector<1x128xi32>
    %189 = arith.extui %188 : vector<1x128xi1> to vector<1x128xi32>
    %190 = arith.sitofp %189 : vector<1x128xi32> to vector<1x128xf32>
    %191 = vector.broadcast %190 : vector<1x128xf32> to vector<16x128xf32>
    %192 = arith.mulf %185, %191 : vector<16x128xf32>
    %cst_46 = arith.constant dense<0.000000e+00> : vector<16xf32>
    %193 = vector.multi_reduction <add>, %192, %cst_46 [1] : vector<16x128xf32> to vector<16xf32>
    %194 = vector.shape_cast %193 : vector<16xf32> to vector<16x1xf32>
    %cst_47 = arith.constant 0.020833334 : f32
    %195 = vector.broadcast %cst_47 : f32 to vector<16x1xf32>
    %196 = arith.mulf %194, %195 : vector<16x1xf32>
    %197 = vector.broadcast %196 : vector<16x1xf32> to vector<16x128xf32>
    %198 = arith.subf %185, %197 : vector<16x128xf32>
    %199 = arith.mulf %198, %198 : vector<16x128xf32>
    %200 = vector.broadcast %190 : vector<1x128xf32> to vector<16x128xf32>
    %201 = arith.mulf %199, %200 : vector<16x128xf32>
    %cst_48 = arith.constant dense<0.000000e+00> : vector<16xf32>
    %202 = vector.multi_reduction <add>, %201, %cst_48 [1] : vector<16x128xf32> to vector<16xf32>
    %203 = vector.shape_cast %202 : vector<16xf32> to vector<16x1xf32>
    %cst_49 = arith.constant 0.020833334 : f32
    %204 = vector.broadcast %cst_49 : f32 to vector<16x1xf32>
    %205 = arith.mulf %203, %204 : vector<16x1xf32>
    %cst_50 = arith.constant 9.99999974E-6 : f32
    %206 = vector.broadcast %cst_50 : f32 to vector<16x1xf32>
    %207 = arith.addf %205, %206 : vector<16x1xf32>
    %208 = math.rsqrt %207 : vector<16x1xf32>
    %209 = vector.broadcast %208 : vector<16x1xf32> to vector<16x128xf32>
    %210 = arith.mulf %198, %209 : vector<16x128xf32>
    %cst_51 = arith.constant 0.000000e+00 : f32
    %211 = vector.broadcast %cst_51 : f32 to vector<16x128xf32>
    %212 = arith.maximumf %210, %211 : vector<16x128xf32>
    %c0_52 = arith.constant 0 : index
    %c0_53 = arith.constant 0 : index
    %213 = vector.load %arg21[%c0_52, %c0_53] : memref<8x144xbf16, #tpu.memory_space<vmem>>, vector<8x144xbf16>
    %c0_54 = arith.constant 0 : index
    %c0_55 = arith.constant 0 : index
    %214 = vector.load %arg22[%c0_54, %c0_55] : memref<8x1xf32, #tpu.memory_space<vmem>>, vector<8x1xf32>
    %215 = arith.truncf %212 : vector<16x128xf32> to vector<16x128xbf16>
    %c0_56 = arith.constant 0 : index
    %c0_57 = arith.constant 0 : index
    %216 = vector.load %arg7[%c0_56, %c0_57] : memref<128x2304xbf16, #tpu.memory_space<vmem>>, vector<128x2304xbf16>
    %cst_58 = arith.constant dense<0.000000e+00> : vector<16x2304xf32>
    %217 = tpu.matmul %215, %216, %cst_58 {dimension_numbers = #tpu.dot_dimension_numbers<[1], [0], [0], [1], [0, 0, 1, 1], [], []>} : vector<16x128xbf16>, vector<128x2304xbf16>, vector<16x2304xf32> -> vector<16x2304xf32>
    %218 = vector.extract_strided_slice %217 {offsets = [0, 0], sizes = [16, 256], strides = [1, 1]} : vector<16x2304xf32> to vector<16x256xf32>
    %219 = vector.extract_strided_slice %217 {offsets = [0, 256], sizes = [16, 256], strides = [1, 1]} : vector<16x2304xf32> to vector<16x256xf32>
    %220 = vector.extract_strided_slice %217 {offsets = [0, 512], sizes = [16, 256], strides = [1, 1]} : vector<16x2304xf32> to vector<16x256xf32>
    %221 = vector.extract_strided_slice %217 {offsets = [0, 768], sizes = [16, 256], strides = [1, 1]} : vector<16x2304xf32> to vector<16x256xf32>
    %222 = vector.extract_strided_slice %217 {offsets = [0, 1024], sizes = [16, 256], strides = [1, 1]} : vector<16x2304xf32> to vector<16x256xf32>
    %223 = vector.extract_strided_slice %217 {offsets = [0, 1280], sizes = [16, 256], strides = [1, 1]} : vector<16x2304xf32> to vector<16x256xf32>
    %224 = vector.extract_strided_slice %217 {offsets = [0, 1536], sizes = [16, 256], strides = [1, 1]} : vector<16x2304xf32> to vector<16x256xf32>
    %225 = vector.extract_strided_slice %217 {offsets = [0, 1792], sizes = [16, 256], strides = [1, 1]} : vector<16x2304xf32> to vector<16x256xf32>
    %226 = vector.extract_strided_slice %217 {offsets = [0, 2048], sizes = [16, 256], strides = [1, 1]} : vector<16x2304xf32> to vector<16x256xf32>
    %227 = tpu.concatenate %218, %219, %220, %221, %222, %223, %224, %225, %226 in 0 : vector<16x256xf32>, vector<16x256xf32>, vector<16x256xf32>, vector<16x256xf32>, vector<16x256xf32>, vector<16x256xf32>, vector<16x256xf32>, vector<16x256xf32>, vector<16x256xf32> -> vector<144x256xf32>
    %228 = arith.truncf %227 : vector<144x256xf32> to vector<144x256xbf16>
    %cst_59 = arith.constant dense<0.000000e+00> : vector<8x256xf32>
    %229 = tpu.matmul %213, %228, %cst_59 {dimension_numbers = #tpu.dot_dimension_numbers<[1], [0], [0], [1], [0, 0, 1, 1], [], []>} : vector<8x144xbf16>, vector<144x256xbf16>, vector<8x256xf32> -> vector<8x256xf32>
    %230 = vector.broadcast %214 : vector<8x1xf32> to vector<8x256xf32>
    %231 = arith.addf %229, %230 : vector<8x256xf32>
    %232 = tpu.iota {dimensions = array<i32: 1>} : vector<1x256xi32>
    %c176_i32 = arith.constant 176 : i32
    %233 = vector.broadcast %c176_i32 : i32 to vector<1x256xi32>
    %234 = arith.cmpi slt, %232, %233 : vector<1x256xi32>
    %235 = arith.extui %234 : vector<1x256xi1> to vector<1x256xi32>
    %236 = arith.sitofp %235 : vector<1x256xi32> to vector<1x256xf32>
    %237 = vector.broadcast %236 : vector<1x256xf32> to vector<8x256xf32>
    %238 = arith.mulf %231, %237 : vector<8x256xf32>
    %cst_60 = arith.constant dense<0.000000e+00> : vector<8xf32>
    %239 = vector.multi_reduction <add>, %238, %cst_60 [1] : vector<8x256xf32> to vector<8xf32>
    %240 = vector.shape_cast %239 : vector<8xf32> to vector<8x1xf32>
    %cst_61 = arith.constant 0.00568181835 : f32
    %241 = vector.broadcast %cst_61 : f32 to vector<8x1xf32>
    %242 = arith.mulf %240, %241 : vector<8x1xf32>
    %243 = vector.broadcast %242 : vector<8x1xf32> to vector<8x256xf32>
    %244 = arith.subf %231, %243 : vector<8x256xf32>
    %245 = arith.mulf %244, %244 : vector<8x256xf32>
    %246 = vector.broadcast %236 : vector<1x256xf32> to vector<8x256xf32>
    %247 = arith.mulf %245, %246 : vector<8x256xf32>
    %cst_62 = arith.constant dense<0.000000e+00> : vector<8xf32>
    %248 = vector.multi_reduction <add>, %247, %cst_62 [1] : vector<8x256xf32> to vector<8xf32>
    %249 = vector.shape_cast %248 : vector<8xf32> to vector<8x1xf32>
    %cst_63 = arith.constant 0.00568181835 : f32
    %250 = vector.broadcast %cst_63 : f32 to vector<8x1xf32>
    %251 = arith.mulf %249, %250 : vector<8x1xf32>
    %cst_64 = arith.constant 9.99999974E-6 : f32
    %252 = vector.broadcast %cst_64 : f32 to vector<8x1xf32>
    %253 = arith.addf %251, %252 : vector<8x1xf32>
    %254 = math.rsqrt %253 : vector<8x1xf32>
    %255 = vector.broadcast %254 : vector<8x1xf32> to vector<8x256xf32>
    %256 = arith.mulf %244, %255 : vector<8x256xf32>
    %cst_65 = arith.constant 0.000000e+00 : f32
    %257 = vector.broadcast %cst_65 : f32 to vector<8x256xf32>
    %258 = arith.maximumf %256, %257 : vector<8x256xf32>
    %c0_66 = arith.constant 0 : index
    %c0_67 = arith.constant 0 : index
    %259 = vector.load %arg23[%c0_66, %c0_67] : memref<1x72xbf16, #tpu.memory_space<vmem>>, vector<1x72xbf16>
    %c0_68 = arith.constant 0 : index
    %c0_69 = arith.constant 0 : index
    %260 = vector.load %arg24[%c0_68, %c0_69] : memref<1x1xf32, #tpu.memory_space<vmem>>, vector<1x1xf32>
    %261 = arith.truncf %258 : vector<8x256xf32> to vector<8x256xbf16>
    %c0_70 = arith.constant 0 : index
    %c0_71 = arith.constant 0 : index
    %262 = vector.load %arg8[%c0_70, %c0_71] : memref<256x2304xbf16, #tpu.memory_space<vmem>>, vector<256x2304xbf16>
    %cst_72 = arith.constant dense<0.000000e+00> : vector<8x2304xf32>
    %263 = tpu.matmul %261, %262, %cst_72 {dimension_numbers = #tpu.dot_dimension_numbers<[1], [0], [0], [1], [0, 0, 1, 1], [], []>} : vector<8x256xbf16>, vector<256x2304xbf16>, vector<8x2304xf32> -> vector<8x2304xf32>
    %264 = vector.extract_strided_slice %263 {offsets = [0, 0], sizes = [8, 256], strides = [1, 1]} : vector<8x2304xf32> to vector<8x256xf32>
    %265 = vector.extract_strided_slice %263 {offsets = [0, 256], sizes = [8, 256], strides = [1, 1]} : vector<8x2304xf32> to vector<8x256xf32>
    %266 = vector.extract_strided_slice %263 {offsets = [0, 512], sizes = [8, 256], strides = [1, 1]} : vector<8x2304xf32> to vector<8x256xf32>
    %267 = vector.extract_strided_slice %263 {offsets = [0, 768], sizes = [8, 256], strides = [1, 1]} : vector<8x2304xf32> to vector<8x256xf32>
    %268 = vector.extract_strided_slice %263 {offsets = [0, 1024], sizes = [8, 256], strides = [1, 1]} : vector<8x2304xf32> to vector<8x256xf32>
    %269 = vector.extract_strided_slice %263 {offsets = [0, 1280], sizes = [8, 256], strides = [1, 1]} : vector<8x2304xf32> to vector<8x256xf32>
    %270 = vector.extract_strided_slice %263 {offsets = [0, 1536], sizes = [8, 256], strides = [1, 1]} : vector<8x2304xf32> to vector<8x256xf32>
    %271 = vector.extract_strided_slice %263 {offsets = [0, 1792], sizes = [8, 256], strides = [1, 1]} : vector<8x2304xf32> to vector<8x256xf32>
    %272 = vector.extract_strided_slice %263 {offsets = [0, 2048], sizes = [8, 256], strides = [1, 1]} : vector<8x2304xf32> to vector<8x256xf32>
    %273 = tpu.concatenate %264, %265, %266, %267, %268, %269, %270, %271, %272 in 0 : vector<8x256xf32>, vector<8x256xf32>, vector<8x256xf32>, vector<8x256xf32>, vector<8x256xf32>, vector<8x256xf32>, vector<8x256xf32>, vector<8x256xf32>, vector<8x256xf32> -> vector<72x256xf32>
    %274 = arith.truncf %273 : vector<72x256xf32> to vector<72x256xbf16>
    %cst_73 = arith.constant dense<0.000000e+00> : vector<1x256xf32>
    %275 = tpu.matmul %259, %274, %cst_73 {dimension_numbers = #tpu.dot_dimension_numbers<[1], [0], [0], [1], [0, 0, 1, 1], [], []>} : vector<1x72xbf16>, vector<72x256xbf16>, vector<1x256xf32> -> vector<1x256xf32>
    %276 = vector.broadcast %260 : vector<1x1xf32> to vector<1x256xf32>
    %277 = arith.addf %275, %276 : vector<1x256xf32>
    %278 = arith.addf %1, %277 : vector<1x256xf32>
    %c0_74 = arith.constant 0 : index
    %c0_75 = arith.constant 0 : index
    %c0_76 = arith.constant 0 : index
    %279 = vector.load %arg25[%c0_74, %c0_75, %c0_76] : memref<1x1x256xf32, #tpu.memory_space<vmem>>, vector<1x1x256xf32>
    %280 = vector.shape_cast %279 : vector<1x1x256xf32> to vector<1x256xf32>
    %281 = vector.shape_cast %278 : vector<1x256xf32> to vector<1x1x256xf32>
    tpu.vector_store %arg25[%c0_74, %c0_75, %c0_76], %281 {strides = array<i32>} : memref<1x1x256xf32, #tpu.memory_space<vmem>>, vector<1x1x256xf32>,
    return
  }
  func.func @transform_0(%arg0: i32) -> (i32, i32, i32) {
    %c0_i32 = arith.constant 0 : i32
    %c0_i32_0 = arith.constant 0 : i32
    %c0_i32_1 = arith.constant 0 : i32
    return %arg0, %c0_i32, %c0_i32_0 : i32, i32, i32
  }
  func.func @transform_1(%arg0: i32) -> (i32, i32) {
    %c0_i32 = arith.constant 0 : i32
    %c0_i32_0 = arith.constant 0 : i32
    %c0_i32_1 = arith.constant 0 : i32
    return %c0_i32, %c0_i32_0 : i32, i32
  }
  func.func @transform_2(%arg0: i32) -> (i32, i32) {
    %c0_i32 = arith.constant 0 : i32
    %c0_i32_0 = arith.constant 0 : i32
    %c0_i32_1 = arith.constant 0 : i32
    return %c0_i32, %c0_i32_0 : i32, i32
  }
  func.func @transform_3(%arg0: i32) -> (i32, i32) {
    %c0_i32 = arith.constant 0 : i32
    %c0_i32_0 = arith.constant 0 : i32
    %c0_i32_1 = arith.constant 0 : i32
    return %c0_i32, %c0_i32_0 : i32, i32
  }
  func.func @transform_4(%arg0: i32) -> (i32, i32) {
    %c0_i32 = arith.constant 0 : i32
    %c0_i32_0 = arith.constant 0 : i32
    %c0_i32_1 = arith.constant 0 : i32
    return %c0_i32, %c0_i32_0 : i32, i32
  }
  func.func @transform_5(%arg0: i32) -> (i32, i32) {
    %c0_i32 = arith.constant 0 : i32
    %c0_i32_0 = arith.constant 0 : i32
    %c0_i32_1 = arith.constant 0 : i32
    return %c0_i32, %c0_i32_0 : i32, i32
  }
  func.func @transform_6(%arg0: i32) -> (i32, i32) {
    %c0_i32 = arith.constant 0 : i32
    %c0_i32_0 = arith.constant 0 : i32
    %c0_i32_1 = arith.constant 0 : i32
    return %c0_i32, %c0_i32_0 : i32, i32
  }
  func.func @transform_7(%arg0: i32) -> (i32, i32) {
    %c0_i32 = arith.constant 0 : i32
    %c0_i32_0 = arith.constant 0 : i32
    %c0_i32_1 = arith.constant 0 : i32
    return %c0_i32, %c0_i32_0 : i32, i32
  }
  func.func @transform_8(%arg0: i32) -> (i32, i32) {
    %c0_i32 = arith.constant 0 : i32
    %c0_i32_0 = arith.constant 0 : i32
    %c0_i32_1 = arith.constant 0 : i32
    return %c0_i32, %c0_i32_0 : i32, i32
  }
  func.func @transform_9(%arg0: i32) -> (i32, i32) {
    %c0_i32 = arith.constant 0 : i32
    %c0_i32_0 = arith.constant 0 : i32
    %c0_i32_1 = arith.constant 0 : i32
    return %c0_i32, %c0_i32_0 : i32, i32
  }
  func.func @transform_10(%arg0: i32) -> (i32, i32) {
    %c0_i32 = arith.constant 0 : i32
    %c0_i32_0 = arith.constant 0 : i32
    %c0_i32_1 = arith.constant 0 : i32
    return %c0_i32, %c0_i32_0 : i32, i32
  }
  func.func @transform_11(%arg0: i32) -> (i32, i32) {
    %c0_i32 = arith.constant 0 : i32
    %c0_i32_0 = arith.constant 0 : i32
    %c0_i32_1 = arith.constant 0 : i32
    return %c0_i32, %c0_i32_0 : i32, i32
  }
  func.func @transform_12(%arg0: i32) -> (i32, i32) {
    %c0_i32 = arith.constant 0 : i32
    %c0_i32_0 = arith.constant 0 : i32
    %c0_i32_1 = arith.constant 0 : i32
    return %c0_i32, %c0_i32_0 : i32, i32
  }
  func.func @transform_13(%arg0: i32) -> (i32, i32) {
    %c0_i32 = arith.constant 0 : i32
    %c0_i32_0 = arith.constant 0 : i32
    %c0_i32_1 = arith.constant 0 : i32
    return %c0_i32, %c0_i32_0 : i32, i32
  }
  func.func @transform_14(%arg0: i32) -> (i32, i32, i32) {
    %c0_i32 = arith.constant 0 : i32
    %c0_i32_0 = arith.constant 0 : i32
    %c0_i32_1 = arith.constant 0 : i32
    %c0_i32_2 = arith.constant 0 : i32
    return %c0_i32, %c0_i32_0, %c0_i32_1 : i32, i32, i32
  }
  func.func @transform_15(%arg0: i32) -> (i32, i32, i32) {
    %c0_i32 = arith.constant 0 : i32
    %c0_i32_0 = arith.constant 0 : i32
    %c0_i32_1 = arith.constant 0 : i32
    %c0_i32_2 = arith.constant 0 : i32
    return %c0_i32, %c0_i32_0, %c0_i32_1 : i32, i32, i32
  }
  func.func @transform_16(%arg0: i32) -> (i32, i32, i32) {
    %c0_i32 = arith.constant 0 : i32
    %c0_i32_0 = arith.constant 0 : i32
    %c0_i32_1 = arith.constant 0 : i32
    %c0_i32_2 = arith.constant 0 : i32
    return %c0_i32, %c0_i32_0, %c0_i32_1 : i32, i32, i32
  }
  func.func @transform_17(%arg0: i32) -> (i32, i32, i32) {
    %c0_i32 = arith.constant 0 : i32
    %c0_i32_0 = arith.constant 0 : i32
    %c0_i32_1 = arith.constant 0 : i32
    %c0_i32_2 = arith.constant 0 : i32
    return %c0_i32, %c0_i32_0, %c0_i32_1 : i32, i32, i32
  }
  func.func @transform_18(%arg0: i32) -> (i32, i32) {
    %c0_i32 = arith.constant 0 : i32
    %c0_i32_0 = arith.constant 0 : i32
    %c0_i32_1 = arith.constant 0 : i32
    return %c0_i32, %c0_i32_0 : i32, i32
  }
  func.func @transform_19(%arg0: i32) -> (i32, i32) {
    %c0_i32 = arith.constant 0 : i32
    %c0_i32_0 = arith.constant 0 : i32
    %c0_i32_1 = arith.constant 0 : i32
    return %c0_i32, %c0_i32_0 : i32, i32
  }
  func.func @transform_20(%arg0: i32) -> (i32, i32) {
    %c0_i32 = arith.constant 0 : i32
    %c0_i32_0 = arith.constant 0 : i32
    %c0_i32_1 = arith.constant 0 : i32
    return %c0_i32, %c0_i32_0 : i32, i32
  }
  func.func @transform_21(%arg0: i32) -> (i32, i32) {
    %c0_i32 = arith.constant 0 : i32
    %c0_i32_0 = arith.constant 0 : i32
    %c0_i32_1 = arith.constant 0 : i32
    return %c0_i32, %c0_i32_0 : i32, i32
  }
  func.func @transform_22(%arg0: i32) -> (i32, i32) {
    %c0_i32 = arith.constant 0 : i32
    %c0_i32_0 = arith.constant 0 : i32
    %c0_i32_1 = arith.constant 0 : i32
    return %c0_i32, %c0_i32_0 : i32, i32
  }
  func.func @transform_23(%arg0: i32) -> (i32, i32) {
    %c0_i32 = arith.constant 0 : i32
    %c0_i32_0 = arith.constant 0 : i32
    %c0_i32_1 = arith.constant 0 : i32
    return %c0_i32, %c0_i32_0 : i32, i32
  }
  func.func @transform_24(%arg0: i32) -> (i32, i32, i32) {
    %c0_i32 = arith.constant 0 : i32
    %c0_i32_0 = arith.constant 0 : i32
    %c0_i32_1 = arith.constant 0 : i32
    return %arg0, %c0_i32, %c0_i32_0 : i32, i32, i32
  }
}

</mosaic_0001>

<llo_original>
// kernel: _lambda_.1
$region0: #{_lambda_.1}
  #allocation0 [shape = 'u32[]', space=smem, size = 0x4, offset = 0x4, fixed_abs, tag = 'smem constant byte address 0x4 - core index']
  #allocation1 [shape = 'u32[72,128]{1,0:T(1,128)}', space=vmem, size = 0x9000, scoped, tag = 'internal scratch']
  #allocation2 [shape = 'f32[1,1]{1,0:T(1,128)S(1)}', space=vmem, size = 0x200, scoped, tag = 'scoped memory for _lambda_.1']
  %s0 = inlined_call_operand.vmem [shape: f32[2,1,256], index: 0, kind: input, shape index: {}]
  %s1 = inlined_call_operand.vmem [shape: bf16[256,2304], index: 1, kind: input, shape index: {}]
  %s2 = inlined_call_operand.hbm [shape: bf16[256,1152], index: 2, kind: input, shape index: {}]
  %s3 = inlined_call_operand.vmem [shape: bf16[128,1152], index: 3, kind: input, shape index: {}]
  %s4 = inlined_call_operand.hbm [shape: bf16[128,1152], index: 4, kind: input, shape index: {}]
  %s5 = inlined_call_operand.hbm [shape: bf16[128,1152], index: 5, kind: input, shape index: {}]
  %s6 = inlined_call_operand.hbm [shape: bf16[128,2304], index: 6, kind: input, shape index: {}]
  %s7 = inlined_call_operand.vmem [shape: bf16[256,2304], index: 7, kind: input, shape index: {}]
  %s8 = inlined_call_operand.vmem [shape: bf16[8,9], index: 8, kind: input, shape index: {}]
  %s9 = inlined_call_operand.vmem [shape: f32[8,1], index: 9, kind: input, shape index: {}]
  %s10 = inlined_call_operand.vmem [shape: bf16[16,72], index: 10, kind: input, shape index: {}]
  %s11 = inlined_call_operand.vmem [shape: f32[16,1], index: 11, kind: input, shape index: {}]
  %s12 = inlined_call_operand.vmem [shape: bf16[32,144], index: 12, kind: input, shape index: {}]
  %s13 = inlined_call_operand.vmem [shape: f32[32,1], index: 13, kind: input, shape index: {}]
  %s14 = inlined_call_operand.vmem [shape: bf16[2,32,288], index: 14, kind: input, shape index: {}]
  %s15 = inlined_call_operand.vmem [shape: f32[2,32,1], index: 15, kind: input, shape index: {}]
  %s16 = inlined_call_operand.vmem [shape: bf16[2,32,288], index: 16, kind: input, shape index: {}]
  %s17 = inlined_call_operand.vmem [shape: f32[2,32,1], index: 17, kind: input, shape index: {}]
  %s18 = inlined_call_operand.vmem [shape: bf16[16,288], index: 18, kind: input, shape index: {}]
  %s19 = inlined_call_operand.vmem [shape: f32[16,1], index: 19, kind: input, shape index: {}]
  %s20 = inlined_call_operand.vmem [shape: bf16[8,144], index: 20, kind: input, shape index: {}]
  %s21 = inlined_call_operand.vmem [shape: f32[8,1], index: 21, kind: input, shape index: {}]
  %s22 = inlined_call_operand.vmem [shape: bf16[1,72], index: 22, kind: input, shape index: {}]
  %s23 = inlined_call_operand.<no memory space> [shape: f32[1,1], index: 23, kind: input, shape index: {}]
  %s24 = inlined_call_operand.vmem [shape: f32[2,1,256], index: 24, kind: output, shape index: {}]
  %s25 = sld [smem:[#allocation0]]
  $region152: #{_lambda_.1} parent=0
    _
  %s27 = ssub.s32 1, %s25
  %s28 = scalar_select 0, %s27, %s25
  %v29 = vstv %s23
  %30 = vst [vmem:[#allocation2] sm:$0x1] %v29
  $region1: #{_lambda_.1} parent=0
    #allocation3 [shape = 'u8[589824]{0}', space=vmem, size = 0x90000, scoped, tag = 'input window, operand 2, single buffered']
    #allocation4 [shape = 's32[2]{0}', space=sflag, size = 0x8, scoped, tag = 'scoped memory for _lambda_.1']
    #allocation5 [shape = 'u8[294912]{0}', space=vmem, size = 0x48000, scoped, tag = 'input window, operand 4, single buffered']
    #allocation6 [shape = 's32[1]{0}', space=sflag, size = 0x4, scoped, tag = 'scoped memory for _lambda_.1']
    #allocation7 [shape = 'u8[294912]{0}', space=vmem, size = 0x48000, scoped, tag = 'input window, operand 5, single buffered']
    #allocation8 [shape = 'u8[589824]{0}', space=vmem, size = 0x90000, scoped, tag = 'input window, operand 6, single buffered']
    #allocation9 [shape = 's32[1]{0}', space=sflag, size = 0x4, scoped, tag = 'scoped memory for _lambda_.1']
    %31 = vsyncpa [#allocation4], 0
    %32 = vsyncpa [#allocation6], 0
    %33 = vsyncpa [#allocation9], 0
    loop: start=0, step=1, limit=4
    $region2: #{_lambda_.1} parent=1 // loop_pre_header
      _
    $region3: #{_lambda_.1} parent=1 // loop_header
      %s35 = sphi 0, %s39
      %p36 = scmp.ge.s32.totalorder %s35, 4
      %s45 = sphi 0, %s47
      %s48 = sphi 0, %s45
      %s49 = sphi 0, %s48
      %s65 = sphi 0, %s49
      %s69 = sphi 0, %s69
      %s71 = sphi 0, %s69
      %s72 = sphi 0, %s71
      %s86 = sphi 0, %s72
      %s90 = sphi 0, %s90
      %s92 = sphi 0, %s90
      %s93 = sphi 0, %s92
      %s107 = sphi 0, %s93
      %s111 = sphi 0, %s111
      %s113 = sphi 0, %s111
      %s114 = sphi 0, %s113
      %s128 = sphi 0, %s114
      %s132 = sphi 0, %s132
      %s134 = sphi 0, %s132
      %s135 = sphi 0, %s134
      %s149 = sphi 0, %s135
      %s153 = sphi 0, %s153
      %s155 = sphi 0, %s153
      %s156 = sphi 0, %s155
      %s170 = sphi 0, %s156
      %s174 = sphi 0, %s174
      %s176 = sphi 0, %s174
      %s177 = sphi 0, %s176
      %s191 = sphi 0, %s177
      %s195 = sphi 0, %s195
      %s197 = sphi 0, %s195
      %s198 = sphi 0, %s197
      %s212 = sphi 0, %s198
      %s216 = sphi 0, %s216
      %s218 = sphi 0, %s216
      %s219 = sphi 0, %s218
      %s233 = sphi 0, %s219
      %s237 = sphi 0, %s237
      %s239 = sphi 0, %s237
      %s240 = sphi 0, %s239
      %s254 = sphi 0, %s240
      %s258 = sphi 0, %s258
      %s260 = sphi 0, %s258
      %s261 = sphi 0, %s260
      %s275 = sphi 0, %s261
      %s279 = sphi 0, %s279
      %s281 = sphi 0, %s279
      %s282 = sphi 0, %s281
      %s296 = sphi 0, %s282
      %s300 = sphi 0, %s300
      %s302 = sphi 0, %s300
      %s303 = sphi 0, %s302
      %s317 = sphi 0, %s303
      %s321 = sphi 0, %s321
      %s323 = sphi 0, %s321
      %s324 = sphi 0, %s323
      %s338 = sphi 0, %s324
      %s342 = sphi 0, %s342
      %s344 = sphi 0, %s342
      %s345 = sphi 0, %s344
      %s359 = sphi 0, %s345
      %s363 = sphi 0, %s363
      %s365 = sphi 0, %s363
      %s366 = sphi 0, %s365
      %s380 = sphi 0, %s366
      %s384 = sphi 0, %s384
      %s386 = sphi 0, %s384
      %s387 = sphi 0, %s386
      %s401 = sphi 0, %s387
      %s405 = sphi 0, %s405
      %s407 = sphi 0, %s405
      %s408 = sphi 0, %s407
      %s422 = sphi 0, %s408
      %s426 = sphi 0, %s426
      %s428 = sphi 0, %s426
      %s429 = sphi 0, %s428
      %s443 = sphi 0, %s429
      %s447 = sphi 0, %s447
      %s449 = sphi 0, %s447
      %s450 = sphi 0, %s449
      %s464 = sphi 0, %s450
      %s468 = sphi 0, %s468
      %s470 = sphi 0, %s468
      %s471 = sphi 0, %s470
      %s485 = sphi 0, %s471
      %s489 = sphi 0, %s489
      %s491 = sphi 0, %s489
      %s492 = sphi 0, %s491
      %s506 = sphi 0, %s492
      %s510 = sphi 0, %s510
      %s512 = sphi 0, %s510
      %s513 = sphi 0, %s512
      %s527 = sphi 0, %s513
      %s531 = sphi 0, %s531
      %s533 = sphi 0, %s531
      %s534 = sphi 0, %s533
      %s548 = sphi 0, %s534
      %s554 = sphi 0, %s556
      %s557 = sphi 0, %s554
      %s558 = sphi 0, %s557
      %s574 = sphi 0, %s558
    $region4: #{_lambda_.1} parent=1 // loop_header_branch
      %38 = sbr.rel (%p36) target = $region8
    $region5: #{_lambda_.1} parent=1 // loop_body
      %s40 = ssub.s32 %s35, 1
      %s41 = ssub.s32 %s35, 2
      %s42 = sadd.s32 %s35, 1
      %s43 = ssub.s32 %s35, %s42
      %p44 = scmp.eq.s32.totalorder %s43, 0
      %s46 = sadd.s32 %s45, 1
      %s47 = scalar_select %p44, %s45, %s46
      %p50 = pneg %p44
      %p51 = scmp.eq.s32.totalorder %s35, 1
      %p52 = por %p50, %p51
      %p53 = scmp.ne.s32.totalorder %s45, %s48
      %p54 = scmp.eq.s32.totalorder %s35, 0
      %p55 = por %p53, %p54
      %p56 = scmp.ne.s32.totalorder %s45, %s48
      %p57 = scmp.eq.s32.totalorder %s40, 1
      %p58 = por %p56, %p57
      %p59 = scmp.ne.s32.totalorder %s48, %s49
      %p60 = scmp.eq.s32.totalorder %s40, 0
      %p61 = por %p59, %p60
      %p62 = scmp.ne.s32.totalorder %s48, %s49
      %p63 = scmp.eq.s32.totalorder %s41, 1
      %p64 = por %p62, %p63
      %p66 = scmp.ne.s32.totalorder %s49, %s65
      %p67 = scmp.eq.s32.totalorder %s41, 0
      %p68 = por %p66, %p67
      %s70 = sadd.s32 %s69, 1
      %p73 = scmp.eq.s32.totalorder %s35, 1
      %p74 = scmp.ne.s32.totalorder %s69, %s71
      %p75 = scmp.eq.s32.totalorder %s35, 0
      %p76 = por %p74, %p75
      %p77 = scmp.ne.s32.totalorder %s69, %s71
      %p78 = scmp.eq.s32.totalorder %s40, 1
      %p79 = por %p77, %p78
      %p80 = scmp.ne.s32.totalorder %s71, %s72
      %p81 = scmp.eq.s32.totalorder %s40, 0
      %p82 = por %p80, %p81
      %p83 = scmp.ne.s32.totalorder %s71, %s72
      %p84 = scmp.eq.s32.totalorder %s41, 1
      %p85 = por %p83, %p84
      %p87 = scmp.ne.s32.totalorder %s72, %s86
      %p88 = scmp.eq.s32.totalorder %s41, 0
      %p89 = por %p87, %p88
      %s91 = sadd.s32 %s90, 1
      %p94 = scmp.eq.s32.totalorder %s35, 1
      %p95 = scmp.ne.s32.totalorder %s90, %s92
      %p96 = scmp.eq.s32.totalorder %s35, 0
      %p97 = por %p95, %p96
      %p98 = scmp.ne.s32.totalorder %s90, %s92
      %p99 = scmp.eq.s32.totalorder %s40, 1
      %p100 = por %p98, %p99
      %p101 = scmp.ne.s32.totalorder %s92, %s93
      %p102 = scmp.eq.s32.totalorder %s40, 0
      %p103 = por %p101, %p102
      %p104 = scmp.ne.s32.totalorder %s92, %s93
      %p105 = scmp.eq.s32.totalorder %s41, 1
      %p106 = por %p104, %p105
      %p108 = scmp.ne.s32.totalorder %s93, %s107
      %p109 = scmp.eq.s32.totalorder %s41, 0
      %p110 = por %p108, %p109
      %s112 = sadd.s32 %s111, 1
      %p115 = scmp.eq.s32.totalorder %s35, 1
      %p116 = scmp.ne.s32.totalorder %s111, %s113
      %p117 = scmp.eq.s32.totalorder %s35, 0
      %p118 = por %p116, %p117
      %p119 = scmp.ne.s32.totalorder %s111, %s113
      %p120 = scmp.eq.s32.totalorder %s40, 1
      %p121 = por %p119, %p120
      %p122 = scmp.ne.s32.totalorder %s113, %s114
      %p123 = scmp.eq.s32.totalorder %s40, 0
      %p124 = por %p122, %p123
      %p125 = scmp.ne.s32.totalorder %s113, %s114
      %p126 = scmp.eq.s32.totalorder %s41, 1
      %p127 = por %p125, %p126
      %p129 = scmp.ne.s32.totalorder %s114, %s128
      %p130 = scmp.eq.s32.totalorder %s41, 0
      %p131 = por %p129, %p130
      %s133 = sadd.s32 %s132, 1
      %p136 = scmp.eq.s32.totalorder %s35, 1
      %p137 = scmp.ne.s32.totalorder %s132, %s134
      %p138 = scmp.eq.s32.totalorder %s35, 0
      %p139 = por %p137, %p138
      %p140 = scmp.ne.s32.totalorder %s132, %s134
      %p141 = scmp.eq.s32.totalorder %s40, 1
      %p142 = por %p140, %p141
      %p143 = scmp.ne.s32.totalorder %s134, %s135
      %p144 = scmp.eq.s32.totalorder %s40, 0
      %p145 = por %p143, %p144
      %p146 = scmp.ne.s32.totalorder %s134, %s135
      %p147 = scmp.eq.s32.totalorder %s41, 1
      %p148 = por %p146, %p147
      %p150 = scmp.ne.s32.totalorder %s135, %s149
      %p151 = scmp.eq.s32.totalorder %s41, 0
      %p152 = por %p150, %p151
      %s154 = sadd.s32 %s153, 1
      %p157 = scmp.eq.s32.totalorder %s35, 1
      %p158 = scmp.ne.s32.totalorder %s153, %s155
      %p159 = scmp.eq.s32.totalorder %s35, 0
      %p160 = por %p158, %p159
      %p161 = scmp.ne.s32.totalorder %s153, %s155
      %p162 = scmp.eq.s32.totalorder %s40, 1
      %p163 = por %p161, %p162
      %p164 = scmp.ne.s32.totalorder %s155, %s156
      %p165 = scmp.eq.s32.totalorder %s40, 0
      %p166 = por %p164, %p165
      %p167 = scmp.ne.s32.totalorder %s155, %s156
      %p168 = scmp.eq.s32.totalorder %s41, 1
      %p169 = por %p167, %p168
      %p171 = scmp.ne.s32.totalorder %s156, %s170
      %p172 = scmp.eq.s32.totalorder %s41, 0
      %p173 = por %p171, %p172
      %s175 = sadd.s32 %s174, 1
      %p178 = scmp.eq.s32.totalorder %s35, 1
      %p179 = scmp.ne.s32.totalorder %s174, %s176
      %p180 = scmp.eq.s32.totalorder %s35, 0
      %p181 = por %p179, %p180
      %p182 = scmp.ne.s32.totalorder %s174, %s176
      %p183 = scmp.eq.s32.totalorder %s40, 1
      %p184 = por %p182, %p183
      %p185 = scmp.ne.s32.totalorder %s176, %s177
      %p186 = scmp.eq.s32.totalorder %s40, 0
      %p187 = por %p185, %p186
      %p188 = scmp.ne.s32.totalorder %s176, %s177
      %p189 = scmp.eq.s32.totalorder %s41, 1
      %p190 = por %p188, %p189
      %p192 = scmp.ne.s32.totalorder %s177, %s191
      %p193 = scmp.eq.s32.totalorder %s41, 0
      %p194 = por %p192, %p193
      %s196 = sadd.s32 %s195, 1
      %p199 = scmp.eq.s32.totalorder %s35, 1
      %p200 = scmp.ne.s32.totalorder %s195, %s197
      %p201 = scmp.eq.s32.totalorder %s35, 0
      %p202 = por %p200, %p201
      %p203 = scmp.ne.s32.totalorder %s195, %s197
      %p204 = scmp.eq.s32.totalorder %s40, 1
      %p205 = por %p203, %p204
      %p206 = scmp.ne.s32.totalorder %s197, %s198
      %p207 = scmp.eq.s32.totalorder %s40, 0
      %p208 = por %p206, %p207
      %p209 = scmp.ne.s32.totalorder %s197, %s198
      %p210 = scmp.eq.s32.totalorder %s41, 1
      %p211 = por %p209, %p210
      %p213 = scmp.ne.s32.totalorder %s198, %s212
      %p214 = scmp.eq.s32.totalorder %s41, 0
      %p215 = por %p213, %p214
      %s217 = sadd.s32 %s216, 1
      %p220 = scmp.eq.s32.totalorder %s35, 1
      %p221 = scmp.ne.s32.totalorder %s216, %s218
      %p222 = scmp.eq.s32.totalorder %s35, 0
      %p223 = por %p221, %p222
      %p224 = scmp.ne.s32.totalorder %s216, %s218
      %p225 = scmp.eq.s32.totalorder %s40, 1
      %p226 = por %p224, %p225
      %p227 = scmp.ne.s32.totalorder %s218, %s219
      %p228 = scmp.eq.s32.totalorder %s40, 0
      %p229 = por %p227, %p228
      %p230 = scmp.ne.s32.totalorder %s218, %s219
      %p231 = scmp.eq.s32.totalorder %s41, 1
      %p232 = por %p230, %p231
      %p234 = scmp.ne.s32.totalorder %s219, %s233
      %p235 = scmp.eq.s32.totalorder %s41, 0
      %p236 = por %p234, %p235
      %s238 = sadd.s32 %s237, 1
      %p241 = scmp.eq.s32.totalorder %s35, 1
      %p242 = scmp.ne.s32.totalorder %s237, %s239
      %p243 = scmp.eq.s32.totalorder %s35, 0
      %p244 = por %p242, %p243
      %p245 = scmp.ne.s32.totalorder %s237, %s239
      %p246 = scmp.eq.s32.totalorder %s40, 1
      %p247 = por %p245, %p246
      %p248 = scmp.ne.s32.totalorder %s239, %s240
      %p249 = scmp.eq.s32.totalorder %s40, 0
      %p250 = por %p248, %p249
      %p251 = scmp.ne.s32.totalorder %s239, %s240
      %p252 = scmp.eq.s32.totalorder %s41, 1
      %p253 = por %p251, %p252
      %p255 = scmp.ne.s32.totalorder %s240, %s254
      %p256 = scmp.eq.s32.totalorder %s41, 0
      %p257 = por %p255, %p256
      %s259 = sadd.s32 %s258, 1
      %p262 = scmp.eq.s32.totalorder %s35, 1
      %p263 = scmp.ne.s32.totalorder %s258, %s260
      %p264 = scmp.eq.s32.totalorder %s35, 0
      %p265 = por %p263, %p264
      %p266 = scmp.ne.s32.totalorder %s258, %s260
      %p267 = scmp.eq.s32.totalorder %s40, 1
      %p268 = por %p266, %p267
      %p269 = scmp.ne.s32.totalorder %s260, %s261
      %p270 = scmp.eq.s32.totalorder %s40, 0
      %p271 = por %p269, %p270
      %p272 = scmp.ne.s32.totalorder %s260, %s261
      %p273 = scmp.eq.s32.totalorder %s41, 1
      %p274 = por %p272, %p273
      %p276 = scmp.ne.s32.totalorder %s261, %s275
      %p277 = scmp.eq.s32.totalorder %s41, 0
      %p278 = por %p276, %p277
      %s280 = sadd.s32 %s279, 1
      %p283 = scmp.eq.s32.totalorder %s35, 1
      %p284 = scmp.ne.s32.totalorder %s279, %s281
      %p285 = scmp.eq.s32.totalorder %s35, 0
      %p286 = por %p284, %p285
      %p287 = scmp.ne.s32.totalorder %s279, %s281
      %p288 = scmp.eq.s32.totalorder %s40, 1
      %p289 = por %p287, %p288
      %p290 = scmp.ne.s32.totalorder %s281, %s282
      %p291 = scmp.eq.s32.totalorder %s40, 0
      %p292 = por %p290, %p291
      %p293 = scmp.ne.s32.totalorder %s281, %s282
      %p294 = scmp.eq.s32.totalorder %s41, 1
      %p295 = por %p293, %p294
      %p297 = scmp.ne.s32.totalorder %s282, %s296
      %p298 = scmp.eq.s32.totalorder %s41, 0
      %p299 = por %p297, %p298
      %s301 = sadd.s32 %s300, 1
      %p304 = scmp.eq.s32.totalorder %s35, 1
      %p305 = scmp.ne.s32.totalorder %s300, %s302
      %p306 = scmp.eq.s32.totalorder %s35, 0
      %p307 = por %p305, %p306
      %p308 = scmp.ne.s32.totalorder %s300, %s302
      %p309 = scmp.eq.s32.totalorder %s40, 1
      %p310 = por %p308, %p309
      %p311 = scmp.ne.s32.totalorder %s302, %s303
      %p312 = scmp.eq.s32.totalorder %s40, 0
      %p313 = por %p311, %p312
      %p314 = scmp.ne.s32.totalorder %s302, %s303
      %p315 = scmp.eq.s32.totalorder %s41, 1
      %p316 = por %p314, %p315
      %p318 = scmp.ne.s32.totalorder %s303, %s317
      %p319 = scmp.eq.s32.totalorder %s41, 0
      %p320 = por %p318, %p319
      %s322 = sadd.s32 %s321, 1
      %p325 = scmp.eq.s32.totalorder %s35, 1
      %p326 = scmp.ne.s32.totalorder %s321, %s323
      %p327 = scmp.eq.s32.totalorder %s35, 0
      %p328 = por %p326, %p327
      %p329 = scmp.ne.s32.totalorder %s321, %s323
      %p330 = scmp.eq.s32.totalorder %s40, 1
      %p331 = por %p329, %p330
      %p332 = scmp.ne.s32.totalorder %s323, %s324
      %p333 = scmp.eq.s32.totalorder %s40, 0
      %p334 = por %p332, %p333
      %p335 = scmp.ne.s32.totalorder %s323, %s324
      %p336 = scmp.eq.s32.totalorder %s41, 1
      %p337 = por %p335, %p336
      %p339 = scmp.ne.s32.totalorder %s324, %s338
      %p340 = scmp.eq.s32.totalorder %s41, 0
      %p341 = por %p339, %p340
      %s343 = sadd.s32 %s342, 1
      %p346 = scmp.eq.s32.totalorder %s35, 1
      %p347 = scmp.ne.s32.totalorder %s342, %s344
      %p348 = scmp.eq.s32.totalorder %s35, 0
      %p349 = por %p347, %p348
      %p350 = scmp.ne.s32.totalorder %s342, %s344
      %p351 = scmp.eq.s32.totalorder %s40, 1
      %p352 = por %p350, %p351
      %p353 = scmp.ne.s32.totalorder %s344, %s345
      %p354 = scmp.eq.s32.totalorder %s40, 0
      %p355 = por %p353, %p354
      %p356 = scmp.ne.s32.totalorder %s344, %s345
      %p357 = scmp.eq.s32.totalorder %s41, 1
      %p358 = por %p356, %p357
      %p360 = scmp.ne.s32.totalorder %s345, %s359
      %p361 = scmp.eq.s32.totalorder %s41, 0
      %p362 = por %p360, %p361
      %s364 = sadd.s32 %s363, 1
      %p367 = scmp.eq.s32.totalorder %s35, 1
      %p368 = scmp.ne.s32.totalorder %s363, %s365
      %p369 = scmp.eq.s32.totalorder %s35, 0
      %p370 = por %p368, %p369
      %p371 = scmp.ne.s32.totalorder %s363, %s365
      %p372 = scmp.eq.s32.totalorder %s40, 1
      %p373 = por %p371, %p372
      %p374 = scmp.ne.s32.totalorder %s365, %s366
      %p375 = scmp.eq.s32.totalorder %s40, 0
      %p376 = por %p374, %p375
      %p377 = scmp.ne.s32.totalorder %s365, %s366
      %p378 = scmp.eq.s32.totalorder %s41, 1
      %p379 = por %p377, %p378
      %p381 = scmp.ne.s32.totalorder %s366, %s380
      %p382 = scmp.eq.s32.totalorder %s41, 0
      %p383 = por %p381, %p382
      %s385 = sadd.s32 %s384, 1
      %p388 = scmp.eq.s32.totalorder %s35, 1
      %p389 = scmp.ne.s32.totalorder %s384, %s386
      %p390 = scmp.eq.s32.totalorder %s35, 0
      %p391 = por %p389, %p390
      %p392 = scmp.ne.s32.totalorder %s384, %s386
      %p393 = scmp.eq.s32.totalorder %s40, 1
      %p394 = por %p392, %p393
      %p395 = scmp.ne.s32.totalorder %s386, %s387
      %p396 = scmp.eq.s32.totalorder %s40, 0
      %p397 = por %p395, %p396
      %p398 = scmp.ne.s32.totalorder %s386, %s387
      %p399 = scmp.eq.s32.totalorder %s41, 1
      %p400 = por %p398, %p399
      %p402 = scmp.ne.s32.totalorder %s387, %s401
      %p403 = scmp.eq.s32.totalorder %s41, 0
      %p404 = por %p402, %p403
      %s406 = sadd.s32 %s405, 1
      %p409 = scmp.eq.s32.totalorder %s35, 1
      %p410 = scmp.ne.s32.totalorder %s405, %s407
      %p411 = scmp.eq.s32.totalorder %s35, 0
      %p412 = por %p410, %p411
      %p413 = scmp.ne.s32.totalorder %s405, %s407
      %p414 = scmp.eq.s32.totalorder %s40, 1
      %p415 = por %p413, %p414
      %p416 = scmp.ne.s32.totalorder %s407, %s408
      %p417 = scmp.eq.s32.totalorder %s40, 0
      %p418 = por %p416, %p417
      %p419 = scmp.ne.s32.totalorder %s407, %s408
      %p420 = scmp.eq.s32.totalorder %s41, 1
      %p421 = por %p419, %p420
      %p423 = scmp.ne.s32.totalorder %s408, %s422
      %p424 = scmp.eq.s32.totalorder %s41, 0
      %p425 = por %p423, %p424
      %s427 = sadd.s32 %s426, 1
      %p430 = scmp.eq.s32.totalorder %s35, 1
      %p431 = scmp.ne.s32.totalorder %s426, %s428
      %p432 = scmp.eq.s32.totalorder %s35, 0
      %p433 = por %p431, %p432
      %p434 = scmp.ne.s32.totalorder %s426, %s428
      %p435 = scmp.eq.s32.totalorder %s40, 1
      %p436 = por %p434, %p435
      %p437 = scmp.ne.s32.totalorder %s428, %s429
      %p438 = scmp.eq.s32.totalorder %s40, 0
      %p439 = por %p437, %p438
      %p440 = scmp.ne.s32.totalorder %s428, %s429
      %p441 = scmp.eq.s32.totalorder %s41, 1
      %p442 = por %p440, %p441
      %p444 = scmp.ne.s32.totalorder %s429, %s443
      %p445 = scmp.eq.s32.totalorder %s41, 0
      %p446 = por %p444, %p445
      %s448 = sadd.s32 %s447, 1
      %p451 = scmp.eq.s32.totalorder %s35, 1
      %p452 = scmp.ne.s32.totalorder %s447, %s449
      %p453 = scmp.eq.s32.totalorder %s35, 0
      %p454 = por %p452, %p453
      %p455 = scmp.ne.s32.totalorder %s447, %s449
      %p456 = scmp.eq.s32.totalorder %s40, 1
      %p457 = por %p455, %p456
      %p458 = scmp.ne.s32.totalorder %s449, %s450
      %p459 = scmp.eq.s32.totalorder %s40, 0
      %p460 = por %p458, %p459
      %p461 = scmp.ne.s32.totalorder %s449, %s450
      %p462 = scmp.eq.s32.totalorder %s41, 1
      %p463 = por %p461, %p462
      %p465 = scmp.ne.s32.totalorder %s450, %s464
      %p466 = scmp.eq.s32.totalorder %s41, 0
      %p467 = por %p465, %p466
      %s469 = sadd.s32 %s468, 1
      %p472 = scmp.eq.s32.totalorder %s35, 1
      %p473 = scmp.ne.s32.totalorder %s468, %s470
      %p474 = scmp.eq.s32.totalorder %s35, 0
      %p475 = por %p473, %p474
      %p476 = scmp.ne.s32.totalorder %s468, %s470
      %p477 = scmp.eq.s32.totalorder %s40, 1
      %p478 = por %p476, %p477
      %p479 = scmp.ne.s32.totalorder %s470, %s471
      %p480 = scmp.eq.s32.totalorder %s40, 0
      %p481 = por %p479, %p480
      %p482 = scmp.ne.s32.totalorder %s470, %s471
      %p483 = scmp.eq.s32.totalorder %s41, 1
      %p484 = por %p482, %p483
      %p486 = scmp.ne.s32.totalorder %s471, %s485
      %p487 = scmp.eq.s32.totalorder %s41, 0
      %p488 = por %p486, %p487
      %s490 = sadd.s32 %s489, 1
      %p493 = scmp.eq.s32.totalorder %s35, 1
      %p494 = scmp.ne.s32.totalorder %s489, %s491
      %p495 = scmp.eq.s32.totalorder %s35, 0
      %p496 = por %p494, %p495
      %p497 = scmp.ne.s32.totalorder %s489, %s491
      %p498 = scmp.eq.s32.totalorder %s40, 1
      %p499 = por %p497, %p498
      %p500 = scmp.ne.s32.totalorder %s491, %s492
      %p501 = scmp.eq.s32.totalorder %s40, 0
      %p502 = por %p500, %p501
      %p503 = scmp.ne.s32.totalorder %s491, %s492
      %p504 = scmp.eq.s32.totalorder %s41, 1
      %p505 = por %p503, %p504
      %p507 = scmp.ne.s32.totalorder %s492, %s506
      %p508 = scmp.eq.s32.totalorder %s41, 0
      %p509 = por %p507, %p508
      %s511 = sadd.s32 %s510, 1
      %p514 = scmp.eq.s32.totalorder %s35, 1
      %p515 = scmp.ne.s32.totalorder %s510, %s512
      %p516 = scmp.eq.s32.totalorder %s35, 0
      %p517 = por %p515, %p516
      %p518 = scmp.ne.s32.totalorder %s510, %s512
      %p519 = scmp.eq.s32.totalorder %s40, 1
      %p520 = por %p518, %p519
      %p521 = scmp.ne.s32.totalorder %s512, %s513
      %p522 = scmp.eq.s32.totalorder %s40, 0
      %p523 = por %p521, %p522
      %p524 = scmp.ne.s32.totalorder %s512, %s513
      %p525 = scmp.eq.s32.totalorder %s41, 1
      %p526 = por %p524, %p525
      %p528 = scmp.ne.s32.totalorder %s513, %s527
      %p529 = scmp.eq.s32.totalorder %s41, 0
      %p530 = por %p528, %p529
      %s532 = sadd.s32 %s531, 1
      %p535 = scmp.eq.s32.totalorder %s35, 1
      %p536 = scmp.ne.s32.totalorder %s531, %s533
      %p537 = scmp.eq.s32.totalorder %s35, 0
      %p538 = por %p536, %p537
      %p539 = scmp.ne.s32.totalorder %s531, %s533
      %p540 = scmp.eq.s32.totalorder %s40, 1
      %p541 = por %p539, %p540
      %p542 = scmp.ne.s32.totalorder %s533, %s534
      %p543 = scmp.eq.s32.totalorder %s40, 0
      %p544 = por %p542, %p543
      %p545 = scmp.ne.s32.totalorder %s533, %s534
      %p546 = scmp.eq.s32.totalorder %s41, 1
      %p547 = por %p545, %p546
      %p549 = scmp.ne.s32.totalorder %s534, %s548
      %p550 = scmp.eq.s32.totalorder %s41, 0
      %p551 = por %p549, %p550
      %s552 = ssub.s32 %s35, %s42
      %p553 = scmp.eq.s32.totalorder %s552, 0
      %s555 = sadd.s32 %s554, 1
      %s556 = scalar_select %p553, %s554, %s555
      %p559 = pneg %p553
      %p560 = scmp.eq.s32.totalorder %s35, 1
      %p561 = por %p559, %p560
      %p562 = scmp.ne.s32.totalorder %s554, %s557
      %p563 = scmp.eq.s32.totalorder %s35, 0
      %p564 = por %p562, %p563
      %p565 = scmp.ne.s32.totalorder %s554, %s557
      %p566 = scmp.eq.s32.totalorder %s40, 1
      %p567 = por %p565, %p566
      %p568 = scmp.ne.s32.totalorder %s557, %s558
      %p569 = scmp.eq.s32.totalorder %s40, 0
      %p570 = por %p568, %p569
      %p571 = scmp.ne.s32.totalorder %s557, %s558
      %p572 = scmp.eq.s32.totalorder %s41, 1
      %p573 = por %p571, %p572
      %p575 = scmp.ne.s32.totalorder %s558, %s574
      %p576 = scmp.eq.s32.totalorder %s41, 0
      %p577 = por %p575, %p576
      %p578 = scmp.le.s32.totalorder 1, %s35
      %p579 = scmp.lt.s32.totalorder %s35, 3
      %p580 = pnand %p578, %p579
      %p581 = pneg %p580
      // Predicated region
      $region9: #{_lambda_.1} parent=5 // pred_check
        _
      $region10: #{_lambda_.1} parent=5 // pred_check_branch
        %583 = sbr.rel (%p580) target = $region12
      $region11: #{_lambda_.1} parent=5 // pred_region
        %s584 = ssub.s32 %s35, 1
        // Predicated region
        $region13: #{_lambda_.1} parent=11 // pred_check
          %p585 = pneg %p82
        $region14: #{_lambda_.1} parent=11 // pred_check_branch
          %587 = sbr.rel (%p585) target = $region16
        $region15: #{_lambda_.1} parent=11 // pred_region
          _
        $region16: #{_lambda_.1} parent=11 // pred_fallthru
          _
        // Predicated region
        $region17: #{_lambda_.1} parent=11 // pred_check
          %p588 = pneg %p103
        $region18: #{_lambda_.1} parent=11 // pred_check_branch
          %590 = sbr.rel (%p588) target = $region20
        $region19: #{_lambda_.1} parent=11 // pred_region
          %592 = vsyncadd [#allocation4], 0
          %s593 = sshll.u32 %s2, 4
          %s594 = int_to_ptr.hbm [resolvable:$true] %s593
          %s595 = sshll.u32 [#allocation3], 4
          %s596 = int_to_ptr.vmem [resolvable:$true] %s595
          %601 = dma.hbm_to_vmem [thread:$0]  %s594, 18432, %s596, [#allocation4], 576, 576, 36
        $region20: #{_lambda_.1} parent=11 // pred_fallthru
          _
        // Predicated region
        $region21: #{_lambda_.1} parent=11 // pred_check
          %p602 = pneg %p124
        $region22: #{_lambda_.1} parent=11 // pred_check_branch
          %604 = sbr.rel (%p602) target = $region24
        $region23: #{_lambda_.1} parent=11 // pred_region
          _
        $region24: #{_lambda_.1} parent=11 // pred_fallthru
          _
        // Predicated region
        $region25: #{_lambda_.1} parent=11 // pred_check
          %p605 = pneg %p145
        $region26: #{_lambda_.1} parent=11 // pred_check_branch
          %607 = sbr.rel (%p605) target = $region28
        $region27: #{_lambda_.1} parent=11 // pred_region
          %609 = vsyncadd [#allocation6], 0
          %s610 = sshll.u32 %s4, 4
          %s611 = int_to_ptr.hbm [resolvable:$true] %s610
          %s612 = sshll.u32 [#allocation5], 4
          %s613 = int_to_ptr.vmem [resolvable:$true] %s612
          %618 = dma.hbm_to_vmem [thread:$0]  %s611, 9216, %s613, [#allocation6], 576, 576, 36
        $region28: #{_lambda_.1} parent=11 // pred_fallthru
          _
        // Predicated region
        $region29: #{_lambda_.1} parent=11 // pred_check
          %p619 = pneg %p166
        $region30: #{_lambda_.1} parent=11 // pred_check_branch
          %621 = sbr.rel (%p619) target = $region32
        $region31: #{_lambda_.1} parent=11 // pred_region
          %623 = vsyncadd [#allocation6], 0
          %s624 = sshll.u32 %s5, 4
          %s625 = int_to_ptr.hbm [resolvable:$true] %s624
          %s626 = sshll.u32 [#allocation7], 4
          %s627 = int_to_ptr.vmem [resolvable:$true] %s626
          %632 = dma.hbm_to_vmem [thread:$0]  %s625, 9216, %s627, [#allocation6], 576, 576, 36
        $region32: #{_lambda_.1} parent=11 // pred_fallthru
          _
        // Predicated region
        $region33: #{_lambda_.1} parent=11 // pred_check
          %p633 = pneg %p187
        $region34: #{_lambda_.1} parent=11 // pred_check_branch
          %635 = sbr.rel (%p633) target = $region36
        $region35: #{_lambda_.1} parent=11 // pred_region
          %637 = vsyncadd [#allocation9], 0
          %s638 = sshll.u32 %s6, 4
          %s639 = int_to_ptr.hbm [resolvable:$true] %s638
          %s640 = sshll.u32 [#allocation8], 4
          %s641 = int_to_ptr.vmem [resolvable:$true] %s640
          %646 = dma.hbm_to_vmem [thread:$0]  %s639, 18432, %s641, [#allocation9], 1152, 1152, 72
        $region36: #{_lambda_.1} parent=11 // pred_fallthru
          _
        // Predicated region
        $region37: #{_lambda_.1} parent=11 // pred_check
          %p647 = pneg %p208
        $region38: #{_lambda_.1} parent=11 // pred_check_branch
          %649 = sbr.rel (%p647) target = $region40
        $region39: #{_lambda_.1} parent=11 // pred_region
          _
        $region40: #{_lambda_.1} parent=11 // pred_fallthru
          _
        // Predicated region
        $region41: #{_lambda_.1} parent=11 // pred_check
          %p650 = pneg %p229
        $region42: #{_lambda_.1} parent=11 // pred_check_branch
          %652 = sbr.rel (%p650) target = $region44
        $region43: #{_lambda_.1} parent=11 // pred_region
          _
        $region44: #{_lambda_.1} parent=11 // pred_fallthru
          _
        // Predicated region
        $region45: #{_lambda_.1} parent=11 // pred_check
          %p653 = pneg %p250
        $region46: #{_lambda_.1} parent=11 // pred_check_branch
          %655 = sbr.rel (%p653) target = $region48
        $region47: #{_lambda_.1} parent=11 // pred_region
          _
        $region48: #{_lambda_.1} parent=11 // pred_fallthru
          _
        // Predicated region
        $region49: #{_lambda_.1} parent=11 // pred_check
          %p656 = pneg %p271
        $region50: #{_lambda_.1} parent=11 // pred_check_branch
          %658 = sbr.rel (%p656) target = $region52
        $region51: #{_lambda_.1} parent=11 // pred_region
          _
        $region52: #{_lambda_.1} parent=11 // pred_fallthru
          _
        // Predicated region
        $region53: #{_lambda_.1} parent=11 // pred_check
          %p659 = pneg %p292
        $region54: #{_lambda_.1} parent=11 // pred_check_branch
          %661 = sbr.rel (%p659) target = $region56
        $region55: #{_lambda_.1} parent=11 // pred_region
          _
        $region56: #{_lambda_.1} parent=11 // pred_fallthru
          _
        // Predicated region
        $region57: #{_lambda_.1} parent=11 // pred_check
          %p662 = pneg %p313
        $region58: #{_lambda_.1} parent=11 // pred_check_branch
          %664 = sbr.rel (%p662) target = $region60
        $region59: #{_lambda_.1} parent=11 // pred_region
          _
        $region60: #{_lambda_.1} parent=11 // pred_fallthru
          _
        // Predicated region
        $region61: #{_lambda_.1} parent=11 // pred_check
          %p665 = pneg %p334
        $region62: #{_lambda_.1} parent=11 // pred_check_branch
          %667 = sbr.rel (%p665) target = $region64
        $region63: #{_lambda_.1} parent=11 // pred_region
          _
        $region64: #{_lambda_.1} parent=11 // pred_fallthru
          _
        // Predicated region
        $region65: #{_lambda_.1} parent=11 // pred_check
          %p668 = pneg %p355
        $region66: #{_lambda_.1} parent=11 // pred_check_branch
          %670 = sbr.rel (%p668) target = $region68
        $region67: #{_lambda_.1} parent=11 // pred_region
          _
        $region68: #{_lambda_.1} parent=11 // pred_fallthru
          _
        // Predicated region
        $region69: #{_lambda_.1} parent=11 // pred_check
          %p671 = pneg %p376
        $region70: #{_lambda_.1} parent=11 // pred_check_branch
          %673 = sbr.rel (%p671) target = $region72
        $region71: #{_lambda_.1} parent=11 // pred_region
          _
        $region72: #{_lambda_.1} parent=11 // pred_fallthru
          _
        // Predicated region
        $region73: #{_lambda_.1} parent=11 // pred_check
          %p674 = pneg %p397
        $region74: #{_lambda_.1} parent=11 // pred_check_branch
          %676 = sbr.rel (%p674) target = $region76
        $region75: #{_lambda_.1} parent=11 // pred_region
          _
        $region76: #{_lambda_.1} parent=11 // pred_fallthru
          _
        // Predicated region
        $region77: #{_lambda_.1} parent=11 // pred_check
          %p677 = pneg %p418
        $region78: #{_lambda_.1} parent=11 // pred_check_branch
          %679 = sbr.rel (%p677) target = $region80
        $region79: #{_lambda_.1} parent=11 // pred_region
          _
        $region80: #{_lambda_.1} parent=11 // pred_fallthru
          _
        // Predicated region
        $region81: #{_lambda_.1} parent=11 // pred_check
          %p680 = pneg %p439
        $region82: #{_lambda_.1} parent=11 // pred_check_branch
          %682 = sbr.rel (%p680) target = $region84
        $region83: #{_lambda_.1} parent=11 // pred_region
          _
        $region84: #{_lambda_.1} parent=11 // pred_fallthru
          _
        // Predicated region
        $region85: #{_lambda_.1} parent=11 // pred_check
          %p683 = pneg %p460
        $region86: #{_lambda_.1} parent=11 // pred_check_branch
          %685 = sbr.rel (%p683) target = $region88
        $region87: #{_lambda_.1} parent=11 // pred_region
          _
        $region88: #{_lambda_.1} parent=11 // pred_fallthru
          _
        // Predicated region
        $region89: #{_lambda_.1} parent=11 // pred_check
          %p686 = pneg %p481
        $region90: #{_lambda_.1} parent=11 // pred_check_branch
          %688 = sbr.rel (%p686) target = $region92
        $region91: #{_lambda_.1} parent=11 // pred_region
          _
        $region92: #{_lambda_.1} parent=11 // pred_fallthru
          _
        // Predicated region
        $region93: #{_lambda_.1} parent=11 // pred_check
          %p689 = pneg %p502
        $region94: #{_lambda_.1} parent=11 // pred_check_branch
          %691 = sbr.rel (%p689) target = $region96
        $region95: #{_lambda_.1} parent=11 // pred_region
          _
        $region96: #{_lambda_.1} parent=11 // pred_fallthru
          _
        // Predicated region
        $region97: #{_lambda_.1} parent=11 // pred_check
          %p692 = pneg %p523
        $region98: #{_lambda_.1} parent=11 // pred_check_branch
          %694 = sbr.rel (%p692) target = $region100
        $region99: #{_lambda_.1} parent=11 // pred_region
          _
        $region100: #{_lambda_.1} parent=11 // pred_fallthru
          _
        // Predicated region
        $region101: #{_lambda_.1} parent=11 // pred_check
          %p695 = pneg %p544
        $region102: #{_lambda_.1} parent=11 // pred_check_branch
          %697 = sbr.rel (%p695) target = $region104
        $region103: #{_lambda_.1} parent=11 // pred_region
          _
        $region104: #{_lambda_.1} parent=11 // pred_fallthru
          _
      $region12: #{_lambda_.1} parent=5 // pred_fallthru
        _
      %p698 = scmp.lt.s32.totalorder %s35, 2
      // Predicated region
      $region105: #{_lambda_.1} parent=5 // pred_check
        %p699 = pneg %p698
      $region106: #{_lambda_.1} parent=5 // pred_check_branch
        %701 = sbr.rel (%p699) target = $region108
      $region107: #{_lambda_.1} parent=5 // pred_region
        // Predicated region
        $region109: #{_lambda_.1} parent=107 // pred_check
          %p702 = pneg %p55
        $region110: #{_lambda_.1} parent=107 // pred_check_branch
          %704 = sbr.rel (%p702) target = $region112
        $region111: #{_lambda_.1} parent=107 // pred_region
          %p705 = scmp.lt.s32.totalorder %s35, 1
          %s706 = scalar_select %p705, %s35, 1
          %s707 = smul.addr %s706, 2
          %s708 = scalar_lea.vmem %s0, %s707
        $region112: #{_lambda_.1} parent=107 // pred_fallthru
          _
      $region108: #{_lambda_.1} parent=5 // pred_fallthru
        _
      %p709 = scmp.le.s32.totalorder 1, %s35
      %p710 = scmp.lt.s32.totalorder %s35, 3
      %p711 = pnand %p709, %p710
      %p712 = pneg %p711
      // Predicated region
      $region113: #{_lambda_.1} parent=5 // pred_check
        _
      $region114: #{_lambda_.1} parent=5 // pred_check_branch
        %714 = sbr.rel (%p711) target = $region116
      $region115: #{_lambda_.1} parent=5 // pred_region
        %s715 = ssub.s32 %s35, 1
        // Predicated region
        $region117: #{_lambda_.1} parent=115 // pred_check
          %p716 = pneg %p103
        $region118: #{_lambda_.1} parent=115 // pred_check_branch
          %718 = sbr.rel (%p716) target = $region120
        $region119: #{_lambda_.1} parent=115 // pred_region
          %720 = dma.done [#allocation4], 18432
        $region120: #{_lambda_.1} parent=115 // pred_fallthru
          _
        // Predicated region
        $region121: #{_lambda_.1} parent=115 // pred_check
          %p721 = pneg %p145
        $region122: #{_lambda_.1} parent=115 // pred_check_branch
          %723 = sbr.rel (%p721) target = $region124
        $region123: #{_lambda_.1} parent=115 // pred_region
          %725 = dma.done [#allocation6], 9216
        $region124: #{_lambda_.1} parent=115 // pred_fallthru
          _
        // Predicated region
        $region125: #{_lambda_.1} parent=115 // pred_check
          %p726 = pneg %p166
        $region126: #{_lambda_.1} parent=115 // pred_check_branch
          %728 = sbr.rel (%p726) target = $region128
        $region127: #{_lambda_.1} parent=115 // pred_region
          %730 = dma.done [#allocation6], 9216
        $region128: #{_lambda_.1} parent=115 // pred_fallthru
          _
        // Predicated region
        $region129: #{_lambda_.1} parent=115 // pred_check
          %p731 = pneg %p187
        $region130: #{_lambda_.1} parent=115 // pred_check_branch
          %733 = sbr.rel (%p731) target = $region132
        $region131: #{_lambda_.1} parent=115 // pred_region
          %735 = dma.done [#allocation9], 18432
        $region132: #{_lambda_.1} parent=115 // pred_fallthru
          _
        %p736 = scmp.lt.s32.totalorder %s40, 1
        %s737 = scalar_select %p736, %s40, 1
        %s738 = smul.addr %s737, 2
        %s739 = scalar_lea.vmem %s0, %s738
        %p740 = pneg %p61
        %p741 = pneg %p58
        %p742 = pneg %p82
        %p743 = pneg %p79
        %p744 = pneg %p103
        %p745 = pneg %p100
        %p746 = pneg %p124
        %p747 = pneg %p121
        %p748 = pneg %p145
        %p749 = pneg %p142
        %p750 = pneg %p166
        %p751 = pneg %p163
        %p752 = pneg %p187
        %p753 = pneg %p184
        %p754 = pneg %p208
        %p755 = pneg %p205
        %p756 = pneg %p229
        %p757 = pneg %p226
        %p758 = pneg %p250
        %p759 = pneg %p247
        %p760 = pneg %p271
        %p761 = pneg %p268
        %p762 = pneg %p292
        %p763 = pneg %p289
        %p764 = pneg %p313
        %p765 = pneg %p310
        %p766 = pneg %p334
        %p767 = pneg %p331
        %p768 = pneg %p355
        %p769 = pneg %p352
        %p770 = pneg %p376
        %p771 = pneg %p373
        %p772 = pneg %p397
        %p773 = pneg %p394
        %p774 = pneg %p418
        %p775 = pneg %p415
        %p776 = pneg %p439
        %p777 = pneg %p436
        %p778 = pneg %p460
        %p779 = pneg %p457
        %p780 = pneg %p481
        %p781 = pneg %p478
        %p782 = pneg %p502
        %p783 = pneg %p499
        %p784 = pneg %p523
        %p785 = pneg %p520
        %p786 = pneg %p544
        %p787 = pneg %p541
        %p788 = pneg %p570
        %p789 = pneg %p567
        %p790 = scmp.lt.s32.totalorder %s40, 1
        %s791 = scalar_select %p790, %s40, 1
        %s792 = smul.addr %s791, 2
        %s793 = scalar_lea.vmem %s24, %s792
        %p794 = scmp.lt.s32.totalorder %s40, 1
        %s795 = scalar_select %p794, %s40, 1
        %s796 = smul.addr %s795, 2
        %s797 = scalar_lea.vmem %s0, %s796
        %p798 = scmp.lt.s32.totalorder %s40, 1
        %s799 = scalar_select %p798, %s40, 1
        %s800 = smul.addr %s799, 2
        %s801 = scalar_lea.vmem %s24, %s800
        %v803 = vld [vmem:[%s797] sm:$0x3]
        %v804 = vld [vmem:[%s8] sm:$0xf]
        %v805 = vld [vmem:[%s9] sm:$0xff]
        %v807 = vperm.slane %v803, 0
        %v808 = vperm.slane %v803, 1
        %v811 = vpack.c.bf16 %v807, %v807
        %v812 = vpack.c.bf16 %v808, %v808
        %v813 = vld [vmem:[%s1] sm:$0xff]
        %v814 = vld [vmem:[%s1 + $0x8] sm:$0xff]
        %v815 = vld [vmem:[%s1 + $0x10] sm:$0xff]
        %v816 = vld [vmem:[%s1 + $0x18] sm:$0xff]
        %v817 = vld [vmem:[%s1 + $0x20] sm:$0xff]
        %v818 = vld [vmem:[%s1 + $0x28] sm:$0xff]
        %v819 = vld [vmem:[%s1 + $0x30] sm:$0xff]
        %v820 = vld [vmem:[%s1 + $0x38] sm:$0xff]
        %v821 = vld [vmem:[%s1 + $0x40] sm:$0xff]
        %v822 = vld [vmem:[%s1 + $0x48] sm:$0xff]
        %v823 = vld [vmem:[%s1 + $0x50] sm:$0xff]
        %v824 = vld [vmem:[%s1 + $0x58] sm:$0xff]
        %v825 = vld [vmem:[%s1 + $0x60] sm:$0xff]
        %v826 = vld [vmem:[%s1 + $0x68] sm:$0xff]
        %v827 = vld [vmem:[%s1 + $0x70] sm:$0xff]
        %v828 = vld [vmem:[%s1 + $0x78] sm:$0xff]
        %v829 = vld [vmem:[%s1 + $0x80] sm:$0xff]
        %v830 = vld [vmem:[%s1 + $0x88] sm:$0xff]
        %v831 = vld [vmem:[%s1 + $0x90] sm:$0xff]
        %v832 = vld [vmem:[%s1 + $0x98] sm:$0xff]
        %v833 = vld [vmem:[%s1 + $0xa0] sm:$0xff]
        %v834 = vld [vmem:[%s1 + $0xa8] sm:$0xff]
        %v835 = vld [vmem:[%s1 + $0xb0] sm:$0xff]
        %v836 = vld [vmem:[%s1 + $0xb8] sm:$0xff]
        %v837 = vld [vmem:[%s1 + $0xc0] sm:$0xff]
        %v838 = vld [vmem:[%s1 + $0xc8] sm:$0xff]
        %v839 = vld [vmem:[%s1 + $0xd0] sm:$0xff]
        %v840 = vld [vmem:[%s1 + $0xd8] sm:$0xff]
        %v841 = vld [vmem:[%s1 + $0xe0] sm:$0xff]
        %v842 = vld [vmem:[%s1 + $0xe8] sm:$0xff]
        %v843 = vld [vmem:[%s1 + $0xf0] sm:$0xff]
        %v844 = vld [vmem:[%s1 + $0xf8] sm:$0xff]
        %v845 = vld [vmem:[%s1 + $0x100] sm:$0xff]
        %v846 = vld [vmem:[%s1 + $0x108] sm:$0xff]
        %v847 = vld [vmem:[%s1 + $0x110] sm:$0xff]
        %v848 = vld [vmem:[%s1 + $0x118] sm:$0xff]
        %v849 = vld [vmem:[%s1 + $0x120] sm:$0xff]
        %v850 = vld [vmem:[%s1 + $0x128] sm:$0xff]
        %v851 = vld [vmem:[%s1 + $0x130] sm:$0xff]
        %v852 = vld [vmem:[%s1 + $0x138] sm:$0xff]
        %v853 = vld [vmem:[%s1 + $0x140] sm:$0xff]
        %v854 = vld [vmem:[%s1 + $0x148] sm:$0xff]
        %v855 = vld [vmem:[%s1 + $0x150] sm:$0xff]
        %v856 = vld [vmem:[%s1 + $0x158] sm:$0xff]
        %v857 = vld [vmem:[%s1 + $0x160] sm:$0xff]
        %v858 = vld [vmem:[%s1 + $0x168] sm:$0xff]
        %v859 = vld [vmem:[%s1 + $0x170] sm:$0xff]
        %v860 = vld [vmem:[%s1 + $0x178] sm:$0xff]
        %v861 = vld [vmem:[%s1 + $0x180] sm:$0xff]
        %v862 = vld [vmem:[%s1 + $0x188] sm:$0xff]
        %v863 = vld [vmem:[%s1 + $0x190] sm:$0xff]
        %v864 = vld [vmem:[%s1 + $0x198] sm:$0xff]
        %v865 = vld [vmem:[%s1 + $0x1a0] sm:$0xff]
        %v866 = vld [vmem:[%s1 + $0x1a8] sm:$0xff]
        %v867 = vld [vmem:[%s1 + $0x1b0] sm:$0xff]
        %v868 = vld [vmem:[%s1 + $0x1b8] sm:$0xff]
        %v869 = vld [vmem:[%s1 + $0x1c0] sm:$0xff]
        %v870 = vld [vmem:[%s1 + $0x1c8] sm:$0xff]
        %v871 = vld [vmem:[%s1 + $0x1d0] sm:$0xff]
        %v872 = vld [vmem:[%s1 + $0x1d8] sm:$0xff]
        %v873 = vld [vmem:[%s1 + $0x1e0] sm:$0xff]
        %v874 = vld [vmem:[%s1 + $0x1e8] sm:$0xff]
        %v875 = vld [vmem:[%s1 + $0x1f0] sm:$0xff]
        %v876 = vld [vmem:[%s1 + $0x1f8] sm:$0xff]
        %v877 = vld [vmem:[%s1 + $0x200] sm:$0xff]
        %v878 = vld [vmem:[%s1 + $0x208] sm:$0xff]
        %v879 = vld [vmem:[%s1 + $0x210] sm:$0xff]
        %v880 = vld [vmem:[%s1 + $0x218] sm:$0xff]
        %v881 = vld [vmem:[%s1 + $0x220] sm:$0xff]
        %v882 = vld [vmem:[%s1 + $0x228] sm:$0xff]
        %v883 = vld [vmem:[%s1 + $0x230] sm:$0xff]
        %v884 = vld [vmem:[%s1 + $0x238] sm:$0xff]
        %v885 = vld [vmem:[%s1 + $0x240] sm:$0xff]
        %v886 = vld [vmem:[%s1 + $0x248] sm:$0xff]
        %v887 = vld [vmem:[%s1 + $0x250] sm:$0xff]
        %v888 = vld [vmem:[%s1 + $0x258] sm:$0xff]
        %v889 = vld [vmem:[%s1 + $0x260] sm:$0xff]
        %v890 = vld [vmem:[%s1 + $0x268] sm:$0xff]
        %v891 = vld [vmem:[%s1 + $0x270] sm:$0xff]
        %v892 = vld [vmem:[%s1 + $0x278] sm:$0xff]
        %v893 = vld [vmem:[%s1 + $0x280] sm:$0xff]
        %v894 = vld [vmem:[%s1 + $0x288] sm:$0xff]
        %v895 = vld [vmem:[%s1 + $0x290] sm:$0xff]
        %v896 = vld [vmem:[%s1 + $0x298] sm:$0xff]
        %v897 = vld [vmem:[%s1 + $0x2a0] sm:$0xff]
        %v898 = vld [vmem:[%s1 + $0x2a8] sm:$0xff]
        %v899 = vld [vmem:[%s1 + $0x2b0] sm:$0xff]
        %v900 = vld [vmem:[%s1 + $0x2b8] sm:$0xff]
        %v901 = vld [vmem:[%s1 + $0x2c0] sm:$0xff]
        %v902 = vld [vmem:[%s1 + $0x2c8] sm:$0xff]
        %v903 = vld [vmem:[%s1 + $0x2d0] sm:$0xff]
        %v904 = vld [vmem:[%s1 + $0x2d8] sm:$0xff]
        %v905 = vld [vmem:[%s1 + $0x2e0] sm:$0xff]
        %v906 = vld [vmem:[%s1 + $0x2e8] sm:$0xff]
        %v907 = vld [vmem:[%s1 + $0x2f0] sm:$0xff]
        %v908 = vld [vmem:[%s1 + $0x2f8] sm:$0xff]
        %v909 = vld [vmem:[%s1 + $0x300] sm:$0xff]
        %v910 = vld [vmem:[%s1 + $0x308] sm:$0xff]
        %v911 = vld [vmem:[%s1 + $0x310] sm:$0xff]
        %v912 = vld [vmem:[%s1 + $0x318] sm:$0xff]
        %v913 = vld [vmem:[%s1 + $0x320] sm:$0xff]
        %v914 = vld [vmem:[%s1 + $0x328] sm:$0xff]
        %v915 = vld [vmem:[%s1 + $0x330] sm:$0xff]
        %v916 = vld [vmem:[%s1 + $0x338] sm:$0xff]
        %v917 = vld [vmem:[%s1 + $0x340] sm:$0xff]
        %v918 = vld [vmem:[%s1 + $0x348] sm:$0xff]
        %v919 = vld [vmem:[%s1 + $0x350] sm:$0xff]
        %v920 = vld [vmem:[%s1 + $0x358] sm:$0xff]
        %v921 = vld [vmem:[%s1 + $0x360] sm:$0xff]
        %v922 = vld [vmem:[%s1 + $0x368] sm:$0xff]
        %v923 = vld [vmem:[%s1 + $0x370] sm:$0xff]
        %v924 = vld [vmem:[%s1 + $0x378] sm:$0xff]
        %v925 = vld [vmem:[%s1 + $0x380] sm:$0xff]
        %v926 = vld [vmem:[%s1 + $0x388] sm:$0xff]
        %v927 = vld [vmem:[%s1 + $0x390] sm:$0xff]
        %v928 = vld [vmem:[%s1 + $0x398] sm:$0xff]
        %v929 = vld [vmem:[%s1 + $0x3a0] sm:$0xff]
        %v930 = vld [vmem:[%s1 + $0x3a8] sm:$0xff]
        %v931 = vld [vmem:[%s1 + $0x3b0] sm:$0xff]
        %v932 = vld [vmem:[%s1 + $0x3b8] sm:$0xff]
        %v933 = vld [vmem:[%s1 + $0x3c0] sm:$0xff]
        %v934 = vld [vmem:[%s1 + $0x3c8] sm:$0xff]
        %v935 = vld [vmem:[%s1 + $0x3d0] sm:$0xff]
        %v936 = vld [vmem:[%s1 + $0x3d8] sm:$0xff]
        %v937 = vld [vmem:[%s1 + $0x3e0] sm:$0xff]
        %v938 = vld [vmem:[%s1 + $0x3e8] sm:$0xff]
        %v939 = vld [vmem:[%s1 + $0x3f0] sm:$0xff]
        %v940 = vld [vmem:[%s1 + $0x3f8] sm:$0xff]
        %v941 = vld [vmem:[%s1 + $0x400] sm:$0xff]
        %v942 = vld [vmem:[%s1 + $0x408] sm:$0xff]
        %v943 = vld [vmem:[%s1 + $0x410] sm:$0xff]
        %v944 = vld [vmem:[%s1 + $0x418] sm:$0xff]
        %v945 = vld [vmem:[%s1 + $0x420] sm:$0xff]
        %v946 = vld [vmem:[%s1 + $0x428] sm:$0xff]
        %v947 = vld [vmem:[%s1 + $0x430] sm:$0xff]
        %v948 = vld [vmem:[%s1 + $0x438] sm:$0xff]
        %v949 = vld [vmem:[%s1 + $0x440] sm:$0xff]
        %v950 = vld [vmem:[%s1 + $0x448] sm:$0xff]
        %v951 = vld [vmem:[%s1 + $0x450] sm:$0xff]
        %v952 = vld [vmem:[%s1 + $0x458] sm:$0xff]
        %v953 = vld [vmem:[%s1 + $0x460] sm:$0xff]
        %v954 = vld [vmem:[%s1 + $0x468] sm:$0xff]
        %v955 = vld [vmem:[%s1 + $0x470] sm:$0xff]
        %v956 = vld [vmem:[%s1 + $0x478] sm:$0xff]
        %v957 = vld [vmem:[%s1 + $0x480] sm:$0xff]
        %v958 = vld [vmem:[%s1 + $0x488] sm:$0xff]
        %v959 = vld [vmem:[%s1 + $0x490] sm:$0xff]
        %v960 = vld [vmem:[%s1 + $0x498] sm:$0xff]
        %v961 = vld [vmem:[%s1 + $0x4a0] sm:$0xff]
        %v962 = vld [vmem:[%s1 + $0x4a8] sm:$0xff]
        %v963 = vld [vmem:[%s1 + $0x4b0] sm:$0xff]
        %v964 = vld [vmem:[%s1 + $0x4b8] sm:$0xff]
        %v965 = vld [vmem:[%s1 + $0x4c0] sm:$0xff]
        %v966 = vld [vmem:[%s1 + $0x4c8] sm:$0xff]
        %v967 = vld [vmem:[%s1 + $0x4d0] sm:$0xff]
        %v968 = vld [vmem:[%s1 + $0x4d8] sm:$0xff]
        %v969 = vld [vmem:[%s1 + $0x4e0] sm:$0xff]
        %v970 = vld [vmem:[%s1 + $0x4e8] sm:$0xff]
        %v971 = vld [vmem:[%s1 + $0x4f0] sm:$0xff]
        %v972 = vld [vmem:[%s1 + $0x4f8] sm:$0xff]
        %v973 = vld [vmem:[%s1 + $0x500] sm:$0xff]
        %v974 = vld [vmem:[%s1 + $0x508] sm:$0xff]
        %v975 = vld [vmem:[%s1 + $0x510] sm:$0xff]
        %v976 = vld [vmem:[%s1 + $0x518] sm:$0xff]
        %v977 = vld [vmem:[%s1 + $0x520] sm:$0xff]
        %v978 = vld [vmem:[%s1 + $0x528] sm:$0xff]
        %v979 = vld [vmem:[%s1 + $0x530] sm:$0xff]
        %v980 = vld [vmem:[%s1 + $0x538] sm:$0xff]
        %v981 = vld [vmem:[%s1 + $0x540] sm:$0xff]
        %v982 = vld [vmem:[%s1 + $0x548] sm:$0xff]
        %v983 = vld [vmem:[%s1 + $0x550] sm:$0xff]
        %v984 = vld [vmem:[%s1 + $0x558] sm:$0xff]
        %v985 = vld [vmem:[%s1 + $0x560] sm:$0xff]
        %v986 = vld [vmem:[%s1 + $0x568] sm:$0xff]
        %v987 = vld [vmem:[%s1 + $0x570] sm:$0xff]
        %v988 = vld [vmem:[%s1 + $0x578] sm:$0xff]
        %v989 = vld [vmem:[%s1 + $0x580] sm:$0xff]
        %v990 = vld [vmem:[%s1 + $0x588] sm:$0xff]
        %v991 = vld [vmem:[%s1 + $0x590] sm:$0xff]
        %v992 = vld [vmem:[%s1 + $0x598] sm:$0xff]
        %v993 = vld [vmem:[%s1 + $0x5a0] sm:$0xff]
        %v994 = vld [vmem:[%s1 + $0x5a8] sm:$0xff]
        %v995 = vld [vmem:[%s1 + $0x5b0] sm:$0xff]
        %v996 = vld [vmem:[%s1 + $0x5b8] sm:$0xff]
        %v997 = vld [vmem:[%s1 + $0x5c0] sm:$0xff]
        %v998 = vld [vmem:[%s1 + $0x5c8] sm:$0xff]
        %v999 = vld [vmem:[%s1 + $0x5d0] sm:$0xff]
        %v1000 = vld [vmem:[%s1 + $0x5d8] sm:$0xff]
        %v1001 = vld [vmem:[%s1 + $0x5e0] sm:$0xff]
        %v1002 = vld [vmem:[%s1 + $0x5e8] sm:$0xff]
        %v1003 = vld [vmem:[%s1 + $0x5f0] sm:$0xff]
        %v1004 = vld [vmem:[%s1 + $0x5f8] sm:$0xff]
        %v1005 = vld [vmem:[%s1 + $0x600] sm:$0xff]
        %v1006 = vld [vmem:[%s1 + $0x608] sm:$0xff]
        %v1007 = vld [vmem:[%s1 + $0x610] sm:$0xff]
        %v1008 = vld [vmem:[%s1 + $0x618] sm:$0xff]
        %v1009 = vld [vmem:[%s1 + $0x620] sm:$0xff]
        %v1010 = vld [vmem:[%s1 + $0x628] sm:$0xff]
        %v1011 = vld [vmem:[%s1 + $0x630] sm:$0xff]
        %v1012 = vld [vmem:[%s1 + $0x638] sm:$0xff]
        %v1013 = vld [vmem:[%s1 + $0x640] sm:$0xff]
        %v1014 = vld [vmem:[%s1 + $0x648] sm:$0xff]
        %v1015 = vld [vmem:[%s1 + $0x650] sm:$0xff]
        %v1016 = vld [vmem:[%s1 + $0x658] sm:$0xff]
        %v1017 = vld [vmem:[%s1 + $0x660] sm:$0xff]
        %v1018 = vld [vmem:[%s1 + $0x668] sm:$0xff]
        %v1019 = vld [vmem:[%s1 + $0x670] sm:$0xff]
        %v1020 = vld [vmem:[%s1 + $0x678] sm:$0xff]
        %v1021 = vld [vmem:[%s1 + $0x680] sm:$0xff]
        %v1022 = vld [vmem:[%s1 + $0x688] sm:$0xff]
        %v1023 = vld [vmem:[%s1 + $0x690] sm:$0xff]
        %v1024 = vld [vmem:[%s1 + $0x698] sm:$0xff]
        %v1025 = vld [vmem:[%s1 + $0x6a0] sm:$0xff]
        %v1026 = vld [vmem:[%s1 + $0x6a8] sm:$0xff]
        %v1027 = vld [vmem:[%s1 + $0x6b0] sm:$0xff]
        %v1028 = vld [vmem:[%s1 + $0x6b8] sm:$0xff]
        %v1029 = vld [vmem:[%s1 + $0x6c0] sm:$0xff]
        %v1030 = vld [vmem:[%s1 + $0x6c8] sm:$0xff]
        %v1031 = vld [vmem:[%s1 + $0x6d0] sm:$0xff]
        %v1032 = vld [vmem:[%s1 + $0x6d8] sm:$0xff]
        %v1033 = vld [vmem:[%s1 + $0x6e0] sm:$0xff]
        %v1034 = vld [vmem:[%s1 + $0x6e8] sm:$0xff]
        %v1035 = vld [vmem:[%s1 + $0x6f0] sm:$0xff]
        %v1036 = vld [vmem:[%s1 + $0x6f8] sm:$0xff]
        %v1037 = vld [vmem:[%s1 + $0x700] sm:$0xff]
        %v1038 = vld [vmem:[%s1 + $0x708] sm:$0xff]
        %v1039 = vld [vmem:[%s1 + $0x710] sm:$0xff]
        %v1040 = vld [vmem:[%s1 + $0x718] sm:$0xff]
        %v1041 = vld [vmem:[%s1 + $0x720] sm:$0xff]
        %v1042 = vld [vmem:[%s1 + $0x728] sm:$0xff]
        %v1043 = vld [vmem:[%s1 + $0x730] sm:$0xff]
        %v1044 = vld [vmem:[%s1 + $0x738] sm:$0xff]
        %v1045 = vld [vmem:[%s1 + $0x740] sm:$0xff]
        %v1046 = vld [vmem:[%s1 + $0x748] sm:$0xff]
        %v1047 = vld [vmem:[%s1 + $0x750] sm:$0xff]
        %v1048 = vld [vmem:[%s1 + $0x758] sm:$0xff]
        %v1049 = vld [vmem:[%s1 + $0x760] sm:$0xff]
        %v1050 = vld [vmem:[%s1 + $0x768] sm:$0xff]
        %v1051 = vld [vmem:[%s1 + $0x770] sm:$0xff]
        %v1052 = vld [vmem:[%s1 + $0x778] sm:$0xff]
        %v1053 = vld [vmem:[%s1 + $0x780] sm:$0xff]
        %v1054 = vld [vmem:[%s1 + $0x788] sm:$0xff]
        %v1055 = vld [vmem:[%s1 + $0x790] sm:$0xff]
        %v1056 = vld [vmem:[%s1 + $0x798] sm:$0xff]
        %v1057 = vld [vmem:[%s1 + $0x7a0] sm:$0xff]
        %v1058 = vld [vmem:[%s1 + $0x7a8] sm:$0xff]
        %v1059 = vld [vmem:[%s1 + $0x7b0] sm:$0xff]
        %v1060 = vld [vmem:[%s1 + $0x7b8] sm:$0xff]
        %v1061 = vld [vmem:[%s1 + $0x7c0] sm:$0xff]
        %v1062 = vld [vmem:[%s1 + $0x7c8] sm:$0xff]
        %v1063 = vld [vmem:[%s1 + $0x7d0] sm:$0xff]
        %v1064 = vld [vmem:[%s1 + $0x7d8] sm:$0xff]
        %v1065 = vld [vmem:[%s1 + $0x7e0] sm:$0xff]
        %v1066 = vld [vmem:[%s1 + $0x7e8] sm:$0xff]
        %v1067 = vld [vmem:[%s1 + $0x7f0] sm:$0xff]
        %v1068 = vld [vmem:[%s1 + $0x7f8] sm:$0xff]
        %v1069 = vld [vmem:[%s1 + $0x800] sm:$0xff]
        %v1070 = vld [vmem:[%s1 + $0x808] sm:$0xff]
        %v1071 = vld [vmem:[%s1 + $0x810] sm:$0xff]
        %v1072 = vld [vmem:[%s1 + $0x818] sm:$0xff]
        %v1073 = vld [vmem:[%s1 + $0x820] sm:$0xff]
        %v1074 = vld [vmem:[%s1 + $0x828] sm:$0xff]
        %v1075 = vld [vmem:[%s1 + $0x830] sm:$0xff]
        %v1076 = vld [vmem:[%s1 + $0x838] sm:$0xff]
        %v1077 = vld [vmem:[%s1 + $0x840] sm:$0xff]
        %v1078 = vld [vmem:[%s1 + $0x848] sm:$0xff]
        %v1079 = vld [vmem:[%s1 + $0x850] sm:$0xff]
        %v1080 = vld [vmem:[%s1 + $0x858] sm:$0xff]
        %v1081 = vld [vmem:[%s1 + $0x860] sm:$0xff]
        %v1082 = vld [vmem:[%s1 + $0x868] sm:$0xff]
        %v1083 = vld [vmem:[%s1 + $0x870] sm:$0xff]
        %v1084 = vld [vmem:[%s1 + $0x878] sm:$0xff]
        %v1085 = vld [vmem:[%s1 + $0x880] sm:$0xff]
        %v1086 = vld [vmem:[%s1 + $0x888] sm:$0xff]
        %v1087 = vld [vmem:[%s1 + $0x890] sm:$0xff]
        %v1088 = vld [vmem:[%s1 + $0x898] sm:$0xff]
        %v1089 = vld [vmem:[%s1 + $0x8a0] sm:$0xff]
        %v1090 = vld [vmem:[%s1 + $0x8a8] sm:$0xff]
        %v1091 = vld [vmem:[%s1 + $0x8b0] sm:$0xff]
        %v1092 = vld [vmem:[%s1 + $0x8b8] sm:$0xff]
        %v1093 = vld [vmem:[%s1 + $0x8c0] sm:$0xff]
        %v1094 = vld [vmem:[%s1 + $0x8c8] sm:$0xff]
        %v1095 = vld [vmem:[%s1 + $0x8d0] sm:$0xff]
        %v1096 = vld [vmem:[%s1 + $0x8d8] sm:$0xff]
        %v1097 = vld [vmem:[%s1 + $0x8e0] sm:$0xff]
        %v1098 = vld [vmem:[%s1 + $0x8e8] sm:$0xff]
        %v1099 = vld [vmem:[%s1 + $0x8f0] sm:$0xff]
        %v1100 = vld [vmem:[%s1 + $0x8f8] sm:$0xff]
        %v1389 = vunpack.c.l.b16 %v813
        %v1390 = vunpack.c.h.b16 %v813
        %v1391 = vunpack.c.l.b16 %v814
        %v1392 = vunpack.c.h.b16 %v814
        %v1393 = vunpack.c.l.b16 %v815
        %v1394 = vunpack.c.h.b16 %v815
        %v1395 = vunpack.c.l.b16 %v816
        %v1396 = vunpack.c.h.b16 %v816
        %v1397 = vunpack.c.l.b16 %v817
        %v1398 = vunpack.c.h.b16 %v817
        %v1399 = vunpack.c.l.b16 %v818
        %v1400 = vunpack.c.h.b16 %v818
        %v1401 = vunpack.c.l.b16 %v819
        %v1402 = vunpack.c.h.b16 %v819
        %v1403 = vunpack.c.l.b16 %v820
        %v1404 = vunpack.c.h.b16 %v820
        %v1405 = vunpack.c.l.b16 %v821
        %v1406 = vunpack.c.h.b16 %v821
        %v1407 = vunpack.c.l.b16 %v822
        %v1408 = vunpack.c.h.b16 %v822
        %v1409 = vunpack.c.l.b16 %v823
        %v1410 = vunpack.c.h.b16 %v823
        %v1411 = vunpack.c.l.b16 %v824
        %v1412 = vunpack.c.h.b16 %v824
        %v1413 = vunpack.c.l.b16 %v825
        %v1414 = vunpack.c.h.b16 %v825
        %v1415 = vunpack.c.l.b16 %v826
        %v1416 = vunpack.c.h.b16 %v826
        %v1417 = vunpack.c.l.b16 %v827
        %v1418 = vunpack.c.h.b16 %v827
        %v1419 = vunpack.c.l.b16 %v828
        %v1420 = vunpack.c.h.b16 %v828
        %v1421 = vunpack.c.l.b16 %v829
        %v1422 = vunpack.c.h.b16 %v829
        %v1423 = vunpack.c.l.b16 %v830
        %v1424 = vunpack.c.h.b16 %v830
        %v1425 = vunpack.c.l.b16 %v831
        %v1426 = vunpack.c.h.b16 %v831
        %v1427 = vunpack.c.l.b16 %v832
        %v1428 = vunpack.c.h.b16 %v832
        %v1429 = vunpack.c.l.b16 %v833
        %v1430 = vunpack.c.h.b16 %v833
        %v1431 = vunpack.c.l.b16 %v834
        %v1432 = vunpack.c.h.b16 %v834
        %v1433 = vunpack.c.l.b16 %v835
        %v1434 = vunpack.c.h.b16 %v835
        %v1435 = vunpack.c.l.b16 %v836
        %v1436 = vunpack.c.h.b16 %v836
        %v1437 = vunpack.c.l.b16 %v837
        %v1438 = vunpack.c.h.b16 %v837
        %v1439 = vunpack.c.l.b16 %v838
        %v1440 = vunpack.c.h.b16 %v838
        %v1441 = vunpack.c.l.b16 %v839
        %v1442 = vunpack.c.h.b16 %v839
        %v1443 = vunpack.c.l.b16 %v840
        %v1444 = vunpack.c.h.b16 %v840
        %v1445 = vunpack.c.l.b16 %v841
        %v1446 = vunpack.c.h.b16 %v841
        %v1447 = vunpack.c.l.b16 %v842
        %v1448 = vunpack.c.h.b16 %v842
        %v1449 = vunpack.c.l.b16 %v843
        %v1450 = vunpack.c.h.b16 %v843
        %v1451 = vunpack.c.l.b16 %v844
        %v1452 = vunpack.c.h.b16 %v844
        %v1453 = vunpack.c.l.b16 %v845
        %v1454 = vunpack.c.h.b16 %v845
        %v1455 = vunpack.c.l.b16 %v846
        %v1456 = vunpack.c.h.b16 %v846
        %v1457 = vunpack.c.l.b16 %v847
        %v1458 = vunpack.c.h.b16 %v847
        %v1459 = vunpack.c.l.b16 %v848
        %v1460 = vunpack.c.h.b16 %v848
        %v1461 = vunpack.c.l.b16 %v849
        %v1462 = vunpack.c.h.b16 %v849
        %v1463 = vunpack.c.l.b16 %v850
        %v1464 = vunpack.c.h.b16 %v850
        %v1465 = vunpack.c.l.b16 %v851
        %v1466 = vunpack.c.h.b16 %v851
        %v1467 = vunpack.c.l.b16 %v852
        %v1468 = vunpack.c.h.b16 %v852
        %v1469 = vunpack.c.l.b16 %v853
        %v1470 = vunpack.c.h.b16 %v853
        %v1471 = vunpack.c.l.b16 %v854
        %v1472 = vunpack.c.h.b16 %v854
        %v1473 = vunpack.c.l.b16 %v855
        %v1474 = vunpack.c.h.b16 %v855
        %v1475 = vunpack.c.l.b16 %v856
        %v1476 = vunpack.c.h.b16 %v856
        %v1477 = vunpack.c.l.b16 %v857
        %v1478 = vunpack.c.h.b16 %v857
        %v1479 = vunpack.c.l.b16 %v858
        %v1480 = vunpack.c.h.b16 %v858
        %v1481 = vunpack.c.l.b16 %v859
        %v1482 = vunpack.c.h.b16 %v859
        %v1483 = vunpack.c.l.b16 %v860
        %v1484 = vunpack.c.h.b16 %v860
        %v1485 = vunpack.c.l.b16 %v861
        %v1486 = vunpack.c.h.b16 %v861
        %v1487 = vunpack.c.l.b16 %v862
        %v1488 = vunpack.c.h.b16 %v862
        %v1489 = vunpack.c.l.b16 %v863
        %v1490 = vunpack.c.h.b16 %v863
        %v1491 = vunpack.c.l.b16 %v864
        %v1492 = vunpack.c.h.b16 %v864
        %v1493 = vunpack.c.l.b16 %v865
        %v1494 = vunpack.c.h.b16 %v865
        %v1495 = vunpack.c.l.b16 %v866
        %v1496 = vunpack.c.h.b16 %v866
        %v1497 = vunpack.c.l.b16 %v867
        %v1498 = vunpack.c.h.b16 %v867
        %v1499 = vunpack.c.l.b16 %v868
        %v1500 = vunpack.c.h.b16 %v868
        %v1501 = vunpack.c.l.b16 %v869
        %v1502 = vunpack.c.h.b16 %v869
        %v1503 = vunpack.c.l.b16 %v870
        %v1504 = vunpack.c.h.b16 %v870
        %v1505 = vunpack.c.l.b16 %v871
        %v1506 = vunpack.c.h.b16 %v871
        %v1507 = vunpack.c.l.b16 %v872
        %v1508 = vunpack.c.h.b16 %v872
        %v1509 = vunpack.c.l.b16 %v873
        %v1510 = vunpack.c.h.b16 %v873
        %v1511 = vunpack.c.l.b16 %v874
        %v1512 = vunpack.c.h.b16 %v874
        %v1513 = vunpack.c.l.b16 %v875
        %v1514 = vunpack.c.h.b16 %v875
        %v1515 = vunpack.c.l.b16 %v876
        %v1516 = vunpack.c.h.b16 %v876
        %v1517 = vunpack.c.l.b16 %v877
        %v1518 = vunpack.c.h.b16 %v877
        %v1519 = vunpack.c.l.b16 %v878
        %v1520 = vunpack.c.h.b16 %v878
        %v1521 = vunpack.c.l.b16 %v879
        %v1522 = vunpack.c.h.b16 %v879
        %v1523 = vunpack.c.l.b16 %v880
        %v1524 = vunpack.c.h.b16 %v880
        %v1525 = vunpack.c.l.b16 %v881
        %v1526 = vunpack.c.h.b16 %v881
        %v1527 = vunpack.c.l.b16 %v882
        %v1528 = vunpack.c.h.b16 %v882
        %v1529 = vunpack.c.l.b16 %v883
        %v1530 = vunpack.c.h.b16 %v883
        %v1531 = vunpack.c.l.b16 %v884
        %v1532 = vunpack.c.h.b16 %v884
        %v1533 = vunpack.c.l.b16 %v885
        %v1534 = vunpack.c.h.b16 %v885
        %v1535 = vunpack.c.l.b16 %v886
        %v1536 = vunpack.c.h.b16 %v886
        %v1537 = vunpack.c.l.b16 %v887
        %v1538 = vunpack.c.h.b16 %v887
        %v1539 = vunpack.c.l.b16 %v888
        %v1540 = vunpack.c.h.b16 %v888
        %v1541 = vunpack.c.l.b16 %v889
        %v1542 = vunpack.c.h.b16 %v889
        %v1543 = vunpack.c.l.b16 %v890
        %v1544 = vunpack.c.h.b16 %v890
        %v1545 = vunpack.c.l.b16 %v891
        %v1546 = vunpack.c.h.b16 %v891
        %v1547 = vunpack.c.l.b16 %v892
        %v1548 = vunpack.c.h.b16 %v892
        %v1549 = vunpack.c.l.b16 %v893
        %v1550 = vunpack.c.h.b16 %v893
        %v1551 = vunpack.c.l.b16 %v894
        %v1552 = vunpack.c.h.b16 %v894
        %v1553 = vunpack.c.l.b16 %v895
        %v1554 = vunpack.c.h.b16 %v895
        %v1555 = vunpack.c.l.b16 %v896
        %v1556 = vunpack.c.h.b16 %v896
        %v1557 = vunpack.c.l.b16 %v897
        %v1558 = vunpack.c.h.b16 %v897
        %v1559 = vunpack.c.l.b16 %v898
        %v1560 = vunpack.c.h.b16 %v898
        %v1561 = vunpack.c.l.b16 %v899
        %v1562 = vunpack.c.h.b16 %v899
        %v1563 = vunpack.c.l.b16 %v900
        %v1564 = vunpack.c.h.b16 %v900
        %v1565 = vunpack.c.l.b16 %v901
        %v1566 = vunpack.c.h.b16 %v901
        %v1567 = vunpack.c.l.b16 %v902
        %v1568 = vunpack.c.h.b16 %v902
        %v1569 = vunpack.c.l.b16 %v903
        %v1570 = vunpack.c.h.b16 %v903
        %v1571 = vunpack.c.l.b16 %v904
        %v1572 = vunpack.c.h.b16 %v904
        %v1573 = vunpack.c.l.b16 %v905
        %v1574 = vunpack.c.h.b16 %v905
        %v1575 = vunpack.c.l.b16 %v906
        %v1576 = vunpack.c.h.b16 %v906
        %v1577 = vunpack.c.l.b16 %v907
        %v1578 = vunpack.c.h.b16 %v907
        %v1579 = vunpack.c.l.b16 %v908
        %v1580 = vunpack.c.h.b16 %v908
        %v1581 = vunpack.c.l.b16 %v909
        %v1582 = vunpack.c.h.b16 %v909
        %v1583 = vunpack.c.l.b16 %v910
        %v1584 = vunpack.c.h.b16 %v910
        %v1585 = vunpack.c.l.b16 %v911
        %v1586 = vunpack.c.h.b16 %v911
        %v1587 = vunpack.c.l.b16 %v912
        %v1588 = vunpack.c.h.b16 %v912
        %v1589 = vunpack.c.l.b16 %v913
        %v1590 = vunpack.c.h.b16 %v913
        %v1591 = vunpack.c.l.b16 %v914
        %v1592 = vunpack.c.h.b16 %v914
        %v1593 = vunpack.c.l.b16 %v915
        %v1594 = vunpack.c.h.b16 %v915
        %v1595 = vunpack.c.l.b16 %v916
        %v1596 = vunpack.c.h.b16 %v916
        %v1597 = vunpack.c.l.b16 %v917
        %v1598 = vunpack.c.h.b16 %v917
        %v1599 = vunpack.c.l.b16 %v918
        %v1600 = vunpack.c.h.b16 %v918
        %v1601 = vunpack.c.l.b16 %v919
        %v1602 = vunpack.c.h.b16 %v919
        %v1603 = vunpack.c.l.b16 %v920
        %v1604 = vunpack.c.h.b16 %v920
        %v1605 = vunpack.c.l.b16 %v921
        %v1606 = vunpack.c.h.b16 %v921
        %v1607 = vunpack.c.l.b16 %v922
        %v1608 = vunpack.c.h.b16 %v922
        %v1609 = vunpack.c.l.b16 %v923
        %v1610 = vunpack.c.h.b16 %v923
        %v1611 = vunpack.c.l.b16 %v924
        %v1612 = vunpack.c.h.b16 %v924
        %v1613 = vunpack.c.l.b16 %v925
        %v1614 = vunpack.c.h.b16 %v925
        %v1615 = vunpack.c.l.b16 %v926
        %v1616 = vunpack.c.h.b16 %v926
        %v1617 = vunpack.c.l.b16 %v927
        %v1618 = vunpack.c.h.b16 %v927
        %v1619 = vunpack.c.l.b16 %v928
        %v1620 = vunpack.c.h.b16 %v928
        %v1621 = vunpack.c.l.b16 %v929
        %v1622 = vunpack.c.h.b16 %v929
        %v1623 = vunpack.c.l.b16 %v930
        %v1624 = vunpack.c.h.b16 %v930
        %v1625 = vunpack.c.l.b16 %v931
        %v1626 = vunpack.c.h.b16 %v931
        %v1627 = vunpack.c.l.b16 %v932
        %v1628 = vunpack.c.h.b16 %v932
        %v1629 = vunpack.c.l.b16 %v933
        %v1630 = vunpack.c.h.b16 %v933
        %v1631 = vunpack.c.l.b16 %v934
        %v1632 = vunpack.c.h.b16 %v934
        %v1633 = vunpack.c.l.b16 %v935
        %v1634 = vunpack.c.h.b16 %v935
        %v1635 = vunpack.c.l.b16 %v936
        %v1636 = vunpack.c.h.b16 %v936
        %v1637 = vunpack.c.l.b16 %v937
        %v1638 = vunpack.c.h.b16 %v937
        %v1639 = vunpack.c.l.b16 %v938
        %v1640 = vunpack.c.h.b16 %v938
        %v1641 = vunpack.c.l.b16 %v939
        %v1642 = vunpack.c.h.b16 %v939
        %v1643 = vunpack.c.l.b16 %v940
        %v1644 = vunpack.c.h.b16 %v940
        %v1645 = vunpack.c.l.b16 %v941
        %v1646 = vunpack.c.h.b16 %v941
        %v1647 = vunpack.c.l.b16 %v942
        %v1648 = vunpack.c.h.b16 %v942
        %v1649 = vunpack.c.l.b16 %v943
        %v1650 = vunpack.c.h.b16 %v943
        %v1651 = vunpack.c.l.b16 %v944
        %v1652 = vunpack.c.h.b16 %v944
        %v1653 = vunpack.c.l.b16 %v945
        %v1654 = vunpack.c.h.b16 %v945
        %v1655 = vunpack.c.l.b16 %v946
        %v1656 = vunpack.c.h.b16 %v946
        %v1657 = vunpack.c.l.b16 %v947
        %v1658 = vunpack.c.h.b16 %v947
        %v1659 = vunpack.c.l.b16 %v948
        %v1660 = vunpack.c.h.b16 %v948
        %v1661 = vunpack.c.l.b16 %v949
        %v1662 = vunpack.c.h.b16 %v949
        %v1663 = vunpack.c.l.b16 %v950
        %v1664 = vunpack.c.h.b16 %v950
        %v1665 = vunpack.c.l.b16 %v951
        %v1666 = vunpack.c.h.b16 %v951
        %v1667 = vunpack.c.l.b16 %v952
        %v1668 = vunpack.c.h.b16 %v952
        %v1669 = vunpack.c.l.b16 %v953
        %v1670 = vunpack.c.h.b16 %v953
        %v1671 = vunpack.c.l.b16 %v954
        %v1672 = vunpack.c.h.b16 %v954
        %v1673 = vunpack.c.l.b16 %v955
        %v1674 = vunpack.c.h.b16 %v955
        %v1675 = vunpack.c.l.b16 %v956
        %v1676 = vunpack.c.h.b16 %v956
        %v1677 = vunpack.c.l.b16 %v957
        %v1678 = vunpack.c.h.b16 %v957
        %v1679 = vunpack.c.l.b16 %v958
        %v1680 = vunpack.c.h.b16 %v958
        %v1681 = vunpack.c.l.b16 %v959
        %v1682 = vunpack.c.h.b16 %v959
        %v1683 = vunpack.c.l.b16 %v960
        %v1684 = vunpack.c.h.b16 %v960
        %v1685 = vunpack.c.l.b16 %v961
        %v1686 = vunpack.c.h.b16 %v961
        %v1687 = vunpack.c.l.b16 %v962
        %v1688 = vunpack.c.h.b16 %v962
        %v1689 = vunpack.c.l.b16 %v963
        %v1690 = vunpack.c.h.b16 %v963
        %v1691 = vunpack.c.l.b16 %v964
        %v1692 = vunpack.c.h.b16 %v964
        %v1693 = vunpack.c.l.b16 %v965
        %v1694 = vunpack.c.h.b16 %v965
        %v1695 = vunpack.c.l.b16 %v966
        %v1696 = vunpack.c.h.b16 %v966
        %v1697 = vunpack.c.l.b16 %v967
        %v1698 = vunpack.c.h.b16 %v967
        %v1699 = vunpack.c.l.b16 %v968
        %v1700 = vunpack.c.h.b16 %v968
        %v1701 = vunpack.c.l.b16 %v969
        %v1702 = vunpack.c.h.b16 %v969
        %v1703 = vunpack.c.l.b16 %v970
        %v1704 = vunpack.c.h.b16 %v970
        %v1705 = vunpack.c.l.b16 %v971
        %v1706 = vunpack.c.h.b16 %v971
        %v1707 = vunpack.c.l.b16 %v972
        %v1708 = vunpack.c.h.b16 %v972
        %v1709 = vunpack.c.l.b16 %v973
        %v1710 = vunpack.c.h.b16 %v973
        %v1711 = vunpack.c.l.b16 %v974
        %v1712 = vunpack.c.h.b16 %v974
        %v1713 = vunpack.c.l.b16 %v975
        %v1714 = vunpack.c.h.b16 %v975
        %v1715 = vunpack.c.l.b16 %v976
        %v1716 = vunpack.c.h.b16 %v976
        %v1717 = vunpack.c.l.b16 %v977
        %v1718 = vunpack.c.h.b16 %v977
        %v1719 = vunpack.c.l.b16 %v978
        %v1720 = vunpack.c.h.b16 %v978
        %v1721 = vunpack.c.l.b16 %v979
        %v1722 = vunpack.c.h.b16 %v979
        %v1723 = vunpack.c.l.b16 %v980
        %v1724 = vunpack.c.h.b16 %v980
        %v1725 = vunpack.c.l.b16 %v981
        %v1726 = vunpack.c.h.b16 %v981
        %v1727 = vunpack.c.l.b16 %v982
        %v1728 = vunpack.c.h.b16 %v982
        %v1729 = vunpack.c.l.b16 %v983
        %v1730 = vunpack.c.h.b16 %v983
        %v1731 = vunpack.c.l.b16 %v984
        %v1732 = vunpack.c.h.b16 %v984
        %v1733 = vunpack.c.l.b16 %v985
        %v1734 = vunpack.c.h.b16 %v985
        %v1735 = vunpack.c.l.b16 %v986
        %v1736 = vunpack.c.h.b16 %v986
        %v1737 = vunpack.c.l.b16 %v987
        %v1738 = vunpack.c.h.b16 %v987
        %v1739 = vunpack.c.l.b16 %v988
        %v1740 = vunpack.c.h.b16 %v988
        %v1741 = vunpack.c.l.b16 %v989
        %v1742 = vunpack.c.h.b16 %v989
        %v1743 = vunpack.c.l.b16 %v990
        %v1744 = vunpack.c.h.b16 %v990
        %v1745 = vunpack.c.l.b16 %v991
        %v1746 = vunpack.c.h.b16 %v991
        %v1747 = vunpack.c.l.b16 %v992
        %v1748 = vunpack.c.h.b16 %v992
        %v1749 = vunpack.c.l.b16 %v993
        %v1750 = vunpack.c.h.b16 %v993
        %v1751 = vunpack.c.l.b16 %v994
        %v1752 = vunpack.c.h.b16 %v994
        %v1753 = vunpack.c.l.b16 %v995
        %v1754 = vunpack.c.h.b16 %v995
        %v1755 = vunpack.c.l.b16 %v996
        %v1756 = vunpack.c.h.b16 %v996
        %v1757 = vunpack.c.l.b16 %v997
        %v1758 = vunpack.c.h.b16 %v997
        %v1759 = vunpack.c.l.b16 %v998
        %v1760 = vunpack.c.h.b16 %v998
        %v1761 = vunpack.c.l.b16 %v999
        %v1762 = vunpack.c.h.b16 %v999
        %v1763 = vunpack.c.l.b16 %v1000
        %v1764 = vunpack.c.h.b16 %v1000
        %v1765 = vunpack.c.l.b16 %v1001
        %v1766 = vunpack.c.h.b16 %v1001
        %v1767 = vunpack.c.l.b16 %v1002
        %v1768 = vunpack.c.h.b16 %v1002
        %v1769 = vunpack.c.l.b16 %v1003
        %v1770 = vunpack.c.h.b16 %v1003
        %v1771 = vunpack.c.l.b16 %v1004
        %v1772 = vunpack.c.h.b16 %v1004
        %v1773 = vunpack.c.l.b16 %v1005
        %v1774 = vunpack.c.h.b16 %v1005
        %v1775 = vunpack.c.l.b16 %v1006
        %v1776 = vunpack.c.h.b16 %v1006
        %v1777 = vunpack.c.l.b16 %v1007
        %v1778 = vunpack.c.h.b16 %v1007
        %v1779 = vunpack.c.l.b16 %v1008
        %v1780 = vunpack.c.h.b16 %v1008
        %v1781 = vunpack.c.l.b16 %v1009
        %v1782 = vunpack.c.h.b16 %v1009
        %v1783 = vunpack.c.l.b16 %v1010
        %v1784 = vunpack.c.h.b16 %v1010
        %v1785 = vunpack.c.l.b16 %v1011
        %v1786 = vunpack.c.h.b16 %v1011
        %v1787 = vunpack.c.l.b16 %v1012
        %v1788 = vunpack.c.h.b16 %v1012
        %v1789 = vunpack.c.l.b16 %v1013
        %v1790 = vunpack.c.h.b16 %v1013
        %v1791 = vunpack.c.l.b16 %v1014
        %v1792 = vunpack.c.h.b16 %v1014
        %v1793 = vunpack.c.l.b16 %v1015
        %v1794 = vunpack.c.h.b16 %v1015
        %v1795 = vunpack.c.l.b16 %v1016
        %v1796 = vunpack.c.h.b16 %v1016
        %v1797 = vunpack.c.l.b16 %v1017
        %v1798 = vunpack.c.h.b16 %v1017
        %v1799 = vunpack.c.l.b16 %v1018
        %v1800 = vunpack.c.h.b16 %v1018
        %v1801 = vunpack.c.l.b16 %v1019
        %v1802 = vunpack.c.h.b16 %v1019
        %v1803 = vunpack.c.l.b16 %v1020
        %v1804 = vunpack.c.h.b16 %v1020
        %v1805 = vunpack.c.l.b16 %v1021
        %v1806 = vunpack.c.h.b16 %v1021
        %v1807 = vunpack.c.l.b16 %v1022
        %v1808 = vunpack.c.h.b16 %v1022
        %v1809 = vunpack.c.l.b16 %v1023
        %v1810 = vunpack.c.h.b16 %v1023
        %v1811 = vunpack.c.l.b16 %v1024
        %v1812 = vunpack.c.h.b16 %v1024
        %v1813 = vunpack.c.l.b16 %v1025
        %v1814 = vunpack.c.h.b16 %v1025
        %v1815 = vunpack.c.l.b16 %v1026
        %v1816 = vunpack.c.h.b16 %v1026
        %v1817 = vunpack.c.l.b16 %v1027
        %v1818 = vunpack.c.h.b16 %v1027
        %v1819 = vunpack.c.l.b16 %v1028
        %v1820 = vunpack.c.h.b16 %v1028
        %v1821 = vunpack.c.l.b16 %v1029
        %v1822 = vunpack.c.h.b16 %v1029
        %v1823 = vunpack.c.l.b16 %v1030
        %v1824 = vunpack.c.h.b16 %v1030
        %v1825 = vunpack.c.l.b16 %v1031
        %v1826 = vunpack.c.h.b16 %v1031
        %v1827 = vunpack.c.l.b16 %v1032
        %v1828 = vunpack.c.h.b16 %v1032
        %v1829 = vunpack.c.l.b16 %v1033
        %v1830 = vunpack.c.h.b16 %v1033
        %v1831 = vunpack.c.l.b16 %v1034
        %v1832 = vunpack.c.h.b16 %v1034
        %v1833 = vunpack.c.l.b16 %v1035
        %v1834 = vunpack.c.h.b16 %v1035
        %v1835 = vunpack.c.l.b16 %v1036
        %v1836 = vunpack.c.h.b16 %v1036
        %v1837 = vunpack.c.l.b16 %v1037
        %v1838 = vunpack.c.h.b16 %v1037
        %v1839 = vunpack.c.l.b16 %v1038
        %v1840 = vunpack.c.h.b16 %v1038
        %v1841 = vunpack.c.l.b16 %v1039
        %v1842 = vunpack.c.h.b16 %v1039
        %v1843 = vunpack.c.l.b16 %v1040
        %v1844 = vunpack.c.h.b16 %v1040
        %v1845 = vunpack.c.l.b16 %v1041
        %v1846 = vunpack.c.h.b16 %v1041
        %v1847 = vunpack.c.l.b16 %v1042
        %v1848 = vunpack.c.h.b16 %v1042
        %v1849 = vunpack.c.l.b16 %v1043
        %v1850 = vunpack.c.h.b16 %v1043
        %v1851 = vunpack.c.l.b16 %v1044
        %v1852 = vunpack.c.h.b16 %v1044
        %v1853 = vunpack.c.l.b16 %v1045
        %v1854 = vunpack.c.h.b16 %v1045
        %v1855 = vunpack.c.l.b16 %v1046
        %v1856 = vunpack.c.h.b16 %v1046
        %v1857 = vunpack.c.l.b16 %v1047
        %v1858 = vunpack.c.h.b16 %v1047
        %v1859 = vunpack.c.l.b16 %v1048
        %v1860 = vunpack.c.h.b16 %v1048
        %v1861 = vunpack.c.l.b16 %v1049
        %v1862 = vunpack.c.h.b16 %v1049
        %v1863 = vunpack.c.l.b16 %v1050
        %v1864 = vunpack.c.h.b16 %v1050
        %v1865 = vunpack.c.l.b16 %v1051
        %v1866 = vunpack.c.h.b16 %v1051
        %v1867 = vunpack.c.l.b16 %v1052
        %v1868 = vunpack.c.h.b16 %v1052
        %v1869 = vunpack.c.l.b16 %v1053
        %v1870 = vunpack.c.h.b16 %v1053
        %v1871 = vunpack.c.l.b16 %v1054
        %v1872 = vunpack.c.h.b16 %v1054
        %v1873 = vunpack.c.l.b16 %v1055
        %v1874 = vunpack.c.h.b16 %v1055
        %v1875 = vunpack.c.l.b16 %v1056
        %v1876 = vunpack.c.h.b16 %v1056
        %v1877 = vunpack.c.l.b16 %v1057
        %v1878 = vunpack.c.h.b16 %v1057
        %v1879 = vunpack.c.l.b16 %v1058
        %v1880 = vunpack.c.h.b16 %v1058
        %v1881 = vunpack.c.l.b16 %v1059
        %v1882 = vunpack.c.h.b16 %v1059
        %v1883 = vunpack.c.l.b16 %v1060
        %v1884 = vunpack.c.h.b16 %v1060
        %v1885 = vunpack.c.l.b16 %v1061
        %v1886 = vunpack.c.h.b16 %v1061
        %v1887 = vunpack.c.l.b16 %v1062
        %v1888 = vunpack.c.h.b16 %v1062
        %v1889 = vunpack.c.l.b16 %v1063
        %v1890 = vunpack.c.h.b16 %v1063
        %v1891 = vunpack.c.l.b16 %v1064
        %v1892 = vunpack.c.h.b16 %v1064
        %v1893 = vunpack.c.l.b16 %v1065
        %v1894 = vunpack.c.h.b16 %v1065
        %v1895 = vunpack.c.l.b16 %v1066
        %v1896 = vunpack.c.h.b16 %v1066
        %v1897 = vunpack.c.l.b16 %v1067
        %v1898 = vunpack.c.h.b16 %v1067
        %v1899 = vunpack.c.l.b16 %v1068
        %v1900 = vunpack.c.h.b16 %v1068
        %v1901 = vunpack.c.l.b16 %v1069
        %v1902 = vunpack.c.h.b16 %v1069
        %v1903 = vunpack.c.l.b16 %v1070
        %v1904 = vunpack.c.h.b16 %v1070
        %v1905 = vunpack.c.l.b16 %v1071
        %v1906 = vunpack.c.h.b16 %v1071
        %v1907 = vunpack.c.l.b16 %v1072
        %v1908 = vunpack.c.h.b16 %v1072
        %v1909 = vunpack.c.l.b16 %v1073
        %v1910 = vunpack.c.h.b16 %v1073
        %v1911 = vunpack.c.l.b16 %v1074
        %v1912 = vunpack.c.h.b16 %v1074
        %v1913 = vunpack.c.l.b16 %v1075
        %v1914 = vunpack.c.h.b16 %v1075
        %v1915 = vunpack.c.l.b16 %v1076
        %v1916 = vunpack.c.h.b16 %v1076
        %v1917 = vunpack.c.l.b16 %v1077
        %v1918 = vunpack.c.h.b16 %v1077
        %v1919 = vunpack.c.l.b16 %v1078
        %v1920 = vunpack.c.h.b16 %v1078
        %v1921 = vunpack.c.l.b16 %v1079
        %v1922 = vunpack.c.h.b16 %v1079
        %v1923 = vunpack.c.l.b16 %v1080
        %v1924 = vunpack.c.h.b16 %v1080
        %v1925 = vunpack.c.l.b16 %v1081
        %v1926 = vunpack.c.h.b16 %v1081
        %v1927 = vunpack.c.l.b16 %v1082
        %v1928 = vunpack.c.h.b16 %v1082
        %v1929 = vunpack.c.l.b16 %v1083
        %v1930 = vunpack.c.h.b16 %v1083
        %v1931 = vunpack.c.l.b16 %v1084
        %v1932 = vunpack.c.h.b16 %v1084
        %v1933 = vunpack.c.l.b16 %v1085
        %v1934 = vunpack.c.h.b16 %v1085
        %v1935 = vunpack.c.l.b16 %v1086
        %v1936 = vunpack.c.h.b16 %v1086
        %v1937 = vunpack.c.l.b16 %v1087
        %v1938 = vunpack.c.h.b16 %v1087
        %v1939 = vunpack.c.l.b16 %v1088
        %v1940 = vunpack.c.h.b16 %v1088
        %v1941 = vunpack.c.l.b16 %v1089
        %v1942 = vunpack.c.h.b16 %v1089
        %v1943 = vunpack.c.l.b16 %v1090
        %v1944 = vunpack.c.h.b16 %v1090
        %v1945 = vunpack.c.l.b16 %v1091
        %v1946 = vunpack.c.h.b16 %v1091
        %v1947 = vunpack.c.l.b16 %v1092
        %v1948 = vunpack.c.h.b16 %v1092
        %v1949 = vunpack.c.l.b16 %v1093
        %v1950 = vunpack.c.h.b16 %v1093
        %v1951 = vunpack.c.l.b16 %v1094
        %v1952 = vunpack.c.h.b16 %v1094
        %v1953 = vunpack.c.l.b16 %v1095
        %v1954 = vunpack.c.h.b16 %v1095
        %v1955 = vunpack.c.l.b16 %v1096
        %v1956 = vunpack.c.h.b16 %v1096
        %v1957 = vunpack.c.l.b16 %v1097
        %v1958 = vunpack.c.h.b16 %v1097
        %v1959 = vunpack.c.l.b16 %v1098
        %v1960 = vunpack.c.h.b16 %v1098
        %v1961 = vunpack.c.l.b16 %v1099
        %v1962 = vunpack.c.h.b16 %v1099
        %v1963 = vunpack.c.l.b16 %v1100
        %v1964 = vunpack.c.h.b16 %v1100
        %v1965 = vpack.c.b16 %v1407, %v1389
        %v1966 = vpack.c.b16 %v1408, %v1390
        %v1967 = vpack.c.b16 %v1409, %v1391
        %v1968 = vpack.c.b16 %v1410, %v1392
        %v1969 = vpack.c.b16 %v1411, %v1393
        %v1970 = vpack.c.b16 %v1412, %v1394
        %v1971 = vpack.c.b16 %v1413, %v1395
        %v1972 = vpack.c.b16 %v1414, %v1396
        %v1973 = vpack.c.b16 %v1415, %v1397
        %v1974 = vpack.c.b16 %v1416, %v1398
        %v1975 = vpack.c.b16 %v1417, %v1399
        %v1976 = vpack.c.b16 %v1418, %v1400
        %v1977 = vpack.c.b16 %v1419, %v1401
        %v1978 = vpack.c.b16 %v1420, %v1402
        %v1979 = vpack.c.b16 %v1421, %v1403
        %v1980 = vpack.c.b16 %v1422, %v1404
        %v1981 = vpack.c.b16 %v1423, %v1405
        %v1982 = vpack.c.b16 %v1424, %v1406
        %v1983 = vpack.c.b16 %v1443, %v1425
        %v1984 = vpack.c.b16 %v1444, %v1426
        %v1985 = vpack.c.b16 %v1445, %v1427
        %v1986 = vpack.c.b16 %v1446, %v1428
        %v1987 = vpack.c.b16 %v1447, %v1429
        %v1988 = vpack.c.b16 %v1448, %v1430
        %v1989 = vpack.c.b16 %v1449, %v1431
        %v1990 = vpack.c.b16 %v1450, %v1432
        %v1991 = vpack.c.b16 %v1451, %v1433
        %v1992 = vpack.c.b16 %v1452, %v1434
        %v1993 = vpack.c.b16 %v1453, %v1435
        %v1994 = vpack.c.b16 %v1454, %v1436
        %v1995 = vpack.c.b16 %v1455, %v1437
        %v1996 = vpack.c.b16 %v1456, %v1438
        %v1997 = vpack.c.b16 %v1457, %v1439
        %v1998 = vpack.c.b16 %v1458, %v1440
        %v1999 = vpack.c.b16 %v1459, %v1441
        %v2000 = vpack.c.b16 %v1460, %v1442
        %v2001 = vpack.c.b16 %v1479, %v1461
        %v2002 = vpack.c.b16 %v1480, %v1462
        %v2003 = vpack.c.b16 %v1481, %v1463
        %v2004 = vpack.c.b16 %v1482, %v1464
        %v2005 = vpack.c.b16 %v1483, %v1465
        %v2006 = vpack.c.b16 %v1484, %v1466
        %v2007 = vpack.c.b16 %v1485, %v1467
        %v2008 = vpack.c.b16 %v1486, %v1468
        %v2009 = vpack.c.b16 %v1487, %v1469
        %v2010 = vpack.c.b16 %v1488, %v1470
        %v2011 = vpack.c.b16 %v1489, %v1471
        %v2012 = vpack.c.b16 %v1490, %v1472
        %v2013 = vpack.c.b16 %v1491, %v1473
        %v2014 = vpack.c.b16 %v1492, %v1474
        %v2015 = vpack.c.b16 %v1493, %v1475
        %v2016 = vpack.c.b16 %v1494, %v1476
        %v2017 = vpack.c.b16 %v1495, %v1477
        %v2018 = vpack.c.b16 %v1496, %v1478
        %v2019 = vpack.c.b16 %v1515, %v1497
        %v2020 = vpack.c.b16 %v1516, %v1498
        %v2021 = vpack.c.b16 %v1517, %v1499
        %v2022 = vpack.c.b16 %v1518, %v1500
        %v2023 = vpack.c.b16 %v1519, %v1501
        %v2024 = vpack.c.b16 %v1520, %v1502
        %v2025 = vpack.c.b16 %v1521, %v1503
        %v2026 = vpack.c.b16 %v1522, %v1504
        %v2027 = vpack.c.b16 %v1523, %v1505
        %v2028 = vpack.c.b16 %v1524, %v1506
        %v2029 = vpack.c.b16 %v1525, %v1507
        %v2030 = vpack.c.b16 %v1526, %v1508
        %v2031 = vpack.c.b16 %v1527, %v1509
        %v2032 = vpack.c.b16 %v1528, %v1510
        %v2033 = vpack.c.b16 %v1529, %v1511
        %v2034 = vpack.c.b16 %v1530, %v1512
        %v2035 = vpack.c.b16 %v1531, %v1513
        %v2036 = vpack.c.b16 %v1532, %v1514
        %v2037 = vpack.c.b16 %v1551, %v1533
        %v2038 = vpack.c.b16 %v1552, %v1534
        %v2039 = vpack.c.b16 %v1553, %v1535
        %v2040 = vpack.c.b16 %v1554, %v1536
        %v2041 = vpack.c.b16 %v1555, %v1537
        %v2042 = vpack.c.b16 %v1556, %v1538
        %v2043 = vpack.c.b16 %v1557, %v1539
        %v2044 = vpack.c.b16 %v1558, %v1540
        %v2045 = vpack.c.b16 %v1559, %v1541
        %v2046 = vpack.c.b16 %v1560, %v1542
        %v2047 = vpack.c.b16 %v1561, %v1543
        %v2048 = vpack.c.b16 %v1562, %v1544
        %v2049 = vpack.c.b16 %v1563, %v1545
        %v2050 = vpack.c.b16 %v1564, %v1546
        %v2051 = vpack.c.b16 %v1565, %v1547
        %v2052 = vpack.c.b16 %v1566, %v1548
        %v2053 = vpack.c.b16 %v1567, %v1549
        %v2054 = vpack.c.b16 %v1568, %v1550
        %v2055 = vpack.c.b16 %v1587, %v1569
        %v2056 = vpack.c.b16 %v1588, %v1570
        %v2057 = vpack.c.b16 %v1589, %v1571
        %v2058 = vpack.c.b16 %v1590, %v1572
        %v2059 = vpack.c.b16 %v1591, %v1573
        %v2060 = vpack.c.b16 %v1592, %v1574
        %v2061 = vpack.c.b16 %v1593, %v1575
        %v2062 = vpack.c.b16 %v1594, %v1576
        %v2063 = vpack.c.b16 %v1595, %v1577
        %v2064 = vpack.c.b16 %v1596, %v1578
        %v2065 = vpack.c.b16 %v1597, %v1579
        %v2066 = vpack.c.b16 %v1598, %v1580
        %v2067 = vpack.c.b16 %v1599, %v1581
        %v2068 = vpack.c.b16 %v1600, %v1582
        %v2069 = vpack.c.b16 %v1601, %v1583
        %v2070 = vpack.c.b16 %v1602, %v1584
        %v2071 = vpack.c.b16 %v1603, %v1585
        %v2072 = vpack.c.b16 %v1604, %v1586
        %v2073 = vpack.c.b16 %v1623, %v1605
        %v2074 = vpack.c.b16 %v1624, %v1606
        %v2075 = vpack.c.b16 %v1625, %v1607
        %v2076 = vpack.c.b16 %v1626, %v1608
        %v2077 = vpack.c.b16 %v1627, %v1609
        %v2078 = vpack.c.b16 %v1628, %v1610
        %v2079 = vpack.c.b16 %v1629, %v1611
        %v2080 = vpack.c.b16 %v1630, %v1612
        %v2081 = vpack.c.b16 %v1631, %v1613
        %v2082 = vpack.c.b16 %v1632, %v1614
        %v2083 = vpack.c.b16 %v1633, %v1615
        %v2084 = vpack.c.b16 %v1634, %v1616
        %v2085 = vpack.c.b16 %v1635, %v1617
        %v2086 = vpack.c.b16 %v1636, %v1618
        %v2087 = vpack.c.b16 %v1637, %v1619
        %v2088 = vpack.c.b16 %v1638, %v1620
        %v2089 = vpack.c.b16 %v1639, %v1621
        %v2090 = vpack.c.b16 %v1640, %v1622
        %v2091 = vpack.c.b16 %v1659, %v1641
        %v2092 = vpack.c.b16 %v1660, %v1642
        %v2093 = vpack.c.b16 %v1661, %v1643
        %v2094 = vpack.c.b16 %v1662, %v1644
        %v2095 = vpack.c.b16 %v1663, %v1645
        %v2096 = vpack.c.b16 %v1664, %v1646
        %v2097 = vpack.c.b16 %v1665, %v1647
        %v2098 = vpack.c.b16 %v1666, %v1648
        %v2099 = vpack.c.b16 %v1667, %v1649
        %v2100 = vpack.c.b16 %v1668, %v1650
        %v2101 = vpack.c.b16 %v1669, %v1651
        %v2102 = vpack.c.b16 %v1670, %v1652
        %v2103 = vpack.c.b16 %v1671, %v1653
        %v2104 = vpack.c.b16 %v1672, %v1654
        %v2105 = vpack.c.b16 %v1673, %v1655
        %v2106 = vpack.c.b16 %v1674, %v1656
        %v2107 = vpack.c.b16 %v1675, %v1657
        %v2108 = vpack.c.b16 %v1676, %v1658
        %v2109 = vpack.c.b16 %v1695, %v1677
        %v2110 = vpack.c.b16 %v1696, %v1678
        %v2111 = vpack.c.b16 %v1697, %v1679
        %v2112 = vpack.c.b16 %v1698, %v1680
        %v2113 = vpack.c.b16 %v1699, %v1681
        %v2114 = vpack.c.b16 %v1700, %v1682
        %v2115 = vpack.c.b16 %v1701, %v1683
        %v2116 = vpack.c.b16 %v1702, %v1684
        %v2117 = vpack.c.b16 %v1703, %v1685
        %v2118 = vpack.c.b16 %v1704, %v1686
        %v2119 = vpack.c.b16 %v1705, %v1687
        %v2120 = vpack.c.b16 %v1706, %v1688
        %v2121 = vpack.c.b16 %v1707, %v1689
        %v2122 = vpack.c.b16 %v1708, %v1690
        %v2123 = vpack.c.b16 %v1709, %v1691
        %v2124 = vpack.c.b16 %v1710, %v1692
        %v2125 = vpack.c.b16 %v1711, %v1693
        %v2126 = vpack.c.b16 %v1712, %v1694
        %v2127 = vpack.c.b16 %v1731, %v1713
        %v2128 = vpack.c.b16 %v1732, %v1714
        %v2129 = vpack.c.b16 %v1733, %v1715
        %v2130 = vpack.c.b16 %v1734, %v1716
        %v2131 = vpack.c.b16 %v1735, %v1717
        %v2132 = vpack.c.b16 %v1736, %v1718
        %v2133 = vpack.c.b16 %v1737, %v1719
        %v2134 = vpack.c.b16 %v1738, %v1720
        %v2135 = vpack.c.b16 %v1739, %v1721
        %v2136 = vpack.c.b16 %v1740, %v1722
        %v2137 = vpack.c.b16 %v1741, %v1723
        %v2138 = vpack.c.b16 %v1742, %v1724
        %v2139 = vpack.c.b16 %v1743, %v1725
        %v2140 = vpack.c.b16 %v1744, %v1726
        %v2141 = vpack.c.b16 %v1745, %v1727
        %v2142 = vpack.c.b16 %v1746, %v1728
        %v2143 = vpack.c.b16 %v1747, %v1729
        %v2144 = vpack.c.b16 %v1748, %v1730
        %v2145 = vpack.c.b16 %v1767, %v1749
        %v2146 = vpack.c.b16 %v1768, %v1750
        %v2147 = vpack.c.b16 %v1769, %v1751
        %v2148 = vpack.c.b16 %v1770, %v1752
        %v2149 = vpack.c.b16 %v1771, %v1753
        %v2150 = vpack.c.b16 %v1772, %v1754
        %v2151 = vpack.c.b16 %v1773, %v1755
        %v2152 = vpack.c.b16 %v1774, %v1756
        %v2153 = vpack.c.b16 %v1775, %v1757
        %v2154 = vpack.c.b16 %v1776, %v1758
        %v2155 = vpack.c.b16 %v1777, %v1759
        %v2156 = vpack.c.b16 %v1778, %v1760
        %v2157 = vpack.c.b16 %v1779, %v1761
        %v2158 = vpack.c.b16 %v1780, %v1762
        %v2159 = vpack.c.b16 %v1781, %v1763
        %v2160 = vpack.c.b16 %v1782, %v1764
        %v2161 = vpack.c.b16 %v1783, %v1765
        %v2162 = vpack.c.b16 %v1784, %v1766
        %v2163 = vpack.c.b16 %v1803, %v1785
        %v2164 = vpack.c.b16 %v1804, %v1786
        %v2165 = vpack.c.b16 %v1805, %v1787
        %v2166 = vpack.c.b16 %v1806, %v1788
        %v2167 = vpack.c.b16 %v1807, %v1789
        %v2168 = vpack.c.b16 %v1808, %v1790
        %v2169 = vpack.c.b16 %v1809, %v1791
        %v2170 = vpack.c.b16 %v1810, %v1792
        %v2171 = vpack.c.b16 %v1811, %v1793
        %v2172 = vpack.c.b16 %v1812, %v1794
        %v2173 = vpack.c.b16 %v1813, %v1795
        %v2174 = vpack.c.b16 %v1814, %v1796
        %v2175 = vpack.c.b16 %v1815, %v1797
        %v2176 = vpack.c.b16 %v1816, %v1798
        %v2177 = vpack.c.b16 %v1817, %v1799
        %v2178 = vpack.c.b16 %v1818, %v1800
        %v2179 = vpack.c.b16 %v1819, %v1801
        %v2180 = vpack.c.b16 %v1820, %v1802
        %v2181 = vpack.c.b16 %v1839, %v1821
        %v2182 = vpack.c.b16 %v1840, %v1822
        %v2183 = vpack.c.b16 %v1841, %v1823
        %v2184 = vpack.c.b16 %v1842, %v1824
        %v2185 = vpack.c.b16 %v1843, %v1825
        %v2186 = vpack.c.b16 %v1844, %v1826
        %v2187 = vpack.c.b16 %v1845, %v1827
        %v2188 = vpack.c.b16 %v1846, %v1828
        %v2189 = vpack.c.b16 %v1847, %v1829
        %v2190 = vpack.c.b16 %v1848, %v1830
        %v2191 = vpack.c.b16 %v1849, %v1831
        %v2192 = vpack.c.b16 %v1850, %v1832
        %v2193 = vpack.c.b16 %v1851, %v1833
        %v2194 = vpack.c.b16 %v1852, %v1834
        %v2195 = vpack.c.b16 %v1853, %v1835
        %v2196 = vpack.c.b16 %v1854, %v1836
        %v2197 = vpack.c.b16 %v1855, %v1837
        %v2198 = vpack.c.b16 %v1856, %v1838
        %v2199 = vpack.c.b16 %v1875, %v1857
        %v2200 = vpack.c.b16 %v1876, %v1858
        %v2201 = vpack.c.b16 %v1877, %v1859
        %v2202 = vpack.c.b16 %v1878, %v1860
        %v2203 = vpack.c.b16 %v1879, %v1861
        %v2204 = vpack.c.b16 %v1880, %v1862
        %v2205 = vpack.c.b16 %v1881, %v1863
        %v2206 = vpack.c.b16 %v1882, %v1864
        %v2207 = vpack.c.b16 %v1883, %v1865
        %v2208 = vpack.c.b16 %v1884, %v1866
        %v2209 = vpack.c.b16 %v1885, %v1867
        %v2210 = vpack.c.b16 %v1886, %v1868
        %v2211 = vpack.c.b16 %v1887, %v1869
        %v2212 = vpack.c.b16 %v1888, %v1870
        %v2213 = vpack.c.b16 %v1889, %v1871
        %v2214 = vpack.c.b16 %v1890, %v1872
        %v2215 = vpack.c.b16 %v1891, %v1873
        %v2216 = vpack.c.b16 %v1892, %v1874
        %v2217 = vpack.c.b16 %v1911, %v1893
        %v2218 = vpack.c.b16 %v1912, %v1894
        %v2219 = vpack.c.b16 %v1913, %v1895
        %v2220 = vpack.c.b16 %v1914, %v1896
        %v2221 = vpack.c.b16 %v1915, %v1897
        %v2222 = vpack.c.b16 %v1916, %v1898
        %v2223 = vpack.c.b16 %v1917, %v1899
        %v2224 = vpack.c.b16 %v1918, %v1900
        %v2225 = vpack.c.b16 %v1919, %v1901
        %v2226 = vpack.c.b16 %v1920, %v1902
        %v2227 = vpack.c.b16 %v1921, %v1903
        %v2228 = vpack.c.b16 %v1922, %v1904
        %v2229 = vpack.c.b16 %v1923, %v1905
        %v2230 = vpack.c.b16 %v1924, %v1906
        %v2231 = vpack.c.b16 %v1925, %v1907
        %v2232 = vpack.c.b16 %v1926, %v1908
        %v2233 = vpack.c.b16 %v1927, %v1909
        %v2234 = vpack.c.b16 %v1928, %v1910
        %v2235 = vpack.c.b16 %v1947, %v1929
        %v2236 = vpack.c.b16 %v1948, %v1930
        %v2237 = vpack.c.b16 %v1949, %v1931
        %v2238 = vpack.c.b16 %v1950, %v1932
        %v2239 = vpack.c.b16 %v1951, %v1933
        %v2240 = vpack.c.b16 %v1952, %v1934
        %v2241 = vpack.c.b16 %v1953, %v1935
        %v2242 = vpack.c.b16 %v1954, %v1936
        %v2243 = vpack.c.b16 %v1955, %v1937
        %v2244 = vpack.c.b16 %v1956, %v1938
        %v2245 = vpack.c.b16 %v1957, %v1939
        %v2246 = vpack.c.b16 %v1958, %v1940
        %v2247 = vpack.c.b16 %v1959, %v1941
        %v2248 = vpack.c.b16 %v1960, %v1942
        %v2249 = vpack.c.b16 %v1961, %v1943
        %v2250 = vpack.c.b16 %v1962, %v1944
        %v2251 = vpack.c.b16 %v1963, %v1945
        %v2252 = vpack.c.b16 %v1964, %v1946
        %2541 = vmatpush.bf16.msra.mxu0 %v2091
        %2542 = vmatpush.bf16.msra.mxu0 %v2073
        %2543 = vmatpush.bf16.msra.mxu0 %v2055
        %2544 = vmatpush.bf16.msra.mxu0 %v2037
        %2545 = vmatpush.bf16.msra.mxu0 %v2019
        %2546 = vmatpush.bf16.msra.mxu0 %v2001
        %2547 = vmatpush.bf16.msra.mxu0 %v1983
        %2548 = vmatpush.bf16.msra.mxu0 %v1965
        %2549 = vmatmul.bf16.gmra.mxu0 %v811
        %v2550 = vpop.f32.mrf.mxu0
        %v2551 = vadd.f32 0.0, %v2550
        %v2552 = vpop.f32.mrf.mxu0
        %2553 = vdwg.mxu0
        %2554 = vmatpush.bf16.msra.mxu0 %v2235
        %2555 = vmatpush.bf16.msra.mxu0 %v2217
        %2556 = vmatpush.bf16.msra.mxu0 %v2199
        %2557 = vmatpush.bf16.msra.mxu0 %v2181
        %2558 = vmatpush.bf16.msra.mxu0 %v2163
        %2559 = vmatpush.bf16.msra.mxu0 %v2145
        %2560 = vmatpush.bf16.msra.mxu0 %v2127
        %2561 = vmatpush.bf16.msra.mxu0 %v2109
        %2562 = vmatmul.bf16.gmra.mxu0 %v812
        %v2563 = vpop.f32.mrf.mxu0
        %v2564 = vadd.f32 %v2551, %v2563
        %v2565 = vpop.f32.mrf.mxu0
        %2566 = vdwg.mxu0
        %2567 = vmatpush.bf16.msra.mxu0 %v2092
        %2568 = vmatpush.bf16.msra.mxu0 %v2074
        %2569 = vmatpush.bf16.msra.mxu0 %v2056
        %2570 = vmatpush.bf16.msra.mxu0 %v2038
        %2571 = vmatpush.bf16.msra.mxu0 %v2020
        %2572 = vmatpush.bf16.msra.mxu0 %v2002
        %2573 = vmatpush.bf16.msra.mxu0 %v1984
        %2574 = vmatpush.bf16.msra.mxu0 %v1966
        %2575 = vmatmul.bf16.gmra.mxu0 %v811
        %v2576 = vpop.f32.mrf.mxu0
        %v2577 = vadd.f32 0.0, %v2576
        %v2578 = vpop.f32.mrf.mxu0
        %2579 = vdwg.mxu0
        %2580 = vmatpush.bf16.msra.mxu0 %v2236
        %2581 = vmatpush.bf16.msra.mxu0 %v2218
        %2582 = vmatpush.bf16.msra.mxu0 %v2200
        %2583 = vmatpush.bf16.msra.mxu0 %v2182
        %2584 = vmatpush.bf16.msra.mxu0 %v2164
        %2585 = vmatpush.bf16.msra.mxu0 %v2146
        %2586 = vmatpush.bf16.msra.mxu0 %v2128
        %2587 = vmatpush.bf16.msra.mxu0 %v2110
        %2588 = vmatmul.bf16.gmra.mxu0 %v812
        %v2589 = vpop.f32.mrf.mxu0
        %v2590 = vadd.f32 %v2577, %v2589
        %v2591 = vpop.f32.mrf.mxu0
        %2592 = vdwg.mxu0
        %2593 = vmatpush.bf16.msra.mxu0 %v2093
        %2594 = vmatpush.bf16.msra.mxu0 %v2075
        %2595 = vmatpush.bf16.msra.mxu0 %v2057
        %2596 = vmatpush.bf16.msra.mxu0 %v2039
        %2597 = vmatpush.bf16.msra.mxu0 %v2021
        %2598 = vmatpush.bf16.msra.mxu0 %v2003
        %2599 = vmatpush.bf16.msra.mxu0 %v1985
        %2600 = vmatpush.bf16.msra.mxu0 %v1967
        %2601 = vmatmul.bf16.gmra.mxu0 %v811
        %v2602 = vpop.f32.mrf.mxu0
        %v2603 = vadd.f32 0.0, %v2602
        %v2604 = vpop.f32.mrf.mxu0
        %2605 = vdwg.mxu0
        %2606 = vmatpush.bf16.msra.mxu0 %v2237
        %2607 = vmatpush.bf16.msra.mxu0 %v2219
        %2608 = vmatpush.bf16.msra.mxu0 %v2201
        %2609 = vmatpush.bf16.msra.mxu0 %v2183
        %2610 = vmatpush.bf16.msra.mxu0 %v2165
        %2611 = vmatpush.bf16.msra.mxu0 %v2147
        %2612 = vmatpush.bf16.msra.mxu0 %v2129
        %2613 = vmatpush.bf16.msra.mxu0 %v2111
        %2614 = vmatmul.bf16.gmra.mxu0 %v812
        %v2615 = vpop.f32.mrf.mxu0
        %v2616 = vadd.f32 %v2603, %v2615
        %v2617 = vpop.f32.mrf.mxu0
        %2618 = vdwg.mxu0
        %2619 = vmatpush.bf16.msra.mxu0 %v2094
        %2620 = vmatpush.bf16.msra.mxu0 %v2076
        %2621 = vmatpush.bf16.msra.mxu0 %v2058
        %2622 = vmatpush.bf16.msra.mxu0 %v2040
        %2623 = vmatpush.bf16.msra.mxu0 %v2022
        %2624 = vmatpush.bf16.msra.mxu0 %v2004
        %2625 = vmatpush.bf16.msra.mxu0 %v1986
        %2626 = vmatpush.bf16.msra.mxu0 %v1968
        %2627 = vmatmul.bf16.gmra.mxu0 %v811
        %v2628 = vpop.f32.mrf.mxu0
        %v2629 = vadd.f32 0.0, %v2628
        %v2630 = vpop.f32.mrf.mxu0
        %2631 = vdwg.mxu0
        %2632 = vmatpush.bf16.msra.mxu0 %v2238
        %2633 = vmatpush.bf16.msra.mxu0 %v2220
        %2634 = vmatpush.bf16.msra.mxu0 %v2202
        %2635 = vmatpush.bf16.msra.mxu0 %v2184
        %2636 = vmatpush.bf16.msra.mxu0 %v2166
        %2637 = vmatpush.bf16.msra.mxu0 %v2148
        %2638 = vmatpush.bf16.msra.mxu0 %v2130
        %2639 = vmatpush.bf16.msra.mxu0 %v2112
        %2640 = vmatmul.bf16.gmra.mxu0 %v812
        %v2641 = vpop.f32.mrf.mxu0
        %v2642 = vadd.f32 %v2629, %v2641
        %v2643 = vpop.f32.mrf.mxu0
        %2644 = vdwg.mxu0
        %2645 = vmatpush.bf16.msra.mxu0 %v2095
        %2646 = vmatpush.bf16.msra.mxu0 %v2077
        %2647 = vmatpush.bf16.msra.mxu0 %v2059
        %2648 = vmatpush.bf16.msra.mxu0 %v2041
        %2649 = vmatpush.bf16.msra.mxu0 %v2023
        %2650 = vmatpush.bf16.msra.mxu0 %v2005
        %2651 = vmatpush.bf16.msra.mxu0 %v1987
        %2652 = vmatpush.bf16.msra.mxu0 %v1969
        %2653 = vmatmul.bf16.gmra.mxu0 %v811
        %v2654 = vpop.f32.mrf.mxu0
        %v2655 = vadd.f32 0.0, %v2654
        %v2656 = vpop.f32.mrf.mxu0
        %2657 = vdwg.mxu0
        %2658 = vmatpush.bf16.msra.mxu0 %v2239
        %2659 = vmatpush.bf16.msra.mxu0 %v2221
        %2660 = vmatpush.bf16.msra.mxu0 %v2203
        %2661 = vmatpush.bf16.msra.mxu0 %v2185
        %2662 = vmatpush.bf16.msra.mxu0 %v2167
        %2663 = vmatpush.bf16.msra.mxu0 %v2149
        %2664 = vmatpush.bf16.msra.mxu0 %v2131
        %2665 = vmatpush.bf16.msra.mxu0 %v2113
        %2666 = vmatmul.bf16.gmra.mxu0 %v812
        %v2667 = vpop.f32.mrf.mxu0
        %v2668 = vadd.f32 %v2655, %v2667
        %v2669 = vpop.f32.mrf.mxu0
        %2670 = vdwg.mxu0
        %2671 = vmatpush.bf16.msra.mxu0 %v2096
        %2672 = vmatpush.bf16.msra.mxu0 %v2078
        %2673 = vmatpush.bf16.msra.mxu0 %v2060
        %2674 = vmatpush.bf16.msra.mxu0 %v2042
        %2675 = vmatpush.bf16.msra.mxu0 %v2024
        %2676 = vmatpush.bf16.msra.mxu0 %v2006
        %2677 = vmatpush.bf16.msra.mxu0 %v1988
        %2678 = vmatpush.bf16.msra.mxu0 %v1970
        %2679 = vmatmul.bf16.gmra.mxu0 %v811
        %v2680 = vpop.f32.mrf.mxu0
        %v2681 = vadd.f32 0.0, %v2680
        %v2682 = vpop.f32.mrf.mxu0
        %2683 = vdwg.mxu0
        %2684 = vmatpush.bf16.msra.mxu0 %v2240
        %2685 = vmatpush.bf16.msra.mxu0 %v2222
        %2686 = vmatpush.bf16.msra.mxu0 %v2204
        %2687 = vmatpush.bf16.msra.mxu0 %v2186
        %2688 = vmatpush.bf16.msra.mxu0 %v2168
        %2689 = vmatpush.bf16.msra.mxu0 %v2150
        %2690 = vmatpush.bf16.msra.mxu0 %v2132
        %2691 = vmatpush.bf16.msra.mxu0 %v2114
        %2692 = vmatmul.bf16.gmra.mxu0 %v812
        %v2693 = vpop.f32.mrf.mxu0
        %v2694 = vadd.f32 %v2681, %v2693
        %v2695 = vpop.f32.mrf.mxu0
        %2696 = vdwg.mxu0
        %2697 = vmatpush.bf16.msra.mxu0 %v2097
        %2698 = vmatpush.bf16.msra.mxu0 %v2079
        %2699 = vmatpush.bf16.msra.mxu0 %v2061
        %2700 = vmatpush.bf16.msra.mxu0 %v2043
        %2701 = vmatpush.bf16.msra.mxu0 %v2025
        %2702 = vmatpush.bf16.msra.mxu0 %v2007
        %2703 = vmatpush.bf16.msra.mxu0 %v1989
        %2704 = vmatpush.bf16.msra.mxu0 %v1971
        %2705 = vmatmul.bf16.gmra.mxu0 %v811
        %v2706 = vpop.f32.mrf.mxu0
        %v2707 = vadd.f32 0.0, %v2706
        %v2708 = vpop.f32.mrf.mxu0
        %2709 = vdwg.mxu0
        %2710 = vmatpush.bf16.msra.mxu0 %v2241
        %2711 = vmatpush.bf16.msra.mxu0 %v2223
        %2712 = vmatpush.bf16.msra.mxu0 %v2205
        %2713 = vmatpush.bf16.msra.mxu0 %v2187
        %2714 = vmatpush.bf16.msra.mxu0 %v2169
        %2715 = vmatpush.bf16.msra.mxu0 %v2151
        %2716 = vmatpush.bf16.msra.mxu0 %v2133
        %2717 = vmatpush.bf16.msra.mxu0 %v2115
        %2718 = vmatmul.bf16.gmra.mxu0 %v812
        %v2719 = vpop.f32.mrf.mxu0
        %v2720 = vadd.f32 %v2707, %v2719
        %v2721 = vpop.f32.mrf.mxu0
        %2722 = vdwg.mxu0
        %2723 = vmatpush.bf16.msra.mxu0 %v2098
        %2724 = vmatpush.bf16.msra.mxu0 %v2080
        %2725 = vmatpush.bf16.msra.mxu0 %v2062
        %2726 = vmatpush.bf16.msra.mxu0 %v2044
        %2727 = vmatpush.bf16.msra.mxu0 %v2026
        %2728 = vmatpush.bf16.msra.mxu0 %v2008
        %2729 = vmatpush.bf16.msra.mxu0 %v1990
        %2730 = vmatpush.bf16.msra.mxu0 %v1972
        %2731 = vmatmul.bf16.gmra.mxu0 %v811
        %v2732 = vpop.f32.mrf.mxu0
        %v2733 = vadd.f32 0.0, %v2732
        %v2734 = vpop.f32.mrf.mxu0
        %2735 = vdwg.mxu0
        %2736 = vmatpush.bf16.msra.mxu0 %v2242
        %2737 = vmatpush.bf16.msra.mxu0 %v2224
        %2738 = vmatpush.bf16.msra.mxu0 %v2206
        %2739 = vmatpush.bf16.msra.mxu0 %v2188
        %2740 = vmatpush.bf16.msra.mxu0 %v2170
        %2741 = vmatpush.bf16.msra.mxu0 %v2152
        %2742 = vmatpush.bf16.msra.mxu0 %v2134
        %2743 = vmatpush.bf16.msra.mxu0 %v2116
        %2744 = vmatmul.bf16.gmra.mxu0 %v812
        %v2745 = vpop.f32.mrf.mxu0
        %v2746 = vadd.f32 %v2733, %v2745
        %v2747 = vpop.f32.mrf.mxu0
        %2748 = vdwg.mxu0
        %2749 = vmatpush.bf16.msra.mxu0 %v2099
        %2750 = vmatpush.bf16.msra.mxu0 %v2081
        %2751 = vmatpush.bf16.msra.mxu0 %v2063
        %2752 = vmatpush.bf16.msra.mxu0 %v2045
        %2753 = vmatpush.bf16.msra.mxu0 %v2027
        %2754 = vmatpush.bf16.msra.mxu0 %v2009
        %2755 = vmatpush.bf16.msra.mxu0 %v1991
        %2756 = vmatpush.bf16.msra.mxu0 %v1973
        %2757 = vmatmul.bf16.gmra.mxu0 %v811
        %v2758 = vpop.f32.mrf.mxu0
        %v2759 = vadd.f32 0.0, %v2758
        %v2760 = vpop.f32.mrf.mxu0
        %2761 = vdwg.mxu0
        %2762 = vmatpush.bf16.msra.mxu0 %v2243
        %2763 = vmatpush.bf16.msra.mxu0 %v2225
        %2764 = vmatpush.bf16.msra.mxu0 %v2207
        %2765 = vmatpush.bf16.msra.mxu0 %v2189
        %2766 = vmatpush.bf16.msra.mxu0 %v2171
        %2767 = vmatpush.bf16.msra.mxu0 %v2153
        %2768 = vmatpush.bf16.msra.mxu0 %v2135
        %2769 = vmatpush.bf16.msra.mxu0 %v2117
        %2770 = vmatmul.bf16.gmra.mxu0 %v812
        %v2771 = vpop.f32.mrf.mxu0
        %v2772 = vadd.f32 %v2759, %v2771
        %v2773 = vpop.f32.mrf.mxu0
        %2774 = vdwg.mxu0
        %2775 = vmatpush.bf16.msra.mxu0 %v2100
        %2776 = vmatpush.bf16.msra.mxu0 %v2082
        %2777 = vmatpush.bf16.msra.mxu0 %v2064
        %2778 = vmatpush.bf16.msra.mxu0 %v2046
        %2779 = vmatpush.bf16.msra.mxu0 %v2028
        %2780 = vmatpush.bf16.msra.mxu0 %v2010
        %2781 = vmatpush.bf16.msra.mxu0 %v1992
        %2782 = vmatpush.bf16.msra.mxu0 %v1974
        %2783 = vmatmul.bf16.gmra.mxu0 %v811
        %v2784 = vpop.f32.mrf.mxu0
        %v2785 = vadd.f32 0.0, %v2784
        %v2786 = vpop.f32.mrf.mxu0
        %2787 = vdwg.mxu0
        %2788 = vmatpush.bf16.msra.mxu0 %v2244
        %2789 = vmatpush.bf16.msra.mxu0 %v2226
        %2790 = vmatpush.bf16.msra.mxu0 %v2208
        %2791 = vmatpush.bf16.msra.mxu0 %v2190
        %2792 = vmatpush.bf16.msra.mxu0 %v2172
        %2793 = vmatpush.bf16.msra.mxu0 %v2154
        %2794 = vmatpush.bf16.msra.mxu0 %v2136
        %2795 = vmatpush.bf16.msra.mxu0 %v2118
        %2796 = vmatmul.bf16.gmra.mxu0 %v812
        %v2797 = vpop.f32.mrf.mxu0
        %v2798 = vadd.f32 %v2785, %v2797
        %v2799 = vpop.f32.mrf.mxu0
        %2800 = vdwg.mxu0
        %2801 = vmatpush.bf16.msra.mxu0 %v2101
        %2802 = vmatpush.bf16.msra.mxu0 %v2083
        %2803 = vmatpush.bf16.msra.mxu0 %v2065
        %2804 = vmatpush.bf16.msra.mxu0 %v2047
        %2805 = vmatpush.bf16.msra.mxu0 %v2029
        %2806 = vmatpush.bf16.msra.mxu0 %v2011
        %2807 = vmatpush.bf16.msra.mxu0 %v1993
        %2808 = vmatpush.bf16.msra.mxu0 %v1975
        %2809 = vmatmul.bf16.gmra.mxu0 %v811
        %v2810 = vpop.f32.mrf.mxu0
        %v2811 = vadd.f32 0.0, %v2810
        %v2812 = vpop.f32.mrf.mxu0
        %2813 = vdwg.mxu0
        %2814 = vmatpush.bf16.msra.mxu0 %v2245
        %2815 = vmatpush.bf16.msra.mxu0 %v2227
        %2816 = vmatpush.bf16.msra.mxu0 %v2209
        %2817 = vmatpush.bf16.msra.mxu0 %v2191
        %2818 = vmatpush.bf16.msra.mxu0 %v2173
        %2819 = vmatpush.bf16.msra.mxu0 %v2155
        %2820 = vmatpush.bf16.msra.mxu0 %v2137
        %2821 = vmatpush.bf16.msra.mxu0 %v2119
        %2822 = vmatmul.bf16.gmra.mxu0 %v812
        %v2823 = vpop.f32.mrf.mxu0
        %v2824 = vadd.f32 %v2811, %v2823
        %v2825 = vpop.f32.mrf.mxu0
        %2826 = vdwg.mxu0
        %2827 = vmatpush.bf16.msra.mxu0 %v2102
        %2828 = vmatpush.bf16.msra.mxu0 %v2084
        %2829 = vmatpush.bf16.msra.mxu0 %v2066
        %2830 = vmatpush.bf16.msra.mxu0 %v2048
        %2831 = vmatpush.bf16.msra.mxu0 %v2030
        %2832 = vmatpush.bf16.msra.mxu0 %v2012
        %2833 = vmatpush.bf16.msra.mxu0 %v1994
        %2834 = vmatpush.bf16.msra.mxu0 %v1976
        %2835 = vmatmul.bf16.gmra.mxu0 %v811
        %v2836 = vpop.f32.mrf.mxu0
        %v2837 = vadd.f32 0.0, %v2836
        %v2838 = vpop.f32.mrf.mxu0
        %2839 = vdwg.mxu0
        %2840 = vmatpush.bf16.msra.mxu0 %v2246
        %2841 = vmatpush.bf16.msra.mxu0 %v2228
        %2842 = vmatpush.bf16.msra.mxu0 %v2210
        %2843 = vmatpush.bf16.msra.mxu0 %v2192
        %2844 = vmatpush.bf16.msra.mxu0 %v2174
        %2845 = vmatpush.bf16.msra.mxu0 %v2156
        %2846 = vmatpush.bf16.msra.mxu0 %v2138
        %2847 = vmatpush.bf16.msra.mxu0 %v2120
        %2848 = vmatmul.bf16.gmra.mxu0 %v812
        %v2849 = vpop.f32.mrf.mxu0
        %v2850 = vadd.f32 %v2837, %v2849
        %v2851 = vpop.f32.mrf.mxu0
        %2852 = vdwg.mxu0
        %2853 = vmatpush.bf16.msra.mxu0 %v2103
        %2854 = vmatpush.bf16.msra.mxu0 %v2085
        %2855 = vmatpush.bf16.msra.mxu0 %v2067
        %2856 = vmatpush.bf16.msra.mxu0 %v2049
        %2857 = vmatpush.bf16.msra.mxu0 %v2031
        %2858 = vmatpush.bf16.msra.mxu0 %v2013
        %2859 = vmatpush.bf16.msra.mxu0 %v1995
        %2860 = vmatpush.bf16.msra.mxu0 %v1977
        %2861 = vmatmul.bf16.gmra.mxu0 %v811
        %v2862 = vpop.f32.mrf.mxu0
        %v2863 = vadd.f32 0.0, %v2862
        %v2864 = vpop.f32.mrf.mxu0
        %2865 = vdwg.mxu0
        %2866 = vmatpush.bf16.msra.mxu0 %v2247
        %2867 = vmatpush.bf16.msra.mxu0 %v2229
        %2868 = vmatpush.bf16.msra.mxu0 %v2211
        %2869 = vmatpush.bf16.msra.mxu0 %v2193
        %2870 = vmatpush.bf16.msra.mxu0 %v2175
        %2871 = vmatpush.bf16.msra.mxu0 %v2157
        %2872 = vmatpush.bf16.msra.mxu0 %v2139
        %2873 = vmatpush.bf16.msra.mxu0 %v2121
        %2874 = vmatmul.bf16.gmra.mxu0 %v812
        %v2875 = vpop.f32.mrf.mxu0
        %v2876 = vadd.f32 %v2863, %v2875
        %v2877 = vpop.f32.mrf.mxu0
        %2878 = vdwg.mxu0
        %2879 = vmatpush.bf16.msra.mxu0 %v2104
        %2880 = vmatpush.bf16.msra.mxu0 %v2086
        %2881 = vmatpush.bf16.msra.mxu0 %v2068
        %2882 = vmatpush.bf16.msra.mxu0 %v2050
        %2883 = vmatpush.bf16.msra.mxu0 %v2032
        %2884 = vmatpush.bf16.msra.mxu0 %v2014
        %2885 = vmatpush.bf16.msra.mxu0 %v1996
        %2886 = vmatpush.bf16.msra.mxu0 %v1978
        %2887 = vmatmul.bf16.gmra.mxu0 %v811
        %v2888 = vpop.f32.mrf.mxu0
        %v2889 = vadd.f32 0.0, %v2888
        %v2890 = vpop.f32.mrf.mxu0
        %2891 = vdwg.mxu0
        %2892 = vmatpush.bf16.msra.mxu0 %v2248
        %2893 = vmatpush.bf16.msra.mxu0 %v2230
        %2894 = vmatpush.bf16.msra.mxu0 %v2212
        %2895 = vmatpush.bf16.msra.mxu0 %v2194
        %2896 = vmatpush.bf16.msra.mxu0 %v2176
        %2897 = vmatpush.bf16.msra.mxu0 %v2158
        %2898 = vmatpush.bf16.msra.mxu0 %v2140
        %2899 = vmatpush.bf16.msra.mxu0 %v2122
        %2900 = vmatmul.bf16.gmra.mxu0 %v812
        %v2901 = vpop.f32.mrf.mxu0
        %v2902 = vadd.f32 %v2889, %v2901
        %v2903 = vpop.f32.mrf.mxu0
        %2904 = vdwg.mxu0
        %2905 = vmatpush.bf16.msra.mxu0 %v2105
        %2906 = vmatpush.bf16.msra.mxu0 %v2087
        %2907 = vmatpush.bf16.msra.mxu0 %v2069
        %2908 = vmatpush.bf16.msra.mxu0 %v2051
        %2909 = vmatpush.bf16.msra.mxu0 %v2033
        %2910 = vmatpush.bf16.msra.mxu0 %v2015
        %2911 = vmatpush.bf16.msra.mxu0 %v1997
        %2912 = vmatpush.bf16.msra.mxu0 %v1979
        %2913 = vmatmul.bf16.gmra.mxu0 %v811
        %v2914 = vpop.f32.mrf.mxu0
        %v2915 = vadd.f32 0.0, %v2914
        %v2916 = vpop.f32.mrf.mxu0
        %2917 = vdwg.mxu0
        %2918 = vmatpush.bf16.msra.mxu0 %v2249
        %2919 = vmatpush.bf16.msra.mxu0 %v2231
        %2920 = vmatpush.bf16.msra.mxu0 %v2213
        %2921 = vmatpush.bf16.msra.mxu0 %v2195
        %2922 = vmatpush.bf16.msra.mxu0 %v2177
        %2923 = vmatpush.bf16.msra.mxu0 %v2159
        %2924 = vmatpush.bf16.msra.mxu0 %v2141
        %2925 = vmatpush.bf16.msra.mxu0 %v2123
        %2926 = vmatmul.bf16.gmra.mxu0 %v812
        %v2927 = vpop.f32.mrf.mxu0
        %v2928 = vadd.f32 %v2915, %v2927
        %v2929 = vpop.f32.mrf.mxu0
        %2930 = vdwg.mxu0
        %2931 = vmatpush.bf16.msra.mxu0 %v2106
        %2932 = vmatpush.bf16.msra.mxu0 %v2088
        %2933 = vmatpush.bf16.msra.mxu0 %v2070
        %2934 = vmatpush.bf16.msra.mxu0 %v2052
        %2935 = vmatpush.bf16.msra.mxu0 %v2034
        %2936 = vmatpush.bf16.msra.mxu0 %v2016
        %2937 = vmatpush.bf16.msra.mxu0 %v1998
        %2938 = vmatpush.bf16.msra.mxu0 %v1980
        %2939 = vmatmul.bf16.gmra.mxu0 %v811
        %v2940 = vpop.f32.mrf.mxu0
        %v2941 = vadd.f32 0.0, %v2940
        %v2942 = vpop.f32.mrf.mxu0
        %2943 = vdwg.mxu0
        %2944 = vmatpush.bf16.msra.mxu0 %v2250
        %2945 = vmatpush.bf16.msra.mxu0 %v2232
        %2946 = vmatpush.bf16.msra.mxu0 %v2214
        %2947 = vmatpush.bf16.msra.mxu0 %v2196
        %2948 = vmatpush.bf16.msra.mxu0 %v2178
        %2949 = vmatpush.bf16.msra.mxu0 %v2160
        %2950 = vmatpush.bf16.msra.mxu0 %v2142
        %2951 = vmatpush.bf16.msra.mxu0 %v2124
        %2952 = vmatmul.bf16.gmra.mxu0 %v812
        %v2953 = vpop.f32.mrf.mxu0
        %v2954 = vadd.f32 %v2941, %v2953
        %v2955 = vpop.f32.mrf.mxu0
        %2956 = vdwg.mxu0
        %2957 = vmatpush.bf16.msra.mxu0 %v2107
        %2958 = vmatpush.bf16.msra.mxu0 %v2089
        %2959 = vmatpush.bf16.msra.mxu0 %v2071
        %2960 = vmatpush.bf16.msra.mxu0 %v2053
        %2961 = vmatpush.bf16.msra.mxu0 %v2035
        %2962 = vmatpush.bf16.msra.mxu0 %v2017
        %2963 = vmatpush.bf16.msra.mxu0 %v1999
        %2964 = vmatpush.bf16.msra.mxu0 %v1981
        %2965 = vmatmul.bf16.gmra.mxu0 %v811
        %v2966 = vpop.f32.mrf.mxu0
        %v2967 = vadd.f32 0.0, %v2966
        %v2968 = vpop.f32.mrf.mxu0
        %2969 = vdwg.mxu0
        %2970 = vmatpush.bf16.msra.mxu0 %v2251
        %2971 = vmatpush.bf16.msra.mxu0 %v2233
        %2972 = vmatpush.bf16.msra.mxu0 %v2215
        %2973 = vmatpush.bf16.msra.mxu0 %v2197
        %2974 = vmatpush.bf16.msra.mxu0 %v2179
        %2975 = vmatpush.bf16.msra.mxu0 %v2161
        %2976 = vmatpush.bf16.msra.mxu0 %v2143
        %2977 = vmatpush.bf16.msra.mxu0 %v2125
        %2978 = vmatmul.bf16.gmra.mxu0 %v812
        %v2979 = vpop.f32.mrf.mxu0
        %v2980 = vadd.f32 %v2967, %v2979
        %v2981 = vpop.f32.mrf.mxu0
        %2982 = vdwg.mxu0
        %2983 = vmatpush.bf16.msra.mxu0 %v2108
        %2984 = vmatpush.bf16.msra.mxu0 %v2090
        %2985 = vmatpush.bf16.msra.mxu0 %v2072
        %2986 = vmatpush.bf16.msra.mxu0 %v2054
        %2987 = vmatpush.bf16.msra.mxu0 %v2036
        %2988 = vmatpush.bf16.msra.mxu0 %v2018
        %2989 = vmatpush.bf16.msra.mxu0 %v2000
        %2990 = vmatpush.bf16.msra.mxu0 %v1982
        %2991 = vmatmul.bf16.gmra.mxu0 %v811
        %v2992 = vpop.f32.mrf.mxu0
        %v2993 = vadd.f32 0.0, %v2992
        %v2994 = vpop.f32.mrf.mxu0
        %2995 = vdwg.mxu0
        %2996 = vmatpush.bf16.msra.mxu0 %v2252
        %2997 = vmatpush.bf16.msra.mxu0 %v2234
        %2998 = vmatpush.bf16.msra.mxu0 %v2216
        %2999 = vmatpush.bf16.msra.mxu0 %v2198
        %3000 = vmatpush.bf16.msra.mxu0 %v2180
        %3001 = vmatpush.bf16.msra.mxu0 %v2162
        %3002 = vmatpush.bf16.msra.mxu0 %v2144
        %3003 = vmatpush.bf16.msra.mxu0 %v2126
        %3004 = vmatmul.bf16.gmra.mxu0 %v812
        %v3005 = vpop.f32.mrf.mxu0
        %v3006 = vadd.f32 %v2993, %v3005
        %v3007 = vpop.f32.mrf.mxu0
        %3008 = vdwg.mxu0
        %v3009 = vunpack.c.l.bf16 %v804
        %3011 = vset.pattern.permute.xlu0 0
        %3012 = vperm.xlu0 %3011, %v3009
        %v3013 = vpop.permute.xlu0 %3012
        %v3015 = vperm.slane %v2564, 0
        %v3016 = vperm.slane %v2590, 0
        %v3017 = vmul.f32 %v3013, %v3015
        %v3018 = vmul.f32 %v3013, %v3016
        %3020 = vset.pattern.permute.xlu0 0
        %3021 = vperm.xlu0 %3020, %v805
        %v3022 = vpop.permute.xlu0 %3021
        %v3024 = vadd.f32 %v3022, %v3017
        %v3025 = vadd.f32 %v3022, %v3018
        %3026 = vset.pattern.permute.xlu0 1
        %3027 = vperm.xlu0 %3026, %v3009
        %v3028 = vpop.permute.xlu0 %3027
        %v3030 = vperm.slane %v2616, 0
        %v3031 = vperm.slane %v2642, 0
        %v3032 = vmul.f32 %v3028, %v3030
        %v3033 = vmul.f32 %v3028, %v3031
        %v3034 = vadd.f32 %v3024, %v3032
        %v3035 = vadd.f32 %v3025, %v3033
        %3036 = vset.pattern.permute.xlu0 2
        %3037 = vperm.xlu0 %3036, %v3009
        %v3038 = vpop.permute.xlu0 %3037
        %v3040 = vperm.slane %v2668, 0
        %v3041 = vperm.slane %v2694, 0
        %v3042 = vmul.f32 %v3038, %v3040
        %v3043 = vmul.f32 %v3038, %v3041
        %v3044 = vadd.f32 %v3034, %v3042
        %v3045 = vadd.f32 %v3035, %v3043
        %3046 = vset.pattern.permute.xlu0 3
        %3047 = vperm.xlu0 %3046, %v3009
        %v3048 = vpop.permute.xlu0 %3047
        %v3050 = vperm.slane %v2720, 0
        %v3051 = vperm.slane %v2746, 0
        %v3052 = vmul.f32 %v3048, %v3050
        %v3053 = vmul.f32 %v3048, %v3051
        %v3054 = vadd.f32 %v3044, %v3052
        %v3055 = vadd.f32 %v3045, %v3053
        %3056 = vset.pattern.permute.xlu0 4
        %3057 = vperm.xlu0 %3056, %v3009
        %v3058 = vpop.permute.xlu0 %3057
        %v3060 = vperm.slane %v2772, 0
        %v3061 = vperm.slane %v2798, 0
        %v3062 = vmul.f32 %v3058, %v3060
        %v3063 = vmul.f32 %v3058, %v3061
        %v3064 = vadd.f32 %v3054, %v3062
        %v3065 = vadd.f32 %v3055, %v3063
        %3066 = vset.pattern.permute.xlu0 5
        %3067 = vperm.xlu0 %3066, %v3009
        %v3068 = vpop.permute.xlu0 %3067
        %v3070 = vperm.slane %v2824, 0
        %v3071 = vperm.slane %v2850, 0
        %v3072 = vmul.f32 %v3068, %v3070
        %v3073 = vmul.f32 %v3068, %v3071
        %v3074 = vadd.f32 %v3064, %v3072
        %v3075 = vadd.f32 %v3065, %v3073
        %3076 = vset.pattern.permute.xlu0 6
        %3077 = vperm.xlu0 %3076, %v3009
        %v3078 = vpop.permute.xlu0 %3077
        %v3080 = vperm.slane %v2876, 0
        %v3081 = vperm.slane %v2902, 0
        %v3082 = vmul.f32 %v3078, %v3080
        %v3083 = vmul.f32 %v3078, %v3081
        %v3084 = vadd.f32 %v3074, %v3082
        %v3085 = vadd.f32 %v3075, %v3083
        %3086 = vset.pattern.permute.xlu0 7
        %3087 = vperm.xlu0 %3086, %v3009
        %v3088 = vpop.permute.xlu0 %3087
        %v3090 = vperm.slane %v2928, 0
        %v3091 = vperm.slane %v2954, 0
        %v3092 = vmul.f32 %v3088, %v3090
        %v3093 = vmul.f32 %v3088, %v3091
        %v3094 = vadd.f32 %v3084, %v3092
        %v3095 = vadd.f32 %v3085, %v3093
        %3096 = vset.pattern.permute.xlu0 8
        %3097 = vperm.xlu0 %3096, %v3009
        %v3098 = vpop.permute.xlu0 %3097
        %v3100 = vperm.slane %v2980, 0
        %v3101 = vperm.slane %v3006, 0
        %v3102 = vmul.f32 %v3098, %v3100
        %v3103 = vmul.f32 %v3098, %v3101
        %v3104 = vadd.f32 %v3094, %v3102
        %v3105 = vadd.f32 %v3095, %v3103
        %v3106 = vmax.f32 %v3104, 0.0
        %v3107 = vmax.f32 %v3105, 0.0
        %v3108 = vld [vmem:[%s10] sm:$0xf]
        %v3109 = vld [vmem:[%s10 + $0x4] sm:$0xf]
        %v3110 = vld [vmem:[%s11] sm:$0xff]
        %v3111 = vld [vmem:[%s11 + $0x8] sm:$0xff]
        %v3112 = vpack.c.bf16 %v3106, %v3106
        %v3113 = vpack.c.bf16 %v3107, %v3107
        %v3114 = vld [vmem:[#allocation3] sm:$0xff]
        %v3115 = vld [vmem:[#allocation3 + $0x8] sm:$0xff]
        %v3116 = vld [vmem:[#allocation3 + $0x10] sm:$0xff]
        %v3117 = vld [vmem:[#allocation3 + $0x18] sm:$0xff]
        %v3118 = vld [vmem:[#allocation3 + $0x20] sm:$0xf]
        %v3119 = vld [vmem:[#allocation3 + $0x24] sm:$0xff]
        %v3120 = vld [vmem:[#allocation3 + $0x2c] sm:$0xff]
        %v3121 = vld [vmem:[#allocation3 + $0x34] sm:$0xff]
        %v3122 = vld [vmem:[#allocation3 + $0x3c] sm:$0xff]
        %v3123 = vld [vmem:[#allocation3 + $0x44] sm:$0xf]
        %v3124 = vld [vmem:[#allocation3 + $0x48] sm:$0xff]
        %v3125 = vld [vmem:[#allocation3 + $0x50] sm:$0xff]
        %v3126 = vld [vmem:[#allocation3 + $0x58] sm:$0xff]
        %v3127 = vld [vmem:[#allocation3 + $0x60] sm:$0xff]
        %v3128 = vld [vmem:[#allocation3 + $0x68] sm:$0xf]
        %v3129 = vld [vmem:[#allocation3 + $0x6c] sm:$0xff]
        %v3130 = vld [vmem:[#allocation3 + $0x74] sm:$0xff]
        %v3131 = vld [vmem:[#allocation3 + $0x7c] sm:$0xff]
        %v3132 = vld [vmem:[#allocation3 + $0x84] sm:$0xff]
        %v3133 = vld [vmem:[#allocation3 + $0x8c] sm:$0xf]
        %v3134 = vld [vmem:[#allocation3 + $0x90] sm:$0xff]
        %v3135 = vld [vmem:[#allocation3 + $0x98] sm:$0xff]
        %v3136 = vld [vmem:[#allocation3 + $0xa0] sm:$0xff]
        %v3137 = vld [vmem:[#allocation3 + $0xa8] sm:$0xff]
        %v3138 = vld [vmem:[#allocation3 + $0xb0] sm:$0xf]
        %v3139 = vld [vmem:[#allocation3 + $0xb4] sm:$0xff]
        %v3140 = vld [vmem:[#allocation3 + $0xbc] sm:$0xff]
        %v3141 = vld [vmem:[#allocation3 + $0xc4] sm:$0xff]
        %v3142 = vld [vmem:[#allocation3 + $0xcc] sm:$0xff]
        %v3143 = vld [vmem:[#allocation3 + $0xd4] sm:$0xf]
        %v3144 = vld [vmem:[#allocation3 + $0xd8] sm:$0xff]
        %v3145 = vld [vmem:[#allocation3 + $0xe0] sm:$0xff]
        %v3146 = vld [vmem:[#allocation3 + $0xe8] sm:$0xff]
        %v3147 = vld [vmem:[#allocation3 + $0xf0] sm:$0xff]
        %v3148 = vld [vmem:[#allocation3 + $0xf8] sm:$0xf]
        %v3149 = vld [vmem:[#allocation3 + $0xfc] sm:$0xff]
        %v3150 = vld [vmem:[#allocation3 + $0x104] sm:$0xff]
        %v3151 = vld [vmem:[#allocation3 + $0x10c] sm:$0xff]
        %v3152 = vld [vmem:[#allocation3 + $0x114] sm:$0xff]
        %v3153 = vld [vmem:[#allocation3 + $0x11c] sm:$0xf]
        %v3154 = vld [vmem:[#allocation3 + $0x120] sm:$0xff]
        %v3155 = vld [vmem:[#allocation3 + $0x128] sm:$0xff]
        %v3156 = vld [vmem:[#allocation3 + $0x130] sm:$0xff]
        %v3157 = vld [vmem:[#allocation3 + $0x138] sm:$0xff]
        %v3158 = vld [vmem:[#allocation3 + $0x140] sm:$0xf]
        %v3159 = vld [vmem:[#allocation3 + $0x144] sm:$0xff]
        %v3160 = vld [vmem:[#allocation3 + $0x14c] sm:$0xff]
        %v3161 = vld [vmem:[#allocation3 + $0x154] sm:$0xff]
        %v3162 = vld [vmem:[#allocation3 + $0x15c] sm:$0xff]
        %v3163 = vld [vmem:[#allocation3 + $0x164] sm:$0xf]
        %v3164 = vld [vmem:[#allocation3 + $0x168] sm:$0xff]
        %v3165 = vld [vmem:[#allocation3 + $0x170] sm:$0xff]
        %v3166 = vld [vmem:[#allocation3 + $0x178] sm:$0xff]
        %v3167 = vld [vmem:[#allocation3 + $0x180] sm:$0xff]
        %v3168 = vld [vmem:[#allocation3 + $0x188] sm:$0xf]
        %v3169 = vld [vmem:[#allocation3 + $0x18c] sm:$0xff]
        %v3170 = vld [vmem:[#allocation3 + $0x194] sm:$0xff]
        %v3171 = vld [vmem:[#allocation3 + $0x19c] sm:$0xff]
        %v3172 = vld [vmem:[#allocation3 + $0x1a4] sm:$0xff]
        %v3173 = vld [vmem:[#allocation3 + $0x1ac] sm:$0xf]
        %v3174 = vld [vmem:[#allocation3 + $0x1b0] sm:$0xff]
        %v3175 = vld [vmem:[#allocation3 + $0x1b8] sm:$0xff]
        %v3176 = vld [vmem:[#allocation3 + $0x1c0] sm:$0xff]
        %v3177 = vld [vmem:[#allocation3 + $0x1c8] sm:$0xff]
        %v3178 = vld [vmem:[#allocation3 + $0x1d0] sm:$0xf]
        %v3179 = vld [vmem:[#allocation3 + $0x1d4] sm:$0xff]
        %v3180 = vld [vmem:[#allocation3 + $0x1dc] sm:$0xff]
        %v3181 = vld [vmem:[#allocation3 + $0x1e4] sm:$0xff]
        %v3182 = vld [vmem:[#allocation3 + $0x1ec] sm:$0xff]
        %v3183 = vld [vmem:[#allocation3 + $0x1f4] sm:$0xf]
        %v3184 = vld [vmem:[#allocation3 + $0x1f8] sm:$0xff]
        %v3185 = vld [vmem:[#allocation3 + $0x200] sm:$0xff]
        %v3186 = vld [vmem:[#allocation3 + $0x208] sm:$0xff]
        %v3187 = vld [vmem:[#allocation3 + $0x210] sm:$0xff]
        %v3188 = vld [vmem:[#allocation3 + $0x218] sm:$0xf]
        %v3189 = vld [vmem:[#allocation3 + $0x21c] sm:$0xff]
        %v3190 = vld [vmem:[#allocation3 + $0x224] sm:$0xff]
        %v3191 = vld [vmem:[#allocation3 + $0x22c] sm:$0xff]
        %v3192 = vld [vmem:[#allocation3 + $0x234] sm:$0xff]
        %v3193 = vld [vmem:[#allocation3 + $0x23c] sm:$0xf]
        %v3194 = vld [vmem:[#allocation3 + $0x240] sm:$0xff]
        %v3195 = vld [vmem:[#allocation3 + $0x248] sm:$0xff]
        %v3196 = vld [vmem:[#allocation3 + $0x250] sm:$0xff]
        %v3197 = vld [vmem:[#allocation3 + $0x258] sm:$0xff]
        %v3198 = vld [vmem:[#allocation3 + $0x260] sm:$0xf]
        %v3199 = vld [vmem:[#allocation3 + $0x264] sm:$0xff]
        %v3200 = vld [vmem:[#allocation3 + $0x26c] sm:$0xff]
        %v3201 = vld [vmem:[#allocation3 + $0x274] sm:$0xff]
        %v3202 = vld [vmem:[#allocation3 + $0x27c] sm:$0xff]
        %v3203 = vld [vmem:[#allocation3 + $0x284] sm:$0xf]
        %v3204 = vld [vmem:[#allocation3 + $0x288] sm:$0xff]
        %v3205 = vld [vmem:[#allocation3 + $0x290] sm:$0xff]
        %v3206 = vld [vmem:[#allocation3 + $0x298] sm:$0xff]
        %v3207 = vld [vmem:[#allocation3 + $0x2a0] sm:$0xff]
        %v3208 = vld [vmem:[#allocation3 + $0x2a8] sm:$0xf]
        %v3209 = vld [vmem:[#allocation3 + $0x2ac] sm:$0xff]
        %v3210 = vld [vmem:[#allocation3 + $0x2b4] sm:$0xff]
        %v3211 = vld [vmem:[#allocation3 + $0x2bc] sm:$0xff]
        %v3212 = vld [vmem:[#allocation3 + $0x2c4] sm:$0xff]
        %v3213 = vld [vmem:[#allocation3 + $0x2cc] sm:$0xf]
        %v3214 = vld [vmem:[#allocation3 + $0x2d0] sm:$0xff]
        %v3215 = vld [vmem:[#allocation3 + $0x2d8] sm:$0xff]
        %v3216 = vld [vmem:[#allocation3 + $0x2e0] sm:$0xff]
        %v3217 = vld [vmem:[#allocation3 + $0x2e8] sm:$0xff]
        %v3218 = vld [vmem:[#allocation3 + $0x2f0] sm:$0xf]
        %v3219 = vld [vmem:[#allocation3 + $0x2f4] sm:$0xff]
        %v3220 = vld [vmem:[#allocation3 + $0x2fc] sm:$0xff]
        %v3221 = vld [vmem:[#allocation3 + $0x304] sm:$0xff]
        %v3222 = vld [vmem:[#allocation3 + $0x30c] sm:$0xff]
        %v3223 = vld [vmem:[#allocation3 + $0x314] sm:$0xf]
        %v3224 = vld [vmem:[#allocation3 + $0x318] sm:$0xff]
        %v3225 = vld [vmem:[#allocation3 + $0x320] sm:$0xff]
        %v3226 = vld [vmem:[#allocation3 + $0x328] sm:$0xff]
        %v3227 = vld [vmem:[#allocation3 + $0x330] sm:$0xff]
        %v3228 = vld [vmem:[#allocation3 + $0x338] sm:$0xf]
        %v3229 = vld [vmem:[#allocation3 + $0x33c] sm:$0xff]
        %v3230 = vld [vmem:[#allocation3 + $0x344] sm:$0xff]
        %v3231 = vld [vmem:[#allocation3 + $0x34c] sm:$0xff]
        %v3232 = vld [vmem:[#allocation3 + $0x354] sm:$0xff]
        %v3233 = vld [vmem:[#allocation3 + $0x35c] sm:$0xf]
        %v3234 = vld [vmem:[#allocation3 + $0x360] sm:$0xff]
        %v3235 = vld [vmem:[#allocation3 + $0x368] sm:$0xff]
        %v3236 = vld [vmem:[#allocation3 + $0x370] sm:$0xff]
        %v3237 = vld [vmem:[#allocation3 + $0x378] sm:$0xff]
        %v3238 = vld [vmem:[#allocation3 + $0x380] sm:$0xf]
        %v3239 = vld [vmem:[#allocation3 + $0x384] sm:$0xff]
        %v3240 = vld [vmem:[#allocation3 + $0x38c] sm:$0xff]
        %v3241 = vld [vmem:[#allocation3 + $0x394] sm:$0xff]
        %v3242 = vld [vmem:[#allocation3 + $0x39c] sm:$0xff]
        %v3243 = vld [vmem:[#allocation3 + $0x3a4] sm:$0xf]
        %v3244 = vld [vmem:[#allocation3 + $0x3a8] sm:$0xff]
        %v3245 = vld [vmem:[#allocation3 + $0x3b0] sm:$0xff]
        %v3246 = vld [vmem:[#allocation3 + $0x3b8] sm:$0xff]
        %v3247 = vld [vmem:[#allocation3 + $0x3c0] sm:$0xff]
        %v3248 = vld [vmem:[#allocation3 + $0x3c8] sm:$0xf]
        %v3249 = vld [vmem:[#allocation3 + $0x3cc] sm:$0xff]
        %v3250 = vld [vmem:[#allocation3 + $0x3d4] sm:$0xff]
        %v3251 = vld [vmem:[#allocation3 + $0x3dc] sm:$0xff]
        %v3252 = vld [vmem:[#allocation3 + $0x3e4] sm:$0xff]
        %v3253 = vld [vmem:[#allocation3 + $0x3ec] sm:$0xf]
        %v3254 = vld [vmem:[#allocation3 + $0x3f0] sm:$0xff]
        %v3255 = vld [vmem:[#allocation3 + $0x3f8] sm:$0xff]
        %v3256 = vld [vmem:[#allocation3 + $0x400] sm:$0xff]
        %v3257 = vld [vmem:[#allocation3 + $0x408] sm:$0xff]
        %v3258 = vld [vmem:[#allocation3 + $0x410] sm:$0xf]
        %v3259 = vld [vmem:[#allocation3 + $0x414] sm:$0xff]
        %v3260 = vld [vmem:[#allocation3 + $0x41c] sm:$0xff]
        %v3261 = vld [vmem:[#allocation3 + $0x424] sm:$0xff]
        %v3262 = vld [vmem:[#allocation3 + $0x42c] sm:$0xff]
        %v3263 = vld [vmem:[#allocation3 + $0x434] sm:$0xf]
        %v3264 = vld [vmem:[#allocation3 + $0x438] sm:$0xff]
        %v3265 = vld [vmem:[#allocation3 + $0x440] sm:$0xff]
        %v3266 = vld [vmem:[#allocation3 + $0x448] sm:$0xff]
        %v3267 = vld [vmem:[#allocation3 + $0x450] sm:$0xff]
        %v3268 = vld [vmem:[#allocation3 + $0x458] sm:$0xf]
        %v3269 = vld [vmem:[#allocation3 + $0x45c] sm:$0xff]
        %v3270 = vld [vmem:[#allocation3 + $0x464] sm:$0xff]
        %v3271 = vld [vmem:[#allocation3 + $0x46c] sm:$0xff]
        %v3272 = vld [vmem:[#allocation3 + $0x474] sm:$0xff]
        %v3273 = vld [vmem:[#allocation3 + $0x47c] sm:$0xf]
        %v3434 = vunpack.c.l.b16 %v3114
        %v3435 = vunpack.c.h.b16 %v3114
        %v3436 = vunpack.c.l.b16 %v3115
        %v3437 = vunpack.c.h.b16 %v3115
        %v3438 = vunpack.c.l.b16 %v3116
        %v3439 = vunpack.c.h.b16 %v3116
        %v3440 = vunpack.c.l.b16 %v3117
        %v3441 = vunpack.c.h.b16 %v3117
        %v3442 = vunpack.c.l.b16 %v3118
        %v3443 = vunpack.c.l.b16 %v3119
        %v3444 = vunpack.c.h.b16 %v3119
        %v3445 = vunpack.c.l.b16 %v3120
        %v3446 = vunpack.c.h.b16 %v3120
        %v3447 = vunpack.c.l.b16 %v3121
        %v3448 = vunpack.c.h.b16 %v3121
        %v3449 = vunpack.c.l.b16 %v3122
        %v3450 = vunpack.c.h.b16 %v3122
        %v3451 = vunpack.c.l.b16 %v3123
        %v3452 = vunpack.c.l.b16 %v3124
        %v3453 = vunpack.c.h.b16 %v3124
        %v3454 = vunpack.c.l.b16 %v3125
        %v3455 = vunpack.c.h.b16 %v3125
        %v3456 = vunpack.c.l.b16 %v3126
        %v3457 = vunpack.c.h.b16 %v3126
        %v3458 = vunpack.c.l.b16 %v3127
        %v3459 = vunpack.c.h.b16 %v3127
        %v3460 = vunpack.c.l.b16 %v3128
        %v3461 = vunpack.c.l.b16 %v3129
        %v3462 = vunpack.c.h.b16 %v3129
        %v3463 = vunpack.c.l.b16 %v3130
        %v3464 = vunpack.c.h.b16 %v3130
        %v3465 = vunpack.c.l.b16 %v3131
        %v3466 = vunpack.c.h.b16 %v3131
        %v3467 = vunpack.c.l.b16 %v3132
        %v3468 = vunpack.c.h.b16 %v3132
        %v3469 = vunpack.c.l.b16 %v3133
        %v3470 = vunpack.c.l.b16 %v3134
        %v3471 = vunpack.c.h.b16 %v3134
        %v3472 = vunpack.c.l.b16 %v3135
        %v3473 = vunpack.c.h.b16 %v3135
        %v3474 = vunpack.c.l.b16 %v3136
        %v3475 = vunpack.c.h.b16 %v3136
        %v3476 = vunpack.c.l.b16 %v3137
        %v3477 = vunpack.c.h.b16 %v3137
        %v3478 = vunpack.c.l.b16 %v3138
        %v3479 = vunpack.c.l.b16 %v3139
        %v3480 = vunpack.c.h.b16 %v3139
        %v3481 = vunpack.c.l.b16 %v3140
        %v3482 = vunpack.c.h.b16 %v3140
        %v3483 = vunpack.c.l.b16 %v3141
        %v3484 = vunpack.c.h.b16 %v3141
        %v3485 = vunpack.c.l.b16 %v3142
        %v3486 = vunpack.c.h.b16 %v3142
        %v3487 = vunpack.c.l.b16 %v3143
        %v3488 = vunpack.c.l.b16 %v3144
        %v3489 = vunpack.c.h.b16 %v3144
        %v3490 = vunpack.c.l.b16 %v3145
        %v3491 = vunpack.c.h.b16 %v3145
        %v3492 = vunpack.c.l.b16 %v3146
        %v3493 = vunpack.c.h.b16 %v3146
        %v3494 = vunpack.c.l.b16 %v3147
        %v3495 = vunpack.c.h.b16 %v3147
        %v3496 = vunpack.c.l.b16 %v3148
        %v3497 = vunpack.c.l.b16 %v3149
        %v3498 = vunpack.c.h.b16 %v3149
        %v3499 = vunpack.c.l.b16 %v3150
        %v3500 = vunpack.c.h.b16 %v3150
        %v3501 = vunpack.c.l.b16 %v3151
        %v3502 = vunpack.c.h.b16 %v3151
        %v3503 = vunpack.c.l.b16 %v3152
        %v3504 = vunpack.c.h.b16 %v3152
        %v3505 = vunpack.c.l.b16 %v3153
        %v3506 = vunpack.c.l.b16 %v3154
        %v3507 = vunpack.c.h.b16 %v3154
        %v3508 = vunpack.c.l.b16 %v3155
        %v3509 = vunpack.c.h.b16 %v3155
        %v3510 = vunpack.c.l.b16 %v3156
        %v3511 = vunpack.c.h.b16 %v3156
        %v3512 = vunpack.c.l.b16 %v3157
        %v3513 = vunpack.c.h.b16 %v3157
        %v3514 = vunpack.c.l.b16 %v3158
        %v3515 = vunpack.c.l.b16 %v3159
        %v3516 = vunpack.c.h.b16 %v3159
        %v3517 = vunpack.c.l.b16 %v3160
        %v3518 = vunpack.c.h.b16 %v3160
        %v3519 = vunpack.c.l.b16 %v3161
        %v3520 = vunpack.c.h.b16 %v3161
        %v3521 = vunpack.c.l.b16 %v3162
        %v3522 = vunpack.c.h.b16 %v3162
        %v3523 = vunpack.c.l.b16 %v3163
        %v3524 = vunpack.c.l.b16 %v3164
        %v3525 = vunpack.c.h.b16 %v3164
        %v3526 = vunpack.c.l.b16 %v3165
        %v3527 = vunpack.c.h.b16 %v3165
        %v3528 = vunpack.c.l.b16 %v3166
        %v3529 = vunpack.c.h.b16 %v3166
        %v3530 = vunpack.c.l.b16 %v3167
        %v3531 = vunpack.c.h.b16 %v3167
        %v3532 = vunpack.c.l.b16 %v3168
        %v3533 = vunpack.c.l.b16 %v3169
        %v3534 = vunpack.c.h.b16 %v3169
        %v3535 = vunpack.c.l.b16 %v3170
        %v3536 = vunpack.c.h.b16 %v3170
        %v3537 = vunpack.c.l.b16 %v3171
        %v3538 = vunpack.c.h.b16 %v3171
        %v3539 = vunpack.c.l.b16 %v3172
        %v3540 = vunpack.c.h.b16 %v3172
        %v3541 = vunpack.c.l.b16 %v3173
        %v3542 = vunpack.c.l.b16 %v3174
        %v3543 = vunpack.c.h.b16 %v3174
        %v3544 = vunpack.c.l.b16 %v3175
        %v3545 = vunpack.c.h.b16 %v3175
        %v3546 = vunpack.c.l.b16 %v3176
        %v3547 = vunpack.c.h.b16 %v3176
        %v3548 = vunpack.c.l.b16 %v3177
        %v3549 = vunpack.c.h.b16 %v3177
        %v3550 = vunpack.c.l.b16 %v3178
        %v3551 = vunpack.c.l.b16 %v3179
        %v3552 = vunpack.c.h.b16 %v3179
        %v3553 = vunpack.c.l.b16 %v3180
        %v3554 = vunpack.c.h.b16 %v3180
        %v3555 = vunpack.c.l.b16 %v3181
        %v3556 = vunpack.c.h.b16 %v3181
        %v3557 = vunpack.c.l.b16 %v3182
        %v3558 = vunpack.c.h.b16 %v3182
        %v3559 = vunpack.c.l.b16 %v3183
        %v3560 = vunpack.c.l.b16 %v3184
        %v3561 = vunpack.c.h.b16 %v3184
        %v3562 = vunpack.c.l.b16 %v3185
        %v3563 = vunpack.c.h.b16 %v3185
        %v3564 = vunpack.c.l.b16 %v3186
        %v3565 = vunpack.c.h.b16 %v3186
        %v3566 = vunpack.c.l.b16 %v3187
        %v3567 = vunpack.c.h.b16 %v3187
        %v3568 = vunpack.c.l.b16 %v3188
        %v3569 = vunpack.c.l.b16 %v3189
        %v3570 = vunpack.c.h.b16 %v3189
        %v3571 = vunpack.c.l.b16 %v3190
        %v3572 = vunpack.c.h.b16 %v3190
        %v3573 = vunpack.c.l.b16 %v3191
        %v3574 = vunpack.c.h.b16 %v3191
        %v3575 = vunpack.c.l.b16 %v3192
        %v3576 = vunpack.c.h.b16 %v3192
        %v3577 = vunpack.c.l.b16 %v3193
        %v3578 = vunpack.c.l.b16 %v3194
        %v3579 = vunpack.c.h.b16 %v3194
        %v3580 = vunpack.c.l.b16 %v3195
        %v3581 = vunpack.c.h.b16 %v3195
        %v3582 = vunpack.c.l.b16 %v3196
        %v3583 = vunpack.c.h.b16 %v3196
        %v3584 = vunpack.c.l.b16 %v3197
        %v3585 = vunpack.c.h.b16 %v3197
        %v3586 = vunpack.c.l.b16 %v3198
        %v3587 = vunpack.c.l.b16 %v3199
        %v3588 = vunpack.c.h.b16 %v3199
        %v3589 = vunpack.c.l.b16 %v3200
        %v3590 = vunpack.c.h.b16 %v3200
        %v3591 = vunpack.c.l.b16 %v3201
        %v3592 = vunpack.c.h.b16 %v3201
        %v3593 = vunpack.c.l.b16 %v3202
        %v3594 = vunpack.c.h.b16 %v3202
        %v3595 = vunpack.c.l.b16 %v3203
        %v3596 = vunpack.c.l.b16 %v3204
        %v3597 = vunpack.c.h.b16 %v3204
        %v3598 = vunpack.c.l.b16 %v3205
        %v3599 = vunpack.c.h.b16 %v3205
        %v3600 = vunpack.c.l.b16 %v3206
        %v3601 = vunpack.c.h.b16 %v3206
        %v3602 = vunpack.c.l.b16 %v3207
        %v3603 = vunpack.c.h.b16 %v3207
        %v3604 = vunpack.c.l.b16 %v3208
        %v3605 = vunpack.c.l.b16 %v3209
        %v3606 = vunpack.c.h.b16 %v3209
        %v3607 = vunpack.c.l.b16 %v3210
        %v3608 = vunpack.c.h.b16 %v3210
        %v3609 = vunpack.c.l.b16 %v3211
        %v3610 = vunpack.c.h.b16 %v3211
        %v3611 = vunpack.c.l.b16 %v3212
        %v3612 = vunpack.c.h.b16 %v3212
        %v3613 = vunpack.c.l.b16 %v3213
        %v3614 = vunpack.c.l.b16 %v3214
        %v3615 = vunpack.c.h.b16 %v3214
        %v3616 = vunpack.c.l.b16 %v3215
        %v3617 = vunpack.c.h.b16 %v3215
        %v3618 = vunpack.c.l.b16 %v3216
        %v3619 = vunpack.c.h.b16 %v3216
        %v3620 = vunpack.c.l.b16 %v3217
        %v3621 = vunpack.c.h.b16 %v3217
        %v3622 = vunpack.c.l.b16 %v3218
        %v3623 = vunpack.c.l.b16 %v3219
        %v3624 = vunpack.c.h.b16 %v3219
        %v3625 = vunpack.c.l.b16 %v3220
        %v3626 = vunpack.c.h.b16 %v3220
        %v3627 = vunpack.c.l.b16 %v3221
        %v3628 = vunpack.c.h.b16 %v3221
        %v3629 = vunpack.c.l.b16 %v3222
        %v3630 = vunpack.c.h.b16 %v3222
        %v3631 = vunpack.c.l.b16 %v3223
        %v3632 = vunpack.c.l.b16 %v3224
        %v3633 = vunpack.c.h.b16 %v3224
        %v3634 = vunpack.c.l.b16 %v3225
        %v3635 = vunpack.c.h.b16 %v3225
        %v3636 = vunpack.c.l.b16 %v3226
        %v3637 = vunpack.c.h.b16 %v3226
        %v3638 = vunpack.c.l.b16 %v3227
        %v3639 = vunpack.c.h.b16 %v3227
        %v3640 = vunpack.c.l.b16 %v3228
        %v3641 = vunpack.c.l.b16 %v3229
        %v3642 = vunpack.c.h.b16 %v3229
        %v3643 = vunpack.c.l.b16 %v3230
        %v3644 = vunpack.c.h.b16 %v3230
        %v3645 = vunpack.c.l.b16 %v3231
        %v3646 = vunpack.c.h.b16 %v3231
        %v3647 = vunpack.c.l.b16 %v3232
        %v3648 = vunpack.c.h.b16 %v3232
        %v3649 = vunpack.c.l.b16 %v3233
        %v3650 = vunpack.c.l.b16 %v3234
        %v3651 = vunpack.c.h.b16 %v3234
        %v3652 = vunpack.c.l.b16 %v3235
        %v3653 = vunpack.c.h.b16 %v3235
        %v3654 = vunpack.c.l.b16 %v3236
        %v3655 = vunpack.c.h.b16 %v3236
        %v3656 = vunpack.c.l.b16 %v3237
        %v3657 = vunpack.c.h.b16 %v3237
        %v3658 = vunpack.c.l.b16 %v3238
        %v3659 = vunpack.c.l.b16 %v3239
        %v3660 = vunpack.c.h.b16 %v3239
        %v3661 = vunpack.c.l.b16 %v3240
        %v3662 = vunpack.c.h.b16 %v3240
        %v3663 = vunpack.c.l.b16 %v3241
        %v3664 = vunpack.c.h.b16 %v3241
        %v3665 = vunpack.c.l.b16 %v3242
        %v3666 = vunpack.c.h.b16 %v3242
        %v3667 = vunpack.c.l.b16 %v3243
        %v3668 = vunpack.c.l.b16 %v3244
        %v3669 = vunpack.c.h.b16 %v3244
        %v3670 = vunpack.c.l.b16 %v3245
        %v3671 = vunpack.c.h.b16 %v3245
        %v3672 = vunpack.c.l.b16 %v3246
        %v3673 = vunpack.c.h.b16 %v3246
        %v3674 = vunpack.c.l.b16 %v3247
        %v3675 = vunpack.c.h.b16 %v3247
        %v3676 = vunpack.c.l.b16 %v3248
        %v3677 = vunpack.c.l.b16 %v3249
        %v3678 = vunpack.c.h.b16 %v3249
        %v3679 = vunpack.c.l.b16 %v3250
        %v3680 = vunpack.c.h.b16 %v3250
        %v3681 = vunpack.c.l.b16 %v3251
        %v3682 = vunpack.c.h.b16 %v3251
        %v3683 = vunpack.c.l.b16 %v3252
        %v3684 = vunpack.c.h.b16 %v3252
        %v3685 = vunpack.c.l.b16 %v3253
        %v3686 = vunpack.c.l.b16 %v3254
        %v3687 = vunpack.c.h.b16 %v3254
        %v3688 = vunpack.c.l.b16 %v3255
        %v3689 = vunpack.c.h.b16 %v3255
        %v3690 = vunpack.c.l.b16 %v3256
        %v3691 = vunpack.c.h.b16 %v3256
        %v3692 = vunpack.c.l.b16 %v3257
        %v3693 = vunpack.c.h.b16 %v3257
        %v3694 = vunpack.c.l.b16 %v3258
        %v3695 = vunpack.c.l.b16 %v3259
        %v3696 = vunpack.c.h.b16 %v3259
        %v3697 = vunpack.c.l.b16 %v3260
        %v3698 = vunpack.c.h.b16 %v3260
        %v3699 = vunpack.c.l.b16 %v3261
        %v3700 = vunpack.c.h.b16 %v3261
        %v3701 = vunpack.c.l.b16 %v3262
        %v3702 = vunpack.c.h.b16 %v3262
        %v3703 = vunpack.c.l.b16 %v3263
        %v3704 = vunpack.c.l.b16 %v3264
        %v3705 = vunpack.c.h.b16 %v3264
        %v3706 = vunpack.c.l.b16 %v3265
        %v3707 = vunpack.c.h.b16 %v3265
        %v3708 = vunpack.c.l.b16 %v3266
        %v3709 = vunpack.c.h.b16 %v3266
        %v3710 = vunpack.c.l.b16 %v3267
        %v3711 = vunpack.c.h.b16 %v3267
        %v3712 = vunpack.c.l.b16 %v3268
        %v3713 = vunpack.c.l.b16 %v3269
        %v3714 = vunpack.c.h.b16 %v3269
        %v3715 = vunpack.c.l.b16 %v3270
        %v3716 = vunpack.c.h.b16 %v3270
        %v3717 = vunpack.c.l.b16 %v3271
        %v3718 = vunpack.c.h.b16 %v3271
        %v3719 = vunpack.c.l.b16 %v3272
        %v3720 = vunpack.c.h.b16 %v3272
        %v3721 = vunpack.c.l.b16 %v3273
        %v3722 = vpack.c.b16 %v3443, %v3434
        %v3723 = vpack.c.b16 %v3444, %v3435
        %v3724 = vpack.c.b16 %v3445, %v3436
        %v3725 = vpack.c.b16 %v3446, %v3437
        %v3726 = vpack.c.b16 %v3447, %v3438
        %v3727 = vpack.c.b16 %v3448, %v3439
        %v3728 = vpack.c.b16 %v3449, %v3440
        %v3729 = vpack.c.b16 %v3450, %v3441
        %v3730 = vpack.c.b16 %v3451, %v3442
        %v3731 = vpack.c.b16 %v3461, %v3452
        %v3732 = vpack.c.b16 %v3462, %v3453
        %v3733 = vpack.c.b16 %v3463, %v3454
        %v3734 = vpack.c.b16 %v3464, %v3455
        %v3735 = vpack.c.b16 %v3465, %v3456
        %v3736 = vpack.c.b16 %v3466, %v3457
        %v3737 = vpack.c.b16 %v3467, %v3458
        %v3738 = vpack.c.b16 %v3468, %v3459
        %v3739 = vpack.c.b16 %v3469, %v3460
        %v3740 = vpack.c.b16 %v3479, %v3470
        %v3741 = vpack.c.b16 %v3480, %v3471
        %v3742 = vpack.c.b16 %v3481, %v3472
        %v3743 = vpack.c.b16 %v3482, %v3473
        %v3744 = vpack.c.b16 %v3483, %v3474
        %v3745 = vpack.c.b16 %v3484, %v3475
        %v3746 = vpack.c.b16 %v3485, %v3476
        %v3747 = vpack.c.b16 %v3486, %v3477
        %v3748 = vpack.c.b16 %v3487, %v3478
        %v3749 = vpack.c.b16 %v3497, %v3488
        %v3750 = vpack.c.b16 %v3498, %v3489
        %v3751 = vpack.c.b16 %v3499, %v3490
        %v3752 = vpack.c.b16 %v3500, %v3491
        %v3753 = vpack.c.b16 %v3501, %v3492
        %v3754 = vpack.c.b16 %v3502, %v3493
        %v3755 = vpack.c.b16 %v3503, %v3494
        %v3756 = vpack.c.b16 %v3504, %v3495
        %v3757 = vpack.c.b16 %v3505, %v3496
        %v3758 = vpack.c.b16 %v3515, %v3506
        %v3759 = vpack.c.b16 %v3516, %v3507
        %v3760 = vpack.c.b16 %v3517, %v3508
        %v3761 = vpack.c.b16 %v3518, %v3509
        %v3762 = vpack.c.b16 %v3519, %v3510
        %v3763 = vpack.c.b16 %v3520, %v3511
        %v3764 = vpack.c.b16 %v3521, %v3512
        %v3765 = vpack.c.b16 %v3522, %v3513
        %v3766 = vpack.c.b16 %v3523, %v3514
        %v3767 = vpack.c.b16 %v3533, %v3524
        %v3768 = vpack.c.b16 %v3534, %v3525
        %v3769 = vpack.c.b16 %v3535, %v3526
        %v3770 = vpack.c.b16 %v3536, %v3527
        %v3771 = vpack.c.b16 %v3537, %v3528
        %v3772 = vpack.c.b16 %v3538, %v3529
        %v3773 = vpack.c.b16 %v3539, %v3530
        %v3774 = vpack.c.b16 %v3540, %v3531
        %v3775 = vpack.c.b16 %v3541, %v3532
        %v3776 = vpack.c.b16 %v3551, %v3542
        %v3777 = vpack.c.b16 %v3552, %v3543
        %v3778 = vpack.c.b16 %v3553, %v3544
        %v3779 = vpack.c.b16 %v3554, %v3545
        %v3780 = vpack.c.b16 %v3555, %v3546
        %v3781 = vpack.c.b16 %v3556, %v3547
        %v3782 = vpack.c.b16 %v3557, %v3548
        %v3783 = vpack.c.b16 %v3558, %v3549
        %v3784 = vpack.c.b16 %v3559, %v3550
        %v3785 = vpack.c.b16 %v3569, %v3560
        %v3786 = vpack.c.b16 %v3570, %v3561
        %v3787 = vpack.c.b16 %v3571, %v3562
        %v3788 = vpack.c.b16 %v3572, %v3563
        %v3789 = vpack.c.b16 %v3573, %v3564
        %v3790 = vpack.c.b16 %v3574, %v3565
        %v3791 = vpack.c.b16 %v3575, %v3566
        %v3792 = vpack.c.b16 %v3576, %v3567
        %v3793 = vpack.c.b16 %v3577, %v3568
        %v3794 = vpack.c.b16 %v3587, %v3578
        %v3795 = vpack.c.b16 %v3588, %v3579
        %v3796 = vpack.c.b16 %v3589, %v3580
        %v3797 = vpack.c.b16 %v3590, %v3581
        %v3798 = vpack.c.b16 %v3591, %v3582
        %v3799 = vpack.c.b16 %v3592, %v3583
        %v3800 = vpack.c.b16 %v3593, %v3584
        %v3801 = vpack.c.b16 %v3594, %v3585
        %v3802 = vpack.c.b16 %v3595, %v3586
        %v3803 = vpack.c.b16 %v3605, %v3596
        %v3804 = vpack.c.b16 %v3606, %v3597
        %v3805 = vpack.c.b16 %v3607, %v3598
        %v3806 = vpack.c.b16 %v3608, %v3599
        %v3807 = vpack.c.b16 %v3609, %v3600
        %v3808 = vpack.c.b16 %v3610, %v3601
        %v3809 = vpack.c.b16 %v3611, %v3602
        %v3810 = vpack.c.b16 %v3612, %v3603
        %v3811 = vpack.c.b16 %v3613, %v3604
        %v3812 = vpack.c.b16 %v3623, %v3614
        %v3813 = vpack.c.b16 %v3624, %v3615
        %v3814 = vpack.c.b16 %v3625, %v3616
        %v3815 = vpack.c.b16 %v3626, %v3617
        %v3816 = vpack.c.b16 %v3627, %v3618
        %v3817 = vpack.c.b16 %v3628, %v3619
        %v3818 = vpack.c.b16 %v3629, %v3620
        %v3819 = vpack.c.b16 %v3630, %v3621
        %v3820 = vpack.c.b16 %v3631, %v3622
        %v3821 = vpack.c.b16 %v3641, %v3632
        %v3822 = vpack.c.b16 %v3642, %v3633
        %v3823 = vpack.c.b16 %v3643, %v3634
        %v3824 = vpack.c.b16 %v3644, %v3635
        %v3825 = vpack.c.b16 %v3645, %v3636
        %v3826 = vpack.c.b16 %v3646, %v3637
        %v3827 = vpack.c.b16 %v3647, %v3638
        %v3828 = vpack.c.b16 %v3648, %v3639
        %v3829 = vpack.c.b16 %v3649, %v3640
        %v3830 = vpack.c.b16 %v3659, %v3650
        %v3831 = vpack.c.b16 %v3660, %v3651
        %v3832 = vpack.c.b16 %v3661, %v3652
        %v3833 = vpack.c.b16 %v3662, %v3653
        %v3834 = vpack.c.b16 %v3663, %v3654
        %v3835 = vpack.c.b16 %v3664, %v3655
        %v3836 = vpack.c.b16 %v3665, %v3656
        %v3837 = vpack.c.b16 %v3666, %v3657
        %v3838 = vpack.c.b16 %v3667, %v3658
        %v3839 = vpack.c.b16 %v3677, %v3668
        %v3840 = vpack.c.b16 %v3678, %v3669
        %v3841 = vpack.c.b16 %v3679, %v3670
        %v3842 = vpack.c.b16 %v3680, %v3671
        %v3843 = vpack.c.b16 %v3681, %v3672
        %v3844 = vpack.c.b16 %v3682, %v3673
        %v3845 = vpack.c.b16 %v3683, %v3674
        %v3846 = vpack.c.b16 %v3684, %v3675
        %v3847 = vpack.c.b16 %v3685, %v3676
        %v3848 = vpack.c.b16 %v3695, %v3686
        %v3849 = vpack.c.b16 %v3696, %v3687
        %v3850 = vpack.c.b16 %v3697, %v3688
        %v3851 = vpack.c.b16 %v3698, %v3689
        %v3852 = vpack.c.b16 %v3699, %v3690
        %v3853 = vpack.c.b16 %v3700, %v3691
        %v3854 = vpack.c.b16 %v3701, %v3692
        %v3855 = vpack.c.b16 %v3702, %v3693
        %v3856 = vpack.c.b16 %v3703, %v3694
        %v3857 = vpack.c.b16 %v3713, %v3704
        %v3858 = vpack.c.b16 %v3714, %v3705
        %v3859 = vpack.c.b16 %v3715, %v3706
        %v3860 = vpack.c.b16 %v3716, %v3707
        %v3861 = vpack.c.b16 %v3717, %v3708
        %v3862 = vpack.c.b16 %v3718, %v3709
        %v3863 = vpack.c.b16 %v3719, %v3710
        %v3864 = vpack.c.b16 %v3720, %v3711
        %v3865 = vpack.c.b16 %v3721, %v3712
        %4010 = vmatpush.bf16.msra.mxu0 %v3785
        %4011 = vmatpush.bf16.msra.mxu0 %v3776
        %4012 = vmatpush.bf16.msra.mxu0 %v3767
        %4013 = vmatpush.bf16.msra.mxu0 %v3758
        %4014 = vmatpush.bf16.msra.mxu0 %v3749
        %4015 = vmatpush.bf16.msra.mxu0 %v3740
        %4016 = vmatpush.bf16.msra.mxu0 %v3731
        %4017 = vmatpush.bf16.msra.mxu0 %v3722
        %4018 = vmatmul.bf16.gmra.mxu0 %v3112
        %v4019 = vpop.f32.mrf.mxu0
        %v4020 = vadd.f32 0.0, %v4019
        %v4021 = vpop.f32.mrf.mxu0
        %4022 = vdwg.mxu0
        %4023 = vmatpush.bf16.msra.mxu0 %v3857
        %4024 = vmatpush.bf16.msra.mxu0 %v3848
        %4025 = vmatpush.bf16.msra.mxu0 %v3839
        %4026 = vmatpush.bf16.msra.mxu0 %v3830
        %4027 = vmatpush.bf16.msra.mxu0 %v3821
        %4028 = vmatpush.bf16.msra.mxu0 %v3812
        %4029 = vmatpush.bf16.msra.mxu0 %v3803
        %4030 = vmatpush.bf16.msra.mxu0 %v3794
        %4031 = vmatmul.bf16.gmra.mxu0 %v3113
        %v4032 = vpop.f32.mrf.mxu0
        %v4033 = vadd.f32 %v4020, %v4032
        %v4034 = vpop.f32.mrf.mxu0
        %4035 = vdwg.mxu0
        %4036 = vmatpush.bf16.msra.mxu0 %v3786
        %4037 = vmatpush.bf16.msra.mxu0 %v3777
        %4038 = vmatpush.bf16.msra.mxu0 %v3768
        %4039 = vmatpush.bf16.msra.mxu0 %v3759
        %4040 = vmatpush.bf16.msra.mxu0 %v3750
        %4041 = vmatpush.bf16.msra.mxu0 %v3741
        %4042 = vmatpush.bf16.msra.mxu0 %v3732
        %4043 = vmatpush.bf16.msra.mxu0 %v3723
        %4044 = vmatmul.bf16.gmra.mxu0 %v3112
        %v4045 = vpop.f32.mrf.mxu0
        %v4046 = vadd.f32 0.0, %v4045
        %v4047 = vpop.f32.mrf.mxu0
        %4048 = vdwg.mxu0
        %4049 = vmatpush.bf16.msra.mxu0 %v3858
        %4050 = vmatpush.bf16.msra.mxu0 %v3849
        %4051 = vmatpush.bf16.msra.mxu0 %v3840
        %4052 = vmatpush.bf16.msra.mxu0 %v3831
        %4053 = vmatpush.bf16.msra.mxu0 %v3822
        %4054 = vmatpush.bf16.msra.mxu0 %v3813
        %4055 = vmatpush.bf16.msra.mxu0 %v3804
        %4056 = vmatpush.bf16.msra.mxu0 %v3795
        %4057 = vmatmul.bf16.gmra.mxu0 %v3113
        %v4058 = vpop.f32.mrf.mxu0
        %v4059 = vadd.f32 %v4046, %v4058
        %v4060 = vpop.f32.mrf.mxu0
        %4061 = vdwg.mxu0
        %4062 = vmatpush.bf16.msra.mxu0 %v3787
        %4063 = vmatpush.bf16.msra.mxu0 %v3778
        %4064 = vmatpush.bf16.msra.mxu0 %v3769
        %4065 = vmatpush.bf16.msra.mxu0 %v3760
        %4066 = vmatpush.bf16.msra.mxu0 %v3751
        %4067 = vmatpush.bf16.msra.mxu0 %v3742
        %4068 = vmatpush.bf16.msra.mxu0 %v3733
        %4069 = vmatpush.bf16.msra.mxu0 %v3724
        %4070 = vmatmul.bf16.gmra.mxu0 %v3112
        %v4071 = vpop.f32.mrf.mxu0
        %v4072 = vadd.f32 0.0, %v4071
        %v4073 = vpop.f32.mrf.mxu0
        %4074 = vdwg.mxu0
        %4075 = vmatpush.bf16.msra.mxu0 %v3859
        %4076 = vmatpush.bf16.msra.mxu0 %v3850
        %4077 = vmatpush.bf16.msra.mxu0 %v3841
        %4078 = vmatpush.bf16.msra.mxu0 %v3832
        %4079 = vmatpush.bf16.msra.mxu0 %v3823
        %4080 = vmatpush.bf16.msra.mxu0 %v3814
        %4081 = vmatpush.bf16.msra.mxu0 %v3805
        %4082 = vmatpush.bf16.msra.mxu0 %v3796
        %4083 = vmatmul.bf16.gmra.mxu0 %v3113
        %v4084 = vpop.f32.mrf.mxu0
        %v4085 = vadd.f32 %v4072, %v4084
        %v4086 = vpop.f32.mrf.mxu0
        %4087 = vdwg.mxu0
        %4088 = vmatpush.bf16.msra.mxu0 %v3788
        %4089 = vmatpush.bf16.msra.mxu0 %v3779
        %4090 = vmatpush.bf16.msra.mxu0 %v3770
        %4091 = vmatpush.bf16.msra.mxu0 %v3761
        %4092 = vmatpush.bf16.msra.mxu0 %v3752
        %4093 = vmatpush.bf16.msra.mxu0 %v3743
        %4094 = vmatpush.bf16.msra.mxu0 %v3734
        %4095 = vmatpush.bf16.msra.mxu0 %v3725
        %4096 = vmatmul.bf16.gmra.mxu0 %v3112
        %v4097 = vpop.f32.mrf.mxu0
        %v4098 = vadd.f32 0.0, %v4097
        %v4099 = vpop.f32.mrf.mxu0
        %4100 = vdwg.mxu0
        %4101 = vmatpush.bf16.msra.mxu0 %v3860
        %4102 = vmatpush.bf16.msra.mxu0 %v3851
        %4103 = vmatpush.bf16.msra.mxu0 %v3842
        %4104 = vmatpush.bf16.msra.mxu0 %v3833
        %4105 = vmatpush.bf16.msra.mxu0 %v3824
        %4106 = vmatpush.bf16.msra.mxu0 %v3815
        %4107 = vmatpush.bf16.msra.mxu0 %v3806
        %4108 = vmatpush.bf16.msra.mxu0 %v3797
        %4109 = vmatmul.bf16.gmra.mxu0 %v3113
        %v4110 = vpop.f32.mrf.mxu0
        %v4111 = vadd.f32 %v4098, %v4110
        %v4112 = vpop.f32.mrf.mxu0
        %4113 = vdwg.mxu0
        %4114 = vmatpush.bf16.msra.mxu0 %v3789
        %4115 = vmatpush.bf16.msra.mxu0 %v3780
        %4116 = vmatpush.bf16.msra.mxu0 %v3771
        %4117 = vmatpush.bf16.msra.mxu0 %v3762
        %4118 = vmatpush.bf16.msra.mxu0 %v3753
        %4119 = vmatpush.bf16.msra.mxu0 %v3744
        %4120 = vmatpush.bf16.msra.mxu0 %v3735
        %4121 = vmatpush.bf16.msra.mxu0 %v3726
        %4122 = vmatmul.bf16.gmra.mxu0 %v3112
        %v4123 = vpop.f32.mrf.mxu0
        %v4124 = vadd.f32 0.0, %v4123
        %v4125 = vpop.f32.mrf.mxu0
        %4126 = vdwg.mxu0
        %4127 = vmatpush.bf16.msra.mxu0 %v3861
        %4128 = vmatpush.bf16.msra.mxu0 %v3852
        %4129 = vmatpush.bf16.msra.mxu0 %v3843
        %4130 = vmatpush.bf16.msra.mxu0 %v3834
        %4131 = vmatpush.bf16.msra.mxu0 %v3825
        %4132 = vmatpush.bf16.msra.mxu0 %v3816
        %4133 = vmatpush.bf16.msra.mxu0 %v3807
        %4134 = vmatpush.bf16.msra.mxu0 %v3798
        %4135 = vmatmul.bf16.gmra.mxu0 %v3113
        %v4136 = vpop.f32.mrf.mxu0
        %v4137 = vadd.f32 %v4124, %v4136
        %v4138 = vpop.f32.mrf.mxu0
        %4139 = vdwg.mxu0
        %4140 = vmatpush.bf16.msra.mxu0 %v3790
        %4141 = vmatpush.bf16.msra.mxu0 %v3781
        %4142 = vmatpush.bf16.msra.mxu0 %v3772
        %4143 = vmatpush.bf16.msra.mxu0 %v3763
        %4144 = vmatpush.bf16.msra.mxu0 %v3754
        %4145 = vmatpush.bf16.msra.mxu0 %v3745
        %4146 = vmatpush.bf16.msra.mxu0 %v3736
        %4147 = vmatpush.bf16.msra.mxu0 %v3727
        %4148 = vmatmul.bf16.gmra.mxu0 %v3112
        %v4149 = vpop.f32.mrf.mxu0
        %v4150 = vadd.f32 0.0, %v4149
        %v4151 = vpop.f32.mrf.mxu0
        %4152 = vdwg.mxu0
        %4153 = vmatpush.bf16.msra.mxu0 %v3862
        %4154 = vmatpush.bf16.msra.mxu0 %v3853
        %4155 = vmatpush.bf16.msra.mxu0 %v3844
        %4156 = vmatpush.bf16.msra.mxu0 %v3835
        %4157 = vmatpush.bf16.msra.mxu0 %v3826
        %4158 = vmatpush.bf16.msra.mxu0 %v3817
        %4159 = vmatpush.bf16.msra.mxu0 %v3808
        %4160 = vmatpush.bf16.msra.mxu0 %v3799
        %4161 = vmatmul.bf16.gmra.mxu0 %v3113
        %v4162 = vpop.f32.mrf.mxu0
        %v4163 = vadd.f32 %v4150, %v4162
        %v4164 = vpop.f32.mrf.mxu0
        %4165 = vdwg.mxu0
        %4166 = vmatpush.bf16.msra.mxu0 %v3791
        %4167 = vmatpush.bf16.msra.mxu0 %v3782
        %4168 = vmatpush.bf16.msra.mxu0 %v3773
        %4169 = vmatpush.bf16.msra.mxu0 %v3764
        %4170 = vmatpush.bf16.msra.mxu0 %v3755
        %4171 = vmatpush.bf16.msra.mxu0 %v3746
        %4172 = vmatpush.bf16.msra.mxu0 %v3737
        %4173 = vmatpush.bf16.msra.mxu0 %v3728
        %4174 = vmatmul.bf16.gmra.mxu0 %v3112
        %v4175 = vpop.f32.mrf.mxu0
        %v4176 = vadd.f32 0.0, %v4175
        %v4177 = vpop.f32.mrf.mxu0
        %4178 = vdwg.mxu0
        %4179 = vmatpush.bf16.msra.mxu0 %v3863
        %4180 = vmatpush.bf16.msra.mxu0 %v3854
        %4181 = vmatpush.bf16.msra.mxu0 %v3845
        %4182 = vmatpush.bf16.msra.mxu0 %v3836
        %4183 = vmatpush.bf16.msra.mxu0 %v3827
        %4184 = vmatpush.bf16.msra.mxu0 %v3818
        %4185 = vmatpush.bf16.msra.mxu0 %v3809
        %4186 = vmatpush.bf16.msra.mxu0 %v3800
        %4187 = vmatmul.bf16.gmra.mxu0 %v3113
        %v4188 = vpop.f32.mrf.mxu0
        %v4189 = vadd.f32 %v4176, %v4188
        %v4190 = vpop.f32.mrf.mxu0
        %4191 = vdwg.mxu0
        %4192 = vmatpush.bf16.msra.mxu0 %v3792
        %4193 = vmatpush.bf16.msra.mxu0 %v3783
        %4194 = vmatpush.bf16.msra.mxu0 %v3774
        %4195 = vmatpush.bf16.msra.mxu0 %v3765
        %4196 = vmatpush.bf16.msra.mxu0 %v3756
        %4197 = vmatpush.bf16.msra.mxu0 %v3747
        %4198 = vmatpush.bf16.msra.mxu0 %v3738
        %4199 = vmatpush.bf16.msra.mxu0 %v3729
        %4200 = vmatmul.bf16.gmra.mxu0 %v3112
        %v4201 = vpop.f32.mrf.mxu0
        %v4202 = vadd.f32 0.0, %v4201
        %v4203 = vpop.f32.mrf.mxu0
        %4204 = vdwg.mxu0
        %4205 = vmatpush.bf16.msra.mxu0 %v3864
        %4206 = vmatpush.bf16.msra.mxu0 %v3855
        %4207 = vmatpush.bf16.msra.mxu0 %v3846
        %4208 = vmatpush.bf16.msra.mxu0 %v3837
        %4209 = vmatpush.bf16.msra.mxu0 %v3828
        %4210 = vmatpush.bf16.msra.mxu0 %v3819
        %4211 = vmatpush.bf16.msra.mxu0 %v3810
        %4212 = vmatpush.bf16.msra.mxu0 %v3801
        %4213 = vmatmul.bf16.gmra.mxu0 %v3113
        %v4214 = vpop.f32.mrf.mxu0
        %v4215 = vadd.f32 %v4202, %v4214
        %v4216 = vpop.f32.mrf.mxu0
        %4217 = vdwg.mxu0
        %4218 = vmatpush.bf16.msra.mxu0 %v3793
        %4219 = vmatpush.bf16.msra.mxu0 %v3784
        %4220 = vmatpush.bf16.msra.mxu0 %v3775
        %4221 = vmatpush.bf16.msra.mxu0 %v3766
        %4222 = vmatpush.bf16.msra.mxu0 %v3757
        %4223 = vmatpush.bf16.msra.mxu0 %v3748
        %4224 = vmatpush.bf16.msra.mxu0 %v3739
        %4225 = vmatpush.bf16.msra.mxu0 %v3730
        %4226 = vmatmul.bf16.gmra.mxu0 %v3112
        %v4227 = vpop.f32.mrf.mxu0
        %v4228 = vadd.f32 0.0, %v4227
        %v4229 = vpop.f32.mrf.mxu0
        %4230 = vdwg.mxu0
        %4231 = vmatpush.bf16.msra.mxu0 %v3865
        %4232 = vmatpush.bf16.msra.mxu0 %v3856
        %4233 = vmatpush.bf16.msra.mxu0 %v3847
        %4234 = vmatpush.bf16.msra.mxu0 %v3838
        %4235 = vmatpush.bf16.msra.mxu0 %v3829
        %4236 = vmatpush.bf16.msra.mxu0 %v3820
        %4237 = vmatpush.bf16.msra.mxu0 %v3811
        %4238 = vmatpush.bf16.msra.mxu0 %v3802
        %4239 = vmatmul.bf16.gmra.mxu0 %v3113
        %v4240 = vpop.f32.mrf.mxu0
        %v4241 = vadd.f32 %v4228, %v4240
        %v4242 = vpop.f32.mrf.mxu0
        %4243 = vdwg.mxu0
        %v4244 = vpack.c.bf16 %v4059, %v4033
        %v4245 = vpack.c.bf16 %v4111, %v4085
        %v4246 = vpack.c.bf16 %v4163, %v4137
        %v4247 = vpack.c.bf16 %v4215, %v4189
        %v4248 = vpack.c.bf16 %v4241, %v4241
        %4250 = vset.pattern.permute.xlu0 0
        %4251 = vperm.xlu0 %4250, %v3110
        %v4252 = vpop.permute.xlu0 %4251
        %4255 = vset.pattern.permute.xlu0 0
        %4256 = vperm.xlu0 %4255, %v3111
        %v4257 = vpop.permute.xlu0 %4256
        %v4261 = vunpack.c.l.b16 %v3108
        %v4262 = vunpack.c.l.b16 %v3109
        %v4263 = vpack.c.b16 %v4262, %v4261
        %vm4264 = vcmask 588800
        %v4266 = vsel %vm4264, %v4263, 0
        %vm4268 = vcmask 1043456
        %v4270 = vsel %vm4268, %v4248, 0
        %4272 = vmatpush.bf16.msra.mxu0 0
        %4273 = vmatpush.bf16.msra.mxu0 0
        %4274 = vmatpush.bf16.msra.mxu0 0
        %4275 = vmatpush.bf16.msra.mxu0 %v4270
        %4276 = vmatpush.bf16.msra.mxu0 %v4247
        %4277 = vmatpush.bf16.msra.mxu0 %v4246
        %4278 = vmatpush.bf16.msra.mxu0 %v4245
        %4279 = vmatpush.bf16.msra.mxu0 %v4244
        %4280 = vmatmul.bf16.gmra.mxu0 %v4266
        %v4281 = vpop.f32.mrf.mxu0
        %v4282 = vadd.f32 %v4252, %v4281
        %v4283 = vpop.f32.mrf.mxu0
        %v4284 = vadd.f32 %v4257, %v4283
        %4285 = vdwg.mxu0
        %v4286 = vlaneseq
        %v4287 = vand.u32 %v4286, 127
        %vm4288 = vcmp.lt.s32.totalorder %v4287, 60
        %v4289 = vsel %vm4288, 1, 0
        %v4290 = vcvt.s32.f32 %v4289
        %v4291 = vmul.f32 %v4282, %v4290
        %v4292 = vmul.f32 %v4284, %v4290
        %4293 = vadd.xlane.f32.xlu0 %v4291
        %v4294 = vpop.xlane.xlu0 %4293
        %4295 = vadd.xlane.f32.xlu0 %v4292
        %v4296 = vpop.xlane.xlu0 %4295
        %v4297 = vmul.f32 %v4294, 0.016666668
        %v4298 = vmul.f32 %v4296, 0.016666668
        %v4299 = vsub.f32 %v4282, %v4297
        %v4300 = vsub.f32 %v4284, %v4298
        %v4301 = vmul.f32 %v4299, %v4299
        %v4302 = vmul.f32 %v4300, %v4300
        %v4303 = vmul.f32 %v4301, %v4290
        %v4304 = vmul.f32 %v4302, %v4290
        %4305 = vadd.xlane.f32.xlu0 %v4303
        %v4306 = vpop.xlane.xlu0 %4305
        %4307 = vadd.xlane.f32.xlu0 %v4304
        %v4308 = vpop.xlane.xlu0 %4307
        %v4309 = vmul.f32 %v4306, 0.016666668
        %v4310 = vmul.f32 %v4308, 0.016666668
        %v4311 = vadd.f32 %v4309, 1e-05
        %v4312 = vadd.f32 %v4310, 1e-05
        %v4313 = vrsqrt.pop %v4311
        %v4314 = vmul.f32 %v4313, %v4311
        %v4315 = vmul.f32 %v4314, %v4313
        %v4316 = vmul.f32 0.5, %v4315
        %v4317 = vsub.f32 1.5, %v4316
        %v4318 = vmul.f32 %v4313, %v4317
        %vm4319 = vweird.f32 %v4311
        %vm4320 = vweird.f32 %v4313
        %vm4321 = vmor %vm4319, %vm4320
        %v4322 = vsel %vm4321, %v4313, %v4318
        %v4323 = vrsqrt.pop %v4312
        %v4324 = vmul.f32 %v4323, %v4312
        %v4325 = vmul.f32 %v4324, %v4323
        %v4326 = vmul.f32 0.5, %v4325
        %v4327 = vsub.f32 1.5, %v4326
        %v4328 = vmul.f32 %v4323, %v4327
        %vm4329 = vweird.f32 %v4312
        %vm4330 = vweird.f32 %v4323
        %vm4331 = vmor %vm4329, %vm4330
        %v4332 = vsel %vm4331, %v4323, %v4328
        %v4333 = vmul.f32 %v4299, %v4322
        %v4334 = vmul.f32 %v4300, %v4332
        %v4335 = vmax.f32 %v4333, 0.0
        %v4336 = vmax.f32 %v4334, 0.0
        %v4337 = vld [vmem:[%s12] sm:$0xff]
        %v4338 = vld [vmem:[%s12 + $0x8] sm:$0xff]
        %v4339 = vld [vmem:[%s12 + $0x10] sm:$0xff]
        %v4340 = vld [vmem:[%s12 + $0x18] sm:$0xff]
        %v4341 = vld [vmem:[%s13] sm:$0xff]
        %v4342 = vld [vmem:[%s13 + $0x8] sm:$0xff]
        %v4343 = vld [vmem:[%s13 + $0x10] sm:$0xff]
        %v4344 = vld [vmem:[%s13 + $0x18] sm:$0xff]
        %v4345 = vpack.c.bf16 %v4336, %v4335
        %v4346 = vld [vmem:[%s3] sm:$0xff]
        %v4347 = vld [vmem:[%s3 + $0x8] sm:$0xff]
        %v4348 = vld [vmem:[%s3 + $0x10] sm:$0xff]
        %v4349 = vld [vmem:[%s3 + $0x18] sm:$0xff]
        %v4350 = vld [vmem:[%s3 + $0x20] sm:$0xf]
        %v4351 = vld [vmem:[%s3 + $0x24] sm:$0xff]
        %v4352 = vld [vmem:[%s3 + $0x2c] sm:$0xff]
        %v4353 = vld [vmem:[%s3 + $0x34] sm:$0xff]
        %v4354 = vld [vmem:[%s3 + $0x3c] sm:$0xff]
        %v4355 = vld [vmem:[%s3 + $0x44] sm:$0xf]
        %v4356 = vld [vmem:[%s3 + $0x48] sm:$0xff]
        %v4357 = vld [vmem:[%s3 + $0x50] sm:$0xff]
        %v4358 = vld [vmem:[%s3 + $0x58] sm:$0xff]
        %v4359 = vld [vmem:[%s3 + $0x60] sm:$0xff]
        %v4360 = vld [vmem:[%s3 + $0x68] sm:$0xf]
        %v4361 = vld [vmem:[%s3 + $0x6c] sm:$0xff]
        %v4362 = vld [vmem:[%s3 + $0x74] sm:$0xff]
        %v4363 = vld [vmem:[%s3 + $0x7c] sm:$0xff]
        %v4364 = vld [vmem:[%s3 + $0x84] sm:$0xff]
        %v4365 = vld [vmem:[%s3 + $0x8c] sm:$0xf]
        %v4366 = vld [vmem:[%s3 + $0x90] sm:$0xff]
        %v4367 = vld [vmem:[%s3 + $0x98] sm:$0xff]
        %v4368 = vld [vmem:[%s3 + $0xa0] sm:$0xff]
        %v4369 = vld [vmem:[%s3 + $0xa8] sm:$0xff]
        %v4370 = vld [vmem:[%s3 + $0xb0] sm:$0xf]
        %v4371 = vld [vmem:[%s3 + $0xb4] sm:$0xff]
        %v4372 = vld [vmem:[%s3 + $0xbc] sm:$0xff]
        %v4373 = vld [vmem:[%s3 + $0xc4] sm:$0xff]
        %v4374 = vld [vmem:[%s3 + $0xcc] sm:$0xff]
        %v4375 = vld [vmem:[%s3 + $0xd4] sm:$0xf]
        %v4376 = vld [vmem:[%s3 + $0xd8] sm:$0xff]
        %v4377 = vld [vmem:[%s3 + $0xe0] sm:$0xff]
        %v4378 = vld [vmem:[%s3 + $0xe8] sm:$0xff]
        %v4379 = vld [vmem:[%s3 + $0xf0] sm:$0xff]
        %v4380 = vld [vmem:[%s3 + $0xf8] sm:$0xf]
        %v4381 = vld [vmem:[%s3 + $0xfc] sm:$0xff]
        %v4382 = vld [vmem:[%s3 + $0x104] sm:$0xff]
        %v4383 = vld [vmem:[%s3 + $0x10c] sm:$0xff]
        %v4384 = vld [vmem:[%s3 + $0x114] sm:$0xff]
        %v4385 = vld [vmem:[%s3 + $0x11c] sm:$0xf]
        %v4386 = vld [vmem:[%s3 + $0x120] sm:$0xff]
        %v4387 = vld [vmem:[%s3 + $0x128] sm:$0xff]
        %v4388 = vld [vmem:[%s3 + $0x130] sm:$0xff]
        %v4389 = vld [vmem:[%s3 + $0x138] sm:$0xff]
        %v4390 = vld [vmem:[%s3 + $0x140] sm:$0xf]
        %v4391 = vld [vmem:[%s3 + $0x144] sm:$0xff]
        %v4392 = vld [vmem:[%s3 + $0x14c] sm:$0xff]
        %v4393 = vld [vmem:[%s3 + $0x154] sm:$0xff]
        %v4394 = vld [vmem:[%s3 + $0x15c] sm:$0xff]
        %v4395 = vld [vmem:[%s3 + $0x164] sm:$0xf]
        %v4396 = vld [vmem:[%s3 + $0x168] sm:$0xff]
        %v4397 = vld [vmem:[%s3 + $0x170] sm:$0xff]
        %v4398 = vld [vmem:[%s3 + $0x178] sm:$0xff]
        %v4399 = vld [vmem:[%s3 + $0x180] sm:$0xff]
        %v4400 = vld [vmem:[%s3 + $0x188] sm:$0xf]
        %v4401 = vld [vmem:[%s3 + $0x18c] sm:$0xff]
        %v4402 = vld [vmem:[%s3 + $0x194] sm:$0xff]
        %v4403 = vld [vmem:[%s3 + $0x19c] sm:$0xff]
        %v4404 = vld [vmem:[%s3 + $0x1a4] sm:$0xff]
        %v4405 = vld [vmem:[%s3 + $0x1ac] sm:$0xf]
        %v4406 = vld [vmem:[%s3 + $0x1b0] sm:$0xff]
        %v4407 = vld [vmem:[%s3 + $0x1b8] sm:$0xff]
        %v4408 = vld [vmem:[%s3 + $0x1c0] sm:$0xff]
        %v4409 = vld [vmem:[%s3 + $0x1c8] sm:$0xff]
        %v4410 = vld [vmem:[%s3 + $0x1d0] sm:$0xf]
        %v4411 = vld [vmem:[%s3 + $0x1d4] sm:$0xff]
        %v4412 = vld [vmem:[%s3 + $0x1dc] sm:$0xff]
        %v4413 = vld [vmem:[%s3 + $0x1e4] sm:$0xff]
        %v4414 = vld [vmem:[%s3 + $0x1ec] sm:$0xff]
        %v4415 = vld [vmem:[%s3 + $0x1f4] sm:$0xf]
        %v4416 = vld [vmem:[%s3 + $0x1f8] sm:$0xff]
        %v4417 = vld [vmem:[%s3 + $0x200] sm:$0xff]
        %v4418 = vld [vmem:[%s3 + $0x208] sm:$0xff]
        %v4419 = vld [vmem:[%s3 + $0x210] sm:$0xff]
        %v4420 = vld [vmem:[%s3 + $0x218] sm:$0xf]
        %v4421 = vld [vmem:[%s3 + $0x21c] sm:$0xff]
        %v4422 = vld [vmem:[%s3 + $0x224] sm:$0xff]
        %v4423 = vld [vmem:[%s3 + $0x22c] sm:$0xff]
        %v4424 = vld [vmem:[%s3 + $0x234] sm:$0xff]
        %v4425 = vld [vmem:[%s3 + $0x23c] sm:$0xf]
        %v4506 = vunpack.c.l.b16 %v4346
        %v4507 = vunpack.c.h.b16 %v4346
        %v4508 = vunpack.c.l.b16 %v4347
        %v4509 = vunpack.c.h.b16 %v4347
        %v4510 = vunpack.c.l.b16 %v4348
        %v4511 = vunpack.c.h.b16 %v4348
        %v4512 = vunpack.c.l.b16 %v4349
        %v4513 = vunpack.c.h.b16 %v4349
        %v4514 = vunpack.c.l.b16 %v4350
        %v4515 = vunpack.c.l.b16 %v4351
        %v4516 = vunpack.c.h.b16 %v4351
        %v4517 = vunpack.c.l.b16 %v4352
        %v4518 = vunpack.c.h.b16 %v4352
        %v4519 = vunpack.c.l.b16 %v4353
        %v4520 = vunpack.c.h.b16 %v4353
        %v4521 = vunpack.c.l.b16 %v4354
        %v4522 = vunpack.c.h.b16 %v4354
        %v4523 = vunpack.c.l.b16 %v4355
        %v4524 = vunpack.c.l.b16 %v4356
        %v4525 = vunpack.c.h.b16 %v4356
        %v4526 = vunpack.c.l.b16 %v4357
        %v4527 = vunpack.c.h.b16 %v4357
        %v4528 = vunpack.c.l.b16 %v4358
        %v4529 = vunpack.c.h.b16 %v4358
        %v4530 = vunpack.c.l.b16 %v4359
        %v4531 = vunpack.c.h.b16 %v4359
        %v4532 = vunpack.c.l.b16 %v4360
        %v4533 = vunpack.c.l.b16 %v4361
        %v4534 = vunpack.c.h.b16 %v4361
        %v4535 = vunpack.c.l.b16 %v4362
        %v4536 = vunpack.c.h.b16 %v4362
        %v4537 = vunpack.c.l.b16 %v4363
        %v4538 = vunpack.c.h.b16 %v4363
        %v4539 = vunpack.c.l.b16 %v4364
        %v4540 = vunpack.c.h.b16 %v4364
        %v4541 = vunpack.c.l.b16 %v4365
        %v4542 = vunpack.c.l.b16 %v4366
        %v4543 = vunpack.c.h.b16 %v4366
        %v4544 = vunpack.c.l.b16 %v4367
        %v4545 = vunpack.c.h.b16 %v4367
        %v4546 = vunpack.c.l.b16 %v4368
        %v4547 = vunpack.c.h.b16 %v4368
        %v4548 = vunpack.c.l.b16 %v4369
        %v4549 = vunpack.c.h.b16 %v4369
        %v4550 = vunpack.c.l.b16 %v4370
        %v4551 = vunpack.c.l.b16 %v4371
        %v4552 = vunpack.c.h.b16 %v4371
        %v4553 = vunpack.c.l.b16 %v4372
        %v4554 = vunpack.c.h.b16 %v4372
        %v4555 = vunpack.c.l.b16 %v4373
        %v4556 = vunpack.c.h.b16 %v4373
        %v4557 = vunpack.c.l.b16 %v4374
        %v4558 = vunpack.c.h.b16 %v4374
        %v4559 = vunpack.c.l.b16 %v4375
        %v4560 = vunpack.c.l.b16 %v4376
        %v4561 = vunpack.c.h.b16 %v4376
        %v4562 = vunpack.c.l.b16 %v4377
        %v4563 = vunpack.c.h.b16 %v4377
        %v4564 = vunpack.c.l.b16 %v4378
        %v4565 = vunpack.c.h.b16 %v4378
        %v4566 = vunpack.c.l.b16 %v4379
        %v4567 = vunpack.c.h.b16 %v4379
        %v4568 = vunpack.c.l.b16 %v4380
        %v4569 = vunpack.c.l.b16 %v4381
        %v4570 = vunpack.c.h.b16 %v4381
        %v4571 = vunpack.c.l.b16 %v4382
        %v4572 = vunpack.c.h.b16 %v4382
        %v4573 = vunpack.c.l.b16 %v4383
        %v4574 = vunpack.c.h.b16 %v4383
        %v4575 = vunpack.c.l.b16 %v4384
        %v4576 = vunpack.c.h.b16 %v4384
        %v4577 = vunpack.c.l.b16 %v4385
        %v4578 = vunpack.c.l.b16 %v4386
        %v4579 = vunpack.c.h.b16 %v4386
        %v4580 = vunpack.c.l.b16 %v4387
        %v4581 = vunpack.c.h.b16 %v4387
        %v4582 = vunpack.c.l.b16 %v4388
        %v4583 = vunpack.c.h.b16 %v4388
        %v4584 = vunpack.c.l.b16 %v4389
        %v4585 = vunpack.c.h.b16 %v4389
        %v4586 = vunpack.c.l.b16 %v4390
        %v4587 = vunpack.c.l.b16 %v4391
        %v4588 = vunpack.c.h.b16 %v4391
        %v4589 = vunpack.c.l.b16 %v4392
        %v4590 = vunpack.c.h.b16 %v4392
        %v4591 = vunpack.c.l.b16 %v4393
        %v4592 = vunpack.c.h.b16 %v4393
        %v4593 = vunpack.c.l.b16 %v4394
        %v4594 = vunpack.c.h.b16 %v4394
        %v4595 = vunpack.c.l.b16 %v4395
        %v4596 = vunpack.c.l.b16 %v4396
        %v4597 = vunpack.c.h.b16 %v4396
        %v4598 = vunpack.c.l.b16 %v4397
        %v4599 = vunpack.c.h.b16 %v4397
        %v4600 = vunpack.c.l.b16 %v4398
        %v4601 = vunpack.c.h.b16 %v4398
        %v4602 = vunpack.c.l.b16 %v4399
        %v4603 = vunpack.c.h.b16 %v4399
        %v4604 = vunpack.c.l.b16 %v4400
        %v4605 = vunpack.c.l.b16 %v4401
        %v4606 = vunpack.c.h.b16 %v4401
        %v4607 = vunpack.c.l.b16 %v4402
        %v4608 = vunpack.c.h.b16 %v4402
        %v4609 = vunpack.c.l.b16 %v4403
        %v4610 = vunpack.c.h.b16 %v4403
        %v4611 = vunpack.c.l.b16 %v4404
        %v4612 = vunpack.c.h.b16 %v4404
        %v4613 = vunpack.c.l.b16 %v4405
        %v4614 = vunpack.c.l.b16 %v4406
        %v4615 = vunpack.c.h.b16 %v4406
        %v4616 = vunpack.c.l.b16 %v4407
        %v4617 = vunpack.c.h.b16 %v4407
        %v4618 = vunpack.c.l.b16 %v4408
        %v4619 = vunpack.c.h.b16 %v4408
        %v4620 = vunpack.c.l.b16 %v4409
        %v4621 = vunpack.c.h.b16 %v4409
        %v4622 = vunpack.c.l.b16 %v4410
        %v4623 = vunpack.c.l.b16 %v4411
        %v4624 = vunpack.c.h.b16 %v4411
        %v4625 = vunpack.c.l.b16 %v4412
        %v4626 = vunpack.c.h.b16 %v4412
        %v4627 = vunpack.c.l.b16 %v4413
        %v4628 = vunpack.c.h.b16 %v4413
        %v4629 = vunpack.c.l.b16 %v4414
        %v4630 = vunpack.c.h.b16 %v4414
        %v4631 = vunpack.c.l.b16 %v4415
        %v4632 = vunpack.c.l.b16 %v4416
        %v4633 = vunpack.c.h.b16 %v4416
        %v4634 = vunpack.c.l.b16 %v4417
        %v4635 = vunpack.c.h.b16 %v4417
        %v4636 = vunpack.c.l.b16 %v4418
        %v4637 = vunpack.c.h.b16 %v4418
        %v4638 = vunpack.c.l.b16 %v4419
        %v4639 = vunpack.c.h.b16 %v4419
        %v4640 = vunpack.c.l.b16 %v4420
        %v4641 = vunpack.c.l.b16 %v4421
        %v4642 = vunpack.c.h.b16 %v4421
        %v4643 = vunpack.c.l.b16 %v4422
        %v4644 = vunpack.c.h.b16 %v4422
        %v4645 = vunpack.c.l.b16 %v4423
        %v4646 = vunpack.c.h.b16 %v4423
        %v4647 = vunpack.c.l.b16 %v4424
        %v4648 = vunpack.c.h.b16 %v4424
        %v4649 = vunpack.c.l.b16 %v4425
        %v4650 = vpack.c.b16 %v4515, %v4506
        %v4651 = vpack.c.b16 %v4516, %v4507
        %v4652 = vpack.c.b16 %v4517, %v4508
        %v4653 = vpack.c.b16 %v4518, %v4509
        %v4654 = vpack.c.b16 %v4519, %v4510
        %v4655 = vpack.c.b16 %v4520, %v4511
        %v4656 = vpack.c.b16 %v4521, %v4512
        %v4657 = vpack.c.b16 %v4522, %v4513
        %v4658 = vpack.c.b16 %v4523, %v4514
        %v4659 = vpack.c.b16 %v4533, %v4524
        %v4660 = vpack.c.b16 %v4534, %v4525
        %v4661 = vpack.c.b16 %v4535, %v4526
        %v4662 = vpack.c.b16 %v4536, %v4527
        %v4663 = vpack.c.b16 %v4537, %v4528
        %v4664 = vpack.c.b16 %v4538, %v4529
        %v4665 = vpack.c.b16 %v4539, %v4530
        %v4666 = vpack.c.b16 %v4540, %v4531
        %v4667 = vpack.c.b16 %v4541, %v4532
        %v4668 = vpack.c.b16 %v4551, %v4542
        %v4669 = vpack.c.b16 %v4552, %v4543
        %v4670 = vpack.c.b16 %v4553, %v4544
        %v4671 = vpack.c.b16 %v4554, %v4545
        %v4672 = vpack.c.b16 %v4555, %v4546
        %v4673 = vpack.c.b16 %v4556, %v4547
        %v4674 = vpack.c.b16 %v4557, %v4548
        %v4675 = vpack.c.b16 %v4558, %v4549
        %v4676 = vpack.c.b16 %v4559, %v4550
        %v4677 = vpack.c.b16 %v4569, %v4560
        %v4678 = vpack.c.b16 %v4570, %v4561
        %v4679 = vpack.c.b16 %v4571, %v4562
        %v4680 = vpack.c.b16 %v4572, %v4563
        %v4681 = vpack.c.b16 %v4573, %v4564
        %v4682 = vpack.c.b16 %v4574, %v4565
        %v4683 = vpack.c.b16 %v4575, %v4566
        %v4684 = vpack.c.b16 %v4576, %v4567
        %v4685 = vpack.c.b16 %v4577, %v4568
        %v4686 = vpack.c.b16 %v4587, %v4578
        %v4687 = vpack.c.b16 %v4588, %v4579
        %v4688 = vpack.c.b16 %v4589, %v4580
        %v4689 = vpack.c.b16 %v4590, %v4581
        %v4690 = vpack.c.b16 %v4591, %v4582
        %v4691 = vpack.c.b16 %v4592, %v4583
        %v4692 = vpack.c.b16 %v4593, %v4584
        %v4693 = vpack.c.b16 %v4594, %v4585
        %v4694 = vpack.c.b16 %v4595, %v4586
        %v4695 = vpack.c.b16 %v4605, %v4596
        %v4696 = vpack.c.b16 %v4606, %v4597
        %v4697 = vpack.c.b16 %v4607, %v4598
        %v4698 = vpack.c.b16 %v4608, %v4599
        %v4699 = vpack.c.b16 %v4609, %v4600
        %v4700 = vpack.c.b16 %v4610, %v4601
        %v4701 = vpack.c.b16 %v4611, %v4602
        %v4702 = vpack.c.b16 %v4612, %v4603
        %v4703 = vpack.c.b16 %v4613, %v4604
        %v4704 = vpack.c.b16 %v4623, %v4614
        %v4705 = vpack.c.b16 %v4624, %v4615
        %v4706 = vpack.c.b16 %v4625, %v4616
        %v4707 = vpack.c.b16 %v4626, %v4617
        %v4708 = vpack.c.b16 %v4627, %v4618
        %v4709 = vpack.c.b16 %v4628, %v4619
        %v4710 = vpack.c.b16 %v4629, %v4620
        %v4711 = vpack.c.b16 %v4630, %v4621
        %v4712 = vpack.c.b16 %v4631, %v4622
        %v4713 = vpack.c.b16 %v4641, %v4632
        %v4714 = vpack.c.b16 %v4642, %v4633
        %v4715 = vpack.c.b16 %v4643, %v4634
        %v4716 = vpack.c.b16 %v4644, %v4635
        %v4717 = vpack.c.b16 %v4645, %v4636
        %v4718 = vpack.c.b16 %v4646, %v4637
        %v4719 = vpack.c.b16 %v4647, %v4638
        %v4720 = vpack.c.b16 %v4648, %v4639
        %v4721 = vpack.c.b16 %v4649, %v4640
        %4794 = vmatpush.bf16.msra.mxu0 %v4713
        %4795 = vmatpush.bf16.msra.mxu0 %v4704
        %4796 = vmatpush.bf16.msra.mxu0 %v4695
        %4797 = vmatpush.bf16.msra.mxu0 %v4686
        %4798 = vmatpush.bf16.msra.mxu0 %v4677
        %4799 = vmatpush.bf16.msra.mxu0 %v4668
        %4800 = vmatpush.bf16.msra.mxu0 %v4659
        %4801 = vmatpush.bf16.msra.mxu0 %v4650
        %4802 = vmatmul.bf16.gmra.mxu0 %v4345
        %v4803 = vpop.f32.mrf.mxu0
        %v4804 = vadd.f32 0.0, %v4803
        %v4805 = vpop.f32.mrf.mxu0
        %v4806 = vadd.f32 0.0, %v4805
        %4807 = vdwg.mxu0
        %4808 = vmatpush.bf16.msra.mxu0 %v4714
        %4809 = vmatpush.bf16.msra.mxu0 %v4705
        %4810 = vmatpush.bf16.msra.mxu0 %v4696
        %4811 = vmatpush.bf16.msra.mxu0 %v4687
        %4812 = vmatpush.bf16.msra.mxu0 %v4678
        %4813 = vmatpush.bf16.msra.mxu0 %v4669
        %4814 = vmatpush.bf16.msra.mxu0 %v4660
        %4815 = vmatpush.bf16.msra.mxu0 %v4651
        %4816 = vmatmul.bf16.gmra.mxu0 %v4345
        %v4817 = vpop.f32.mrf.mxu0
        %v4818 = vadd.f32 0.0, %v4817
        %v4819 = vpop.f32.mrf.mxu0
        %v4820 = vadd.f32 0.0, %v4819
        %4821 = vdwg.mxu0
        %4822 = vmatpush.bf16.msra.mxu0 %v4715
        %4823 = vmatpush.bf16.msra.mxu0 %v4706
        %4824 = vmatpush.bf16.msra.mxu0 %v4697
        %4825 = vmatpush.bf16.msra.mxu0 %v4688
        %4826 = vmatpush.bf16.msra.mxu0 %v4679
        %4827 = vmatpush.bf16.msra.mxu0 %v4670
        %4828 = vmatpush.bf16.msra.mxu0 %v4661
        %4829 = vmatpush.bf16.msra.mxu0 %v4652
        %4830 = vmatmul.bf16.gmra.mxu0 %v4345
        %v4831 = vpop.f32.mrf.mxu0
        %v4832 = vadd.f32 0.0, %v4831
        %v4833 = vpop.f32.mrf.mxu0
        %v4834 = vadd.f32 0.0, %v4833
        %4835 = vdwg.mxu0
        %4836 = vmatpush.bf16.msra.mxu0 %v4716
        %4837 = vmatpush.bf16.msra.mxu0 %v4707
        %4838 = vmatpush.bf16.msra.mxu0 %v4698
        %4839 = vmatpush.bf16.msra.mxu0 %v4689
        %4840 = vmatpush.bf16.msra.mxu0 %v4680
        %4841 = vmatpush.bf16.msra.mxu0 %v4671
        %4842 = vmatpush.bf16.msra.mxu0 %v4662
        %4843 = vmatpush.bf16.msra.mxu0 %v4653
        %4844 = vmatmul.bf16.gmra.mxu0 %v4345
        %v4845 = vpop.f32.mrf.mxu0
        %v4846 = vadd.f32 0.0, %v4845
        %v4847 = vpop.f32.mrf.mxu0
        %v4848 = vadd.f32 0.0, %v4847
        %4849 = vdwg.mxu0
        %4850 = vmatpush.bf16.msra.mxu0 %v4717
        %4851 = vmatpush.bf16.msra.mxu0 %v4708
        %4852 = vmatpush.bf16.msra.mxu0 %v4699
        %4853 = vmatpush.bf16.msra.mxu0 %v4690
        %4854 = vmatpush.bf16.msra.mxu0 %v4681
        %4855 = vmatpush.bf16.msra.mxu0 %v4672
        %4856 = vmatpush.bf16.msra.mxu0 %v4663
        %4857 = vmatpush.bf16.msra.mxu0 %v4654
        %4858 = vmatmul.bf16.gmra.mxu0 %v4345
        %v4859 = vpop.f32.mrf.mxu0
        %v4860 = vadd.f32 0.0, %v4859
        %v4861 = vpop.f32.mrf.mxu0
        %v4862 = vadd.f32 0.0, %v4861
        %4863 = vdwg.mxu0
        %4864 = vmatpush.bf16.msra.mxu0 %v4718
        %4865 = vmatpush.bf16.msra.mxu0 %v4709
        %4866 = vmatpush.bf16.msra.mxu0 %v4700
        %4867 = vmatpush.bf16.msra.mxu0 %v4691
        %4868 = vmatpush.bf16.msra.mxu0 %v4682
        %4869 = vmatpush.bf16.msra.mxu0 %v4673
        %4870 = vmatpush.bf16.msra.mxu0 %v4664
        %4871 = vmatpush.bf16.msra.mxu0 %v4655
        %4872 = vmatmul.bf16.gmra.mxu0 %v4345
        %v4873 = vpop.f32.mrf.mxu0
        %v4874 = vadd.f32 0.0, %v4873
        %v4875 = vpop.f32.mrf.mxu0
        %v4876 = vadd.f32 0.0, %v4875
        %4877 = vdwg.mxu0
        %4878 = vmatpush.bf16.msra.mxu0 %v4719
        %4879 = vmatpush.bf16.msra.mxu0 %v4710
        %4880 = vmatpush.bf16.msra.mxu0 %v4701
        %4881 = vmatpush.bf16.msra.mxu0 %v4692
        %4882 = vmatpush.bf16.msra.mxu0 %v4683
        %4883 = vmatpush.bf16.msra.mxu0 %v4674
        %4884 = vmatpush.bf16.msra.mxu0 %v4665
        %4885 = vmatpush.bf16.msra.mxu0 %v4656
        %4886 = vmatmul.bf16.gmra.mxu0 %v4345
        %v4887 = vpop.f32.mrf.mxu0
        %v4888 = vadd.f32 0.0, %v4887
        %v4889 = vpop.f32.mrf.mxu0
        %v4890 = vadd.f32 0.0, %v4889
        %4891 = vdwg.mxu0
        %4892 = vmatpush.bf16.msra.mxu0 %v4720
        %4893 = vmatpush.bf16.msra.mxu0 %v4711
        %4894 = vmatpush.bf16.msra.mxu0 %v4702
        %4895 = vmatpush.bf16.msra.mxu0 %v4693
        %4896 = vmatpush.bf16.msra.mxu0 %v4684
        %4897 = vmatpush.bf16.msra.mxu0 %v4675
        %4898 = vmatpush.bf16.msra.mxu0 %v4666
        %4899 = vmatpush.bf16.msra.mxu0 %v4657
        %4900 = vmatmul.bf16.gmra.mxu0 %v4345
        %v4901 = vpop.f32.mrf.mxu0
        %v4902 = vadd.f32 0.0, %v4901
        %v4903 = vpop.f32.mrf.mxu0
        %v4904 = vadd.f32 0.0, %v4903
        %4905 = vdwg.mxu0
        %4906 = vmatpush.bf16.msra.mxu0 %v4721
        %4907 = vmatpush.bf16.msra.mxu0 %v4712
        %4908 = vmatpush.bf16.msra.mxu0 %v4703
        %4909 = vmatpush.bf16.msra.mxu0 %v4694
        %4910 = vmatpush.bf16.msra.mxu0 %v4685
        %4911 = vmatpush.bf16.msra.mxu0 %v4676
        %4912 = vmatpush.bf16.msra.mxu0 %v4667
        %4913 = vmatpush.bf16.msra.mxu0 %v4658
        %4914 = vmatmul.bf16.gmra.mxu0 %v4345
        %v4915 = vpop.f32.mrf.mxu0
        %v4916 = vadd.f32 0.0, %v4915
        %v4917 = vpop.f32.mrf.mxu0
        %v4918 = vadd.f32 0.0, %v4917
        %4919 = vdwg.mxu0
        %v4920 = vpack.c.bf16 %v4806, %v4804
        %v4921 = vpack.c.bf16 %v4820, %v4818
        %v4922 = vpack.c.bf16 %v4834, %v4832
        %v4923 = vpack.c.bf16 %v4848, %v4846
        %v4924 = vpack.c.bf16 %v4862, %v4860
        %v4925 = vpack.c.bf16 %v4876, %v4874
        %v4926 = vpack.c.bf16 %v4890, %v4888
        %v4927 = vpack.c.bf16 %v4904, %v4902
        %v4928 = vpack.c.bf16 %v4918, %v4916
        %4930 = vset.pattern.permute.xlu0 0
        %4931 = vperm.xlu0 %4930, %v4341
        %v4932 = vpop.permute.xlu0 %4931
        %4935 = vset.pattern.permute.xlu0 0
        %4936 = vperm.xlu0 %4935, %v4342
        %v4937 = vpop.permute.xlu0 %4936
        %4940 = vset.pattern.permute.xlu0 0
        %4941 = vperm.xlu0 %4940, %v4343
        %v4942 = vpop.permute.xlu0 %4941
        %4945 = vset.pattern.permute.xlu0 0
        %4946 = vperm.xlu0 %4945, %v4344
        %v4947 = vpop.permute.xlu0 %4946
        %v4953 = vunpack.c.l.b16 %v4337
        %v4954 = vunpack.c.h.b16 %v4337
        %v4955 = vunpack.c.l.b16 %v4338
        %v4956 = vunpack.c.h.b16 %v4338
        %v4957 = vunpack.c.l.b16 %v4339
        %v4958 = vunpack.c.h.b16 %v4339
        %v4959 = vunpack.c.l.b16 %v4340
        %v4960 = vunpack.c.h.b16 %v4340
        %v4961 = vpack.c.b16 %v4955, %v4953
        %v4962 = vpack.c.b16 %v4956, %v4954
        %v4963 = vpack.c.b16 %v4959, %v4957
        %v4964 = vpack.c.b16 %v4960, %v4958
        %vm4967 = vcmask 130048
        %v4969 = vsel %vm4967, %v4962, 0
        %v4972 = vsel %vm4967, %v4964, 0
        %4974 = vmatpush.bf16.msra.mxu0 %v4927
        %4975 = vmatpush.bf16.msra.mxu0 %v4926
        %4976 = vmatpush.bf16.msra.mxu0 %v4925
        %4977 = vmatpush.bf16.msra.mxu0 %v4924
        %4978 = vmatpush.bf16.msra.mxu0 %v4923
        %4979 = vmatpush.bf16.msra.mxu0 %v4922
        %4980 = vmatpush.bf16.msra.mxu0 %v4921
        %4981 = vmatpush.bf16.msra.mxu0 %v4920
        %4982 = vmatmul.bf16.gmra.mxu0 %v4961
        %v4983 = vpop.f32.mrf.mxu0
        %v4984 = vadd.f32 %v4932, %v4983
        %v4985 = vpop.f32.mrf.mxu0
        %v4986 = vadd.f32 %v4937, %v4985
        %4987 = vmatmul.bf16.gmra.mxu0 %v4963
        %v4988 = vpop.f32.mrf.mxu0
        %v4989 = vadd.f32 %v4942, %v4988
        %v4990 = vpop.f32.mrf.mxu0
        %v4991 = vadd.f32 %v4947, %v4990
        %4992 = vdwg.mxu0
        %4993 = vmatpush.bf16.msra.mxu0 0
        %4994 = vmatpush.bf16.msra.mxu0 0
        %4995 = vmatpush.bf16.msra.mxu0 0
        %4996 = vmatpush.bf16.msra.mxu0 0
        %4997 = vmatpush.bf16.msra.mxu0 0
        %4998 = vmatpush.bf16.msra.mxu0 0
        %4999 = vmatpush.bf16.msra.mxu0 0
        %5000 = vmatpush.bf16.msra.mxu0 %v4928
        %5001 = vmatmul.bf16.gmra.mxu0 %v4969
        %v5002 = vpop.f32.mrf.mxu0
        %v5003 = vadd.f32 %v4984, %v5002
        %v5004 = vpop.f32.mrf.mxu0
        %v5005 = vadd.f32 %v4986, %v5004
        %5006 = vmatmul.bf16.gmra.mxu0 %v4972
        %v5007 = vpop.f32.mrf.mxu0
        %v5008 = vadd.f32 %v4989, %v5007
        %v5009 = vpop.f32.mrf.mxu0
        %v5010 = vadd.f32 %v4991, %v5009
        %5011 = vdwg.mxu0
        %vm5012 = vcmp.lt.s32.totalorder %v4287, 12
        %v5013 = vsel %vm5012, 1, 0
        %v5014 = vcvt.s32.f32 %v5013
        %v5015 = vmul.f32 %v5003, %v5014
        %v5016 = vmul.f32 %v5005, %v5014
        %v5017 = vmul.f32 %v5008, %v5014
        %v5018 = vmul.f32 %v5010, %v5014
        %5019 = vadd.xlane.f32.xlu0 %v5015
        %v5020 = vpop.xlane.xlu0 %5019
        %5021 = vadd.xlane.f32.xlu0 %v5016
        %v5022 = vpop.xlane.xlu0 %5021
        %5023 = vadd.xlane.f32.xlu0 %v5017
        %v5024 = vpop.xlane.xlu0 %5023
        %5025 = vadd.xlane.f32.xlu0 %v5018
        %v5026 = vpop.xlane.xlu0 %5025
        %v5027 = vmul.f32 %v5020, 0.083333336
        %v5028 = vmul.f32 %v5022, 0.083333336
        %v5029 = vmul.f32 %v5024, 0.083333336
        %v5030 = vmul.f32 %v5026, 0.083333336
        %v5031 = vsub.f32 %v5003, %v5027
        %v5032 = vsub.f32 %v5005, %v5028
        %v5033 = vsub.f32 %v5008, %v5029
        %v5034 = vsub.f32 %v5010, %v5030
        %v5035 = vmul.f32 %v5031, %v5031
        %v5036 = vmul.f32 %v5032, %v5032
        %v5037 = vmul.f32 %v5033, %v5033
        %v5038 = vmul.f32 %v5034, %v5034
        %v5039 = vmul.f32 %v5035, %v5014
        %v5040 = vmul.f32 %v5036, %v5014
        %v5041 = vmul.f32 %v5037, %v5014
        %v5042 = vmul.f32 %v5038, %v5014
        %5043 = vadd.xlane.f32.xlu0 %v5039
        %v5044 = vpop.xlane.xlu0 %5043
        %5045 = vadd.xlane.f32.xlu0 %v5040
        %v5046 = vpop.xlane.xlu0 %5045
        %5047 = vadd.xlane.f32.xlu0 %v5041
        %v5048 = vpop.xlane.xlu0 %5047
        %5049 = vadd.xlane.f32.xlu0 %v5042
        %v5050 = vpop.xlane.xlu0 %5049
        %v5051 = vmul.f32 %v5044, 0.083333336
        %v5052 = vmul.f32 %v5046, 0.083333336
        %v5053 = vmul.f32 %v5048, 0.083333336
        %v5054 = vmul.f32 %v5050, 0.083333336
        %v5055 = vadd.f32 %v5051, 1e-05
        %v5056 = vadd.f32 %v5052, 1e-05
        %v5057 = vadd.f32 %v5053, 1e-05
        %v5058 = vadd.f32 %v5054, 1e-05
        %v5059 = vrsqrt.pop %v5055
        %v5060 = vmul.f32 %v5059, %v5055
        %v5061 = vmul.f32 %v5060, %v5059
        %v5062 = vmul.f32 0.5, %v5061
        %v5063 = vsub.f32 1.5, %v5062
        %v5064 = vmul.f32 %v5059, %v5063
        %vm5065 = vweird.f32 %v5055
        %vm5066 = vweird.f32 %v5059
        %vm5067 = vmor %vm5065, %vm5066
        %v5068 = vsel %vm5067, %v5059, %v5064
        %v5069 = vrsqrt.pop %v5056
        %v5070 = vmul.f32 %v5069, %v5056
        %v5071 = vmul.f32 %v5070, %v5069
        %v5072 = vmul.f32 0.5, %v5071
        %v5073 = vsub.f32 1.5, %v5072
        %v5074 = vmul.f32 %v5069, %v5073
        %vm5075 = vweird.f32 %v5056
        %vm5076 = vweird.f32 %v5069
        %vm5077 = vmor %vm5075, %vm5076
        %v5078 = vsel %vm5077, %v5069, %v5074
        %v5079 = vrsqrt.pop %v5057
        %v5080 = vmul.f32 %v5079, %v5057
        %v5081 = vmul.f32 %v5080, %v5079
        %v5082 = vmul.f32 0.5, %v5081
        %v5083 = vsub.f32 1.5, %v5082
        %v5084 = vmul.f32 %v5079, %v5083
        %vm5085 = vweird.f32 %v5057
        %vm5086 = vweird.f32 %v5079
        %vm5087 = vmor %vm5085, %vm5086
        %v5088 = vsel %vm5087, %v5079, %v5084
        %v5089 = vrsqrt.pop %v5058
        %v5090 = vmul.f32 %v5089, %v5058
        %v5091 = vmul.f32 %v5090, %v5089
        %v5092 = vmul.f32 0.5, %v5091
        %v5093 = vsub.f32 1.5, %v5092
        %v5094 = vmul.f32 %v5089, %v5093
        %vm5095 = vweird.f32 %v5058
        %vm5096 = vweird.f32 %v5089
        %vm5097 = vmor %vm5095, %vm5096
        %v5098 = vsel %vm5097, %v5089, %v5094
        %v5099 = vmul.f32 %v5031, %v5068
        %v5100 = vmul.f32 %v5032, %v5078
        %v5101 = vmul.f32 %v5033, %v5088
        %v5102 = vmul.f32 %v5034, %v5098
        %v5103 = vmax.f32 %v5099, 0.0
        %v5104 = vmax.f32 %v5100, 0.0
        %v5105 = vmax.f32 %v5101, 0.0
        %v5106 = vmax.f32 %v5102, 0.0
        loop: start=0, step=1, limit=2
        $region133: #{_lambda_.1} parent=115 // loop_pre_header
          _
        $region134: #{_lambda_.1} parent=115 // loop_header
          %s5108 = sphi 0, %s5112
          %p5109 = scmp.ge.s32.totalorder %s5108, 2
          %v5113 = vphi %v5103, %v6390
          %v5114 = vphi %v5104, %v6391
          %v5115 = vphi %v5105, %v6392
          %v5116 = vphi %v5106, %v6393
        $region135: #{_lambda_.1} parent=115 // loop_header_branch
          %5111 = sbr.rel (%p5109) target = $region139
        $region136: #{_lambda_.1} parent=115 // loop_body
          %s5117 = smul.u32 %s5108, 12
          %s5118 = smul.addr %s5117, 4
          %s5119 = scalar_lea.vmem %s14, %s5118
          %v5120 = vld [vmem:[%s5119] sm:$0xff]
          %v5121 = vld [vmem:[%s5119 + $0x8] sm:$0xf]
          %v5122 = vld [vmem:[%s5119 + $0xc] sm:$0xff]
          %v5123 = vld [vmem:[%s5119 + $0x14] sm:$0xf]
          %v5124 = vld [vmem:[%s5119 + $0x18] sm:$0xff]
          %v5125 = vld [vmem:[%s5119 + $0x20] sm:$0xf]
          %v5126 = vld [vmem:[%s5119 + $0x24] sm:$0xff]
          %v5127 = vld [vmem:[%s5119 + $0x2c] sm:$0xf]
          %s5128 = smul.u32 %s5108, 32
          %s5129 = scalar_lea.vmem %s15, %s5128
          %v5130 = vld [vmem:[%s5129] sm:$0xff]
          %v5131 = vld [vmem:[%s5129 + $0x8] sm:$0xff]
          %v5132 = vld [vmem:[%s5129 + $0x10] sm:$0xff]
          %v5133 = vld [vmem:[%s5129 + $0x18] sm:$0xff]
          %v5134 = vpack.c.bf16 %v5114, %v5113
          %v5135 = vpack.c.bf16 %v5116, %v5115
          %v5136 = vld [vmem:[#allocation5] sm:$0xff]
          %v5137 = vld [vmem:[#allocation5 + $0x8] sm:$0xff]
          %v5138 = vld [vmem:[#allocation5 + $0x10] sm:$0xff]
          %v5139 = vld [vmem:[#allocation5 + $0x18] sm:$0xff]
          %v5140 = vld [vmem:[#allocation5 + $0x20] sm:$0xf]
          %v5141 = vld [vmem:[#allocation5 + $0x24] sm:$0xff]
          %v5142 = vld [vmem:[#allocation5 + $0x2c] sm:$0xff]
          %v5143 = vld [vmem:[#allocation5 + $0x34] sm:$0xff]
          %v5144 = vld [vmem:[#allocation5 + $0x3c] sm:$0xff]
          %v5145 = vld [vmem:[#allocation5 + $0x44] sm:$0xf]
          %v5146 = vld [vmem:[#allocation5 + $0x48] sm:$0xff]
          %v5147 = vld [vmem:[#allocation5 + $0x50] sm:$0xff]
          %v5148 = vld [vmem:[#allocation5 + $0x58] sm:$0xff]
          %v5149 = vld [vmem:[#allocation5 + $0x60] sm:$0xff]
          %v5150 = vld [vmem:[#allocation5 + $0x68] sm:$0xf]
          %v5151 = vld [vmem:[#allocation5 + $0x6c] sm:$0xff]
          %v5152 = vld [vmem:[#allocation5 + $0x74] sm:$0xff]
          %v5153 = vld [vmem:[#allocation5 + $0x7c] sm:$0xff]
          %v5154 = vld [vmem:[#allocation5 + $0x84] sm:$0xff]
          %v5155 = vld [vmem:[#allocation5 + $0x8c] sm:$0xf]
          %v5156 = vld [vmem:[#allocation5 + $0x90] sm:$0xff]
          %v5157 = vld [vmem:[#allocation5 + $0x98] sm:$0xff]
          %v5158 = vld [vmem:[#allocation5 + $0xa0] sm:$0xff]
          %v5159 = vld [vmem:[#allocation5 + $0xa8] sm:$0xff]
          %v5160 = vld [vmem:[#allocation5 + $0xb0] sm:$0xf]
          %v5161 = vld [vmem:[#allocation5 + $0xb4] sm:$0xff]
          %v5162 = vld [vmem:[#allocation5 + $0xbc] sm:$0xff]
          %v5163 = vld [vmem:[#allocation5 + $0xc4] sm:$0xff]
          %v5164 = vld [vmem:[#allocation5 + $0xcc] sm:$0xff]
          %v5165 = vld [vmem:[#allocation5 + $0xd4] sm:$0xf]
          %v5166 = vld [vmem:[#allocation5 + $0xd8] sm:$0xff]
          %v5167 = vld [vmem:[#allocation5 + $0xe0] sm:$0xff]
          %v5168 = vld [vmem:[#allocation5 + $0xe8] sm:$0xff]
          %v5169 = vld [vmem:[#allocation5 + $0xf0] sm:$0xff]
          %v5170 = vld [vmem:[#allocation5 + $0xf8] sm:$0xf]
          %v5171 = vld [vmem:[#allocation5 + $0xfc] sm:$0xff]
          %v5172 = vld [vmem:[#allocation5 + $0x104] sm:$0xff]
          %v5173 = vld [vmem:[#allocation5 + $0x10c] sm:$0xff]
          %v5174 = vld [vmem:[#allocation5 + $0x114] sm:$0xff]
          %v5175 = vld [vmem:[#allocation5 + $0x11c] sm:$0xf]
          %v5176 = vld [vmem:[#allocation5 + $0x120] sm:$0xff]
          %v5177 = vld [vmem:[#allocation5 + $0x128] sm:$0xff]
          %v5178 = vld [vmem:[#allocation5 + $0x130] sm:$0xff]
          %v5179 = vld [vmem:[#allocation5 + $0x138] sm:$0xff]
          %v5180 = vld [vmem:[#allocation5 + $0x140] sm:$0xf]
          %v5181 = vld [vmem:[#allocation5 + $0x144] sm:$0xff]
          %v5182 = vld [vmem:[#allocation5 + $0x14c] sm:$0xff]
          %v5183 = vld [vmem:[#allocation5 + $0x154] sm:$0xff]
          %v5184 = vld [vmem:[#allocation5 + $0x15c] sm:$0xff]
          %v5185 = vld [vmem:[#allocation5 + $0x164] sm:$0xf]
          %v5186 = vld [vmem:[#allocation5 + $0x168] sm:$0xff]
          %v5187 = vld [vmem:[#allocation5 + $0x170] sm:$0xff]
          %v5188 = vld [vmem:[#allocation5 + $0x178] sm:$0xff]
          %v5189 = vld [vmem:[#allocation5 + $0x180] sm:$0xff]
          %v5190 = vld [vmem:[#allocation5 + $0x188] sm:$0xf]
          %v5191 = vld [vmem:[#allocation5 + $0x18c] sm:$0xff]
          %v5192 = vld [vmem:[#allocation5 + $0x194] sm:$0xff]
          %v5193 = vld [vmem:[#allocation5 + $0x19c] sm:$0xff]
          %v5194 = vld [vmem:[#allocation5 + $0x1a4] sm:$0xff]
          %v5195 = vld [vmem:[#allocation5 + $0x1ac] sm:$0xf]
          %v5196 = vld [vmem:[#allocation5 + $0x1b0] sm:$0xff]
          %v5197 = vld [vmem:[#allocation5 + $0x1b8] sm:$0xff]
          %v5198 = vld [vmem:[#allocation5 + $0x1c0] sm:$0xff]
          %v5199 = vld [vmem:[#allocation5 + $0x1c8] sm:$0xff]
          %v5200 = vld [vmem:[#allocation5 + $0x1d0] sm:$0xf]
          %v5201 = vld [vmem:[#allocation5 + $0x1d4] sm:$0xff]
          %v5202 = vld [vmem:[#allocation5 + $0x1dc] sm:$0xff]
          %v5203 = vld [vmem:[#allocation5 + $0x1e4] sm:$0xff]
          %v5204 = vld [vmem:[#allocation5 + $0x1ec] sm:$0xff]
          %v5205 = vld [vmem:[#allocation5 + $0x1f4] sm:$0xf]
          %v5206 = vld [vmem:[#allocation5 + $0x1f8] sm:$0xff]
          %v5207 = vld [vmem:[#allocation5 + $0x200] sm:$0xff]
          %v5208 = vld [vmem:[#allocation5 + $0x208] sm:$0xff]
          %v5209 = vld [vmem:[#allocation5 + $0x210] sm:$0xff]
          %v5210 = vld [vmem:[#allocation5 + $0x218] sm:$0xf]
          %v5211 = vld [vmem:[#allocation5 + $0x21c] sm:$0xff]
          %v5212 = vld [vmem:[#allocation5 + $0x224] sm:$0xff]
          %v5213 = vld [vmem:[#allocation5 + $0x22c] sm:$0xff]
          %v5214 = vld [vmem:[#allocation5 + $0x234] sm:$0xff]
          %v5215 = vld [vmem:[#allocation5 + $0x23c] sm:$0xf]
          %v5296 = vunpack.c.l.b16 %v5136
          %v5297 = vunpack.c.h.b16 %v5136
          %v5298 = vunpack.c.l.b16 %v5137
          %v5299 = vunpack.c.h.b16 %v5137
          %v5300 = vunpack.c.l.b16 %v5138
          %v5301 = vunpack.c.h.b16 %v5138
          %v5302 = vunpack.c.l.b16 %v5139
          %v5303 = vunpack.c.h.b16 %v5139
          %v5304 = vunpack.c.l.b16 %v5140
          %v5305 = vunpack.c.l.b16 %v5141
          %v5306 = vunpack.c.h.b16 %v5141
          %v5307 = vunpack.c.l.b16 %v5142
          %v5308 = vunpack.c.h.b16 %v5142
          %v5309 = vunpack.c.l.b16 %v5143
          %v5310 = vunpack.c.h.b16 %v5143
          %v5311 = vunpack.c.l.b16 %v5144
          %v5312 = vunpack.c.h.b16 %v5144
          %v5313 = vunpack.c.l.b16 %v5145
          %v5314 = vunpack.c.l.b16 %v5146
          %v5315 = vunpack.c.h.b16 %v5146
          %v5316 = vunpack.c.l.b16 %v5147
          %v5317 = vunpack.c.h.b16 %v5147
          %v5318 = vunpack.c.l.b16 %v5148
          %v5319 = vunpack.c.h.b16 %v5148
          %v5320 = vunpack.c.l.b16 %v5149
          %v5321 = vunpack.c.h.b16 %v5149
          %v5322 = vunpack.c.l.b16 %v5150
          %v5323 = vunpack.c.l.b16 %v5151
          %v5324 = vunpack.c.h.b16 %v5151
          %v5325 = vunpack.c.l.b16 %v5152
          %v5326 = vunpack.c.h.b16 %v5152
          %v5327 = vunpack.c.l.b16 %v5153
          %v5328 = vunpack.c.h.b16 %v5153
          %v5329 = vunpack.c.l.b16 %v5154
          %v5330 = vunpack.c.h.b16 %v5154
          %v5331 = vunpack.c.l.b16 %v5155
          %v5332 = vunpack.c.l.b16 %v5156
          %v5333 = vunpack.c.h.b16 %v5156
          %v5334 = vunpack.c.l.b16 %v5157
          %v5335 = vunpack.c.h.b16 %v5157
          %v5336 = vunpack.c.l.b16 %v5158
          %v5337 = vunpack.c.h.b16 %v5158
          %v5338 = vunpack.c.l.b16 %v5159
          %v5339 = vunpack.c.h.b16 %v5159
          %v5340 = vunpack.c.l.b16 %v5160
          %v5341 = vunpack.c.l.b16 %v5161
          %v5342 = vunpack.c.h.b16 %v5161
          %v5343 = vunpack.c.l.b16 %v5162
          %v5344 = vunpack.c.h.b16 %v5162
          %v5345 = vunpack.c.l.b16 %v5163
          %v5346 = vunpack.c.h.b16 %v5163
          %v5347 = vunpack.c.l.b16 %v5164
          %v5348 = vunpack.c.h.b16 %v5164
          %v5349 = vunpack.c.l.b16 %v5165
          %v5350 = vunpack.c.l.b16 %v5166
          %v5351 = vunpack.c.h.b16 %v5166
          %v5352 = vunpack.c.l.b16 %v5167
          %v5353 = vunpack.c.h.b16 %v5167
          %v5354 = vunpack.c.l.b16 %v5168
          %v5355 = vunpack.c.h.b16 %v5168
          %v5356 = vunpack.c.l.b16 %v5169
          %v5357 = vunpack.c.h.b16 %v5169
          %v5358 = vunpack.c.l.b16 %v5170
          %v5359 = vunpack.c.l.b16 %v5171
          %v5360 = vunpack.c.h.b16 %v5171
          %v5361 = vunpack.c.l.b16 %v5172
          %v5362 = vunpack.c.h.b16 %v5172
          %v5363 = vunpack.c.l.b16 %v5173
          %v5364 = vunpack.c.h.b16 %v5173
          %v5365 = vunpack.c.l.b16 %v5174
          %v5366 = vunpack.c.h.b16 %v5174
          %v5367 = vunpack.c.l.b16 %v5175
          %v5368 = vunpack.c.l.b16 %v5176
          %v5369 = vunpack.c.h.b16 %v5176
          %v5370 = vunpack.c.l.b16 %v5177
          %v5371 = vunpack.c.h.b16 %v5177
          %v5372 = vunpack.c.l.b16 %v5178
          %v5373 = vunpack.c.h.b16 %v5178
          %v5374 = vunpack.c.l.b16 %v5179
          %v5375 = vunpack.c.h.b16 %v5179
          %v5376 = vunpack.c.l.b16 %v5180
          %v5377 = vunpack.c.l.b16 %v5181
          %v5378 = vunpack.c.h.b16 %v5181
          %v5379 = vunpack.c.l.b16 %v5182
          %v5380 = vunpack.c.h.b16 %v5182
          %v5381 = vunpack.c.l.b16 %v5183
          %v5382 = vunpack.c.h.b16 %v5183
          %v5383 = vunpack.c.l.b16 %v5184
          %v5384 = vunpack.c.h.b16 %v5184
          %v5385 = vunpack.c.l.b16 %v5185
          %v5386 = vunpack.c.l.b16 %v5186
          %v5387 = vunpack.c.h.b16 %v5186
          %v5388 = vunpack.c.l.b16 %v5187
          %v5389 = vunpack.c.h.b16 %v5187
          %v5390 = vunpack.c.l.b16 %v5188
          %v5391 = vunpack.c.h.b16 %v5188
          %v5392 = vunpack.c.l.b16 %v5189
          %v5393 = vunpack.c.h.b16 %v5189
          %v5394 = vunpack.c.l.b16 %v5190
          %v5395 = vunpack.c.l.b16 %v5191
          %v5396 = vunpack.c.h.b16 %v5191
          %v5397 = vunpack.c.l.b16 %v5192
          %v5398 = vunpack.c.h.b16 %v5192
          %v5399 = vunpack.c.l.b16 %v5193
          %v5400 = vunpack.c.h.b16 %v5193
          %v5401 = vunpack.c.l.b16 %v5194
          %v5402 = vunpack.c.h.b16 %v5194
          %v5403 = vunpack.c.l.b16 %v5195
          %v5404 = vunpack.c.l.b16 %v5196
          %v5405 = vunpack.c.h.b16 %v5196
          %v5406 = vunpack.c.l.b16 %v5197
          %v5407 = vunpack.c.h.b16 %v5197
          %v5408 = vunpack.c.l.b16 %v5198
          %v5409 = vunpack.c.h.b16 %v5198
          %v5410 = vunpack.c.l.b16 %v5199
          %v5411 = vunpack.c.h.b16 %v5199
          %v5412 = vunpack.c.l.b16 %v5200
          %v5413 = vunpack.c.l.b16 %v5201
          %v5414 = vunpack.c.h.b16 %v5201
          %v5415 = vunpack.c.l.b16 %v5202
          %v5416 = vunpack.c.h.b16 %v5202
          %v5417 = vunpack.c.l.b16 %v5203
          %v5418 = vunpack.c.h.b16 %v5203
          %v5419 = vunpack.c.l.b16 %v5204
          %v5420 = vunpack.c.h.b16 %v5204
          %v5421 = vunpack.c.l.b16 %v5205
          %v5422 = vunpack.c.l.b16 %v5206
          %v5423 = vunpack.c.h.b16 %v5206
          %v5424 = vunpack.c.l.b16 %v5207
          %v5425 = vunpack.c.h.b16 %v5207
          %v5426 = vunpack.c.l.b16 %v5208
          %v5427 = vunpack.c.h.b16 %v5208
          %v5428 = vunpack.c.l.b16 %v5209
          %v5429 = vunpack.c.h.b16 %v5209
          %v5430 = vunpack.c.l.b16 %v5210
          %v5431 = vunpack.c.l.b16 %v5211
          %v5432 = vunpack.c.h.b16 %v5211
          %v5433 = vunpack.c.l.b16 %v5212
          %v5434 = vunpack.c.h.b16 %v5212
          %v5435 = vunpack.c.l.b16 %v5213
          %v5436 = vunpack.c.h.b16 %v5213
          %v5437 = vunpack.c.l.b16 %v5214
          %v5438 = vunpack.c.h.b16 %v5214
          %v5439 = vunpack.c.l.b16 %v5215
          %v5440 = vpack.c.b16 %v5305, %v5296
          %v5441 = vpack.c.b16 %v5306, %v5297
          %v5442 = vpack.c.b16 %v5307, %v5298
          %v5443 = vpack.c.b16 %v5308, %v5299
          %v5444 = vpack.c.b16 %v5309, %v5300
          %v5445 = vpack.c.b16 %v5310, %v5301
          %v5446 = vpack.c.b16 %v5311, %v5302
          %v5447 = vpack.c.b16 %v5312, %v5303
          %v5448 = vpack.c.b16 %v5313, %v5304
          %v5449 = vpack.c.b16 %v5323, %v5314
          %v5450 = vpack.c.b16 %v5324, %v5315
          %v5451 = vpack.c.b16 %v5325, %v5316
          %v5452 = vpack.c.b16 %v5326, %v5317
          %v5453 = vpack.c.b16 %v5327, %v5318
          %v5454 = vpack.c.b16 %v5328, %v5319
          %v5455 = vpack.c.b16 %v5329, %v5320
          %v5456 = vpack.c.b16 %v5330, %v5321
          %v5457 = vpack.c.b16 %v5331, %v5322
          %v5458 = vpack.c.b16 %v5341, %v5332
          %v5459 = vpack.c.b16 %v5342, %v5333
          %v5460 = vpack.c.b16 %v5343, %v5334
          %v5461 = vpack.c.b16 %v5344, %v5335
          %v5462 = vpack.c.b16 %v5345, %v5336
          %v5463 = vpack.c.b16 %v5346, %v5337
          %v5464 = vpack.c.b16 %v5347, %v5338
          %v5465 = vpack.c.b16 %v5348, %v5339
          %v5466 = vpack.c.b16 %v5349, %v5340
          %v5467 = vpack.c.b16 %v5359, %v5350
          %v5468 = vpack.c.b16 %v5360, %v5351
          %v5469 = vpack.c.b16 %v5361, %v5352
          %v5470 = vpack.c.b16 %v5362, %v5353
          %v5471 = vpack.c.b16 %v5363, %v5354
          %v5472 = vpack.c.b16 %v5364, %v5355
          %v5473 = vpack.c.b16 %v5365, %v5356
          %v5474 = vpack.c.b16 %v5366, %v5357
          %v5475 = vpack.c.b16 %v5367, %v5358
          %v5476 = vpack.c.b16 %v5377, %v5368
          %v5477 = vpack.c.b16 %v5378, %v5369
          %v5478 = vpack.c.b16 %v5379, %v5370
          %v5479 = vpack.c.b16 %v5380, %v5371
          %v5480 = vpack.c.b16 %v5381, %v5372
          %v5481 = vpack.c.b16 %v5382, %v5373
          %v5482 = vpack.c.b16 %v5383, %v5374
          %v5483 = vpack.c.b16 %v5384, %v5375
          %v5484 = vpack.c.b16 %v5385, %v5376
          %v5485 = vpack.c.b16 %v5395, %v5386
          %v5486 = vpack.c.b16 %v5396, %v5387
          %v5487 = vpack.c.b16 %v5397, %v5388
          %v5488 = vpack.c.b16 %v5398, %v5389
          %v5489 = vpack.c.b16 %v5399, %v5390
          %v5490 = vpack.c.b16 %v5400, %v5391
          %v5491 = vpack.c.b16 %v5401, %v5392
          %v5492 = vpack.c.b16 %v5402, %v5393
          %v5493 = vpack.c.b16 %v5403, %v5394
          %v5494 = vpack.c.b16 %v5413, %v5404
          %v5495 = vpack.c.b16 %v5414, %v5405
          %v5496 = vpack.c.b16 %v5415, %v5406
          %v5497 = vpack.c.b16 %v5416, %v5407
          %v5498 = vpack.c.b16 %v5417, %v5408
          %v5499 = vpack.c.b16 %v5418, %v5409
          %v5500 = vpack.c.b16 %v5419, %v5410
          %v5501 = vpack.c.b16 %v5420, %v5411
          %v5502 = vpack.c.b16 %v5421, %v5412
          %v5503 = vpack.c.b16 %v5431, %v5422
          %v5504 = vpack.c.b16 %v5432, %v5423
          %v5505 = vpack.c.b16 %v5433, %v5424
          %v5506 = vpack.c.b16 %v5434, %v5425
          %v5507 = vpack.c.b16 %v5435, %v5426
          %v5508 = vpack.c.b16 %v5436, %v5427
          %v5509 = vpack.c.b16 %v5437, %v5428
          %v5510 = vpack.c.b16 %v5438, %v5429
          %v5511 = vpack.c.b16 %v5439, %v5430
          %5584 = vmatpush.bf16.msra.mxu0 %v5503
          %5585 = vmatpush.bf16.msra.mxu0 %v5494
          %5586 = vmatpush.bf16.msra.mxu0 %v5485
          %5587 = vmatpush.bf16.msra.mxu0 %v5476
          %5588 = vmatpush.bf16.msra.mxu0 %v5467
          %5589 = vmatpush.bf16.msra.mxu0 %v5458
          %5590 = vmatpush.bf16.msra.mxu0 %v5449
          %5591 = vmatpush.bf16.msra.mxu0 %v5440
          %5592 = vmatmul.bf16.gmra.mxu0 %v5134
          %v5593 = vpop.f32.mrf.mxu0
          %v5594 = vadd.f32 0.0, %v5593
          %v5595 = vpop.f32.mrf.mxu0
          %v5596 = vadd.f32 0.0, %v5595
          %5597 = vmatmul.bf16.gmra.mxu0 %v5135
          %v5598 = vpop.f32.mrf.mxu0
          %v5599 = vadd.f32 0.0, %v5598
          %v5600 = vpop.f32.mrf.mxu0
          %v5601 = vadd.f32 0.0, %v5600
          %5602 = vdwg.mxu0
          %5603 = vmatpush.bf16.msra.mxu0 %v5504
          %5604 = vmatpush.bf16.msra.mxu0 %v5495
          %5605 = vmatpush.bf16.msra.mxu0 %v5486
          %5606 = vmatpush.bf16.msra.mxu0 %v5477
          %5607 = vmatpush.bf16.msra.mxu0 %v5468
          %5608 = vmatpush.bf16.msra.mxu0 %v5459
          %5609 = vmatpush.bf16.msra.mxu0 %v5450
          %5610 = vmatpush.bf16.msra.mxu0 %v5441
          %5611 = vmatmul.bf16.gmra.mxu0 %v5134
          %v5612 = vpop.f32.mrf.mxu0
          %v5613 = vadd.f32 0.0, %v5612
          %v5614 = vpop.f32.mrf.mxu0
          %v5615 = vadd.f32 0.0, %v5614
          %5616 = vmatmul.bf16.gmra.mxu0 %v5135
          %v5617 = vpop.f32.mrf.mxu0
          %v5618 = vadd.f32 0.0, %v5617
          %v5619 = vpop.f32.mrf.mxu0
          %v5620 = vadd.f32 0.0, %v5619
          %5621 = vdwg.mxu0
          %5622 = vmatpush.bf16.msra.mxu0 %v5505
          %5623 = vmatpush.bf16.msra.mxu0 %v5496
          %5624 = vmatpush.bf16.msra.mxu0 %v5487
          %5625 = vmatpush.bf16.msra.mxu0 %v5478
          %5626 = vmatpush.bf16.msra.mxu0 %v5469
          %5627 = vmatpush.bf16.msra.mxu0 %v5460
          %5628 = vmatpush.bf16.msra.mxu0 %v5451
          %5629 = vmatpush.bf16.msra.mxu0 %v5442
          %5630 = vmatmul.bf16.gmra.mxu0 %v5134
          %v5631 = vpop.f32.mrf.mxu0
          %v5632 = vadd.f32 0.0, %v5631
          %v5633 = vpop.f32.mrf.mxu0
          %v5634 = vadd.f32 0.0, %v5633
          %5635 = vmatmul.bf16.gmra.mxu0 %v5135
          %v5636 = vpop.f32.mrf.mxu0
          %v5637 = vadd.f32 0.0, %v5636
          %v5638 = vpop.f32.mrf.mxu0
          %v5639 = vadd.f32 0.0, %v5638
          %5640 = vdwg.mxu0
          %5641 = vmatpush.bf16.msra.mxu0 %v5506
          %5642 = vmatpush.bf16.msra.mxu0 %v5497
          %5643 = vmatpush.bf16.msra.mxu0 %v5488
          %5644 = vmatpush.bf16.msra.mxu0 %v5479
          %5645 = vmatpush.bf16.msra.mxu0 %v5470
          %5646 = vmatpush.bf16.msra.mxu0 %v5461
          %5647 = vmatpush.bf16.msra.mxu0 %v5452
          %5648 = vmatpush.bf16.msra.mxu0 %v5443
          %5649 = vmatmul.bf16.gmra.mxu0 %v5134
          %v5650 = vpop.f32.mrf.mxu0
          %v5651 = vadd.f32 0.0, %v5650
          %v5652 = vpop.f32.mrf.mxu0
          %v5653 = vadd.f32 0.0, %v5652
          %5654 = vmatmul.bf16.gmra.mxu0 %v5135
          %v5655 = vpop.f32.mrf.mxu0
          %v5656 = vadd.f32 0.0, %v5655
          %v5657 = vpop.f32.mrf.mxu0
          %v5658 = vadd.f32 0.0, %v5657
          %5659 = vdwg.mxu0
          %5660 = vmatpush.bf16.msra.mxu0 %v5507
          %5661 = vmatpush.bf16.msra.mxu0 %v5498
          %5662 = vmatpush.bf16.msra.mxu0 %v5489
          %5663 = vmatpush.bf16.msra.mxu0 %v5480
          %5664 = vmatpush.bf16.msra.mxu0 %v5471
          %5665 = vmatpush.bf16.msra.mxu0 %v5462
          %5666 = vmatpush.bf16.msra.mxu0 %v5453
          %5667 = vmatpush.bf16.msra.mxu0 %v5444
          %5668 = vmatmul.bf16.gmra.mxu0 %v5134
          %v5669 = vpop.f32.mrf.mxu0
          %v5670 = vadd.f32 0.0, %v5669
          %v5671 = vpop.f32.mrf.mxu0
          %v5672 = vadd.f32 0.0, %v5671
          %5673 = vmatmul.bf16.gmra.mxu0 %v5135
          %v5674 = vpop.f32.mrf.mxu0
          %v5675 = vadd.f32 0.0, %v5674
          %v5676 = vpop.f32.mrf.mxu0
          %v5677 = vadd.f32 0.0, %v5676
          %5678 = vdwg.mxu0
          %5679 = vmatpush.bf16.msra.mxu0 %v5508
          %5680 = vmatpush.bf16.msra.mxu0 %v5499
          %5681 = vmatpush.bf16.msra.mxu0 %v5490
          %5682 = vmatpush.bf16.msra.mxu0 %v5481
          %5683 = vmatpush.bf16.msra.mxu0 %v5472
          %5684 = vmatpush.bf16.msra.mxu0 %v5463
          %5685 = vmatpush.bf16.msra.mxu0 %v5454
          %5686 = vmatpush.bf16.msra.mxu0 %v5445
          %5687 = vmatmul.bf16.gmra.mxu0 %v5134
          %v5688 = vpop.f32.mrf.mxu0
          %v5689 = vadd.f32 0.0, %v5688
          %v5690 = vpop.f32.mrf.mxu0
          %v5691 = vadd.f32 0.0, %v5690
          %5692 = vmatmul.bf16.gmra.mxu0 %v5135
          %v5693 = vpop.f32.mrf.mxu0
          %v5694 = vadd.f32 0.0, %v5693
          %v5695 = vpop.f32.mrf.mxu0
          %v5696 = vadd.f32 0.0, %v5695
          %5697 = vdwg.mxu0
          %5698 = vmatpush.bf16.msra.mxu0 %v5509
          %5699 = vmatpush.bf16.msra.mxu0 %v5500
          %5700 = vmatpush.bf16.msra.mxu0 %v5491
          %5701 = vmatpush.bf16.msra.mxu0 %v5482
          %5702 = vmatpush.bf16.msra.mxu0 %v5473
          %5703 = vmatpush.bf16.msra.mxu0 %v5464
          %5704 = vmatpush.bf16.msra.mxu0 %v5455
          %5705 = vmatpush.bf16.msra.mxu0 %v5446
          %5706 = vmatmul.bf16.gmra.mxu0 %v5134
          %v5707 = vpop.f32.mrf.mxu0
          %v5708 = vadd.f32 0.0, %v5707
          %v5709 = vpop.f32.mrf.mxu0
          %v5710 = vadd.f32 0.0, %v5709
          %5711 = vmatmul.bf16.gmra.mxu0 %v5135
          %v5712 = vpop.f32.mrf.mxu0
          %v5713 = vadd.f32 0.0, %v5712
          %v5714 = vpop.f32.mrf.mxu0
          %v5715 = vadd.f32 0.0, %v5714
          %5716 = vdwg.mxu0
          %5717 = vmatpush.bf16.msra.mxu0 %v5510
          %5718 = vmatpush.bf16.msra.mxu0 %v5501
          %5719 = vmatpush.bf16.msra.mxu0 %v5492
          %5720 = vmatpush.bf16.msra.mxu0 %v5483
          %5721 = vmatpush.bf16.msra.mxu0 %v5474
          %5722 = vmatpush.bf16.msra.mxu0 %v5465
          %5723 = vmatpush.bf16.msra.mxu0 %v5456
          %5724 = vmatpush.bf16.msra.mxu0 %v5447
          %5725 = vmatmul.bf16.gmra.mxu0 %v5134
          %v5726 = vpop.f32.mrf.mxu0
          %v5727 = vadd.f32 0.0, %v5726
          %v5728 = vpop.f32.mrf.mxu0
          %v5729 = vadd.f32 0.0, %v5728
          %5730 = vmatmul.bf16.gmra.mxu0 %v5135
          %v5731 = vpop.f32.mrf.mxu0
          %v5732 = vadd.f32 0.0, %v5731
          %v5733 = vpop.f32.mrf.mxu0
          %v5734 = vadd.f32 0.0, %v5733
          %5735 = vdwg.mxu0
          %5736 = vmatpush.bf16.msra.mxu0 %v5511
          %5737 = vmatpush.bf16.msra.mxu0 %v5502
          %5738 = vmatpush.bf16.msra.mxu0 %v5493
          %5739 = vmatpush.bf16.msra.mxu0 %v5484
          %5740 = vmatpush.bf16.msra.mxu0 %v5475
          %5741 = vmatpush.bf16.msra.mxu0 %v5466
          %5742 = vmatpush.bf16.msra.mxu0 %v5457
          %5743 = vmatpush.bf16.msra.mxu0 %v5448
          %5744 = vmatmul.bf16.gmra.mxu0 %v5134
          %v5745 = vpop.f32.mrf.mxu0
          %v5746 = vadd.f32 0.0, %v5745
          %v5747 = vpop.f32.mrf.mxu0
          %v5748 = vadd.f32 0.0, %v5747
          %5749 = vmatmul.bf16.gmra.mxu0 %v5135
          %v5750 = vpop.f32.mrf.mxu0
          %v5751 = vadd.f32 0.0, %v5750
          %v5752 = vpop.f32.mrf.mxu0
          %v5753 = vadd.f32 0.0, %v5752
          %5754 = vdwg.mxu0
          %v5755 = vpack.c.bf16 %v5596, %v5594
          %v5756 = vpack.c.bf16 %v5601, %v5599
          %v5757 = vpack.c.bf16 %v5615, %v5613
          %v5758 = vpack.c.bf16 %v5620, %v5618
          %v5759 = vpack.c.bf16 %v5634, %v5632
          %v5760 = vpack.c.bf16 %v5639, %v5637
          %v5761 = vpack.c.bf16 %v5653, %v5651
          %v5762 = vpack.c.bf16 %v5658, %v5656
          %v5763 = vpack.c.bf16 %v5672, %v5670
          %v5764 = vpack.c.bf16 %v5677, %v5675
          %v5765 = vpack.c.bf16 %v5691, %v5689
          %v5766 = vpack.c.bf16 %v5696, %v5694
          %v5767 = vpack.c.bf16 %v5710, %v5708
          %v5768 = vpack.c.bf16 %v5715, %v5713
          %v5769 = vpack.c.bf16 %v5729, %v5727
          %v5770 = vpack.c.bf16 %v5734, %v5732
          %v5771 = vpack.c.bf16 %v5748, %v5746
          %v5772 = vpack.c.bf16 %v5753, %v5751
          %5774 = vset.pattern.permute.xlu0 0
          %5775 = vperm.xlu0 %5774, %v5130
          %v5776 = vpop.permute.xlu0 %5775
          %5779 = vset.pattern.permute.xlu0 0
          %5780 = vperm.xlu0 %5779, %v5131
          %v5781 = vpop.permute.xlu0 %5780
          %5784 = vset.pattern.permute.xlu0 0
          %5785 = vperm.xlu0 %5784, %v5132
          %v5786 = vpop.permute.xlu0 %5785
          %5789 = vset.pattern.permute.xlu0 0
          %5790 = vperm.xlu0 %5789, %v5133
          %v5791 = vpop.permute.xlu0 %5790
          %v5801 = vunpack.c.l.b16 %v5120
          %v5802 = vunpack.c.h.b16 %v5120
          %v5803 = vunpack.c.l.b16 %v5121
          %v5804 = vunpack.c.l.b16 %v5122
          %v5805 = vunpack.c.h.b16 %v5122
          %v5806 = vunpack.c.l.b16 %v5123
          %v5807 = vunpack.c.l.b16 %v5124
          %v5808 = vunpack.c.h.b16 %v5124
          %v5809 = vunpack.c.l.b16 %v5125
          %v5810 = vunpack.c.l.b16 %v5126
          %v5811 = vunpack.c.h.b16 %v5126
          %v5812 = vunpack.c.l.b16 %v5127
          %v5813 = vpack.c.b16 %v5804, %v5801
          %v5814 = vpack.c.b16 %v5805, %v5802
          %v5815 = vpack.c.b16 %v5806, %v5803
          %v5816 = vpack.c.b16 %v5810, %v5807
          %v5817 = vpack.c.b16 %v5811, %v5808
          %v5818 = vpack.c.b16 %v5812, %v5809
          %vm5823 = vcmask 261120
          %v5825 = vsel %vm5823, %v5815, 0
          %v5828 = vsel %vm5823, %v5818, 0
          %5830 = vmatpush.bf16.msra.mxu0 %v5762
          %5831 = vmatpush.bf16.msra.mxu0 %v5761
          %5832 = vmatpush.bf16.msra.mxu0 %v5760
          %5833 = vmatpush.bf16.msra.mxu0 %v5759
          %5834 = vmatpush.bf16.msra.mxu0 %v5758
          %5835 = vmatpush.bf16.msra.mxu0 %v5757
          %5836 = vmatpush.bf16.msra.mxu0 %v5756
          %5837 = vmatpush.bf16.msra.mxu0 %v5755
          %5838 = vmatmul.bf16.gmra.mxu0 %v5813
          %v5839 = vpop.f32.mrf.mxu0
          %v5840 = vadd.f32 %v5776, %v5839
          %v5841 = vpop.f32.mrf.mxu0
          %v5842 = vadd.f32 %v5781, %v5841
          %5843 = vmatmul.bf16.gmra.mxu0 %v5816
          %v5844 = vpop.f32.mrf.mxu0
          %v5845 = vadd.f32 %v5786, %v5844
          %v5846 = vpop.f32.mrf.mxu0
          %v5847 = vadd.f32 %v5791, %v5846
          %5848 = vdwg.mxu0
          %5849 = vmatpush.bf16.msra.mxu0 %v5770
          %5850 = vmatpush.bf16.msra.mxu0 %v5769
          %5851 = vmatpush.bf16.msra.mxu0 %v5768
          %5852 = vmatpush.bf16.msra.mxu0 %v5767
          %5853 = vmatpush.bf16.msra.mxu0 %v5766
          %5854 = vmatpush.bf16.msra.mxu0 %v5765
          %5855 = vmatpush.bf16.msra.mxu0 %v5764
          %5856 = vmatpush.bf16.msra.mxu0 %v5763
          %5857 = vmatmul.bf16.gmra.mxu0 %v5814
          %v5858 = vpop.f32.mrf.mxu0
          %v5859 = vadd.f32 %v5840, %v5858
          %v5860 = vpop.f32.mrf.mxu0
          %v5861 = vadd.f32 %v5842, %v5860
          %5862 = vmatmul.bf16.gmra.mxu0 %v5817
          %v5863 = vpop.f32.mrf.mxu0
          %v5864 = vadd.f32 %v5845, %v5863
          %v5865 = vpop.f32.mrf.mxu0
          %v5866 = vadd.f32 %v5847, %v5865
          %5867 = vdwg.mxu0
          %5868 = vmatpush.bf16.msra.mxu0 0
          %5869 = vmatpush.bf16.msra.mxu0 0
          %5870 = vmatpush.bf16.msra.mxu0 0
          %5871 = vmatpush.bf16.msra.mxu0 0
          %5872 = vmatpush.bf16.msra.mxu0 0
          %5873 = vmatpush.bf16.msra.mxu0 0
          %5874 = vmatpush.bf16.msra.mxu0 %v5772
          %5875 = vmatpush.bf16.msra.mxu0 %v5771
          %5876 = vmatmul.bf16.gmra.mxu0 %v5825
          %v5877 = vpop.f32.mrf.mxu0
          %v5878 = vadd.f32 %v5859, %v5877
          %v5879 = vpop.f32.mrf.mxu0
          %v5880 = vadd.f32 %v5861, %v5879
          %5881 = vmatmul.bf16.gmra.mxu0 %v5828
          %v5882 = vpop.f32.mrf.mxu0
          %v5883 = vadd.f32 %v5864, %v5882
          %v5884 = vpop.f32.mrf.mxu0
          %v5885 = vadd.f32 %v5866, %v5884
          %5886 = vdwg.mxu0
          %v5887 = vmul.f32 %v5878, %v5014
          %v5888 = vmul.f32 %v5880, %v5014
          %v5889 = vmul.f32 %v5883, %v5014
          %v5890 = vmul.f32 %v5885, %v5014
          %5891 = vadd.xlane.f32.xlu0 %v5887
          %v5892 = vpop.xlane.xlu0 %5891
          %5893 = vadd.xlane.f32.xlu0 %v5888
          %v5894 = vpop.xlane.xlu0 %5893
          %5895 = vadd.xlane.f32.xlu0 %v5889
          %v5896 = vpop.xlane.xlu0 %5895
          %5897 = vadd.xlane.f32.xlu0 %v5890
          %v5898 = vpop.xlane.xlu0 %5897
          %v5899 = vmul.f32 %v5892, 0.083333336
          %v5900 = vmul.f32 %v5894, 0.083333336
          %v5901 = vmul.f32 %v5896, 0.083333336
          %v5902 = vmul.f32 %v5898, 0.083333336
          %v5903 = vsub.f32 %v5878, %v5899
          %v5904 = vsub.f32 %v5880, %v5900
          %v5905 = vsub.f32 %v5883, %v5901
          %v5906 = vsub.f32 %v5885, %v5902
          %v5907 = vmul.f32 %v5903, %v5903
          %v5908 = vmul.f32 %v5904, %v5904
          %v5909 = vmul.f32 %v5905, %v5905
          %v5910 = vmul.f32 %v5906, %v5906
          %v5911 = vmul.f32 %v5907, %v5014
          %v5912 = vmul.f32 %v5908, %v5014
          %v5913 = vmul.f32 %v5909, %v5014
          %v5914 = vmul.f32 %v5910, %v5014
          %5915 = vadd.xlane.f32.xlu0 %v5911
          %v5916 = vpop.xlane.xlu0 %5915
          %5917 = vadd.xlane.f32.xlu0 %v5912
          %v5918 = vpop.xlane.xlu0 %5917
          %5919 = vadd.xlane.f32.xlu0 %v5913
          %v5920 = vpop.xlane.xlu0 %5919
          %5921 = vadd.xlane.f32.xlu0 %v5914
          %v5922 = vpop.xlane.xlu0 %5921
          %v5923 = vmul.f32 %v5916, 0.083333336
          %v5924 = vmul.f32 %v5918, 0.083333336
          %v5925 = vmul.f32 %v5920, 0.083333336
          %v5926 = vmul.f32 %v5922, 0.083333336
          %v5927 = vadd.f32 %v5923, 1e-05
          %v5928 = vadd.f32 %v5924, 1e-05
          %v5929 = vadd.f32 %v5925, 1e-05
          %v5930 = vadd.f32 %v5926, 1e-05
          %v5931 = vrsqrt.pop %v5927
          %v5932 = vmul.f32 %v5931, %v5927
          %v5933 = vmul.f32 %v5932, %v5931
          %v5934 = vmul.f32 0.5, %v5933
          %v5935 = vsub.f32 1.5, %v5934
          %v5936 = vmul.f32 %v5931, %v5935
          %vm5937 = vweird.f32 %v5927
          %vm5938 = vweird.f32 %v5931
          %vm5939 = vmor %vm5937, %vm5938
          %v5940 = vsel %vm5939, %v5931, %v5936
          %v5941 = vrsqrt.pop %v5928
          %v5942 = vmul.f32 %v5941, %v5928
          %v5943 = vmul.f32 %v5942, %v5941
          %v5944 = vmul.f32 0.5, %v5943
          %v5945 = vsub.f32 1.5, %v5944
          %v5946 = vmul.f32 %v5941, %v5945
          %vm5947 = vweird.f32 %v5928
          %vm5948 = vweird.f32 %v5941
          %vm5949 = vmor %vm5947, %vm5948
          %v5950 = vsel %vm5949, %v5941, %v5946
          %v5951 = vrsqrt.pop %v5929
          %v5952 = vmul.f32 %v5951, %v5929
          %v5953 = vmul.f32 %v5952, %v5951
          %v5954 = vmul.f32 0.5, %v5953
          %v5955 = vsub.f32 1.5, %v5954
          %v5956 = vmul.f32 %v5951, %v5955
          %vm5957 = vweird.f32 %v5929
          %vm5958 = vweird.f32 %v5951
          %vm5959 = vmor %vm5957, %vm5958
          %v5960 = vsel %vm5959, %v5951, %v5956
          %v5961 = vrsqrt.pop %v5930
          %v5962 = vmul.f32 %v5961, %v5930
          %v5963 = vmul.f32 %v5962, %v5961
          %v5964 = vmul.f32 0.5, %v5963
          %v5965 = vsub.f32 1.5, %v5964
          %v5966 = vmul.f32 %v5961, %v5965
          %vm5967 = vweird.f32 %v5930
          %vm5968 = vweird.f32 %v5961
          %vm5969 = vmor %vm5967, %vm5968
          %v5970 = vsel %vm5969, %v5961, %v5966
          %v5971 = vmul.f32 %v5903, %v5940
          %v5972 = vmul.f32 %v5904, %v5950
          %v5973 = vmul.f32 %v5905, %v5960
          %v5974 = vmul.f32 %v5906, %v5970
          %v5975 = vmax.f32 %v5971, 0.0
          %v5976 = vmax.f32 %v5972, 0.0
          %v5977 = vmax.f32 %v5973, 0.0
          %v5978 = vmax.f32 %v5974, 0.0
          %s5979 = smul.addr %s5117, 4
          %s5980 = scalar_lea.vmem %s16, %s5979
          %v5981 = vld [vmem:[%s5980] sm:$0xff]
          %v5982 = vld [vmem:[%s5980 + $0x8] sm:$0xf]
          %v5983 = vld [vmem:[%s5980 + $0xc] sm:$0xff]
          %v5984 = vld [vmem:[%s5980 + $0x14] sm:$0xf]
          %v5985 = vld [vmem:[%s5980 + $0x18] sm:$0xff]
          %v5986 = vld [vmem:[%s5980 + $0x20] sm:$0xf]
          %v5987 = vld [vmem:[%s5980 + $0x24] sm:$0xff]
          %v5988 = vld [vmem:[%s5980 + $0x2c] sm:$0xf]
          %s5989 = scalar_lea.vmem %s17, %s5128
          %v5990 = vld [vmem:[%s5989] sm:$0xff]
          %v5991 = vld [vmem:[%s5989 + $0x8] sm:$0xff]
          %v5992 = vld [vmem:[%s5989 + $0x10] sm:$0xff]
          %v5993 = vld [vmem:[%s5989 + $0x18] sm:$0xff]
          %v5994 = vpack.c.bf16 %v5976, %v5975
          %v5995 = vpack.c.bf16 %v5978, %v5977
          %5996 = vmatpush.bf16.msra.mxu0 %v5503
          %5997 = vmatpush.bf16.msra.mxu0 %v5494
          %5998 = vmatpush.bf16.msra.mxu0 %v5485
          %5999 = vmatpush.bf16.msra.mxu0 %v5476
          %6000 = vmatpush.bf16.msra.mxu0 %v5467
          %6001 = vmatpush.bf16.msra.mxu0 %v5458
          %6002 = vmatpush.bf16.msra.mxu0 %v5449
          %6003 = vmatpush.bf16.msra.mxu0 %v5440
          %6004 = vmatmul.bf16.gmra.mxu0 %v5994
          %v6005 = vpop.f32.mrf.mxu0
          %v6006 = vadd.f32 0.0, %v6005
          %v6007 = vpop.f32.mrf.mxu0
          %v6008 = vadd.f32 0.0, %v6007
          %6009 = vmatmul.bf16.gmra.mxu0 %v5995
          %v6010 = vpop.f32.mrf.mxu0
          %v6011 = vadd.f32 0.0, %v6010
          %v6012 = vpop.f32.mrf.mxu0
          %v6013 = vadd.f32 0.0, %v6012
          %6014 = vdwg.mxu0
          %6015 = vmatpush.bf16.msra.mxu0 %v5504
          %6016 = vmatpush.bf16.msra.mxu0 %v5495
          %6017 = vmatpush.bf16.msra.mxu0 %v5486
          %6018 = vmatpush.bf16.msra.mxu0 %v5477
          %6019 = vmatpush.bf16.msra.mxu0 %v5468
          %6020 = vmatpush.bf16.msra.mxu0 %v5459
          %6021 = vmatpush.bf16.msra.mxu0 %v5450
          %6022 = vmatpush.bf16.msra.mxu0 %v5441
          %6023 = vmatmul.bf16.gmra.mxu0 %v5994
          %v6024 = vpop.f32.mrf.mxu0
          %v6025 = vadd.f32 0.0, %v6024
          %v6026 = vpop.f32.mrf.mxu0
          %v6027 = vadd.f32 0.0, %v6026
          %6028 = vmatmul.bf16.gmra.mxu0 %v5995
          %v6029 = vpop.f32.mrf.mxu0
          %v6030 = vadd.f32 0.0, %v6029
          %v6031 = vpop.f32.mrf.mxu0
          %v6032 = vadd.f32 0.0, %v6031
          %6033 = vdwg.mxu0
          %6034 = vmatpush.bf16.msra.mxu0 %v5505
          %6035 = vmatpush.bf16.msra.mxu0 %v5496
          %6036 = vmatpush.bf16.msra.mxu0 %v5487
          %6037 = vmatpush.bf16.msra.mxu0 %v5478
          %6038 = vmatpush.bf16.msra.mxu0 %v5469
          %6039 = vmatpush.bf16.msra.mxu0 %v5460
          %6040 = vmatpush.bf16.msra.mxu0 %v5451
          %6041 = vmatpush.bf16.msra.mxu0 %v5442
          %6042 = vmatmul.bf16.gmra.mxu0 %v5994
          %v6043 = vpop.f32.mrf.mxu0
          %v6044 = vadd.f32 0.0, %v6043
          %v6045 = vpop.f32.mrf.mxu0
          %v6046 = vadd.f32 0.0, %v6045
          %6047 = vmatmul.bf16.gmra.mxu0 %v5995
          %v6048 = vpop.f32.mrf.mxu0
          %v6049 = vadd.f32 0.0, %v6048
          %v6050 = vpop.f32.mrf.mxu0
          %v6051 = vadd.f32 0.0, %v6050
          %6052 = vdwg.mxu0
          %6053 = vmatpush.bf16.msra.mxu0 %v5506
          %6054 = vmatpush.bf16.msra.mxu0 %v5497
          %6055 = vmatpush.bf16.msra.mxu0 %v5488
          %6056 = vmatpush.bf16.msra.mxu0 %v5479
          %6057 = vmatpush.bf16.msra.mxu0 %v5470
          %6058 = vmatpush.bf16.msra.mxu0 %v5461
          %6059 = vmatpush.bf16.msra.mxu0 %v5452
          %6060 = vmatpush.bf16.msra.mxu0 %v5443
          %6061 = vmatmul.bf16.gmra.mxu0 %v5994
          %v6062 = vpop.f32.mrf.mxu0
          %v6063 = vadd.f32 0.0, %v6062
          %v6064 = vpop.f32.mrf.mxu0
          %v6065 = vadd.f32 0.0, %v6064
          %6066 = vmatmul.bf16.gmra.mxu0 %v5995
          %v6067 = vpop.f32.mrf.mxu0
          %v6068 = vadd.f32 0.0, %v6067
          %v6069 = vpop.f32.mrf.mxu0
          %v6070 = vadd.f32 0.0, %v6069
          %6071 = vdwg.mxu0
          %6072 = vmatpush.bf16.msra.mxu0 %v5507
          %6073 = vmatpush.bf16.msra.mxu0 %v5498
          %6074 = vmatpush.bf16.msra.mxu0 %v5489
          %6075 = vmatpush.bf16.msra.mxu0 %v5480
          %6076 = vmatpush.bf16.msra.mxu0 %v5471
          %6077 = vmatpush.bf16.msra.mxu0 %v5462
          %6078 = vmatpush.bf16.msra.mxu0 %v5453
          %6079 = vmatpush.bf16.msra.mxu0 %v5444
          %6080 = vmatmul.bf16.gmra.mxu0 %v5994
          %v6081 = vpop.f32.mrf.mxu0
          %v6082 = vadd.f32 0.0, %v6081
          %v6083 = vpop.f32.mrf.mxu0
          %v6084 = vadd.f32 0.0, %v6083
          %6085 = vmatmul.bf16.gmra.mxu0 %v5995
          %v6086 = vpop.f32.mrf.mxu0
          %v6087 = vadd.f32 0.0, %v6086
          %v6088 = vpop.f32.mrf.mxu0
          %v6089 = vadd.f32 0.0, %v6088
          %6090 = vdwg.mxu0
          %6091 = vmatpush.bf16.msra.mxu0 %v5508
          %6092 = vmatpush.bf16.msra.mxu0 %v5499
          %6093 = vmatpush.bf16.msra.mxu0 %v5490
          %6094 = vmatpush.bf16.msra.mxu0 %v5481
          %6095 = vmatpush.bf16.msra.mxu0 %v5472
          %6096 = vmatpush.bf16.msra.mxu0 %v5463
          %6097 = vmatpush.bf16.msra.mxu0 %v5454
          %6098 = vmatpush.bf16.msra.mxu0 %v5445
          %6099 = vmatmul.bf16.gmra.mxu0 %v5994
          %v6100 = vpop.f32.mrf.mxu0
          %v6101 = vadd.f32 0.0, %v6100
          %v6102 = vpop.f32.mrf.mxu0
          %v6103 = vadd.f32 0.0, %v6102
          %6104 = vmatmul.bf16.gmra.mxu0 %v5995
          %v6105 = vpop.f32.mrf.mxu0
          %v6106 = vadd.f32 0.0, %v6105
          %v6107 = vpop.f32.mrf.mxu0
          %v6108 = vadd.f32 0.0, %v6107
          %6109 = vdwg.mxu0
          %6110 = vmatpush.bf16.msra.mxu0 %v5509
          %6111 = vmatpush.bf16.msra.mxu0 %v5500
          %6112 = vmatpush.bf16.msra.mxu0 %v5491
          %6113 = vmatpush.bf16.msra.mxu0 %v5482
          %6114 = vmatpush.bf16.msra.mxu0 %v5473
          %6115 = vmatpush.bf16.msra.mxu0 %v5464
          %6116 = vmatpush.bf16.msra.mxu0 %v5455
          %6117 = vmatpush.bf16.msra.mxu0 %v5446
          %6118 = vmatmul.bf16.gmra.mxu0 %v5994
          %v6119 = vpop.f32.mrf.mxu0
          %v6120 = vadd.f32 0.0, %v6119
          %v6121 = vpop.f32.mrf.mxu0
          %v6122 = vadd.f32 0.0, %v6121
          %6123 = vmatmul.bf16.gmra.mxu0 %v5995
          %v6124 = vpop.f32.mrf.mxu0
          %v6125 = vadd.f32 0.0, %v6124
          %v6126 = vpop.f32.mrf.mxu0
          %v6127 = vadd.f32 0.0, %v6126
          %6128 = vdwg.mxu0
          %6129 = vmatpush.bf16.msra.mxu0 %v5510
          %6130 = vmatpush.bf16.msra.mxu0 %v5501
          %6131 = vmatpush.bf16.msra.mxu0 %v5492
          %6132 = vmatpush.bf16.msra.mxu0 %v5483
          %6133 = vmatpush.bf16.msra.mxu0 %v5474
          %6134 = vmatpush.bf16.msra.mxu0 %v5465
          %6135 = vmatpush.bf16.msra.mxu0 %v5456
          %6136 = vmatpush.bf16.msra.mxu0 %v5447
          %6137 = vmatmul.bf16.gmra.mxu0 %v5994
          %v6138 = vpop.f32.mrf.mxu0
          %v6139 = vadd.f32 0.0, %v6138
          %v6140 = vpop.f32.mrf.mxu0
          %v6141 = vadd.f32 0.0, %v6140
          %6142 = vmatmul.bf16.gmra.mxu0 %v5995
          %v6143 = vpop.f32.mrf.mxu0
          %v6144 = vadd.f32 0.0, %v6143
          %v6145 = vpop.f32.mrf.mxu0
          %v6146 = vadd.f32 0.0, %v6145
          %6147 = vdwg.mxu0
          %6148 = vmatpush.bf16.msra.mxu0 %v5511
          %6149 = vmatpush.bf16.msra.mxu0 %v5502
          %6150 = vmatpush.bf16.msra.mxu0 %v5493
          %6151 = vmatpush.bf16.msra.mxu0 %v5484
          %6152 = vmatpush.bf16.msra.mxu0 %v5475
          %6153 = vmatpush.bf16.msra.mxu0 %v5466
          %6154 = vmatpush.bf16.msra.mxu0 %v5457
          %6155 = vmatpush.bf16.msra.mxu0 %v5448
          %6156 = vmatmul.bf16.gmra.mxu0 %v5994
          %v6157 = vpop.f32.mrf.mxu0
          %v6158 = vadd.f32 0.0, %v6157
          %v6159 = vpop.f32.mrf.mxu0
          %v6160 = vadd.f32 0.0, %v6159
          %6161 = vmatmul.bf16.gmra.mxu0 %v5995
          %v6162 = vpop.f32.mrf.mxu0
          %v6163 = vadd.f32 0.0, %v6162
          %v6164 = vpop.f32.mrf.mxu0
          %v6165 = vadd.f32 0.0, %v6164
          %6166 = vdwg.mxu0
          %v6167 = vpack.c.bf16 %v6008, %v6006
          %v6168 = vpack.c.bf16 %v6013, %v6011
          %v6169 = vpack.c.bf16 %v6027, %v6025
          %v6170 = vpack.c.bf16 %v6032, %v6030
          %v6171 = vpack.c.bf16 %v6046, %v6044
          %v6172 = vpack.c.bf16 %v6051, %v6049
          %v6173 = vpack.c.bf16 %v6065, %v6063
          %v6174 = vpack.c.bf16 %v6070, %v6068
          %v6175 = vpack.c.bf16 %v6084, %v6082
          %v6176 = vpack.c.bf16 %v6089, %v6087
          %v6177 = vpack.c.bf16 %v6103, %v6101
          %v6178 = vpack.c.bf16 %v6108, %v6106
          %v6179 = vpack.c.bf16 %v6122, %v6120
          %v6180 = vpack.c.bf16 %v6127, %v6125
          %v6181 = vpack.c.bf16 %v6141, %v6139
          %v6182 = vpack.c.bf16 %v6146, %v6144
          %v6183 = vpack.c.bf16 %v6160, %v6158
          %v6184 = vpack.c.bf16 %v6165, %v6163
          %6186 = vset.pattern.permute.xlu0 0
          %6187 = vperm.xlu0 %6186, %v5990
          %v6188 = vpop.permute.xlu0 %6187
          %6191 = vset.pattern.permute.xlu0 0
          %6192 = vperm.xlu0 %6191, %v5991
          %v6193 = vpop.permute.xlu0 %6192
          %6196 = vset.pattern.permute.xlu0 0
          %6197 = vperm.xlu0 %6196, %v5992
          %v6198 = vpop.permute.xlu0 %6197
          %6201 = vset.pattern.permute.xlu0 0
          %6202 = vperm.xlu0 %6201, %v5993
          %v6203 = vpop.permute.xlu0 %6202
          %v6213 = vunpack.c.l.b16 %v5981
          %v6214 = vunpack.c.h.b16 %v5981
          %v6215 = vunpack.c.l.b16 %v5982
          %v6216 = vunpack.c.l.b16 %v5983
          %v6217 = vunpack.c.h.b16 %v5983
          %v6218 = vunpack.c.l.b16 %v5984
          %v6219 = vunpack.c.l.b16 %v5985
          %v6220 = vunpack.c.h.b16 %v5985
          %v6221 = vunpack.c.l.b16 %v5986
          %v6222 = vunpack.c.l.b16 %v5987
          %v6223 = vunpack.c.h.b16 %v5987
          %v6224 = vunpack.c.l.b16 %v5988
          %v6225 = vpack.c.b16 %v6216, %v6213
          %v6226 = vpack.c.b16 %v6217, %v6214
          %v6227 = vpack.c.b16 %v6218, %v6215
          %v6228 = vpack.c.b16 %v6222, %v6219
          %v6229 = vpack.c.b16 %v6223, %v6220
          %v6230 = vpack.c.b16 %v6224, %v6221
          %v6236 = vsel %vm5823, %v6227, 0
          %v6239 = vsel %vm5823, %v6230, 0
          %6241 = vmatpush.bf16.msra.mxu0 %v6174
          %6242 = vmatpush.bf16.msra.mxu0 %v6173
          %6243 = vmatpush.bf16.msra.mxu0 %v6172
          %6244 = vmatpush.bf16.msra.mxu0 %v6171
          %6245 = vmatpush.bf16.msra.mxu0 %v6170
          %6246 = vmatpush.bf16.msra.mxu0 %v6169
          %6247 = vmatpush.bf16.msra.mxu0 %v6168
          %6248 = vmatpush.bf16.msra.mxu0 %v6167
          %6249 = vmatmul.bf16.gmra.mxu0 %v6225
          %v6250 = vpop.f32.mrf.mxu0
          %v6251 = vadd.f32 %v6188, %v6250
          %v6252 = vpop.f32.mrf.mxu0
          %v6253 = vadd.f32 %v6193, %v6252
          %6254 = vmatmul.bf16.gmra.mxu0 %v6228
          %v6255 = vpop.f32.mrf.mxu0
          %v6256 = vadd.f32 %v6198, %v6255
          %v6257 = vpop.f32.mrf.mxu0
          %v6258 = vadd.f32 %v6203, %v6257
          %6259 = vdwg.mxu0
          %6260 = vmatpush.bf16.msra.mxu0 %v6182
          %6261 = vmatpush.bf16.msra.mxu0 %v6181
          %6262 = vmatpush.bf16.msra.mxu0 %v6180
          %6263 = vmatpush.bf16.msra.mxu0 %v6179
          %6264 = vmatpush.bf16.msra.mxu0 %v6178
          %6265 = vmatpush.bf16.msra.mxu0 %v6177
          %6266 = vmatpush.bf16.msra.mxu0 %v6176
          %6267 = vmatpush.bf16.msra.mxu0 %v6175
          %6268 = vmatmul.bf16.gmra.mxu0 %v6226
          %v6269 = vpop.f32.mrf.mxu0
          %v6270 = vadd.f32 %v6251, %v6269
          %v6271 = vpop.f32.mrf.mxu0
          %v6272 = vadd.f32 %v6253, %v6271
          %6273 = vmatmul.bf16.gmra.mxu0 %v6229
          %v6274 = vpop.f32.mrf.mxu0
          %v6275 = vadd.f32 %v6256, %v6274
          %v6276 = vpop.f32.mrf.mxu0
          %v6277 = vadd.f32 %v6258, %v6276
          %6278 = vdwg.mxu0
          %6279 = vmatpush.bf16.msra.mxu0 0
          %6280 = vmatpush.bf16.msra.mxu0 0
          %6281 = vmatpush.bf16.msra.mxu0 0
          %6282 = vmatpush.bf16.msra.mxu0 0
          %6283 = vmatpush.bf16.msra.mxu0 0
          %6284 = vmatpush.bf16.msra.mxu0 0
          %6285 = vmatpush.bf16.msra.mxu0 %v6184
          %6286 = vmatpush.bf16.msra.mxu0 %v6183
          %6287 = vmatmul.bf16.gmra.mxu0 %v6236
          %v6288 = vpop.f32.mrf.mxu0
          %v6289 = vadd.f32 %v6270, %v6288
          %v6290 = vpop.f32.mrf.mxu0
          %v6291 = vadd.f32 %v6272, %v6290
          %6292 = vmatmul.bf16.gmra.mxu0 %v6239
          %v6293 = vpop.f32.mrf.mxu0
          %v6294 = vadd.f32 %v6275, %v6293
          %v6295 = vpop.f32.mrf.mxu0
          %v6296 = vadd.f32 %v6277, %v6295
          %6297 = vdwg.mxu0
          %v6298 = vmul.f32 %v6289, %v5014
          %v6299 = vmul.f32 %v6291, %v5014
          %v6300 = vmul.f32 %v6294, %v5014
          %v6301 = vmul.f32 %v6296, %v5014
          %6302 = vadd.xlane.f32.xlu0 %v6298
          %v6303 = vpop.xlane.xlu0 %6302
          %6304 = vadd.xlane.f32.xlu0 %v6299
          %v6305 = vpop.xlane.xlu0 %6304
          %6306 = vadd.xlane.f32.xlu0 %v6300
          %v6307 = vpop.xlane.xlu0 %6306
          %6308 = vadd.xlane.f32.xlu0 %v6301
          %v6309 = vpop.xlane.xlu0 %6308
          %v6310 = vmul.f32 %v6303, 0.083333336
          %v6311 = vmul.f32 %v6305, 0.083333336
          %v6312 = vmul.f32 %v6307, 0.083333336
          %v6313 = vmul.f32 %v6309, 0.083333336
          %v6314 = vsub.f32 %v6289, %v6310
          %v6315 = vsub.f32 %v6291, %v6311
          %v6316 = vsub.f32 %v6294, %v6312
          %v6317 = vsub.f32 %v6296, %v6313
          %v6318 = vmul.f32 %v6314, %v6314
          %v6319 = vmul.f32 %v6315, %v6315
          %v6320 = vmul.f32 %v6316, %v6316
          %v6321 = vmul.f32 %v6317, %v6317
          %v6322 = vmul.f32 %v6318, %v5014
          %v6323 = vmul.f32 %v6319, %v5014
          %v6324 = vmul.f32 %v6320, %v5014
          %v6325 = vmul.f32 %v6321, %v5014
          %6326 = vadd.xlane.f32.xlu0 %v6322
          %v6327 = vpop.xlane.xlu0 %6326
          %6328 = vadd.xlane.f32.xlu0 %v6323
          %v6329 = vpop.xlane.xlu0 %6328
          %6330 = vadd.xlane.f32.xlu0 %v6324
          %v6331 = vpop.xlane.xlu0 %6330
          %6332 = vadd.xlane.f32.xlu0 %v6325
          %v6333 = vpop.xlane.xlu0 %6332
          %v6334 = vmul.f32 %v6327, 0.083333336
          %v6335 = vmul.f32 %v6329, 0.083333336
          %v6336 = vmul.f32 %v6331, 0.083333336
          %v6337 = vmul.f32 %v6333, 0.083333336
          %v6338 = vadd.f32 %v6334, 1e-05
          %v6339 = vadd.f32 %v6335, 1e-05
          %v6340 = vadd.f32 %v6336, 1e-05
          %v6341 = vadd.f32 %v6337, 1e-05
          %v6342 = vrsqrt.pop %v6338
          %v6343 = vmul.f32 %v6342, %v6338
          %v6344 = vmul.f32 %v6343, %v6342
          %v6345 = vmul.f32 0.5, %v6344
          %v6346 = vsub.f32 1.5, %v6345
          %v6347 = vmul.f32 %v6342, %v6346
          %vm6348 = vweird.f32 %v6338
          %vm6349 = vweird.f32 %v6342
          %vm6350 = vmor %vm6348, %vm6349
          %v6351 = vsel %vm6350, %v6342, %v6347
          %v6352 = vrsqrt.pop %v6339
          %v6353 = vmul.f32 %v6352, %v6339
          %v6354 = vmul.f32 %v6353, %v6352
          %v6355 = vmul.f32 0.5, %v6354
          %v6356 = vsub.f32 1.5, %v6355
          %v6357 = vmul.f32 %v6352, %v6356
          %vm6358 = vweird.f32 %v6339
          %vm6359 = vweird.f32 %v6352
          %vm6360 = vmor %vm6358, %vm6359
          %v6361 = vsel %vm6360, %v6352, %v6357
          %v6362 = vrsqrt.pop %v6340
          %v6363 = vmul.f32 %v6362, %v6340
          %v6364 = vmul.f32 %v6363, %v6362
          %v6365 = vmul.f32 0.5, %v6364
          %v6366 = vsub.f32 1.5, %v6365
          %v6367 = vmul.f32 %v6362, %v6366
          %vm6368 = vweird.f32 %v6340
          %vm6369 = vweird.f32 %v6362
          %vm6370 = vmor %vm6368, %vm6369
          %v6371 = vsel %vm6370, %v6362, %v6367
          %v6372 = vrsqrt.pop %v6341
          %v6373 = vmul.f32 %v6372, %v6341
          %v6374 = vmul.f32 %v6373, %v6372
          %v6375 = vmul.f32 0.5, %v6374
          %v6376 = vsub.f32 1.5, %v6375
          %v6377 = vmul.f32 %v6372, %v6376
          %vm6378 = vweird.f32 %v6341
          %vm6379 = vweird.f32 %v6372
          %vm6380 = vmor %vm6378, %vm6379
          %v6381 = vsel %vm6380, %v6372, %v6377
          %v6382 = vmul.f32 %v6314, %v6351
          %v6383 = vmul.f32 %v6315, %v6361
          %v6384 = vmul.f32 %v6316, %v6371
          %v6385 = vmul.f32 %v6317, %v6381
          %v6386 = vadd.f32 %v5113, %v6382
          %v6387 = vadd.f32 %v5114, %v6383
          %v6388 = vadd.f32 %v5115, %v6384
          %v6389 = vadd.f32 %v5116, %v6385
          %v6390 = vmax.f32 %v6386, 0.0
          %v6391 = vmax.f32 %v6387, 0.0
          %v6392 = vmax.f32 %v6388, 0.0
          %v6393 = vmax.f32 %v6389, 0.0
        $region137: #{_lambda_.1} parent=115 // loop_footer
          %s5112 = sadd.s32 1, %s5108
        $region138: #{_lambda_.1} parent=115 // loop_footer_branch
          %5107 = sbr.rel target = $region134
        $region139: #{_lambda_.1} parent=115 // loop_exit
          _
        %v6394 = vld [vmem:[%s18] sm:$0xff]
        %v6395 = vld [vmem:[%s18 + $0x8] sm:$0xf]
        %v6396 = vld [vmem:[%s18 + $0xc] sm:$0xff]
        %v6397 = vld [vmem:[%s18 + $0x14] sm:$0xf]
        %v6398 = vld [vmem:[%s19] sm:$0xff]
        %v6399 = vld [vmem:[%s19 + $0x8] sm:$0xff]
        %v6400 = vpack.c.bf16 %v5114, %v5113
        %v6401 = vpack.c.bf16 %v5116, %v5115
        %v6402 = vld [vmem:[#allocation7] sm:$0xff]
        %v6403 = vld [vmem:[#allocation7 + $0x8] sm:$0xff]
        %v6404 = vld [vmem:[#allocation7 + $0x10] sm:$0xff]
        %v6405 = vld [vmem:[#allocation7 + $0x18] sm:$0xff]
        %v6406 = vld [vmem:[#allocation7 + $0x20] sm:$0xf]
        %v6407 = vld [vmem:[#allocation7 + $0x24] sm:$0xff]
        %v6408 = vld [vmem:[#allocation7 + $0x2c] sm:$0xff]
        %v6409 = vld [vmem:[#allocation7 + $0x34] sm:$0xff]
        %v6410 = vld [vmem:[#allocation7 + $0x3c] sm:$0xff]
        %v6411 = vld [vmem:[#allocation7 + $0x44] sm:$0xf]
        %v6412 = vld [vmem:[#allocation7 + $0x48] sm:$0xff]
        %v6413 = vld [vmem:[#allocation7 + $0x50] sm:$0xff]
        %v6414 = vld [vmem:[#allocation7 + $0x58] sm:$0xff]
        %v6415 = vld [vmem:[#allocation7 + $0x60] sm:$0xff]
        %v6416 = vld [vmem:[#allocation7 + $0x68] sm:$0xf]
        %v6417 = vld [vmem:[#allocation7 + $0x6c] sm:$0xff]
        %v6418 = vld [vmem:[#allocation7 + $0x74] sm:$0xff]
        %v6419 = vld [vmem:[#allocation7 + $0x7c] sm:$0xff]
        %v6420 = vld [vmem:[#allocation7 + $0x84] sm:$0xff]
        %v6421 = vld [vmem:[#allocation7 + $0x8c] sm:$0xf]
        %v6422 = vld [vmem:[#allocation7 + $0x90] sm:$0xff]
        %v6423 = vld [vmem:[#allocation7 + $0x98] sm:$0xff]
        %v6424 = vld [vmem:[#allocation7 + $0xa0] sm:$0xff]
        %v6425 = vld [vmem:[#allocation7 + $0xa8] sm:$0xff]
        %v6426 = vld [vmem:[#allocation7 + $0xb0] sm:$0xf]
        %v6427 = vld [vmem:[#allocation7 + $0xb4] sm:$0xff]
        %v6428 = vld [vmem:[#allocation7 + $0xbc] sm:$0xff]
        %v6429 = vld [vmem:[#allocation7 + $0xc4] sm:$0xff]
        %v6430 = vld [vmem:[#allocation7 + $0xcc] sm:$0xff]
        %v6431 = vld [vmem:[#allocation7 + $0xd4] sm:$0xf]
        %v6432 = vld [vmem:[#allocation7 + $0xd8] sm:$0xff]
        %v6433 = vld [vmem:[#allocation7 + $0xe0] sm:$0xff]
        %v6434 = vld [vmem:[#allocation7 + $0xe8] sm:$0xff]
        %v6435 = vld [vmem:[#allocation7 + $0xf0] sm:$0xff]
        %v6436 = vld [vmem:[#allocation7 + $0xf8] sm:$0xf]
        %v6437 = vld [vmem:[#allocation7 + $0xfc] sm:$0xff]
        %v6438 = vld [vmem:[#allocation7 + $0x104] sm:$0xff]
        %v6439 = vld [vmem:[#allocation7 + $0x10c] sm:$0xff]
        %v6440 = vld [vmem:[#allocation7 + $0x114] sm:$0xff]
        %v6441 = vld [vmem:[#allocation7 + $0x11c] sm:$0xf]
        %v6442 = vld [vmem:[#allocation7 + $0x120] sm:$0xff]
        %v6443 = vld [vmem:[#allocation7 + $0x128] sm:$0xff]
        %v6444 = vld [vmem:[#allocation7 + $0x130] sm:$0xff]
        %v6445 = vld [vmem:[#allocation7 + $0x138] sm:$0xff]
        %v6446 = vld [vmem:[#allocation7 + $0x140] sm:$0xf]
        %v6447 = vld [vmem:[#allocation7 + $0x144] sm:$0xff]
        %v6448 = vld [vmem:[#allocation7 + $0x14c] sm:$0xff]
        %v6449 = vld [vmem:[#allocation7 + $0x154] sm:$0xff]
        %v6450 = vld [vmem:[#allocation7 + $0x15c] sm:$0xff]
        %v6451 = vld [vmem:[#allocation7 + $0x164] sm:$0xf]
        %v6452 = vld [vmem:[#allocation7 + $0x168] sm:$0xff]
        %v6453 = vld [vmem:[#allocation7 + $0x170] sm:$0xff]
        %v6454 = vld [vmem:[#allocation7 + $0x178] sm:$0xff]
        %v6455 = vld [vmem:[#allocation7 + $0x180] sm:$0xff]
        %v6456 = vld [vmem:[#allocation7 + $0x188] sm:$0xf]
        %v6457 = vld [vmem:[#allocation7 + $0x18c] sm:$0xff]
        %v6458 = vld [vmem:[#allocation7 + $0x194] sm:$0xff]
        %v6459 = vld [vmem:[#allocation7 + $0x19c] sm:$0xff]
        %v6460 = vld [vmem:[#allocation7 + $0x1a4] sm:$0xff]
        %v6461 = vld [vmem:[#allocation7 + $0x1ac] sm:$0xf]
        %v6462 = vld [vmem:[#allocation7 + $0x1b0] sm:$0xff]
        %v6463 = vld [vmem:[#allocation7 + $0x1b8] sm:$0xff]
        %v6464 = vld [vmem:[#allocation7 + $0x1c0] sm:$0xff]
        %v6465 = vld [vmem:[#allocation7 + $0x1c8] sm:$0xff]
        %v6466 = vld [vmem:[#allocation7 + $0x1d0] sm:$0xf]
        %v6467 = vld [vmem:[#allocation7 + $0x1d4] sm:$0xff]
        %v6468 = vld [vmem:[#allocation7 + $0x1dc] sm:$0xff]
        %v6469 = vld [vmem:[#allocation7 + $0x1e4] sm:$0xff]
        %v6470 = vld [vmem:[#allocation7 + $0x1ec] sm:$0xff]
        %v6471 = vld [vmem:[#allocation7 + $0x1f4] sm:$0xf]
        %v6472 = vld [vmem:[#allocation7 + $0x1f8] sm:$0xff]
        %v6473 = vld [vmem:[#allocation7 + $0x200] sm:$0xff]
        %v6474 = vld [vmem:[#allocation7 + $0x208] sm:$0xff]
        %v6475 = vld [vmem:[#allocation7 + $0x210] sm:$0xff]
        %v6476 = vld [vmem:[#allocation7 + $0x218] sm:$0xf]
        %v6477 = vld [vmem:[#allocation7 + $0x21c] sm:$0xff]
        %v6478 = vld [vmem:[#allocation7 + $0x224] sm:$0xff]
        %v6479 = vld [vmem:[#allocation7 + $0x22c] sm:$0xff]
        %v6480 = vld [vmem:[#allocation7 + $0x234] sm:$0xff]
        %v6481 = vld [vmem:[#allocation7 + $0x23c] sm:$0xf]
        %v6562 = vunpack.c.l.b16 %v6402
        %v6563 = vunpack.c.h.b16 %v6402
        %v6564 = vunpack.c.l.b16 %v6403
        %v6565 = vunpack.c.h.b16 %v6403
        %v6566 = vunpack.c.l.b16 %v6404
        %v6567 = vunpack.c.h.b16 %v6404
        %v6568 = vunpack.c.l.b16 %v6405
        %v6569 = vunpack.c.h.b16 %v6405
        %v6570 = vunpack.c.l.b16 %v6406
        %v6571 = vunpack.c.l.b16 %v6407
        %v6572 = vunpack.c.h.b16 %v6407
        %v6573 = vunpack.c.l.b16 %v6408
        %v6574 = vunpack.c.h.b16 %v6408
        %v6575 = vunpack.c.l.b16 %v6409
        %v6576 = vunpack.c.h.b16 %v6409
        %v6577 = vunpack.c.l.b16 %v6410
        %v6578 = vunpack.c.h.b16 %v6410
        %v6579 = vunpack.c.l.b16 %v6411
        %v6580 = vunpack.c.l.b16 %v6412
        %v6581 = vunpack.c.h.b16 %v6412
        %v6582 = vunpack.c.l.b16 %v6413
        %v6583 = vunpack.c.h.b16 %v6413
        %v6584 = vunpack.c.l.b16 %v6414
        %v6585 = vunpack.c.h.b16 %v6414
        %v6586 = vunpack.c.l.b16 %v6415
        %v6587 = vunpack.c.h.b16 %v6415
        %v6588 = vunpack.c.l.b16 %v6416
        %v6589 = vunpack.c.l.b16 %v6417
        %v6590 = vunpack.c.h.b16 %v6417
        %v6591 = vunpack.c.l.b16 %v6418
        %v6592 = vunpack.c.h.b16 %v6418
        %v6593 = vunpack.c.l.b16 %v6419
        %v6594 = vunpack.c.h.b16 %v6419
        %v6595 = vunpack.c.l.b16 %v6420
        %v6596 = vunpack.c.h.b16 %v6420
        %v6597 = vunpack.c.l.b16 %v6421
        %v6598 = vunpack.c.l.b16 %v6422
        %v6599 = vunpack.c.h.b16 %v6422
        %v6600 = vunpack.c.l.b16 %v6423
        %v6601 = vunpack.c.h.b16 %v6423
        %v6602 = vunpack.c.l.b16 %v6424
        %v6603 = vunpack.c.h.b16 %v6424
        %v6604 = vunpack.c.l.b16 %v6425
        %v6605 = vunpack.c.h.b16 %v6425
        %v6606 = vunpack.c.l.b16 %v6426
        %v6607 = vunpack.c.l.b16 %v6427
        %v6608 = vunpack.c.h.b16 %v6427
        %v6609 = vunpack.c.l.b16 %v6428
        %v6610 = vunpack.c.h.b16 %v6428
        %v6611 = vunpack.c.l.b16 %v6429
        %v6612 = vunpack.c.h.b16 %v6429
        %v6613 = vunpack.c.l.b16 %v6430
        %v6614 = vunpack.c.h.b16 %v6430
        %v6615 = vunpack.c.l.b16 %v6431
        %v6616 = vunpack.c.l.b16 %v6432
        %v6617 = vunpack.c.h.b16 %v6432
        %v6618 = vunpack.c.l.b16 %v6433
        %v6619 = vunpack.c.h.b16 %v6433
        %v6620 = vunpack.c.l.b16 %v6434
        %v6621 = vunpack.c.h.b16 %v6434
        %v6622 = vunpack.c.l.b16 %v6435
        %v6623 = vunpack.c.h.b16 %v6435
        %v6624 = vunpack.c.l.b16 %v6436
        %v6625 = vunpack.c.l.b16 %v6437
        %v6626 = vunpack.c.h.b16 %v6437
        %v6627 = vunpack.c.l.b16 %v6438
        %v6628 = vunpack.c.h.b16 %v6438
        %v6629 = vunpack.c.l.b16 %v6439
        %v6630 = vunpack.c.h.b16 %v6439
        %v6631 = vunpack.c.l.b16 %v6440
        %v6632 = vunpack.c.h.b16 %v6440
        %v6633 = vunpack.c.l.b16 %v6441
        %v6634 = vunpack.c.l.b16 %v6442
        %v6635 = vunpack.c.h.b16 %v6442
        %v6636 = vunpack.c.l.b16 %v6443
        %v6637 = vunpack.c.h.b16 %v6443
        %v6638 = vunpack.c.l.b16 %v6444
        %v6639 = vunpack.c.h.b16 %v6444
        %v6640 = vunpack.c.l.b16 %v6445
        %v6641 = vunpack.c.h.b16 %v6445
        %v6642 = vunpack.c.l.b16 %v6446
        %v6643 = vunpack.c.l.b16 %v6447
        %v6644 = vunpack.c.h.b16 %v6447
        %v6645 = vunpack.c.l.b16 %v6448
        %v6646 = vunpack.c.h.b16 %v6448
        %v6647 = vunpack.c.l.b16 %v6449
        %v6648 = vunpack.c.h.b16 %v6449
        %v6649 = vunpack.c.l.b16 %v6450
        %v6650 = vunpack.c.h.b16 %v6450
        %v6651 = vunpack.c.l.b16 %v6451
        %v6652 = vunpack.c.l.b16 %v6452
        %v6653 = vunpack.c.h.b16 %v6452
        %v6654 = vunpack.c.l.b16 %v6453
        %v6655 = vunpack.c.h.b16 %v6453
        %v6656 = vunpack.c.l.b16 %v6454
        %v6657 = vunpack.c.h.b16 %v6454
        %v6658 = vunpack.c.l.b16 %v6455
        %v6659 = vunpack.c.h.b16 %v6455
        %v6660 = vunpack.c.l.b16 %v6456
        %v6661 = vunpack.c.l.b16 %v6457
        %v6662 = vunpack.c.h.b16 %v6457
        %v6663 = vunpack.c.l.b16 %v6458
        %v6664 = vunpack.c.h.b16 %v6458
        %v6665 = vunpack.c.l.b16 %v6459
        %v6666 = vunpack.c.h.b16 %v6459
        %v6667 = vunpack.c.l.b16 %v6460
        %v6668 = vunpack.c.h.b16 %v6460
        %v6669 = vunpack.c.l.b16 %v6461
        %v6670 = vunpack.c.l.b16 %v6462
        %v6671 = vunpack.c.h.b16 %v6462
        %v6672 = vunpack.c.l.b16 %v6463
        %v6673 = vunpack.c.h.b16 %v6463
        %v6674 = vunpack.c.l.b16 %v6464
        %v6675 = vunpack.c.h.b16 %v6464
        %v6676 = vunpack.c.l.b16 %v6465
        %v6677 = vunpack.c.h.b16 %v6465
        %v6678 = vunpack.c.l.b16 %v6466
        %v6679 = vunpack.c.l.b16 %v6467
        %v6680 = vunpack.c.h.b16 %v6467
        %v6681 = vunpack.c.l.b16 %v6468
        %v6682 = vunpack.c.h.b16 %v6468
        %v6683 = vunpack.c.l.b16 %v6469
        %v6684 = vunpack.c.h.b16 %v6469
        %v6685 = vunpack.c.l.b16 %v6470
        %v6686 = vunpack.c.h.b16 %v6470
        %v6687 = vunpack.c.l.b16 %v6471
        %v6688 = vunpack.c.l.b16 %v6472
        %v6689 = vunpack.c.h.b16 %v6472
        %v6690 = vunpack.c.l.b16 %v6473
        %v6691 = vunpack.c.h.b16 %v6473
        %v6692 = vunpack.c.l.b16 %v6474
        %v6693 = vunpack.c.h.b16 %v6474
        %v6694 = vunpack.c.l.b16 %v6475
        %v6695 = vunpack.c.h.b16 %v6475
        %v6696 = vunpack.c.l.b16 %v6476
        %v6697 = vunpack.c.l.b16 %v6477
        %v6698 = vunpack.c.h.b16 %v6477
        %v6699 = vunpack.c.l.b16 %v6478
        %v6700 = vunpack.c.h.b16 %v6478
        %v6701 = vunpack.c.l.b16 %v6479
        %v6702 = vunpack.c.h.b16 %v6479
        %v6703 = vunpack.c.l.b16 %v6480
        %v6704 = vunpack.c.h.b16 %v6480
        %v6705 = vunpack.c.l.b16 %v6481
        %v6706 = vpack.c.b16 %v6571, %v6562
        %v6707 = vpack.c.b16 %v6572, %v6563
        %v6708 = vpack.c.b16 %v6573, %v6564
        %v6709 = vpack.c.b16 %v6574, %v6565
        %v6710 = vpack.c.b16 %v6575, %v6566
        %v6711 = vpack.c.b16 %v6576, %v6567
        %v6712 = vpack.c.b16 %v6577, %v6568
        %v6713 = vpack.c.b16 %v6578, %v6569
        %v6714 = vpack.c.b16 %v6579, %v6570
        %v6715 = vpack.c.b16 %v6589, %v6580
        %v6716 = vpack.c.b16 %v6590, %v6581
        %v6717 = vpack.c.b16 %v6591, %v6582
        %v6718 = vpack.c.b16 %v6592, %v6583
        %v6719 = vpack.c.b16 %v6593, %v6584
        %v6720 = vpack.c.b16 %v6594, %v6585
        %v6721 = vpack.c.b16 %v6595, %v6586
        %v6722 = vpack.c.b16 %v6596, %v6587
        %v6723 = vpack.c.b16 %v6597, %v6588
        %v6724 = vpack.c.b16 %v6607, %v6598
        %v6725 = vpack.c.b16 %v6608, %v6599
        %v6726 = vpack.c.b16 %v6609, %v6600
        %v6727 = vpack.c.b16 %v6610, %v6601
        %v6728 = vpack.c.b16 %v6611, %v6602
        %v6729 = vpack.c.b16 %v6612, %v6603
        %v6730 = vpack.c.b16 %v6613, %v6604
        %v6731 = vpack.c.b16 %v6614, %v6605
        %v6732 = vpack.c.b16 %v6615, %v6606
        %v6733 = vpack.c.b16 %v6625, %v6616
        %v6734 = vpack.c.b16 %v6626, %v6617
        %v6735 = vpack.c.b16 %v6627, %v6618
        %v6736 = vpack.c.b16 %v6628, %v6619
        %v6737 = vpack.c.b16 %v6629, %v6620
        %v6738 = vpack.c.b16 %v6630, %v6621
        %v6739 = vpack.c.b16 %v6631, %v6622
        %v6740 = vpack.c.b16 %v6632, %v6623
        %v6741 = vpack.c.b16 %v6633, %v6624
        %v6742 = vpack.c.b16 %v6643, %v6634
        %v6743 = vpack.c.b16 %v6644, %v6635
        %v6744 = vpack.c.b16 %v6645, %v6636
        %v6745 = vpack.c.b16 %v6646, %v6637
        %v6746 = vpack.c.b16 %v6647, %v6638
        %v6747 = vpack.c.b16 %v6648, %v6639
        %v6748 = vpack.c.b16 %v6649, %v6640
        %v6749 = vpack.c.b16 %v6650, %v6641
        %v6750 = vpack.c.b16 %v6651, %v6642
        %v6751 = vpack.c.b16 %v6661, %v6652
        %v6752 = vpack.c.b16 %v6662, %v6653
        %v6753 = vpack.c.b16 %v6663, %v6654
        %v6754 = vpack.c.b16 %v6664, %v6655
        %v6755 = vpack.c.b16 %v6665, %v6656
        %v6756 = vpack.c.b16 %v6666, %v6657
        %v6757 = vpack.c.b16 %v6667, %v6658
        %v6758 = vpack.c.b16 %v6668, %v6659
        %v6759 = vpack.c.b16 %v6669, %v6660
        %v6760 = vpack.c.b16 %v6679, %v6670
        %v6761 = vpack.c.b16 %v6680, %v6671
        %v6762 = vpack.c.b16 %v6681, %v6672
        %v6763 = vpack.c.b16 %v6682, %v6673
        %v6764 = vpack.c.b16 %v6683, %v6674
        %v6765 = vpack.c.b16 %v6684, %v6675
        %v6766 = vpack.c.b16 %v6685, %v6676
        %v6767 = vpack.c.b16 %v6686, %v6677
        %v6768 = vpack.c.b16 %v6687, %v6678
        %v6769 = vpack.c.b16 %v6697, %v6688
        %v6770 = vpack.c.b16 %v6698, %v6689
        %v6771 = vpack.c.b16 %v6699, %v6690
        %v6772 = vpack.c.b16 %v6700, %v6691
        %v6773 = vpack.c.b16 %v6701, %v6692
        %v6774 = vpack.c.b16 %v6702, %v6693
        %v6775 = vpack.c.b16 %v6703, %v6694
        %v6776 = vpack.c.b16 %v6704, %v6695
        %v6777 = vpack.c.b16 %v6705, %v6696
        %6850 = vmatpush.bf16.msra.mxu0 %v6769
        %6851 = vmatpush.bf16.msra.mxu0 %v6760
        %6852 = vmatpush.bf16.msra.mxu0 %v6751
        %6853 = vmatpush.bf16.msra.mxu0 %v6742
        %6854 = vmatpush.bf16.msra.mxu0 %v6733
        %6855 = vmatpush.bf16.msra.mxu0 %v6724
        %6856 = vmatpush.bf16.msra.mxu0 %v6715
        %6857 = vmatpush.bf16.msra.mxu0 %v6706
        %6858 = vmatmul.bf16.gmra.mxu0 %v6400
        %v6859 = vpop.f32.mrf.mxu0
        %v6860 = vadd.f32 0.0, %v6859
        %v6861 = vpop.f32.mrf.mxu0
        %v6862 = vadd.f32 0.0, %v6861
        %6863 = vmatmul.bf16.gmra.mxu0 %v6401
        %v6864 = vpop.f32.mrf.mxu0
        %v6865 = vadd.f32 0.0, %v6864
        %v6866 = vpop.f32.mrf.mxu0
        %v6867 = vadd.f32 0.0, %v6866
        %6868 = vdwg.mxu0
        %6869 = vmatpush.bf16.msra.mxu0 %v6770
        %6870 = vmatpush.bf16.msra.mxu0 %v6761
        %6871 = vmatpush.bf16.msra.mxu0 %v6752
        %6872 = vmatpush.bf16.msra.mxu0 %v6743
        %6873 = vmatpush.bf16.msra.mxu0 %v6734
        %6874 = vmatpush.bf16.msra.mxu0 %v6725
        %6875 = vmatpush.bf16.msra.mxu0 %v6716
        %6876 = vmatpush.bf16.msra.mxu0 %v6707
        %6877 = vmatmul.bf16.gmra.mxu0 %v6400
        %v6878 = vpop.f32.mrf.mxu0
        %v6879 = vadd.f32 0.0, %v6878
        %v6880 = vpop.f32.mrf.mxu0
        %v6881 = vadd.f32 0.0, %v6880
        %6882 = vmatmul.bf16.gmra.mxu0 %v6401
        %v6883 = vpop.f32.mrf.mxu0
        %v6884 = vadd.f32 0.0, %v6883
        %v6885 = vpop.f32.mrf.mxu0
        %v6886 = vadd.f32 0.0, %v6885
        %6887 = vdwg.mxu0
        %6888 = vmatpush.bf16.msra.mxu0 %v6771
        %6889 = vmatpush.bf16.msra.mxu0 %v6762
        %6890 = vmatpush.bf16.msra.mxu0 %v6753
        %6891 = vmatpush.bf16.msra.mxu0 %v6744
        %6892 = vmatpush.bf16.msra.mxu0 %v6735
        %6893 = vmatpush.bf16.msra.mxu0 %v6726
        %6894 = vmatpush.bf16.msra.mxu0 %v6717
        %6895 = vmatpush.bf16.msra.mxu0 %v6708
        %6896 = vmatmul.bf16.gmra.mxu0 %v6400
        %v6897 = vpop.f32.mrf.mxu0
        %v6898 = vadd.f32 0.0, %v6897
        %v6899 = vpop.f32.mrf.mxu0
        %v6900 = vadd.f32 0.0, %v6899
        %6901 = vmatmul.bf16.gmra.mxu0 %v6401
        %v6902 = vpop.f32.mrf.mxu0
        %v6903 = vadd.f32 0.0, %v6902
        %v6904 = vpop.f32.mrf.mxu0
        %v6905 = vadd.f32 0.0, %v6904
        %6906 = vdwg.mxu0
        %6907 = vmatpush.bf16.msra.mxu0 %v6772
        %6908 = vmatpush.bf16.msra.mxu0 %v6763
        %6909 = vmatpush.bf16.msra.mxu0 %v6754
        %6910 = vmatpush.bf16.msra.mxu0 %v6745
        %6911 = vmatpush.bf16.msra.mxu0 %v6736
        %6912 = vmatpush.bf16.msra.mxu0 %v6727
        %6913 = vmatpush.bf16.msra.mxu0 %v6718
        %6914 = vmatpush.bf16.msra.mxu0 %v6709
        %6915 = vmatmul.bf16.gmra.mxu0 %v6400
        %v6916 = vpop.f32.mrf.mxu0
        %v6917 = vadd.f32 0.0, %v6916
        %v6918 = vpop.f32.mrf.mxu0
        %v6919 = vadd.f32 0.0, %v6918
        %6920 = vmatmul.bf16.gmra.mxu0 %v6401
        %v6921 = vpop.f32.mrf.mxu0
        %v6922 = vadd.f32 0.0, %v6921
        %v6923 = vpop.f32.mrf.mxu0
        %v6924 = vadd.f32 0.0, %v6923
        %6925 = vdwg.mxu0
        %6926 = vmatpush.bf16.msra.mxu0 %v6773
        %6927 = vmatpush.bf16.msra.mxu0 %v6764
        %6928 = vmatpush.bf16.msra.mxu0 %v6755
        %6929 = vmatpush.bf16.msra.mxu0 %v6746
        %6930 = vmatpush.bf16.msra.mxu0 %v6737
        %6931 = vmatpush.bf16.msra.mxu0 %v6728
        %6932 = vmatpush.bf16.msra.mxu0 %v6719
        %6933 = vmatpush.bf16.msra.mxu0 %v6710
        %6934 = vmatmul.bf16.gmra.mxu0 %v6400
        %v6935 = vpop.f32.mrf.mxu0
        %v6936 = vadd.f32 0.0, %v6935
        %v6937 = vpop.f32.mrf.mxu0
        %v6938 = vadd.f32 0.0, %v6937
        %6939 = vmatmul.bf16.gmra.mxu0 %v6401
        %v6940 = vpop.f32.mrf.mxu0
        %v6941 = vadd.f32 0.0, %v6940
        %v6942 = vpop.f32.mrf.mxu0
        %v6943 = vadd.f32 0.0, %v6942
        %6944 = vdwg.mxu0
        %6945 = vmatpush.bf16.msra.mxu0 %v6774
        %6946 = vmatpush.bf16.msra.mxu0 %v6765
        %6947 = vmatpush.bf16.msra.mxu0 %v6756
        %6948 = vmatpush.bf16.msra.mxu0 %v6747
        %6949 = vmatpush.bf16.msra.mxu0 %v6738
        %6950 = vmatpush.bf16.msra.mxu0 %v6729
        %6951 = vmatpush.bf16.msra.mxu0 %v6720
        %6952 = vmatpush.bf16.msra.mxu0 %v6711
        %6953 = vmatmul.bf16.gmra.mxu0 %v6400
        %v6954 = vpop.f32.mrf.mxu0
        %v6955 = vadd.f32 0.0, %v6954
        %v6956 = vpop.f32.mrf.mxu0
        %v6957 = vadd.f32 0.0, %v6956
        %6958 = vmatmul.bf16.gmra.mxu0 %v6401
        %v6959 = vpop.f32.mrf.mxu0
        %v6960 = vadd.f32 0.0, %v6959
        %v6961 = vpop.f32.mrf.mxu0
        %v6962 = vadd.f32 0.0, %v6961
        %6963 = vdwg.mxu0
        %6964 = vmatpush.bf16.msra.mxu0 %v6775
        %6965 = vmatpush.bf16.msra.mxu0 %v6766
        %6966 = vmatpush.bf16.msra.mxu0 %v6757
        %6967 = vmatpush.bf16.msra.mxu0 %v6748
        %6968 = vmatpush.bf16.msra.mxu0 %v6739
        %6969 = vmatpush.bf16.msra.mxu0 %v6730
        %6970 = vmatpush.bf16.msra.mxu0 %v6721
        %6971 = vmatpush.bf16.msra.mxu0 %v6712
        %6972 = vmatmul.bf16.gmra.mxu0 %v6400
        %v6973 = vpop.f32.mrf.mxu0
        %v6974 = vadd.f32 0.0, %v6973
        %v6975 = vpop.f32.mrf.mxu0
        %v6976 = vadd.f32 0.0, %v6975
        %6977 = vmatmul.bf16.gmra.mxu0 %v6401
        %v6978 = vpop.f32.mrf.mxu0
        %v6979 = vadd.f32 0.0, %v6978
        %v6980 = vpop.f32.mrf.mxu0
        %v6981 = vadd.f32 0.0, %v6980
        %6982 = vdwg.mxu0
        %6983 = vmatpush.bf16.msra.mxu0 %v6776
        %6984 = vmatpush.bf16.msra.mxu0 %v6767
        %6985 = vmatpush.bf16.msra.mxu0 %v6758
        %6986 = vmatpush.bf16.msra.mxu0 %v6749
        %6987 = vmatpush.bf16.msra.mxu0 %v6740
        %6988 = vmatpush.bf16.msra.mxu0 %v6731
        %6989 = vmatpush.bf16.msra.mxu0 %v6722
        %6990 = vmatpush.bf16.msra.mxu0 %v6713
        %6991 = vmatmul.bf16.gmra.mxu0 %v6400
        %v6992 = vpop.f32.mrf.mxu0
        %v6993 = vadd.f32 0.0, %v6992
        %v6994 = vpop.f32.mrf.mxu0
        %v6995 = vadd.f32 0.0, %v6994
        %6996 = vmatmul.bf16.gmra.mxu0 %v6401
        %v6997 = vpop.f32.mrf.mxu0
        %v6998 = vadd.f32 0.0, %v6997
        %v6999 = vpop.f32.mrf.mxu0
        %v7000 = vadd.f32 0.0, %v6999
        %7001 = vdwg.mxu0
        %7002 = vmatpush.bf16.msra.mxu0 %v6777
        %7003 = vmatpush.bf16.msra.mxu0 %v6768
        %7004 = vmatpush.bf16.msra.mxu0 %v6759
        %7005 = vmatpush.bf16.msra.mxu0 %v6750
        %7006 = vmatpush.bf16.msra.mxu0 %v6741
        %7007 = vmatpush.bf16.msra.mxu0 %v6732
        %7008 = vmatpush.bf16.msra.mxu0 %v6723
        %7009 = vmatpush.bf16.msra.mxu0 %v6714
        %7010 = vmatmul.bf16.gmra.mxu0 %v6400
        %v7011 = vpop.f32.mrf.mxu0
        %v7012 = vadd.f32 0.0, %v7011
        %v7013 = vpop.f32.mrf.mxu0
        %v7014 = vadd.f32 0.0, %v7013
        %7015 = vmatmul.bf16.gmra.mxu0 %v6401
        %v7016 = vpop.f32.mrf.mxu0
        %v7017 = vadd.f32 0.0, %v7016
        %v7018 = vpop.f32.mrf.mxu0
        %v7019 = vadd.f32 0.0, %v7018
        %7020 = vdwg.mxu0
        %v7021 = vpack.c.bf16 %v6862, %v6860
        %v7022 = vpack.c.bf16 %v6867, %v6865
        %v7023 = vpack.c.bf16 %v6881, %v6879
        %v7024 = vpack.c.bf16 %v6886, %v6884
        %v7025 = vpack.c.bf16 %v6900, %v6898
        %v7026 = vpack.c.bf16 %v6905, %v6903
        %v7027 = vpack.c.bf16 %v6919, %v6917
        %v7028 = vpack.c.bf16 %v6924, %v6922
        %v7029 = vpack.c.bf16 %v6938, %v6936
        %v7030 = vpack.c.bf16 %v6943, %v6941
        %v7031 = vpack.c.bf16 %v6957, %v6955
        %v7032 = vpack.c.bf16 %v6962, %v6960
        %v7033 = vpack.c.bf16 %v6976, %v6974
        %v7034 = vpack.c.bf16 %v6981, %v6979
        %v7035 = vpack.c.bf16 %v6995, %v6993
        %v7036 = vpack.c.bf16 %v7000, %v6998
        %v7037 = vpack.c.bf16 %v7014, %v7012
        %v7038 = vpack.c.bf16 %v7019, %v7017
        %7040 = vset.pattern.permute.xlu0 0
        %7041 = vperm.xlu0 %7040, %v6398
        %v7042 = vpop.permute.xlu0 %7041
        %7045 = vset.pattern.permute.xlu0 0
        %7046 = vperm.xlu0 %7045, %v6399
        %v7047 = vpop.permute.xlu0 %7046
        %v7053 = vunpack.c.l.b16 %v6394
        %v7054 = vunpack.c.h.b16 %v6394
        %v7055 = vunpack.c.l.b16 %v6395
        %v7056 = vunpack.c.l.b16 %v6396
        %v7057 = vunpack.c.h.b16 %v6396
        %v7058 = vunpack.c.l.b16 %v6397
        %v7059 = vpack.c.b16 %v7056, %v7053
        %v7060 = vpack.c.b16 %v7057, %v7054
        %v7061 = vpack.c.b16 %v7058, %v7055
        %vm7064 = vcmask 261120
        %v7066 = vsel %vm7064, %v7061, 0
        %7068 = vmatpush.bf16.msra.mxu0 %v7028
        %7069 = vmatpush.bf16.msra.mxu0 %v7027
        %7070 = vmatpush.bf16.msra.mxu0 %v7026
        %7071 = vmatpush.bf16.msra.mxu0 %v7025
        %7072 = vmatpush.bf16.msra.mxu0 %v7024
        %7073 = vmatpush.bf16.msra.mxu0 %v7023
        %7074 = vmatpush.bf16.msra.mxu0 %v7022
        %7075 = vmatpush.bf16.msra.mxu0 %v7021
        %7076 = vmatmul.bf16.gmra.mxu0 %v7059
        %v7077 = vpop.f32.mrf.mxu0
        %v7078 = vadd.f32 %v7042, %v7077
        %v7079 = vpop.f32.mrf.mxu0
        %v7080 = vadd.f32 %v7047, %v7079
        %7081 = vdwg.mxu0
        %7082 = vmatpush.bf16.msra.mxu0 %v7036
        %7083 = vmatpush.bf16.msra.mxu0 %v7035
        %7084 = vmatpush.bf16.msra.mxu0 %v7034
        %7085 = vmatpush.bf16.msra.mxu0 %v7033
        %7086 = vmatpush.bf16.msra.mxu0 %v7032
        %7087 = vmatpush.bf16.msra.mxu0 %v7031
        %7088 = vmatpush.bf16.msra.mxu0 %v7030
        %7089 = vmatpush.bf16.msra.mxu0 %v7029
        %7090 = vmatmul.bf16.gmra.mxu0 %v7060
        %v7091 = vpop.f32.mrf.mxu0
        %v7092 = vadd.f32 %v7078, %v7091
        %v7093 = vpop.f32.mrf.mxu0
        %v7094 = vadd.f32 %v7080, %v7093
        %7095 = vdwg.mxu0
        %7096 = vmatpush.bf16.msra.mxu0 0
        %7097 = vmatpush.bf16.msra.mxu0 0
        %7098 = vmatpush.bf16.msra.mxu0 0
        %7099 = vmatpush.bf16.msra.mxu0 0
        %7100 = vmatpush.bf16.msra.mxu0 0
        %7101 = vmatpush.bf16.msra.mxu0 0
        %7102 = vmatpush.bf16.msra.mxu0 %v7038
        %7103 = vmatpush.bf16.msra.mxu0 %v7037
        %7104 = vmatmul.bf16.gmra.mxu0 %v7066
        %v7105 = vpop.f32.mrf.mxu0
        %v7106 = vadd.f32 %v7092, %v7105
        %v7107 = vpop.f32.mrf.mxu0
        %v7108 = vadd.f32 %v7094, %v7107
        %7109 = vdwg.mxu0
        %vm7110 = vcmp.lt.s32.totalorder %v4287, 48
        %v7111 = vsel %vm7110, 1, 0
        %v7112 = vcvt.s32.f32 %v7111
        %v7113 = vmul.f32 %v7106, %v7112
        %v7114 = vmul.f32 %v7108, %v7112
        %7115 = vadd.xlane.f32.xlu0 %v7113
        %v7116 = vpop.xlane.xlu0 %7115
        %7117 = vadd.xlane.f32.xlu0 %v7114
        %v7118 = vpop.xlane.xlu0 %7117
        %v7119 = vmul.f32 %v7116, 0.020833334
        %v7120 = vmul.f32 %v7118, 0.020833334
        %v7121 = vsub.f32 %v7106, %v7119
        %v7122 = vsub.f32 %v7108, %v7120
        %v7123 = vmul.f32 %v7121, %v7121
        %v7124 = vmul.f32 %v7122, %v7122
        %v7125 = vmul.f32 %v7123, %v7112
        %v7126 = vmul.f32 %v7124, %v7112
        %7127 = vadd.xlane.f32.xlu0 %v7125
        %v7128 = vpop.xlane.xlu0 %7127
        %7129 = vadd.xlane.f32.xlu0 %v7126
        %v7130 = vpop.xlane.xlu0 %7129
        %v7131 = vmul.f32 %v7128, 0.020833334
        %v7132 = vmul.f32 %v7130, 0.020833334
        %v7133 = vadd.f32 %v7131, 1e-05
        %v7134 = vadd.f32 %v7132, 1e-05
        %v7135 = vrsqrt.pop %v7133
        %v7136 = vmul.f32 %v7135, %v7133
        %v7137 = vmul.f32 %v7136, %v7135
        %v7138 = vmul.f32 0.5, %v7137
        %v7139 = vsub.f32 1.5, %v7138
        %v7140 = vmul.f32 %v7135, %v7139
        %vm7141 = vweird.f32 %v7133
        %vm7142 = vweird.f32 %v7135
        %vm7143 = vmor %vm7141, %vm7142
        %v7144 = vsel %vm7143, %v7135, %v7140
        %v7145 = vrsqrt.pop %v7134
        %v7146 = vmul.f32 %v7145, %v7134
        %v7147 = vmul.f32 %v7146, %v7145
        %v7148 = vmul.f32 0.5, %v7147
        %v7149 = vsub.f32 1.5, %v7148
        %v7150 = vmul.f32 %v7145, %v7149
        %vm7151 = vweird.f32 %v7134
        %vm7152 = vweird.f32 %v7145
        %vm7153 = vmor %vm7151, %vm7152
        %v7154 = vsel %vm7153, %v7145, %v7150
        %v7155 = vmul.f32 %v7121, %v7144
        %v7156 = vmul.f32 %v7122, %v7154
        %v7157 = vmax.f32 %v7155, 0.0
        %v7158 = vmax.f32 %v7156, 0.0
        %v7159 = vld [vmem:[%s20] sm:$0xff]
        %v7160 = vld [vmem:[%s21] sm:$0xff]
        %v7161 = vpack.c.bf16 %v7158, %v7157
        %v7162 = vld [vmem:[#allocation8] sm:$0xff]
        %v7163 = vld [vmem:[#allocation8 + $0x8] sm:$0xff]
        %v7164 = vld [vmem:[#allocation8 + $0x10] sm:$0xff]
        %v7165 = vld [vmem:[#allocation8 + $0x18] sm:$0xff]
        %v7166 = vld [vmem:[#allocation8 + $0x20] sm:$0xff]
        %v7167 = vld [vmem:[#allocation8 + $0x28] sm:$0xff]
        %v7168 = vld [vmem:[#allocation8 + $0x30] sm:$0xff]
        %v7169 = vld [vmem:[#allocation8 + $0x38] sm:$0xff]
        %v7170 = vld [vmem:[#allocation8 + $0x40] sm:$0xff]
        %v7171 = vld [vmem:[#allocation8 + $0x48] sm:$0xff]
        %v7172 = vld [vmem:[#allocation8 + $0x50] sm:$0xff]
        %v7173 = vld [vmem:[#allocation8 + $0x58] sm:$0xff]
        %v7174 = vld [vmem:[#allocation8 + $0x60] sm:$0xff]
        %v7175 = vld [vmem:[#allocation8 + $0x68] sm:$0xff]
        %v7176 = vld [vmem:[#allocation8 + $0x70] sm:$0xff]
        %v7177 = vld [vmem:[#allocation8 + $0x78] sm:$0xff]
        %v7178 = vld [vmem:[#allocation8 + $0x80] sm:$0xff]
        %v7179 = vld [vmem:[#allocation8 + $0x88] sm:$0xff]
        %v7180 = vld [vmem:[#allocation8 + $0x90] sm:$0xff]
        %v7181 = vld [vmem:[#allocation8 + $0x98] sm:$0xff]
        %v7182 = vld [vmem:[#allocation8 + $0xa0] sm:$0xff]
        %v7183 = vld [vmem:[#allocation8 + $0xa8] sm:$0xff]
        %v7184 = vld [vmem:[#allocation8 + $0xb0] sm:$0xff]
        %v7185 = vld [vmem:[#allocation8 + $0xb8] sm:$0xff]
        %v7186 = vld [vmem:[#allocation8 + $0xc0] sm:$0xff]
        %v7187 = vld [vmem:[#allocation8 + $0xc8] sm:$0xff]
        %v7188 = vld [vmem:[#allocation8 + $0xd0] sm:$0xff]
        %v7189 = vld [vmem:[#allocation8 + $0xd8] sm:$0xff]
        %v7190 = vld [vmem:[#allocation8 + $0xe0] sm:$0xff]
        %v7191 = vld [vmem:[#allocation8 + $0xe8] sm:$0xff]
        %v7192 = vld [vmem:[#allocation8 + $0xf0] sm:$0xff]
        %v7193 = vld [vmem:[#allocation8 + $0xf8] sm:$0xff]
        %v7194 = vld [vmem:[#allocation8 + $0x100] sm:$0xff]
        %v7195 = vld [vmem:[#allocation8 + $0x108] sm:$0xff]
        %v7196 = vld [vmem:[#allocation8 + $0x110] sm:$0xff]
        %v7197 = vld [vmem:[#allocation8 + $0x118] sm:$0xff]
        %v7198 = vld [vmem:[#allocation8 + $0x120] sm:$0xff]
        %v7199 = vld [vmem:[#allocation8 + $0x128] sm:$0xff]
        %v7200 = vld [vmem:[#allocation8 + $0x130] sm:$0xff]
        %v7201 = vld [vmem:[#allocation8 + $0x138] sm:$0xff]
        %v7202 = vld [vmem:[#allocation8 + $0x140] sm:$0xff]
        %v7203 = vld [vmem:[#allocation8 + $0x148] sm:$0xff]
        %v7204 = vld [vmem:[#allocation8 + $0x150] sm:$0xff]
        %v7205 = vld [vmem:[#allocation8 + $0x158] sm:$0xff]
        %v7206 = vld [vmem:[#allocation8 + $0x160] sm:$0xff]
        %v7207 = vld [vmem:[#allocation8 + $0x168] sm:$0xff]
        %v7208 = vld [vmem:[#allocation8 + $0x170] sm:$0xff]
        %v7209 = vld [vmem:[#allocation8 + $0x178] sm:$0xff]
        %v7210 = vld [vmem:[#allocation8 + $0x180] sm:$0xff]
        %v7211 = vld [vmem:[#allocation8 + $0x188] sm:$0xff]
        %v7212 = vld [vmem:[#allocation8 + $0x190] sm:$0xff]
        %v7213 = vld [vmem:[#allocation8 + $0x198] sm:$0xff]
        %v7214 = vld [vmem:[#allocation8 + $0x1a0] sm:$0xff]
        %v7215 = vld [vmem:[#allocation8 + $0x1a8] sm:$0xff]
        %v7216 = vld [vmem:[#allocation8 + $0x1b0] sm:$0xff]
        %v7217 = vld [vmem:[#allocation8 + $0x1b8] sm:$0xff]
        %v7218 = vld [vmem:[#allocation8 + $0x1c0] sm:$0xff]
        %v7219 = vld [vmem:[#allocation8 + $0x1c8] sm:$0xff]
        %v7220 = vld [vmem:[#allocation8 + $0x1d0] sm:$0xff]
        %v7221 = vld [vmem:[#allocation8 + $0x1d8] sm:$0xff]
        %v7222 = vld [vmem:[#allocation8 + $0x1e0] sm:$0xff]
        %v7223 = vld [vmem:[#allocation8 + $0x1e8] sm:$0xff]
        %v7224 = vld [vmem:[#allocation8 + $0x1f0] sm:$0xff]
        %v7225 = vld [vmem:[#allocation8 + $0x1f8] sm:$0xff]
        %v7226 = vld [vmem:[#allocation8 + $0x200] sm:$0xff]
        %v7227 = vld [vmem:[#allocation8 + $0x208] sm:$0xff]
        %v7228 = vld [vmem:[#allocation8 + $0x210] sm:$0xff]
        %v7229 = vld [vmem:[#allocation8 + $0x218] sm:$0xff]
        %v7230 = vld [vmem:[#allocation8 + $0x220] sm:$0xff]
        %v7231 = vld [vmem:[#allocation8 + $0x228] sm:$0xff]
        %v7232 = vld [vmem:[#allocation8 + $0x230] sm:$0xff]
        %v7233 = vld [vmem:[#allocation8 + $0x238] sm:$0xff]
        %v7234 = vld [vmem:[#allocation8 + $0x240] sm:$0xff]
        %v7235 = vld [vmem:[#allocation8 + $0x248] sm:$0xff]
        %v7236 = vld [vmem:[#allocation8 + $0x250] sm:$0xff]
        %v7237 = vld [vmem:[#allocation8 + $0x258] sm:$0xff]
        %v7238 = vld [vmem:[#allocation8 + $0x260] sm:$0xff]
        %v7239 = vld [vmem:[#allocation8 + $0x268] sm:$0xff]
        %v7240 = vld [vmem:[#allocation8 + $0x270] sm:$0xff]
        %v7241 = vld [vmem:[#allocation8 + $0x278] sm:$0xff]
        %v7242 = vld [vmem:[#allocation8 + $0x280] sm:$0xff]
        %v7243 = vld [vmem:[#allocation8 + $0x288] sm:$0xff]
        %v7244 = vld [vmem:[#allocation8 + $0x290] sm:$0xff]
        %v7245 = vld [vmem:[#allocation8 + $0x298] sm:$0xff]
        %v7246 = vld [vmem:[#allocation8 + $0x2a0] sm:$0xff]
        %v7247 = vld [vmem:[#allocation8 + $0x2a8] sm:$0xff]
        %v7248 = vld [vmem:[#allocation8 + $0x2b0] sm:$0xff]
        %v7249 = vld [vmem:[#allocation8 + $0x2b8] sm:$0xff]
        %v7250 = vld [vmem:[#allocation8 + $0x2c0] sm:$0xff]
        %v7251 = vld [vmem:[#allocation8 + $0x2c8] sm:$0xff]
        %v7252 = vld [vmem:[#allocation8 + $0x2d0] sm:$0xff]
        %v7253 = vld [vmem:[#allocation8 + $0x2d8] sm:$0xff]
        %v7254 = vld [vmem:[#allocation8 + $0x2e0] sm:$0xff]
        %v7255 = vld [vmem:[#allocation8 + $0x2e8] sm:$0xff]
        %v7256 = vld [vmem:[#allocation8 + $0x2f0] sm:$0xff]
        %v7257 = vld [vmem:[#allocation8 + $0x2f8] sm:$0xff]
        %v7258 = vld [vmem:[#allocation8 + $0x300] sm:$0xff]
        %v7259 = vld [vmem:[#allocation8 + $0x308] sm:$0xff]
        %v7260 = vld [vmem:[#allocation8 + $0x310] sm:$0xff]
        %v7261 = vld [vmem:[#allocation8 + $0x318] sm:$0xff]
        %v7262 = vld [vmem:[#allocation8 + $0x320] sm:$0xff]
        %v7263 = vld [vmem:[#allocation8 + $0x328] sm:$0xff]
        %v7264 = vld [vmem:[#allocation8 + $0x330] sm:$0xff]
        %v7265 = vld [vmem:[#allocation8 + $0x338] sm:$0xff]
        %v7266 = vld [vmem:[#allocation8 + $0x340] sm:$0xff]
        %v7267 = vld [vmem:[#allocation8 + $0x348] sm:$0xff]
        %v7268 = vld [vmem:[#allocation8 + $0x350] sm:$0xff]
        %v7269 = vld [vmem:[#allocation8 + $0x358] sm:$0xff]
        %v7270 = vld [vmem:[#allocation8 + $0x360] sm:$0xff]
        %v7271 = vld [vmem:[#allocation8 + $0x368] sm:$0xff]
        %v7272 = vld [vmem:[#allocation8 + $0x370] sm:$0xff]
        %v7273 = vld [vmem:[#allocation8 + $0x378] sm:$0xff]
        %v7274 = vld [vmem:[#allocation8 + $0x380] sm:$0xff]
        %v7275 = vld [vmem:[#allocation8 + $0x388] sm:$0xff]
        %v7276 = vld [vmem:[#allocation8 + $0x390] sm:$0xff]
        %v7277 = vld [vmem:[#allocation8 + $0x398] sm:$0xff]
        %v7278 = vld [vmem:[#allocation8 + $0x3a0] sm:$0xff]
        %v7279 = vld [vmem:[#allocation8 + $0x3a8] sm:$0xff]
        %v7280 = vld [vmem:[#allocation8 + $0x3b0] sm:$0xff]
        %v7281 = vld [vmem:[#allocation8 + $0x3b8] sm:$0xff]
        %v7282 = vld [vmem:[#allocation8 + $0x3c0] sm:$0xff]
        %v7283 = vld [vmem:[#allocation8 + $0x3c8] sm:$0xff]
        %v7284 = vld [vmem:[#allocation8 + $0x3d0] sm:$0xff]
        %v7285 = vld [vmem:[#allocation8 + $0x3d8] sm:$0xff]
        %v7286 = vld [vmem:[#allocation8 + $0x3e0] sm:$0xff]
        %v7287 = vld [vmem:[#allocation8 + $0x3e8] sm:$0xff]
        %v7288 = vld [vmem:[#allocation8 + $0x3f0] sm:$0xff]
        %v7289 = vld [vmem:[#allocation8 + $0x3f8] sm:$0xff]
        %v7290 = vld [vmem:[#allocation8 + $0x400] sm:$0xff]
        %v7291 = vld [vmem:[#allocation8 + $0x408] sm:$0xff]
        %v7292 = vld [vmem:[#allocation8 + $0x410] sm:$0xff]
        %v7293 = vld [vmem:[#allocation8 + $0x418] sm:$0xff]
        %v7294 = vld [vmem:[#allocation8 + $0x420] sm:$0xff]
        %v7295 = vld [vmem:[#allocation8 + $0x428] sm:$0xff]
        %v7296 = vld [vmem:[#allocation8 + $0x430] sm:$0xff]
        %v7297 = vld [vmem:[#allocation8 + $0x438] sm:$0xff]
        %v7298 = vld [vmem:[#allocation8 + $0x440] sm:$0xff]
        %v7299 = vld [vmem:[#allocation8 + $0x448] sm:$0xff]
        %v7300 = vld [vmem:[#allocation8 + $0x450] sm:$0xff]
        %v7301 = vld [vmem:[#allocation8 + $0x458] sm:$0xff]
        %v7302 = vld [vmem:[#allocation8 + $0x460] sm:$0xff]
        %v7303 = vld [vmem:[#allocation8 + $0x468] sm:$0xff]
        %v7304 = vld [vmem:[#allocation8 + $0x470] sm:$0xff]
        %v7305 = vld [vmem:[#allocation8 + $0x478] sm:$0xff]
        %v7450 = vunpack.c.l.b16 %v7162
        %v7451 = vunpack.c.h.b16 %v7162
        %v7452 = vunpack.c.l.b16 %v7163
        %v7453 = vunpack.c.h.b16 %v7163
        %v7454 = vunpack.c.l.b16 %v7164
        %v7455 = vunpack.c.h.b16 %v7164
        %v7456 = vunpack.c.l.b16 %v7165
        %v7457 = vunpack.c.h.b16 %v7165
        %v7458 = vunpack.c.l.b16 %v7166
        %v7459 = vunpack.c.h.b16 %v7166
        %v7460 = vunpack.c.l.b16 %v7167
        %v7461 = vunpack.c.h.b16 %v7167
        %v7462 = vunpack.c.l.b16 %v7168
        %v7463 = vunpack.c.h.b16 %v7168
        %v7464 = vunpack.c.l.b16 %v7169
        %v7465 = vunpack.c.h.b16 %v7169
        %v7466 = vunpack.c.l.b16 %v7170
        %v7467 = vunpack.c.h.b16 %v7170
        %v7468 = vunpack.c.l.b16 %v7171
        %v7469 = vunpack.c.h.b16 %v7171
        %v7470 = vunpack.c.l.b16 %v7172
        %v7471 = vunpack.c.h.b16 %v7172
        %v7472 = vunpack.c.l.b16 %v7173
        %v7473 = vunpack.c.h.b16 %v7173
        %v7474 = vunpack.c.l.b16 %v7174
        %v7475 = vunpack.c.h.b16 %v7174
        %v7476 = vunpack.c.l.b16 %v7175
        %v7477 = vunpack.c.h.b16 %v7175
        %v7478 = vunpack.c.l.b16 %v7176
        %v7479 = vunpack.c.h.b16 %v7176
        %v7480 = vunpack.c.l.b16 %v7177
        %v7481 = vunpack.c.h.b16 %v7177
        %v7482 = vunpack.c.l.b16 %v7178
        %v7483 = vunpack.c.h.b16 %v7178
        %v7484 = vunpack.c.l.b16 %v7179
        %v7485 = vunpack.c.h.b16 %v7179
        %v7486 = vunpack.c.l.b16 %v7180
        %v7487 = vunpack.c.h.b16 %v7180
        %v7488 = vunpack.c.l.b16 %v7181
        %v7489 = vunpack.c.h.b16 %v7181
        %v7490 = vunpack.c.l.b16 %v7182
        %v7491 = vunpack.c.h.b16 %v7182
        %v7492 = vunpack.c.l.b16 %v7183
        %v7493 = vunpack.c.h.b16 %v7183
        %v7494 = vunpack.c.l.b16 %v7184
        %v7495 = vunpack.c.h.b16 %v7184
        %v7496 = vunpack.c.l.b16 %v7185
        %v7497 = vunpack.c.h.b16 %v7185
        %v7498 = vunpack.c.l.b16 %v7186
        %v7499 = vunpack.c.h.b16 %v7186
        %v7500 = vunpack.c.l.b16 %v7187
        %v7501 = vunpack.c.h.b16 %v7187
        %v7502 = vunpack.c.l.b16 %v7188
        %v7503 = vunpack.c.h.b16 %v7188
        %v7504 = vunpack.c.l.b16 %v7189
        %v7505 = vunpack.c.h.b16 %v7189
        %v7506 = vunpack.c.l.b16 %v7190
        %v7507 = vunpack.c.h.b16 %v7190
        %v7508 = vunpack.c.l.b16 %v7191
        %v7509 = vunpack.c.h.b16 %v7191
        %v7510 = vunpack.c.l.b16 %v7192
        %v7511 = vunpack.c.h.b16 %v7192
        %v7512 = vunpack.c.l.b16 %v7193
        %v7513 = vunpack.c.h.b16 %v7193
        %v7514 = vunpack.c.l.b16 %v7194
        %v7515 = vunpack.c.h.b16 %v7194
        %v7516 = vunpack.c.l.b16 %v7195
        %v7517 = vunpack.c.h.b16 %v7195
        %v7518 = vunpack.c.l.b16 %v7196
        %v7519 = vunpack.c.h.b16 %v7196
        %v7520 = vunpack.c.l.b16 %v7197
        %v7521 = vunpack.c.h.b16 %v7197
        %v7522 = vunpack.c.l.b16 %v7198
        %v7523 = vunpack.c.h.b16 %v7198
        %v7524 = vunpack.c.l.b16 %v7199
        %v7525 = vunpack.c.h.b16 %v7199
        %v7526 = vunpack.c.l.b16 %v7200
        %v7527 = vunpack.c.h.b16 %v7200
        %v7528 = vunpack.c.l.b16 %v7201
        %v7529 = vunpack.c.h.b16 %v7201
        %v7530 = vunpack.c.l.b16 %v7202
        %v7531 = vunpack.c.h.b16 %v7202
        %v7532 = vunpack.c.l.b16 %v7203
        %v7533 = vunpack.c.h.b16 %v7203
        %v7534 = vunpack.c.l.b16 %v7204
        %v7535 = vunpack.c.h.b16 %v7204
        %v7536 = vunpack.c.l.b16 %v7205
        %v7537 = vunpack.c.h.b16 %v7205
        %v7538 = vunpack.c.l.b16 %v7206
        %v7539 = vunpack.c.h.b16 %v7206
        %v7540 = vunpack.c.l.b16 %v7207
        %v7541 = vunpack.c.h.b16 %v7207
        %v7542 = vunpack.c.l.b16 %v7208
        %v7543 = vunpack.c.h.b16 %v7208
        %v7544 = vunpack.c.l.b16 %v7209
        %v7545 = vunpack.c.h.b16 %v7209
        %v7546 = vunpack.c.l.b16 %v7210
        %v7547 = vunpack.c.h.b16 %v7210
        %v7548 = vunpack.c.l.b16 %v7211
        %v7549 = vunpack.c.h.b16 %v7211
        %v7550 = vunpack.c.l.b16 %v7212
        %v7551 = vunpack.c.h.b16 %v7212
        %v7552 = vunpack.c.l.b16 %v7213
        %v7553 = vunpack.c.h.b16 %v7213
        %v7554 = vunpack.c.l.b16 %v7214
        %v7555 = vunpack.c.h.b16 %v7214
        %v7556 = vunpack.c.l.b16 %v7215
        %v7557 = vunpack.c.h.b16 %v7215
        %v7558 = vunpack.c.l.b16 %v7216
        %v7559 = vunpack.c.h.b16 %v7216
        %v7560 = vunpack.c.l.b16 %v7217
        %v7561 = vunpack.c.h.b16 %v7217
        %v7562 = vunpack.c.l.b16 %v7218
        %v7563 = vunpack.c.h.b16 %v7218
        %v7564 = vunpack.c.l.b16 %v7219
        %v7565 = vunpack.c.h.b16 %v7219
        %v7566 = vunpack.c.l.b16 %v7220
        %v7567 = vunpack.c.h.b16 %v7220
        %v7568 = vunpack.c.l.b16 %v7221
        %v7569 = vunpack.c.h.b16 %v7221
        %v7570 = vunpack.c.l.b16 %v7222
        %v7571 = vunpack.c.h.b16 %v7222
        %v7572 = vunpack.c.l.b16 %v7223
        %v7573 = vunpack.c.h.b16 %v7223
        %v7574 = vunpack.c.l.b16 %v7224
        %v7575 = vunpack.c.h.b16 %v7224
        %v7576 = vunpack.c.l.b16 %v7225
        %v7577 = vunpack.c.h.b16 %v7225
        %v7578 = vunpack.c.l.b16 %v7226
        %v7579 = vunpack.c.h.b16 %v7226
        %v7580 = vunpack.c.l.b16 %v7227
        %v7581 = vunpack.c.h.b16 %v7227
        %v7582 = vunpack.c.l.b16 %v7228
        %v7583 = vunpack.c.h.b16 %v7228
        %v7584 = vunpack.c.l.b16 %v7229
        %v7585 = vunpack.c.h.b16 %v7229
        %v7586 = vunpack.c.l.b16 %v7230
        %v7587 = vunpack.c.h.b16 %v7230
        %v7588 = vunpack.c.l.b16 %v7231
        %v7589 = vunpack.c.h.b16 %v7231
        %v7590 = vunpack.c.l.b16 %v7232
        %v7591 = vunpack.c.h.b16 %v7232
        %v7592 = vunpack.c.l.b16 %v7233
        %v7593 = vunpack.c.h.b16 %v7233
        %v7594 = vunpack.c.l.b16 %v7234
        %v7595 = vunpack.c.h.b16 %v7234
        %v7596 = vunpack.c.l.b16 %v7235
        %v7597 = vunpack.c.h.b16 %v7235
        %v7598 = vunpack.c.l.b16 %v7236
        %v7599 = vunpack.c.h.b16 %v7236
        %v7600 = vunpack.c.l.b16 %v7237
        %v7601 = vunpack.c.h.b16 %v7237
        %v7602 = vunpack.c.l.b16 %v7238
        %v7603 = vunpack.c.h.b16 %v7238
        %v7604 = vunpack.c.l.b16 %v7239
        %v7605 = vunpack.c.h.b16 %v7239
        %v7606 = vunpack.c.l.b16 %v7240
        %v7607 = vunpack.c.h.b16 %v7240
        %v7608 = vunpack.c.l.b16 %v7241
        %v7609 = vunpack.c.h.b16 %v7241
        %v7610 = vunpack.c.l.b16 %v7242
        %v7611 = vunpack.c.h.b16 %v7242
        %v7612 = vunpack.c.l.b16 %v7243
        %v7613 = vunpack.c.h.b16 %v7243
        %v7614 = vunpack.c.l.b16 %v7244
        %v7615 = vunpack.c.h.b16 %v7244
        %v7616 = vunpack.c.l.b16 %v7245
        %v7617 = vunpack.c.h.b16 %v7245
        %v7618 = vunpack.c.l.b16 %v7246
        %v7619 = vunpack.c.h.b16 %v7246
        %v7620 = vunpack.c.l.b16 %v7247
        %v7621 = vunpack.c.h.b16 %v7247
        %v7622 = vunpack.c.l.b16 %v7248
        %v7623 = vunpack.c.h.b16 %v7248
        %v7624 = vunpack.c.l.b16 %v7249
        %v7625 = vunpack.c.h.b16 %v7249
        %v7626 = vunpack.c.l.b16 %v7250
        %v7627 = vunpack.c.h.b16 %v7250
        %v7628 = vunpack.c.l.b16 %v7251
        %v7629 = vunpack.c.h.b16 %v7251
        %v7630 = vunpack.c.l.b16 %v7252
        %v7631 = vunpack.c.h.b16 %v7252
        %v7632 = vunpack.c.l.b16 %v7253
        %v7633 = vunpack.c.h.b16 %v7253
        %v7634 = vunpack.c.l.b16 %v7254
        %v7635 = vunpack.c.h.b16 %v7254
        %v7636 = vunpack.c.l.b16 %v7255
        %v7637 = vunpack.c.h.b16 %v7255
        %v7638 = vunpack.c.l.b16 %v7256
        %v7639 = vunpack.c.h.b16 %v7256
        %v7640 = vunpack.c.l.b16 %v7257
        %v7641 = vunpack.c.h.b16 %v7257
        %v7642 = vunpack.c.l.b16 %v7258
        %v7643 = vunpack.c.h.b16 %v7258
        %v7644 = vunpack.c.l.b16 %v7259
        %v7645 = vunpack.c.h.b16 %v7259
        %v7646 = vunpack.c.l.b16 %v7260
        %v7647 = vunpack.c.h.b16 %v7260
        %v7648 = vunpack.c.l.b16 %v7261
        %v7649 = vunpack.c.h.b16 %v7261
        %v7650 = vunpack.c.l.b16 %v7262
        %v7651 = vunpack.c.h.b16 %v7262
        %v7652 = vunpack.c.l.b16 %v7263
        %v7653 = vunpack.c.h.b16 %v7263
        %v7654 = vunpack.c.l.b16 %v7264
        %v7655 = vunpack.c.h.b16 %v7264
        %v7656 = vunpack.c.l.b16 %v7265
        %v7657 = vunpack.c.h.b16 %v7265
        %v7658 = vunpack.c.l.b16 %v7266
        %v7659 = vunpack.c.h.b16 %v7266
        %v7660 = vunpack.c.l.b16 %v7267
        %v7661 = vunpack.c.h.b16 %v7267
        %v7662 = vunpack.c.l.b16 %v7268
        %v7663 = vunpack.c.h.b16 %v7268
        %v7664 = vunpack.c.l.b16 %v7269
        %v7665 = vunpack.c.h.b16 %v7269
        %v7666 = vunpack.c.l.b16 %v7270
        %v7667 = vunpack.c.h.b16 %v7270
        %v7668 = vunpack.c.l.b16 %v7271
        %v7669 = vunpack.c.h.b16 %v7271
        %v7670 = vunpack.c.l.b16 %v7272
        %v7671 = vunpack.c.h.b16 %v7272
        %v7672 = vunpack.c.l.b16 %v7273
        %v7673 = vunpack.c.h.b16 %v7273
        %v7674 = vunpack.c.l.b16 %v7274
        %v7675 = vunpack.c.h.b16 %v7274
        %v7676 = vunpack.c.l.b16 %v7275
        %v7677 = vunpack.c.h.b16 %v7275
        %v7678 = vunpack.c.l.b16 %v7276
        %v7679 = vunpack.c.h.b16 %v7276
        %v7680 = vunpack.c.l.b16 %v7277
        %v7681 = vunpack.c.h.b16 %v7277
        %v7682 = vunpack.c.l.b16 %v7278
        %v7683 = vunpack.c.h.b16 %v7278
        %v7684 = vunpack.c.l.b16 %v7279
        %v7685 = vunpack.c.h.b16 %v7279
        %v7686 = vunpack.c.l.b16 %v7280
        %v7687 = vunpack.c.h.b16 %v7280
        %v7688 = vunpack.c.l.b16 %v7281
        %v7689 = vunpack.c.h.b16 %v7281
        %v7690 = vunpack.c.l.b16 %v7282
        %v7691 = vunpack.c.h.b16 %v7282
        %v7692 = vunpack.c.l.b16 %v7283
        %v7693 = vunpack.c.h.b16 %v7283
        %v7694 = vunpack.c.l.b16 %v7284
        %v7695 = vunpack.c.h.b16 %v7284
        %v7696 = vunpack.c.l.b16 %v7285
        %v7697 = vunpack.c.h.b16 %v7285
        %v7698 = vunpack.c.l.b16 %v7286
        %v7699 = vunpack.c.h.b16 %v7286
        %v7700 = vunpack.c.l.b16 %v7287
        %v7701 = vunpack.c.h.b16 %v7287
        %v7702 = vunpack.c.l.b16 %v7288
        %v7703 = vunpack.c.h.b16 %v7288
        %v7704 = vunpack.c.l.b16 %v7289
        %v7705 = vunpack.c.h.b16 %v7289
        %v7706 = vunpack.c.l.b16 %v7290
        %v7707 = vunpack.c.h.b16 %v7290
        %v7708 = vunpack.c.l.b16 %v7291
        %v7709 = vunpack.c.h.b16 %v7291
        %v7710 = vunpack.c.l.b16 %v7292
        %v7711 = vunpack.c.h.b16 %v7292
        %v7712 = vunpack.c.l.b16 %v7293
        %v7713 = vunpack.c.h.b16 %v7293
        %v7714 = vunpack.c.l.b16 %v7294
        %v7715 = vunpack.c.h.b16 %v7294
        %v7716 = vunpack.c.l.b16 %v7295
        %v7717 = vunpack.c.h.b16 %v7295
        %v7718 = vunpack.c.l.b16 %v7296
        %v7719 = vunpack.c.h.b16 %v7296
        %v7720 = vunpack.c.l.b16 %v7297
        %v7721 = vunpack.c.h.b16 %v7297
        %v7722 = vunpack.c.l.b16 %v7298
        %v7723 = vunpack.c.h.b16 %v7298
        %v7724 = vunpack.c.l.b16 %v7299
        %v7725 = vunpack.c.h.b16 %v7299
        %v7726 = vunpack.c.l.b16 %v7300
        %v7727 = vunpack.c.h.b16 %v7300
        %v7728 = vunpack.c.l.b16 %v7301
        %v7729 = vunpack.c.h.b16 %v7301
        %v7730 = vunpack.c.l.b16 %v7302
        %v7731 = vunpack.c.h.b16 %v7302
        %v7732 = vunpack.c.l.b16 %v7303
        %v7733 = vunpack.c.h.b16 %v7303
        %v7734 = vunpack.c.l.b16 %v7304
        %v7735 = vunpack.c.h.b16 %v7304
        %v7736 = vunpack.c.l.b16 %v7305
        %v7737 = vunpack.c.h.b16 %v7305
        %v7738 = vpack.c.b16 %v7468, %v7450
        %v7739 = vpack.c.b16 %v7469, %v7451
        %v7740 = vpack.c.b16 %v7470, %v7452
        %v7741 = vpack.c.b16 %v7471, %v7453
        %v7742 = vpack.c.b16 %v7472, %v7454
        %v7743 = vpack.c.b16 %v7473, %v7455
        %v7744 = vpack.c.b16 %v7474, %v7456
        %v7745 = vpack.c.b16 %v7475, %v7457
        %v7746 = vpack.c.b16 %v7476, %v7458
        %v7747 = vpack.c.b16 %v7477, %v7459
        %v7748 = vpack.c.b16 %v7478, %v7460
        %v7749 = vpack.c.b16 %v7479, %v7461
        %v7750 = vpack.c.b16 %v7480, %v7462
        %v7751 = vpack.c.b16 %v7481, %v7463
        %v7752 = vpack.c.b16 %v7482, %v7464
        %v7753 = vpack.c.b16 %v7483, %v7465
        %v7754 = vpack.c.b16 %v7484, %v7466
        %v7755 = vpack.c.b16 %v7485, %v7467
        %v7756 = vpack.c.b16 %v7504, %v7486
        %v7757 = vpack.c.b16 %v7505, %v7487
        %v7758 = vpack.c.b16 %v7506, %v7488
        %v7759 = vpack.c.b16 %v7507, %v7489
        %v7760 = vpack.c.b16 %v7508, %v7490
        %v7761 = vpack.c.b16 %v7509, %v7491
        %v7762 = vpack.c.b16 %v7510, %v7492
        %v7763 = vpack.c.b16 %v7511, %v7493
        %v7764 = vpack.c.b16 %v7512, %v7494
        %v7765 = vpack.c.b16 %v7513, %v7495
        %v7766 = vpack.c.b16 %v7514, %v7496
        %v7767 = vpack.c.b16 %v7515, %v7497
        %v7768 = vpack.c.b16 %v7516, %v7498
        %v7769 = vpack.c.b16 %v7517, %v7499
        %v7770 = vpack.c.b16 %v7518, %v7500
        %v7771 = vpack.c.b16 %v7519, %v7501
        %v7772 = vpack.c.b16 %v7520, %v7502
        %v7773 = vpack.c.b16 %v7521, %v7503
        %v7774 = vpack.c.b16 %v7540, %v7522
        %v7775 = vpack.c.b16 %v7541, %v7523
        %v7776 = vpack.c.b16 %v7542, %v7524
        %v7777 = vpack.c.b16 %v7543, %v7525
        %v7778 = vpack.c.b16 %v7544, %v7526
        %v7779 = vpack.c.b16 %v7545, %v7527
        %v7780 = vpack.c.b16 %v7546, %v7528
        %v7781 = vpack.c.b16 %v7547, %v7529
        %v7782 = vpack.c.b16 %v7548, %v7530
        %v7783 = vpack.c.b16 %v7549, %v7531
        %v7784 = vpack.c.b16 %v7550, %v7532
        %v7785 = vpack.c.b16 %v7551, %v7533
        %v7786 = vpack.c.b16 %v7552, %v7534
        %v7787 = vpack.c.b16 %v7553, %v7535
        %v7788 = vpack.c.b16 %v7554, %v7536
        %v7789 = vpack.c.b16 %v7555, %v7537
        %v7790 = vpack.c.b16 %v7556, %v7538
        %v7791 = vpack.c.b16 %v7557, %v7539
        %v7792 = vpack.c.b16 %v7576, %v7558
        %v7793 = vpack.c.b16 %v7577, %v7559
        %v7794 = vpack.c.b16 %v7578, %v7560
        %v7795 = vpack.c.b16 %v7579, %v7561
        %v7796 = vpack.c.b16 %v7580, %v7562
        %v7797 = vpack.c.b16 %v7581, %v7563
        %v7798 = vpack.c.b16 %v7582, %v7564
        %v7799 = vpack.c.b16 %v7583, %v7565
        %v7800 = vpack.c.b16 %v7584, %v7566
        %v7801 = vpack.c.b16 %v7585, %v7567
        %v7802 = vpack.c.b16 %v7586, %v7568
        %v7803 = vpack.c.b16 %v7587, %v7569
        %v7804 = vpack.c.b16 %v7588, %v7570
        %v7805 = vpack.c.b16 %v7589, %v7571
        %v7806 = vpack.c.b16 %v7590, %v7572
        %v7807 = vpack.c.b16 %v7591, %v7573
        %v7808 = vpack.c.b16 %v7592, %v7574
        %v7809 = vpack.c.b16 %v7593, %v7575
        %v7810 = vpack.c.b16 %v7612, %v7594
        %v7811 = vpack.c.b16 %v7613, %v7595
        %v7812 = vpack.c.b16 %v7614, %v7596
        %v7813 = vpack.c.b16 %v7615, %v7597
        %v7814 = vpack.c.b16 %v7616, %v7598
        %v7815 = vpack.c.b16 %v7617, %v7599
        %v7816 = vpack.c.b16 %v7618, %v7600
        %v7817 = vpack.c.b16 %v7619, %v7601
        %v7818 = vpack.c.b16 %v7620, %v7602
        %v7819 = vpack.c.b16 %v7621, %v7603
        %v7820 = vpack.c.b16 %v7622, %v7604
        %v7821 = vpack.c.b16 %v7623, %v7605
        %v7822 = vpack.c.b16 %v7624, %v7606
        %v7823 = vpack.c.b16 %v7625, %v7607
        %v7824 = vpack.c.b16 %v7626, %v7608
        %v7825 = vpack.c.b16 %v7627, %v7609
        %v7826 = vpack.c.b16 %v7628, %v7610
        %v7827 = vpack.c.b16 %v7629, %v7611
        %v7828 = vpack.c.b16 %v7648, %v7630
        %v7829 = vpack.c.b16 %v7649, %v7631
        %v7830 = vpack.c.b16 %v7650, %v7632
        %v7831 = vpack.c.b16 %v7651, %v7633
        %v7832 = vpack.c.b16 %v7652, %v7634
        %v7833 = vpack.c.b16 %v7653, %v7635
        %v7834 = vpack.c.b16 %v7654, %v7636
        %v7835 = vpack.c.b16 %v7655, %v7637
        %v7836 = vpack.c.b16 %v7656, %v7638
        %v7837 = vpack.c.b16 %v7657, %v7639
        %v7838 = vpack.c.b16 %v7658, %v7640
        %v7839 = vpack.c.b16 %v7659, %v7641
        %v7840 = vpack.c.b16 %v7660, %v7642
        %v7841 = vpack.c.b16 %v7661, %v7643
        %v7842 = vpack.c.b16 %v7662, %v7644
        %v7843 = vpack.c.b16 %v7663, %v7645
        %v7844 = vpack.c.b16 %v7664, %v7646
        %v7845 = vpack.c.b16 %v7665, %v7647
        %v7846 = vpack.c.b16 %v7684, %v7666
        %v7847 = vpack.c.b16 %v7685, %v7667
        %v7848 = vpack.c.b16 %v7686, %v7668
        %v7849 = vpack.c.b16 %v7687, %v7669
        %v7850 = vpack.c.b16 %v7688, %v7670
        %v7851 = vpack.c.b16 %v7689, %v7671
        %v7852 = vpack.c.b16 %v7690, %v7672
        %v7853 = vpack.c.b16 %v7691, %v7673
        %v7854 = vpack.c.b16 %v7692, %v7674
        %v7855 = vpack.c.b16 %v7693, %v7675
        %v7856 = vpack.c.b16 %v7694, %v7676
        %v7857 = vpack.c.b16 %v7695, %v7677
        %v7858 = vpack.c.b16 %v7696, %v7678
        %v7859 = vpack.c.b16 %v7697, %v7679
        %v7860 = vpack.c.b16 %v7698, %v7680
        %v7861 = vpack.c.b16 %v7699, %v7681
        %v7862 = vpack.c.b16 %v7700, %v7682
        %v7863 = vpack.c.b16 %v7701, %v7683
        %v7864 = vpack.c.b16 %v7720, %v7702
        %v7865 = vpack.c.b16 %v7721, %v7703
        %v7866 = vpack.c.b16 %v7722, %v7704
        %v7867 = vpack.c.b16 %v7723, %v7705
        %v7868 = vpack.c.b16 %v7724, %v7706
        %v7869 = vpack.c.b16 %v7725, %v7707
        %v7870 = vpack.c.b16 %v7726, %v7708
        %v7871 = vpack.c.b16 %v7727, %v7709
        %v7872 = vpack.c.b16 %v7728, %v7710
        %v7873 = vpack.c.b16 %v7729, %v7711
        %v7874 = vpack.c.b16 %v7730, %v7712
        %v7875 = vpack.c.b16 %v7731, %v7713
        %v7876 = vpack.c.b16 %v7732, %v7714
        %v7877 = vpack.c.b16 %v7733, %v7715
        %v7878 = vpack.c.b16 %v7734, %v7716
        %v7879 = vpack.c.b16 %v7735, %v7717
        %v7880 = vpack.c.b16 %v7736, %v7718
        %v7881 = vpack.c.b16 %v7737, %v7719
        %8026 = vmatpush.bf16.msra.mxu0 %v7864
        %8027 = vmatpush.bf16.msra.mxu0 %v7846
        %8028 = vmatpush.bf16.msra.mxu0 %v7828
        %8029 = vmatpush.bf16.msra.mxu0 %v7810
        %8030 = vmatpush.bf16.msra.mxu0 %v7792
        %8031 = vmatpush.bf16.msra.mxu0 %v7774
        %8032 = vmatpush.bf16.msra.mxu0 %v7756
        %8033 = vmatpush.bf16.msra.mxu0 %v7738
        %8034 = vmatmul.bf16.gmra.mxu0 %v7161
        %v8035 = vpop.f32.mrf.mxu0
        %v8036 = vadd.f32 0.0, %v8035
        %v8037 = vpop.f32.mrf.mxu0
        %v8038 = vadd.f32 0.0, %v8037
        %8039 = vdwg.mxu0
        %8040 = vmatpush.bf16.msra.mxu0 %v7865
        %8041 = vmatpush.bf16.msra.mxu0 %v7847
        %8042 = vmatpush.bf16.msra.mxu0 %v7829
        %8043 = vmatpush.bf16.msra.mxu0 %v7811
        %8044 = vmatpush.bf16.msra.mxu0 %v7793
        %8045 = vmatpush.bf16.msra.mxu0 %v7775
        %8046 = vmatpush.bf16.msra.mxu0 %v7757
        %8047 = vmatpush.bf16.msra.mxu0 %v7739
        %8048 = vmatmul.bf16.gmra.mxu0 %v7161
        %v8049 = vpop.f32.mrf.mxu0
        %v8050 = vadd.f32 0.0, %v8049
        %v8051 = vpop.f32.mrf.mxu0
        %v8052 = vadd.f32 0.0, %v8051
        %8053 = vdwg.mxu0
        %8054 = vmatpush.bf16.msra.mxu0 %v7866
        %8055 = vmatpush.bf16.msra.mxu0 %v7848
        %8056 = vmatpush.bf16.msra.mxu0 %v7830
        %8057 = vmatpush.bf16.msra.mxu0 %v7812
        %8058 = vmatpush.bf16.msra.mxu0 %v7794
        %8059 = vmatpush.bf16.msra.mxu0 %v7776
        %8060 = vmatpush.bf16.msra.mxu0 %v7758
        %8061 = vmatpush.bf16.msra.mxu0 %v7740
        %8062 = vmatmul.bf16.gmra.mxu0 %v7161
        %v8063 = vpop.f32.mrf.mxu0
        %v8064 = vadd.f32 0.0, %v8063
        %v8065 = vpop.f32.mrf.mxu0
        %v8066 = vadd.f32 0.0, %v8065
        %8067 = vdwg.mxu0
        %8068 = vmatpush.bf16.msra.mxu0 %v7867
        %8069 = vmatpush.bf16.msra.mxu0 %v7849
        %8070 = vmatpush.bf16.msra.mxu0 %v7831
        %8071 = vmatpush.bf16.msra.mxu0 %v7813
        %8072 = vmatpush.bf16.msra.mxu0 %v7795
        %8073 = vmatpush.bf16.msra.mxu0 %v7777
        %8074 = vmatpush.bf16.msra.mxu0 %v7759
        %8075 = vmatpush.bf16.msra.mxu0 %v7741
        %8076 = vmatmul.bf16.gmra.mxu0 %v7161
        %v8077 = vpop.f32.mrf.mxu0
        %v8078 = vadd.f32 0.0, %v8077
        %v8079 = vpop.f32.mrf.mxu0
        %v8080 = vadd.f32 0.0, %v8079
        %8081 = vdwg.mxu0
        %8082 = vmatpush.bf16.msra.mxu0 %v7868
        %8083 = vmatpush.bf16.msra.mxu0 %v7850
        %8084 = vmatpush.bf16.msra.mxu0 %v7832
        %8085 = vmatpush.bf16.msra.mxu0 %v7814
        %8086 = vmatpush.bf16.msra.mxu0 %v7796
        %8087 = vmatpush.bf16.msra.mxu0 %v7778
        %8088 = vmatpush.bf16.msra.mxu0 %v7760
        %8089 = vmatpush.bf16.msra.mxu0 %v7742
        %8090 = vmatmul.bf16.gmra.mxu0 %v7161
        %v8091 = vpop.f32.mrf.mxu0
        %v8092 = vadd.f32 0.0, %v8091
        %v8093 = vpop.f32.mrf.mxu0
        %v8094 = vadd.f32 0.0, %v8093
        %8095 = vdwg.mxu0
        %8096 = vmatpush.bf16.msra.mxu0 %v7869
        %8097 = vmatpush.bf16.msra.mxu0 %v7851
        %8098 = vmatpush.bf16.msra.mxu0 %v7833
        %8099 = vmatpush.bf16.msra.mxu0 %v7815
        %8100 = vmatpush.bf16.msra.mxu0 %v7797
        %8101 = vmatpush.bf16.msra.mxu0 %v7779
        %8102 = vmatpush.bf16.msra.mxu0 %v7761
        %8103 = vmatpush.bf16.msra.mxu0 %v7743
        %8104 = vmatmul.bf16.gmra.mxu0 %v7161
        %v8105 = vpop.f32.mrf.mxu0
        %v8106 = vadd.f32 0.0, %v8105
        %v8107 = vpop.f32.mrf.mxu0
        %v8108 = vadd.f32 0.0, %v8107
        %8109 = vdwg.mxu0
        %8110 = vmatpush.bf16.msra.mxu0 %v7870
        %8111 = vmatpush.bf16.msra.mxu0 %v7852
        %8112 = vmatpush.bf16.msra.mxu0 %v7834
        %8113 = vmatpush.bf16.msra.mxu0 %v7816
        %8114 = vmatpush.bf16.msra.mxu0 %v7798
        %8115 = vmatpush.bf16.msra.mxu0 %v7780
        %8116 = vmatpush.bf16.msra.mxu0 %v7762
        %8117 = vmatpush.bf16.msra.mxu0 %v7744
        %8118 = vmatmul.bf16.gmra.mxu0 %v7161
        %v8119 = vpop.f32.mrf.mxu0
        %v8120 = vadd.f32 0.0, %v8119
        %v8121 = vpop.f32.mrf.mxu0
        %v8122 = vadd.f32 0.0, %v8121
        %8123 = vdwg.mxu0
        %8124 = vmatpush.bf16.msra.mxu0 %v7871
        %8125 = vmatpush.bf16.msra.mxu0 %v7853
        %8126 = vmatpush.bf16.msra.mxu0 %v7835
        %8127 = vmatpush.bf16.msra.mxu0 %v7817
        %8128 = vmatpush.bf16.msra.mxu0 %v7799
        %8129 = vmatpush.bf16.msra.mxu0 %v7781
        %8130 = vmatpush.bf16.msra.mxu0 %v7763
        %8131 = vmatpush.bf16.msra.mxu0 %v7745
        %8132 = vmatmul.bf16.gmra.mxu0 %v7161
        %v8133 = vpop.f32.mrf.mxu0
        %v8134 = vadd.f32 0.0, %v8133
        %v8135 = vpop.f32.mrf.mxu0
        %v8136 = vadd.f32 0.0, %v8135
        %8137 = vdwg.mxu0
        %8138 = vmatpush.bf16.msra.mxu0 %v7872
        %8139 = vmatpush.bf16.msra.mxu0 %v7854
        %8140 = vmatpush.bf16.msra.mxu0 %v7836
        %8141 = vmatpush.bf16.msra.mxu0 %v7818
        %8142 = vmatpush.bf16.msra.mxu0 %v7800
        %8143 = vmatpush.bf16.msra.mxu0 %v7782
        %8144 = vmatpush.bf16.msra.mxu0 %v7764
        %8145 = vmatpush.bf16.msra.mxu0 %v7746
        %8146 = vmatmul.bf16.gmra.mxu0 %v7161
        %v8147 = vpop.f32.mrf.mxu0
        %v8148 = vadd.f32 0.0, %v8147
        %v8149 = vpop.f32.mrf.mxu0
        %v8150 = vadd.f32 0.0, %v8149
        %8151 = vdwg.mxu0
        %8152 = vmatpush.bf16.msra.mxu0 %v7873
        %8153 = vmatpush.bf16.msra.mxu0 %v7855
        %8154 = vmatpush.bf16.msra.mxu0 %v7837
        %8155 = vmatpush.bf16.msra.mxu0 %v7819
        %8156 = vmatpush.bf16.msra.mxu0 %v7801
        %8157 = vmatpush.bf16.msra.mxu0 %v7783
        %8158 = vmatpush.bf16.msra.mxu0 %v7765
        %8159 = vmatpush.bf16.msra.mxu0 %v7747
        %8160 = vmatmul.bf16.gmra.mxu0 %v7161
        %v8161 = vpop.f32.mrf.mxu0
        %v8162 = vadd.f32 0.0, %v8161
        %v8163 = vpop.f32.mrf.mxu0
        %v8164 = vadd.f32 0.0, %v8163
        %8165 = vdwg.mxu0
        %8166 = vmatpush.bf16.msra.mxu0 %v7874
        %8167 = vmatpush.bf16.msra.mxu0 %v7856
        %8168 = vmatpush.bf16.msra.mxu0 %v7838
        %8169 = vmatpush.bf16.msra.mxu0 %v7820
        %8170 = vmatpush.bf16.msra.mxu0 %v7802
        %8171 = vmatpush.bf16.msra.mxu0 %v7784
        %8172 = vmatpush.bf16.msra.mxu0 %v7766
        %8173 = vmatpush.bf16.msra.mxu0 %v7748
        %8174 = vmatmul.bf16.gmra.mxu0 %v7161
        %v8175 = vpop.f32.mrf.mxu0
        %v8176 = vadd.f32 0.0, %v8175
        %v8177 = vpop.f32.mrf.mxu0
        %v8178 = vadd.f32 0.0, %v8177
        %8179 = vdwg.mxu0
        %8180 = vmatpush.bf16.msra.mxu0 %v7875
        %8181 = vmatpush.bf16.msra.mxu0 %v7857
        %8182 = vmatpush.bf16.msra.mxu0 %v7839
        %8183 = vmatpush.bf16.msra.mxu0 %v7821
        %8184 = vmatpush.bf16.msra.mxu0 %v7803
        %8185 = vmatpush.bf16.msra.mxu0 %v7785
        %8186 = vmatpush.bf16.msra.mxu0 %v7767
        %8187 = vmatpush.bf16.msra.mxu0 %v7749
        %8188 = vmatmul.bf16.gmra.mxu0 %v7161
        %v8189 = vpop.f32.mrf.mxu0
        %v8190 = vadd.f32 0.0, %v8189
        %v8191 = vpop.f32.mrf.mxu0
        %v8192 = vadd.f32 0.0, %v8191
        %8193 = vdwg.mxu0
        %8194 = vmatpush.bf16.msra.mxu0 %v7876
        %8195 = vmatpush.bf16.msra.mxu0 %v7858
        %8196 = vmatpush.bf16.msra.mxu0 %v7840
        %8197 = vmatpush.bf16.msra.mxu0 %v7822
        %8198 = vmatpush.bf16.msra.mxu0 %v7804
        %8199 = vmatpush.bf16.msra.mxu0 %v7786
        %8200 = vmatpush.bf16.msra.mxu0 %v7768
        %8201 = vmatpush.bf16.msra.mxu0 %v7750
        %8202 = vmatmul.bf16.gmra.mxu0 %v7161
        %v8203 = vpop.f32.mrf.mxu0
        %v8204 = vadd.f32 0.0, %v8203
        %v8205 = vpop.f32.mrf.mxu0
        %v8206 = vadd.f32 0.0, %v8205
        %8207 = vdwg.mxu0
        %8208 = vmatpush.bf16.msra.mxu0 %v7877
        %8209 = vmatpush.bf16.msra.mxu0 %v7859
        %8210 = vmatpush.bf16.msra.mxu0 %v7841
        %8211 = vmatpush.bf16.msra.mxu0 %v7823
        %8212 = vmatpush.bf16.msra.mxu0 %v7805
        %8213 = vmatpush.bf16.msra.mxu0 %v7787
        %8214 = vmatpush.bf16.msra.mxu0 %v7769
        %8215 = vmatpush.bf16.msra.mxu0 %v7751
        %8216 = vmatmul.bf16.gmra.mxu0 %v7161
        %v8217 = vpop.f32.mrf.mxu0
        %v8218 = vadd.f32 0.0, %v8217
        %v8219 = vpop.f32.mrf.mxu0
        %v8220 = vadd.f32 0.0, %v8219
        %8221 = vdwg.mxu0
        %8222 = vmatpush.bf16.msra.mxu0 %v7878
        %8223 = vmatpush.bf16.msra.mxu0 %v7860
        %8224 = vmatpush.bf16.msra.mxu0 %v7842
        %8225 = vmatpush.bf16.msra.mxu0 %v7824
        %8226 = vmatpush.bf16.msra.mxu0 %v7806
        %8227 = vmatpush.bf16.msra.mxu0 %v7788
        %8228 = vmatpush.bf16.msra.mxu0 %v7770
        %8229 = vmatpush.bf16.msra.mxu0 %v7752
        %8230 = vmatmul.bf16.gmra.mxu0 %v7161
        %v8231 = vpop.f32.mrf.mxu0
        %v8232 = vadd.f32 0.0, %v8231
        %v8233 = vpop.f32.mrf.mxu0
        %v8234 = vadd.f32 0.0, %v8233
        %8235 = vdwg.mxu0
        %8236 = vmatpush.bf16.msra.mxu0 %v7879
        %8237 = vmatpush.bf16.msra.mxu0 %v7861
        %8238 = vmatpush.bf16.msra.mxu0 %v7843
        %8239 = vmatpush.bf16.msra.mxu0 %v7825
        %8240 = vmatpush.bf16.msra.mxu0 %v7807
        %8241 = vmatpush.bf16.msra.mxu0 %v7789
        %8242 = vmatpush.bf16.msra.mxu0 %v7771
        %8243 = vmatpush.bf16.msra.mxu0 %v7753
        %8244 = vmatmul.bf16.gmra.mxu0 %v7161
        %v8245 = vpop.f32.mrf.mxu0
        %v8246 = vadd.f32 0.0, %v8245
        %v8247 = vpop.f32.mrf.mxu0
        %v8248 = vadd.f32 0.0, %v8247
        %8249 = vdwg.mxu0
        %8250 = vmatpush.bf16.msra.mxu0 %v7880
        %8251 = vmatpush.bf16.msra.mxu0 %v7862
        %8252 = vmatpush.bf16.msra.mxu0 %v7844
        %8253 = vmatpush.bf16.msra.mxu0 %v7826
        %8254 = vmatpush.bf16.msra.mxu0 %v7808
        %8255 = vmatpush.bf16.msra.mxu0 %v7790
        %8256 = vmatpush.bf16.msra.mxu0 %v7772
        %8257 = vmatpush.bf16.msra.mxu0 %v7754
        %8258 = vmatmul.bf16.gmra.mxu0 %v7161
        %v8259 = vpop.f32.mrf.mxu0
        %v8260 = vadd.f32 0.0, %v8259
        %v8261 = vpop.f32.mrf.mxu0
        %v8262 = vadd.f32 0.0, %v8261
        %8263 = vdwg.mxu0
        %8264 = vmatpush.bf16.msra.mxu0 %v7881
        %8265 = vmatpush.bf16.msra.mxu0 %v7863
        %8266 = vmatpush.bf16.msra.mxu0 %v7845
        %8267 = vmatpush.bf16.msra.mxu0 %v7827
        %8268 = vmatpush.bf16.msra.mxu0 %v7809
        %8269 = vmatpush.bf16.msra.mxu0 %v7791
        %8270 = vmatpush.bf16.msra.mxu0 %v7773
        %8271 = vmatpush.bf16.msra.mxu0 %v7755
        %8272 = vmatmul.bf16.gmra.mxu0 %v7161
        %v8273 = vpop.f32.mrf.mxu0
        %v8274 = vadd.f32 0.0, %v8273
        %v8275 = vpop.f32.mrf.mxu0
        %v8276 = vadd.f32 0.0, %v8275
        %8277 = vdwg.mxu0
        %v8278 = vpack.c.bf16 %v8038, %v8036
        %v8279 = vpack.c.bf16 %v8052, %v8050
        %v8280 = vpack.c.bf16 %v8066, %v8064
        %v8281 = vpack.c.bf16 %v8080, %v8078
        %v8282 = vpack.c.bf16 %v8094, %v8092
        %v8283 = vpack.c.bf16 %v8108, %v8106
        %v8284 = vpack.c.bf16 %v8122, %v8120
        %v8285 = vpack.c.bf16 %v8136, %v8134
        %v8286 = vpack.c.bf16 %v8150, %v8148
        %v8287 = vpack.c.bf16 %v8164, %v8162
        %v8288 = vpack.c.bf16 %v8178, %v8176
        %v8289 = vpack.c.bf16 %v8192, %v8190
        %v8290 = vpack.c.bf16 %v8206, %v8204
        %v8291 = vpack.c.bf16 %v8220, %v8218
        %v8292 = vpack.c.bf16 %v8234, %v8232
        %v8293 = vpack.c.bf16 %v8248, %v8246
        %v8294 = vpack.c.bf16 %v8262, %v8260
        %v8295 = vpack.c.bf16 %v8276, %v8274
        %8297 = vset.pattern.permute.xlu0 0
        %8298 = vperm.xlu0 %8297, %v7160
        %v8299 = vpop.permute.xlu0 %8298
        %v8302 = vunpack.c.l.b16 %v7159
        %v8303 = vunpack.c.h.b16 %v7159
        %v8304 = vpack.c.b16 %v8302, %v8302
        %v8305 = vpack.c.b16 %v8303, %v8303
        %v8308 = vsel %vm4967, %v8305, 0
        %8310 = vmatpush.bf16.msra.mxu0 %v8292
        %8311 = vmatpush.bf16.msra.mxu0 %v8290
        %8312 = vmatpush.bf16.msra.mxu0 %v8288
        %8313 = vmatpush.bf16.msra.mxu0 %v8286
        %8314 = vmatpush.bf16.msra.mxu0 %v8284
        %8315 = vmatpush.bf16.msra.mxu0 %v8282
        %8316 = vmatpush.bf16.msra.mxu0 %v8280
        %8317 = vmatpush.bf16.msra.mxu0 %v8278
        %8318 = vmatmul.bf16.gmra.mxu0 %v8304
        %v8319 = vpop.f32.mrf.mxu0
        %v8320 = vadd.f32 %v8299, %v8319
        %v8321 = vpop.f32.mrf.mxu0
        %8322 = vdwg.mxu0
        %8323 = vmatpush.bf16.msra.mxu0 0
        %8324 = vmatpush.bf16.msra.mxu0 0
        %8325 = vmatpush.bf16.msra.mxu0 0
        %8326 = vmatpush.bf16.msra.mxu0 0
        %8327 = vmatpush.bf16.msra.mxu0 0
        %8328 = vmatpush.bf16.msra.mxu0 0
        %8329 = vmatpush.bf16.msra.mxu0 0
        %8330 = vmatpush.bf16.msra.mxu0 %v8294
        %8331 = vmatmul.bf16.gmra.mxu0 %v8308
        %v8332 = vpop.f32.mrf.mxu0
        %v8333 = vadd.f32 %v8320, %v8332
        %v8334 = vpop.f32.mrf.mxu0
        %8335 = vdwg.mxu0
        %8336 = vmatpush.bf16.msra.mxu0 %v8293
        %8337 = vmatpush.bf16.msra.mxu0 %v8291
        %8338 = vmatpush.bf16.msra.mxu0 %v8289
        %8339 = vmatpush.bf16.msra.mxu0 %v8287
        %8340 = vmatpush.bf16.msra.mxu0 %v8285
        %8341 = vmatpush.bf16.msra.mxu0 %v8283
        %8342 = vmatpush.bf16.msra.mxu0 %v8281
        %8343 = vmatpush.bf16.msra.mxu0 %v8279
        %8344 = vmatmul.bf16.gmra.mxu0 %v8304
        %v8345 = vpop.f32.mrf.mxu0
        %v8346 = vadd.f32 %v8299, %v8345
        %v8347 = vpop.f32.mrf.mxu0
        %8348 = vdwg.mxu0
        %8349 = vmatpush.bf16.msra.mxu0 0
        %8350 = vmatpush.bf16.msra.mxu0 0
        %8351 = vmatpush.bf16.msra.mxu0 0
        %8352 = vmatpush.bf16.msra.mxu0 0
        %8353 = vmatpush.bf16.msra.mxu0 0
        %8354 = vmatpush.bf16.msra.mxu0 0
        %8355 = vmatpush.bf16.msra.mxu0 0
        %8356 = vmatpush.bf16.msra.mxu0 %v8295
        %8357 = vmatmul.bf16.gmra.mxu0 %v8308
        %v8358 = vpop.f32.mrf.mxu0
        %v8359 = vadd.f32 %v8346, %v8358
        %v8360 = vpop.f32.mrf.mxu0
        %8361 = vdwg.mxu0
        %v8362 = vadd.s32 %v4287, 128
        %vm8363 = vcmp.lt.s32.totalorder %v4287, 176
        %vm8364 = vcmp.lt.s32.totalorder %v8362, 176
        %v8365 = vsel %vm8363, 1, 0
        %v8366 = vsel %vm8364, 1, 0
        %v8367 = vcvt.s32.f32 %v8365
        %v8368 = vcvt.s32.f32 %v8366
        %v8369 = vmul.f32 %v8333, %v8367
        %v8370 = vmul.f32 %v8359, %v8368
        %v8371 = vadd.f32 %v8369, %v8370
        %8372 = vadd.xlane.f32.xlu0 %v8371
        %v8373 = vpop.xlane.xlu0 %8372
        %v8374 = vmul.f32 %v8373, 0.0056818184
        %v8375 = vsub.f32 %v8333, %v8374
        %v8376 = vsub.f32 %v8359, %v8374
        %v8377 = vmul.f32 %v8375, %v8375
        %v8378 = vmul.f32 %v8376, %v8376
        %v8379 = vmul.f32 %v8377, %v8367
        %v8380 = vmul.f32 %v8378, %v8368
        %v8381 = vadd.f32 %v8379, %v8380
        %8382 = vadd.xlane.f32.xlu0 %v8381
        %v8383 = vpop.xlane.xlu0 %8382
        %v8384 = vmul.f32 %v8383, 0.0056818184
        %v8385 = vadd.f32 %v8384, 1e-05
        %v8386 = vrsqrt.pop %v8385
        %v8387 = vmul.f32 %v8386, %v8385
        %v8388 = vmul.f32 %v8387, %v8386
        %v8389 = vmul.f32 0.5, %v8388
        %v8390 = vsub.f32 1.5, %v8389
        %v8391 = vmul.f32 %v8386, %v8390
        %vm8392 = vweird.f32 %v8385
        %vm8393 = vweird.f32 %v8386
        %vm8394 = vmor %vm8392, %vm8393
        %v8395 = vsel %vm8394, %v8386, %v8391
        %v8396 = vmul.f32 %v8375, %v8395
        %v8397 = vmul.f32 %v8376, %v8395
        %v8398 = vmax.f32 %v8396, 0.0
        %v8399 = vmax.f32 %v8397, 0.0
        %v8400 = vld [vmem:[%s22] sm:$0x1]
        %v8401 = vld [vmem:[#allocation2] sm:$0x1]
        %v8402 = vpack.c.bf16 %v8398, %v8398
        %v8403 = vpack.c.bf16 %v8399, %v8399
        %v8404 = vld [vmem:[%s7] sm:$0xff]
        %v8405 = vld [vmem:[%s7 + $0x8] sm:$0xff]
        %v8406 = vld [vmem:[%s7 + $0x10] sm:$0xff]
        %v8407 = vld [vmem:[%s7 + $0x18] sm:$0xff]
        %v8408 = vld [vmem:[%s7 + $0x20] sm:$0xff]
        %v8409 = vld [vmem:[%s7 + $0x28] sm:$0xff]
        %v8410 = vld [vmem:[%s7 + $0x30] sm:$0xff]
        %v8411 = vld [vmem:[%s7 + $0x38] sm:$0xff]
        %v8412 = vld [vmem:[%s7 + $0x40] sm:$0xff]
        %v8413 = vld [vmem:[%s7 + $0x48] sm:$0xff]
        %v8414 = vld [vmem:[%s7 + $0x50] sm:$0xff]
        %v8415 = vld [vmem:[%s7 + $0x58] sm:$0xff]
        %v8416 = vld [vmem:[%s7 + $0x60] sm:$0xff]
        %v8417 = vld [vmem:[%s7 + $0x68] sm:$0xff]
        %v8418 = vld [vmem:[%s7 + $0x70] sm:$0xff]
        %v8419 = vld [vmem:[%s7 + $0x78] sm:$0xff]
        %v8420 = vld [vmem:[%s7 + $0x80] sm:$0xff]
        %v8421 = vld [vmem:[%s7 + $0x88] sm:$0xff]
        %v8422 = vld [vmem:[%s7 + $0x90] sm:$0xff]
        %v8423 = vld [vmem:[%s7 + $0x98] sm:$0xff]
        %v8424 = vld [vmem:[%s7 + $0xa0] sm:$0xff]
        %v8425 = vld [vmem:[%s7 + $0xa8] sm:$0xff]
        %v8426 = vld [vmem:[%s7 + $0xb0] sm:$0xff]
        %v8427 = vld [vmem:[%s7 + $0xb8] sm:$0xff]
        %v8428 = vld [vmem:[%s7 + $0xc0] sm:$0xff]
        %v8429 = vld [vmem:[%s7 + $0xc8] sm:$0xff]
        %v8430 = vld [vmem:[%s7 + $0xd0] sm:$0xff]
        %v8431 = vld [vmem:[%s7 + $0xd8] sm:$0xff]
        %v8432 = vld [vmem:[%s7 + $0xe0] sm:$0xff]
        %v8433 = vld [vmem:[%s7 + $0xe8] sm:$0xff]
        %v8434 = vld [vmem:[%s7 + $0xf0] sm:$0xff]
        %v8435 = vld [vmem:[%s7 + $0xf8] sm:$0xff]
        %v8436 = vld [vmem:[%s7 + $0x100] sm:$0xff]
        %v8437 = vld [vmem:[%s7 + $0x108] sm:$0xff]
        %v8438 = vld [vmem:[%s7 + $0x110] sm:$0xff]
        %v8439 = vld [vmem:[%s7 + $0x118] sm:$0xff]
        %v8440 = vld [vmem:[%s7 + $0x120] sm:$0xff]
        %v8441 = vld [vmem:[%s7 + $0x128] sm:$0xff]
        %v8442 = vld [vmem:[%s7 + $0x130] sm:$0xff]
        %v8443 = vld [vmem:[%s7 + $0x138] sm:$0xff]
        %v8444 = vld [vmem:[%s7 + $0x140] sm:$0xff]
        %v8445 = vld [vmem:[%s7 + $0x148] sm:$0xff]
        %v8446 = vld [vmem:[%s7 + $0x150] sm:$0xff]
        %v8447 = vld [vmem:[%s7 + $0x158] sm:$0xff]
        %v8448 = vld [vmem:[%s7 + $0x160] sm:$0xff]
        %v8449 = vld [vmem:[%s7 + $0x168] sm:$0xff]
        %v8450 = vld [vmem:[%s7 + $0x170] sm:$0xff]
        %v8451 = vld [vmem:[%s7 + $0x178] sm:$0xff]
        %v8452 = vld [vmem:[%s7 + $0x180] sm:$0xff]
        %v8453 = vld [vmem:[%s7 + $0x188] sm:$0xff]
        %v8454 = vld [vmem:[%s7 + $0x190] sm:$0xff]
        %v8455 = vld [vmem:[%s7 + $0x198] sm:$0xff]
        %v8456 = vld [vmem:[%s7 + $0x1a0] sm:$0xff]
        %v8457 = vld [vmem:[%s7 + $0x1a8] sm:$0xff]
        %v8458 = vld [vmem:[%s7 + $0x1b0] sm:$0xff]
        %v8459 = vld [vmem:[%s7 + $0x1b8] sm:$0xff]
        %v8460 = vld [vmem:[%s7 + $0x1c0] sm:$0xff]
        %v8461 = vld [vmem:[%s7 + $0x1c8] sm:$0xff]
        %v8462 = vld [vmem:[%s7 + $0x1d0] sm:$0xff]
        %v8463 = vld [vmem:[%s7 + $0x1d8] sm:$0xff]
        %v8464 = vld [vmem:[%s7 + $0x1e0] sm:$0xff]
        %v8465 = vld [vmem:[%s7 + $0x1e8] sm:$0xff]
        %v8466 = vld [vmem:[%s7 + $0x1f0] sm:$0xff]
        %v8467 = vld [vmem:[%s7 + $0x1f8] sm:$0xff]
        %v8468 = vld [vmem:[%s7 + $0x200] sm:$0xff]
        %v8469 = vld [vmem:[%s7 + $0x208] sm:$0xff]
        %v8470 = vld [vmem:[%s7 + $0x210] sm:$0xff]
        %v8471 = vld [vmem:[%s7 + $0x218] sm:$0xff]
        %v8472 = vld [vmem:[%s7 + $0x220] sm:$0xff]
        %v8473 = vld [vmem:[%s7 + $0x228] sm:$0xff]
        %v8474 = vld [vmem:[%s7 + $0x230] sm:$0xff]
        %v8475 = vld [vmem:[%s7 + $0x238] sm:$0xff]
        %v8476 = vld [vmem:[%s7 + $0x240] sm:$0xff]
        %v8477 = vld [vmem:[%s7 + $0x248] sm:$0xff]
        %v8478 = vld [vmem:[%s7 + $0x250] sm:$0xff]
        %v8479 = vld [vmem:[%s7 + $0x258] sm:$0xff]
        %v8480 = vld [vmem:[%s7 + $0x260] sm:$0xff]
        %v8481 = vld [vmem:[%s7 + $0x268] sm:$0xff]
        %v8482 = vld [vmem:[%s7 + $0x270] sm:$0xff]
        %v8483 = vld [vmem:[%s7 + $0x278] sm:$0xff]
        %v8484 = vld [vmem:[%s7 + $0x280] sm:$0xff]
        %v8485 = vld [vmem:[%s7 + $0x288] sm:$0xff]
        %v8486 = vld [vmem:[%s7 + $0x290] sm:$0xff]
        %v8487 = vld [vmem:[%s7 + $0x298] sm:$0xff]
        %v8488 = vld [vmem:[%s7 + $0x2a0] sm:$0xff]
        %v8489 = vld [vmem:[%s7 + $0x2a8] sm:$0xff]
        %v8490 = vld [vmem:[%s7 + $0x2b0] sm:$0xff]
        %v8491 = vld [vmem:[%s7 + $0x2b8] sm:$0xff]
        %v8492 = vld [vmem:[%s7 + $0x2c0] sm:$0xff]
        %v8493 = vld [vmem:[%s7 + $0x2c8] sm:$0xff]
        %v8494 = vld [vmem:[%s7 + $0x2d0] sm:$0xff]
        %v8495 = vld [vmem:[%s7 + $0x2d8] sm:$0xff]
        %v8496 = vld [vmem:[%s7 + $0x2e0] sm:$0xff]
        %v8497 = vld [vmem:[%s7 + $0x2e8] sm:$0xff]
        %v8498 = vld [vmem:[%s7 + $0x2f0] sm:$0xff]
        %v8499 = vld [vmem:[%s7 + $0x2f8] sm:$0xff]
        %v8500 = vld [vmem:[%s7 + $0x300] sm:$0xff]
        %v8501 = vld [vmem:[%s7 + $0x308] sm:$0xff]
        %v8502 = vld [vmem:[%s7 + $0x310] sm:$0xff]
        %v8503 = vld [vmem:[%s7 + $0x318] sm:$0xff]
        %v8504 = vld [vmem:[%s7 + $0x320] sm:$0xff]
        %v8505 = vld [vmem:[%s7 + $0x328] sm:$0xff]
        %v8506 = vld [vmem:[%s7 + $0x330] sm:$0xff]
        %v8507 = vld [vmem:[%s7 + $0x338] sm:$0xff]
        %v8508 = vld [vmem:[%s7 + $0x340] sm:$0xff]
        %v8509 = vld [vmem:[%s7 + $0x348] sm:$0xff]
        %v8510 = vld [vmem:[%s7 + $0x350] sm:$0xff]
        %v8511 = vld [vmem:[%s7 + $0x358] sm:$0xff]
        %v8512 = vld [vmem:[%s7 + $0x360] sm:$0xff]
        %v8513 = vld [vmem:[%s7 + $0x368] sm:$0xff]
        %v8514 = vld [vmem:[%s7 + $0x370] sm:$0xff]
        %v8515 = vld [vmem:[%s7 + $0x378] sm:$0xff]
        %v8516 = vld [vmem:[%s7 + $0x380] sm:$0xff]
        %v8517 = vld [vmem:[%s7 + $0x388] sm:$0xff]
        %v8518 = vld [vmem:[%s7 + $0x390] sm:$0xff]
        %v8519 = vld [vmem:[%s7 + $0x398] sm:$0xff]
        %v8520 = vld [vmem:[%s7 + $0x3a0] sm:$0xff]
        %v8521 = vld [vmem:[%s7 + $0x3a8] sm:$0xff]
        %v8522 = vld [vmem:[%s7 + $0x3b0] sm:$0xff]
        %v8523 = vld [vmem:[%s7 + $0x3b8] sm:$0xff]
        %v8524 = vld [vmem:[%s7 + $0x3c0] sm:$0xff]
        %v8525 = vld [vmem:[%s7 + $0x3c8] sm:$0xff]
        %v8526 = vld [vmem:[%s7 + $0x3d0] sm:$0xff]
        %v8527 = vld [vmem:[%s7 + $0x3d8] sm:$0xff]
        %v8528 = vld [vmem:[%s7 + $0x3e0] sm:$0xff]
        %v8529 = vld [vmem:[%s7 + $0x3e8] sm:$0xff]
        %v8530 = vld [vmem:[%s7 + $0x3f0] sm:$0xff]
        %v8531 = vld [vmem:[%s7 + $0x3f8] sm:$0xff]
        %v8532 = vld [vmem:[%s7 + $0x400] sm:$0xff]
        %v8533 = vld [vmem:[%s7 + $0x408] sm:$0xff]
        %v8534 = vld [vmem:[%s7 + $0x410] sm:$0xff]
        %v8535 = vld [vmem:[%s7 + $0x418] sm:$0xff]
        %v8536 = vld [vmem:[%s7 + $0x420] sm:$0xff]
        %v8537 = vld [vmem:[%s7 + $0x428] sm:$0xff]
        %v8538 = vld [vmem:[%s7 + $0x430] sm:$0xff]
        %v8539 = vld [vmem:[%s7 + $0x438] sm:$0xff]
        %v8540 = vld [vmem:[%s7 + $0x440] sm:$0xff]
        %v8541 = vld [vmem:[%s7 + $0x448] sm:$0xff]
        %v8542 = vld [vmem:[%s7 + $0x450] sm:$0xff]
        %v8543 = vld [vmem:[%s7 + $0x458] sm:$0xff]
        %v8544 = vld [vmem:[%s7 + $0x460] sm:$0xff]
        %v8545 = vld [vmem:[%s7 + $0x468] sm:$0xff]
        %v8546 = vld [vmem:[%s7 + $0x470] sm:$0xff]
        %v8547 = vld [vmem:[%s7 + $0x478] sm:$0xff]
        %v8548 = vld [vmem:[%s7 + $0x480] sm:$0xff]
        %v8549 = vld [vmem:[%s7 + $0x488] sm:$0xff]
        %v8550 = vld [vmem:[%s7 + $0x490] sm:$0xff]
        %v8551 = vld [vmem:[%s7 + $0x498] sm:$0xff]
        %v8552 = vld [vmem:[%s7 + $0x4a0] sm:$0xff]
        %v8553 = vld [vmem:[%s7 + $0x4a8] sm:$0xff]
        %v8554 = vld [vmem:[%s7 + $0x4b0] sm:$0xff]
        %v8555 = vld [vmem:[%s7 + $0x4b8] sm:$0xff]
        %v8556 = vld [vmem:[%s7 + $0x4c0] sm:$0xff]
        %v8557 = vld [vmem:[%s7 + $0x4c8] sm:$0xff]
        %v8558 = vld [vmem:[%s7 + $0x4d0] sm:$0xff]
        %v8559 = vld [vmem:[%s7 + $0x4d8] sm:$0xff]
        %v8560 = vld [vmem:[%s7 + $0x4e0] sm:$0xff]
        %v8561 = vld [vmem:[%s7 + $0x4e8] sm:$0xff]
        %v8562 = vld [vmem:[%s7 + $0x4f0] sm:$0xff]
        %v8563 = vld [vmem:[%s7 + $0x4f8] sm:$0xff]
        %v8564 = vld [vmem:[%s7 + $0x500] sm:$0xff]
        %v8565 = vld [vmem:[%s7 + $0x508] sm:$0xff]
        %v8566 = vld [vmem:[%s7 + $0x510] sm:$0xff]
        %v8567 = vld [vmem:[%s7 + $0x518] sm:$0xff]
        %v8568 = vld [vmem:[%s7 + $0x520] sm:$0xff]
        %v8569 = vld [vmem:[%s7 + $0x528] sm:$0xff]
        %v8570 = vld [vmem:[%s7 + $0x530] sm:$0xff]
        %v8571 = vld [vmem:[%s7 + $0x538] sm:$0xff]
        %v8572 = vld [vmem:[%s7 + $0x540] sm:$0xff]
        %v8573 = vld [vmem:[%s7 + $0x548] sm:$0xff]
        %v8574 = vld [vmem:[%s7 + $0x550] sm:$0xff]
        %v8575 = vld [vmem:[%s7 + $0x558] sm:$0xff]
        %v8576 = vld [vmem:[%s7 + $0x560] sm:$0xff]
        %v8577 = vld [vmem:[%s7 + $0x568] sm:$0xff]
        %v8578 = vld [vmem:[%s7 + $0x570] sm:$0xff]
        %v8579 = vld [vmem:[%s7 + $0x578] sm:$0xff]
        %v8580 = vld [vmem:[%s7 + $0x580] sm:$0xff]
        %v8581 = vld [vmem:[%s7 + $0x588] sm:$0xff]
        %v8582 = vld [vmem:[%s7 + $0x590] sm:$0xff]
        %v8583 = vld [vmem:[%s7 + $0x598] sm:$0xff]
        %v8584 = vld [vmem:[%s7 + $0x5a0] sm:$0xff]
        %v8585 = vld [vmem:[%s7 + $0x5a8] sm:$0xff]
        %v8586 = vld [vmem:[%s7 + $0x5b0] sm:$0xff]
        %v8587 = vld [vmem:[%s7 + $0x5b8] sm:$0xff]
        %v8588 = vld [vmem:[%s7 + $0x5c0] sm:$0xff]
        %v8589 = vld [vmem:[%s7 + $0x5c8] sm:$0xff]
        %v8590 = vld [vmem:[%s7 + $0x5d0] sm:$0xff]
        %v8591 = vld [vmem:[%s7 + $0x5d8] sm:$0xff]
        %v8592 = vld [vmem:[%s7 + $0x5e0] sm:$0xff]
        %v8593 = vld [vmem:[%s7 + $0x5e8] sm:$0xff]
        %v8594 = vld [vmem:[%s7 + $0x5f0] sm:$0xff]
        %v8595 = vld [vmem:[%s7 + $0x5f8] sm:$0xff]
        %v8596 = vld [vmem:[%s7 + $0x600] sm:$0xff]
        %v8597 = vld [vmem:[%s7 + $0x608] sm:$0xff]
        %v8598 = vld [vmem:[%s7 + $0x610] sm:$0xff]
        %v8599 = vld [vmem:[%s7 + $0x618] sm:$0xff]
        %v8600 = vld [vmem:[%s7 + $0x620] sm:$0xff]
        %v8601 = vld [vmem:[%s7 + $0x628] sm:$0xff]
        %v8602 = vld [vmem:[%s7 + $0x630] sm:$0xff]
        %v8603 = vld [vmem:[%s7 + $0x638] sm:$0xff]
        %v8604 = vld [vmem:[%s7 + $0x640] sm:$0xff]
        %v8605 = vld [vmem:[%s7 + $0x648] sm:$0xff]
        %v8606 = vld [vmem:[%s7 + $0x650] sm:$0xff]
        %v8607 = vld [vmem:[%s7 + $0x658] sm:$0xff]
        %v8608 = vld [vmem:[%s7 + $0x660] sm:$0xff]
        %v8609 = vld [vmem:[%s7 + $0x668] sm:$0xff]
        %v8610 = vld [vmem:[%s7 + $0x670] sm:$0xff]
        %v8611 = vld [vmem:[%s7 + $0x678] sm:$0xff]
        %v8612 = vld [vmem:[%s7 + $0x680] sm:$0xff]
        %v8613 = vld [vmem:[%s7 + $0x688] sm:$0xff]
        %v8614 = vld [vmem:[%s7 + $0x690] sm:$0xff]
        %v8615 = vld [vmem:[%s7 + $0x698] sm:$0xff]
        %v8616 = vld [vmem:[%s7 + $0x6a0] sm:$0xff]
        %v8617 = vld [vmem:[%s7 + $0x6a8] sm:$0xff]
        %v8618 = vld [vmem:[%s7 + $0x6b0] sm:$0xff]
        %v8619 = vld [vmem:[%s7 + $0x6b8] sm:$0xff]
        %v8620 = vld [vmem:[%s7 + $0x6c0] sm:$0xff]
        %v8621 = vld [vmem:[%s7 + $0x6c8] sm:$0xff]
        %v8622 = vld [vmem:[%s7 + $0x6d0] sm:$0xff]
        %v8623 = vld [vmem:[%s7 + $0x6d8] sm:$0xff]
        %v8624 = vld [vmem:[%s7 + $0x6e0] sm:$0xff]
        %v8625 = vld [vmem:[%s7 + $0x6e8] sm:$0xff]
        %v8626 = vld [vmem:[%s7 + $0x6f0] sm:$0xff]
        %v8627 = vld [vmem:[%s7 + $0x6f8] sm:$0xff]
        %v8628 = vld [vmem:[%s7 + $0x700] sm:$0xff]
        %v8629 = vld [vmem:[%s7 + $0x708] sm:$0xff]
        %v8630 = vld [vmem:[%s7 + $0x710] sm:$0xff]
        %v8631 = vld [vmem:[%s7 + $0x718] sm:$0xff]
        %v8632 = vld [vmem:[%s7 + $0x720] sm:$0xff]
        %v8633 = vld [vmem:[%s7 + $0x728] sm:$0xff]
        %v8634 = vld [vmem:[%s7 + $0x730] sm:$0xff]
        %v8635 = vld [vmem:[%s7 + $0x738] sm:$0xff]
        %v8636 = vld [vmem:[%s7 + $0x740] sm:$0xff]
        %v8637 = vld [vmem:[%s7 + $0x748] sm:$0xff]
        %v8638 = vld [vmem:[%s7 + $0x750] sm:$0xff]
        %v8639 = vld [vmem:[%s7 + $0x758] sm:$0xff]
        %v8640 = vld [vmem:[%s7 + $0x760] sm:$0xff]
        %v8641 = vld [vmem:[%s7 + $0x768] sm:$0xff]
        %v8642 = vld [vmem:[%s7 + $0x770] sm:$0xff]
        %v8643 = vld [vmem:[%s7 + $0x778] sm:$0xff]
        %v8644 = vld [vmem:[%s7 + $0x780] sm:$0xff]
        %v8645 = vld [vmem:[%s7 + $0x788] sm:$0xff]
        %v8646 = vld [vmem:[%s7 + $0x790] sm:$0xff]
        %v8647 = vld [vmem:[%s7 + $0x798] sm:$0xff]
        %v8648 = vld [vmem:[%s7 + $0x7a0] sm:$0xff]
        %v8649 = vld [vmem:[%s7 + $0x7a8] sm:$0xff]
        %v8650 = vld [vmem:[%s7 + $0x7b0] sm:$0xff]
        %v8651 = vld [vmem:[%s7 + $0x7b8] sm:$0xff]
        %v8652 = vld [vmem:[%s7 + $0x7c0] sm:$0xff]
        %v8653 = vld [vmem:[%s7 + $0x7c8] sm:$0xff]
        %v8654 = vld [vmem:[%s7 + $0x7d0] sm:$0xff]
        %v8655 = vld [vmem:[%s7 + $0x7d8] sm:$0xff]
        %v8656 = vld [vmem:[%s7 + $0x7e0] sm:$0xff]
        %v8657 = vld [vmem:[%s7 + $0x7e8] sm:$0xff]
        %v8658 = vld [vmem:[%s7 + $0x7f0] sm:$0xff]
        %v8659 = vld [vmem:[%s7 + $0x7f8] sm:$0xff]
        %v8660 = vld [vmem:[%s7 + $0x800] sm:$0xff]
        %v8661 = vld [vmem:[%s7 + $0x808] sm:$0xff]
        %v8662 = vld [vmem:[%s7 + $0x810] sm:$0xff]
        %v8663 = vld [vmem:[%s7 + $0x818] sm:$0xff]
        %v8664 = vld [vmem:[%s7 + $0x820] sm:$0xff]
        %v8665 = vld [vmem:[%s7 + $0x828] sm:$0xff]
        %v8666 = vld [vmem:[%s7 + $0x830] sm:$0xff]
        %v8667 = vld [vmem:[%s7 + $0x838] sm:$0xff]
        %v8668 = vld [vmem:[%s7 + $0x840] sm:$0xff]
        %v8669 = vld [vmem:[%s7 + $0x848] sm:$0xff]
        %v8670 = vld [vmem:[%s7 + $0x850] sm:$0xff]
        %v8671 = vld [vmem:[%s7 + $0x858] sm:$0xff]
        %v8672 = vld [vmem:[%s7 + $0x860] sm:$0xff]
        %v8673 = vld [vmem:[%s7 + $0x868] sm:$0xff]
        %v8674 = vld [vmem:[%s7 + $0x870] sm:$0xff]
        %v8675 = vld [vmem:[%s7 + $0x878] sm:$0xff]
        %v8676 = vld [vmem:[%s7 + $0x880] sm:$0xff]
        %v8677 = vld [vmem:[%s7 + $0x888] sm:$0xff]
        %v8678 = vld [vmem:[%s7 + $0x890] sm:$0xff]
        %v8679 = vld [vmem:[%s7 + $0x898] sm:$0xff]
        %v8680 = vld [vmem:[%s7 + $0x8a0] sm:$0xff]
        %v8681 = vld [vmem:[%s7 + $0x8a8] sm:$0xff]
        %v8682 = vld [vmem:[%s7 + $0x8b0] sm:$0xff]
        %v8683 = vld [vmem:[%s7 + $0x8b8] sm:$0xff]
        %v8684 = vld [vmem:[%s7 + $0x8c0] sm:$0xff]
        %v8685 = vld [vmem:[%s7 + $0x8c8] sm:$0xff]
        %v8686 = vld [vmem:[%s7 + $0x8d0] sm:$0xff]
        %v8687 = vld [vmem:[%s7 + $0x8d8] sm:$0xff]
        %v8688 = vld [vmem:[%s7 + $0x8e0] sm:$0xff]
        %v8689 = vld [vmem:[%s7 + $0x8e8] sm:$0xff]
        %v8690 = vld [vmem:[%s7 + $0x8f0] sm:$0xff]
        %v8691 = vld [vmem:[%s7 + $0x8f8] sm:$0xff]
        %v8980 = vunpack.c.l.b16 %v8404
        %v8981 = vunpack.c.h.b16 %v8404
        %v8982 = vunpack.c.l.b16 %v8405
        %v8983 = vunpack.c.h.b16 %v8405
        %v8984 = vunpack.c.l.b16 %v8406
        %v8985 = vunpack.c.h.b16 %v8406
        %v8986 = vunpack.c.l.b16 %v8407
        %v8987 = vunpack.c.h.b16 %v8407
        %v8988 = vunpack.c.l.b16 %v8408
        %v8989 = vunpack.c.h.b16 %v8408
        %v8990 = vunpack.c.l.b16 %v8409
        %v8991 = vunpack.c.h.b16 %v8409
        %v8992 = vunpack.c.l.b16 %v8410
        %v8993 = vunpack.c.h.b16 %v8410
        %v8994 = vunpack.c.l.b16 %v8411
        %v8995 = vunpack.c.h.b16 %v8411
        %v8996 = vunpack.c.l.b16 %v8412
        %v8997 = vunpack.c.h.b16 %v8412
        %v8998 = vunpack.c.l.b16 %v8413
        %v8999 = vunpack.c.h.b16 %v8413
        %v9000 = vunpack.c.l.b16 %v8414
        %v9001 = vunpack.c.h.b16 %v8414
        %v9002 = vunpack.c.l.b16 %v8415
        %v9003 = vunpack.c.h.b16 %v8415
        %v9004 = vunpack.c.l.b16 %v8416
        %v9005 = vunpack.c.h.b16 %v8416
        %v9006 = vunpack.c.l.b16 %v8417
        %v9007 = vunpack.c.h.b16 %v8417
        %v9008 = vunpack.c.l.b16 %v8418
        %v9009 = vunpack.c.h.b16 %v8418
        %v9010 = vunpack.c.l.b16 %v8419
        %v9011 = vunpack.c.h.b16 %v8419
        %v9012 = vunpack.c.l.b16 %v8420
        %v9013 = vunpack.c.h.b16 %v8420
        %v9014 = vunpack.c.l.b16 %v8421
        %v9015 = vunpack.c.h.b16 %v8421
        %v9016 = vunpack.c.l.b16 %v8422
        %v9017 = vunpack.c.h.b16 %v8422
        %v9018 = vunpack.c.l.b16 %v8423
        %v9019 = vunpack.c.h.b16 %v8423
        %v9020 = vunpack.c.l.b16 %v8424
        %v9021 = vunpack.c.h.b16 %v8424
        %v9022 = vunpack.c.l.b16 %v8425
        %v9023 = vunpack.c.h.b16 %v8425
        %v9024 = vunpack.c.l.b16 %v8426
        %v9025 = vunpack.c.h.b16 %v8426
        %v9026 = vunpack.c.l.b16 %v8427
        %v9027 = vunpack.c.h.b16 %v8427
        %v9028 = vunpack.c.l.b16 %v8428
        %v9029 = vunpack.c.h.b16 %v8428
        %v9030 = vunpack.c.l.b16 %v8429
        %v9031 = vunpack.c.h.b16 %v8429
        %v9032 = vunpack.c.l.b16 %v8430
        %v9033 = vunpack.c.h.b16 %v8430
        %v9034 = vunpack.c.l.b16 %v8431
        %v9035 = vunpack.c.h.b16 %v8431
        %v9036 = vunpack.c.l.b16 %v8432
        %v9037 = vunpack.c.h.b16 %v8432
        %v9038 = vunpack.c.l.b16 %v8433
        %v9039 = vunpack.c.h.b16 %v8433
        %v9040 = vunpack.c.l.b16 %v8434
        %v9041 = vunpack.c.h.b16 %v8434
        %v9042 = vunpack.c.l.b16 %v8435
        %v9043 = vunpack.c.h.b16 %v8435
        %v9044 = vunpack.c.l.b16 %v8436
        %v9045 = vunpack.c.h.b16 %v8436
        %v9046 = vunpack.c.l.b16 %v8437
        %v9047 = vunpack.c.h.b16 %v8437
        %v9048 = vunpack.c.l.b16 %v8438
        %v9049 = vunpack.c.h.b16 %v8438
        %v9050 = vunpack.c.l.b16 %v8439
        %v9051 = vunpack.c.h.b16 %v8439
        %v9052 = vunpack.c.l.b16 %v8440
        %v9053 = vunpack.c.h.b16 %v8440
        %v9054 = vunpack.c.l.b16 %v8441
        %v9055 = vunpack.c.h.b16 %v8441
        %v9056 = vunpack.c.l.b16 %v8442
        %v9057 = vunpack.c.h.b16 %v8442
        %v9058 = vunpack.c.l.b16 %v8443
        %v9059 = vunpack.c.h.b16 %v8443
        %v9060 = vunpack.c.l.b16 %v8444
        %v9061 = vunpack.c.h.b16 %v8444
        %v9062 = vunpack.c.l.b16 %v8445
        %v9063 = vunpack.c.h.b16 %v8445
        %v9064 = vunpack.c.l.b16 %v8446
        %v9065 = vunpack.c.h.b16 %v8446
        %v9066 = vunpack.c.l.b16 %v8447
        %v9067 = vunpack.c.h.b16 %v8447
        %v9068 = vunpack.c.l.b16 %v8448
        %v9069 = vunpack.c.h.b16 %v8448
        %v9070 = vunpack.c.l.b16 %v8449
        %v9071 = vunpack.c.h.b16 %v8449
        %v9072 = vunpack.c.l.b16 %v8450
        %v9073 = vunpack.c.h.b16 %v8450
        %v9074 = vunpack.c.l.b16 %v8451
        %v9075 = vunpack.c.h.b16 %v8451
        %v9076 = vunpack.c.l.b16 %v8452
        %v9077 = vunpack.c.h.b16 %v8452
        %v9078 = vunpack.c.l.b16 %v8453
        %v9079 = vunpack.c.h.b16 %v8453
        %v9080 = vunpack.c.l.b16 %v8454
        %v9081 = vunpack.c.h.b16 %v8454
        %v9082 = vunpack.c.l.b16 %v8455
        %v9083 = vunpack.c.h.b16 %v8455
        %v9084 = vunpack.c.l.b16 %v8456
        %v9085 = vunpack.c.h.b16 %v8456
        %v9086 = vunpack.c.l.b16 %v8457
        %v9087 = vunpack.c.h.b16 %v8457
        %v9088 = vunpack.c.l.b16 %v8458
        %v9089 = vunpack.c.h.b16 %v8458
        %v9090 = vunpack.c.l.b16 %v8459
        %v9091 = vunpack.c.h.b16 %v8459
        %v9092 = vunpack.c.l.b16 %v8460
        %v9093 = vunpack.c.h.b16 %v8460
        %v9094 = vunpack.c.l.b16 %v8461
        %v9095 = vunpack.c.h.b16 %v8461
        %v9096 = vunpack.c.l.b16 %v8462
        %v9097 = vunpack.c.h.b16 %v8462
        %v9098 = vunpack.c.l.b16 %v8463
        %v9099 = vunpack.c.h.b16 %v8463
        %v9100 = vunpack.c.l.b16 %v8464
        %v9101 = vunpack.c.h.b16 %v8464
        %v9102 = vunpack.c.l.b16 %v8465
        %v9103 = vunpack.c.h.b16 %v8465
        %v9104 = vunpack.c.l.b16 %v8466
        %v9105 = vunpack.c.h.b16 %v8466
        %v9106 = vunpack.c.l.b16 %v8467
        %v9107 = vunpack.c.h.b16 %v8467
        %v9108 = vunpack.c.l.b16 %v8468
        %v9109 = vunpack.c.h.b16 %v8468
        %v9110 = vunpack.c.l.b16 %v8469
        %v9111 = vunpack.c.h.b16 %v8469
        %v9112 = vunpack.c.l.b16 %v8470
        %v9113 = vunpack.c.h.b16 %v8470
        %v9114 = vunpack.c.l.b16 %v8471
        %v9115 = vunpack.c.h.b16 %v8471
        %v9116 = vunpack.c.l.b16 %v8472
        %v9117 = vunpack.c.h.b16 %v8472
        %v9118 = vunpack.c.l.b16 %v8473
        %v9119 = vunpack.c.h.b16 %v8473
        %v9120 = vunpack.c.l.b16 %v8474
        %v9121 = vunpack.c.h.b16 %v8474
        %v9122 = vunpack.c.l.b16 %v8475
        %v9123 = vunpack.c.h.b16 %v8475
        %v9124 = vunpack.c.l.b16 %v8476
        %v9125 = vunpack.c.h.b16 %v8476
        %v9126 = vunpack.c.l.b16 %v8477
        %v9127 = vunpack.c.h.b16 %v8477
        %v9128 = vunpack.c.l.b16 %v8478
        %v9129 = vunpack.c.h.b16 %v8478
        %v9130 = vunpack.c.l.b16 %v8479
        %v9131 = vunpack.c.h.b16 %v8479
        %v9132 = vunpack.c.l.b16 %v8480
        %v9133 = vunpack.c.h.b16 %v8480
        %v9134 = vunpack.c.l.b16 %v8481
        %v9135 = vunpack.c.h.b16 %v8481
        %v9136 = vunpack.c.l.b16 %v8482
        %v9137 = vunpack.c.h.b16 %v8482
        %v9138 = vunpack.c.l.b16 %v8483
        %v9139 = vunpack.c.h.b16 %v8483
        %v9140 = vunpack.c.l.b16 %v8484
        %v9141 = vunpack.c.h.b16 %v8484
        %v9142 = vunpack.c.l.b16 %v8485
        %v9143 = vunpack.c.h.b16 %v8485
        %v9144 = vunpack.c.l.b16 %v8486
        %v9145 = vunpack.c.h.b16 %v8486
        %v9146 = vunpack.c.l.b16 %v8487
        %v9147 = vunpack.c.h.b16 %v8487
        %v9148 = vunpack.c.l.b16 %v8488
        %v9149 = vunpack.c.h.b16 %v8488
        %v9150 = vunpack.c.l.b16 %v8489
        %v9151 = vunpack.c.h.b16 %v8489
        %v9152 = vunpack.c.l.b16 %v8490
        %v9153 = vunpack.c.h.b16 %v8490
        %v9154 = vunpack.c.l.b16 %v8491
        %v9155 = vunpack.c.h.b16 %v8491
        %v9156 = vunpack.c.l.b16 %v8492
        %v9157 = vunpack.c.h.b16 %v8492
        %v9158 = vunpack.c.l.b16 %v8493
        %v9159 = vunpack.c.h.b16 %v8493
        %v9160 = vunpack.c.l.b16 %v8494
        %v9161 = vunpack.c.h.b16 %v8494
        %v9162 = vunpack.c.l.b16 %v8495
        %v9163 = vunpack.c.h.b16 %v8495
        %v9164 = vunpack.c.l.b16 %v8496
        %v9165 = vunpack.c.h.b16 %v8496
        %v9166 = vunpack.c.l.b16 %v8497
        %v9167 = vunpack.c.h.b16 %v8497
        %v9168 = vunpack.c.l.b16 %v8498
        %v9169 = vunpack.c.h.b16 %v8498
        %v9170 = vunpack.c.l.b16 %v8499
        %v9171 = vunpack.c.h.b16 %v8499
        %v9172 = vunpack.c.l.b16 %v8500
        %v9173 = vunpack.c.h.b16 %v8500
        %v9174 = vunpack.c.l.b16 %v8501
        %v9175 = vunpack.c.h.b16 %v8501
        %v9176 = vunpack.c.l.b16 %v8502
        %v9177 = vunpack.c.h.b16 %v8502
        %v9178 = vunpack.c.l.b16 %v8503
        %v9179 = vunpack.c.h.b16 %v8503
        %v9180 = vunpack.c.l.b16 %v8504
        %v9181 = vunpack.c.h.b16 %v8504
        %v9182 = vunpack.c.l.b16 %v8505
        %v9183 = vunpack.c.h.b16 %v8505
        %v9184 = vunpack.c.l.b16 %v8506
        %v9185 = vunpack.c.h.b16 %v8506
        %v9186 = vunpack.c.l.b16 %v8507
        %v9187 = vunpack.c.h.b16 %v8507
        %v9188 = vunpack.c.l.b16 %v8508
        %v9189 = vunpack.c.h.b16 %v8508
        %v9190 = vunpack.c.l.b16 %v8509
        %v9191 = vunpack.c.h.b16 %v8509
        %v9192 = vunpack.c.l.b16 %v8510
        %v9193 = vunpack.c.h.b16 %v8510
        %v9194 = vunpack.c.l.b16 %v8511
        %v9195 = vunpack.c.h.b16 %v8511
        %v9196 = vunpack.c.l.b16 %v8512
        %v9197 = vunpack.c.h.b16 %v8512
        %v9198 = vunpack.c.l.b16 %v8513
        %v9199 = vunpack.c.h.b16 %v8513
        %v9200 = vunpack.c.l.b16 %v8514
        %v9201 = vunpack.c.h.b16 %v8514
        %v9202 = vunpack.c.l.b16 %v8515
        %v9203 = vunpack.c.h.b16 %v8515
        %v9204 = vunpack.c.l.b16 %v8516
        %v9205 = vunpack.c.h.b16 %v8516
        %v9206 = vunpack.c.l.b16 %v8517
        %v9207 = vunpack.c.h.b16 %v8517
        %v9208 = vunpack.c.l.b16 %v8518
        %v9209 = vunpack.c.h.b16 %v8518
        %v9210 = vunpack.c.l.b16 %v8519
        %v9211 = vunpack.c.h.b16 %v8519
        %v9212 = vunpack.c.l.b16 %v8520
        %v9213 = vunpack.c.h.b16 %v8520
        %v9214 = vunpack.c.l.b16 %v8521
        %v9215 = vunpack.c.h.b16 %v8521
        %v9216 = vunpack.c.l.b16 %v8522
        %v9217 = vunpack.c.h.b16 %v8522
        %v9218 = vunpack.c.l.b16 %v8523
        %v9219 = vunpack.c.h.b16 %v8523
        %v9220 = vunpack.c.l.b16 %v8524
        %v9221 = vunpack.c.h.b16 %v8524
        %v9222 = vunpack.c.l.b16 %v8525
        %v9223 = vunpack.c.h.b16 %v8525
        %v9224 = vunpack.c.l.b16 %v8526
        %v9225 = vunpack.c.h.b16 %v8526
        %v9226 = vunpack.c.l.b16 %v8527
        %v9227 = vunpack.c.h.b16 %v8527
        %v9228 = vunpack.c.l.b16 %v8528
        %v9229 = vunpack.c.h.b16 %v8528
        %v9230 = vunpack.c.l.b16 %v8529
        %v9231 = vunpack.c.h.b16 %v8529
        %v9232 = vunpack.c.l.b16 %v8530
        %v9233 = vunpack.c.h.b16 %v8530
        %v9234 = vunpack.c.l.b16 %v8531
        %v9235 = vunpack.c.h.b16 %v8531
        %v9236 = vunpack.c.l.b16 %v8532
        %v9237 = vunpack.c.h.b16 %v8532
        %v9238 = vunpack.c.l.b16 %v8533
        %v9239 = vunpack.c.h.b16 %v8533
        %v9240 = vunpack.c.l.b16 %v8534
        %v9241 = vunpack.c.h.b16 %v8534
        %v9242 = vunpack.c.l.b16 %v8535
        %v9243 = vunpack.c.h.b16 %v8535
        %v9244 = vunpack.c.l.b16 %v8536
        %v9245 = vunpack.c.h.b16 %v8536
        %v9246 = vunpack.c.l.b16 %v8537
        %v9247 = vunpack.c.h.b16 %v8537
        %v9248 = vunpack.c.l.b16 %v8538
        %v9249 = vunpack.c.h.b16 %v8538
        %v9250 = vunpack.c.l.b16 %v8539
        %v9251 = vunpack.c.h.b16 %v8539
        %v9252 = vunpack.c.l.b16 %v8540
        %v9253 = vunpack.c.h.b16 %v8540
        %v9254 = vunpack.c.l.b16 %v8541
        %v9255 = vunpack.c.h.b16 %v8541
        %v9256 = vunpack.c.l.b16 %v8542
        %v9257 = vunpack.c.h.b16 %v8542
        %v9258 = vunpack.c.l.b16 %v8543
        %v9259 = vunpack.c.h.b16 %v8543
        %v9260 = vunpack.c.l.b16 %v8544
        %v9261 = vunpack.c.h.b16 %v8544
        %v9262 = vunpack.c.l.b16 %v8545
        %v9263 = vunpack.c.h.b16 %v8545
        %v9264 = vunpack.c.l.b16 %v8546
        %v9265 = vunpack.c.h.b16 %v8546
        %v9266 = vunpack.c.l.b16 %v8547
        %v9267 = vunpack.c.h.b16 %v8547
        %v9268 = vunpack.c.l.b16 %v8548
        %v9269 = vunpack.c.h.b16 %v8548
        %v9270 = vunpack.c.l.b16 %v8549
        %v9271 = vunpack.c.h.b16 %v8549
        %v9272 = vunpack.c.l.b16 %v8550
        %v9273 = vunpack.c.h.b16 %v8550
        %v9274 = vunpack.c.l.b16 %v8551
        %v9275 = vunpack.c.h.b16 %v8551
        %v9276 = vunpack.c.l.b16 %v8552
        %v9277 = vunpack.c.h.b16 %v8552
        %v9278 = vunpack.c.l.b16 %v8553
        %v9279 = vunpack.c.h.b16 %v8553
        %v9280 = vunpack.c.l.b16 %v8554
        %v9281 = vunpack.c.h.b16 %v8554
        %v9282 = vunpack.c.l.b16 %v8555
        %v9283 = vunpack.c.h.b16 %v8555
        %v9284 = vunpack.c.l.b16 %v8556
        %v9285 = vunpack.c.h.b16 %v8556
        %v9286 = vunpack.c.l.b16 %v8557
        %v9287 = vunpack.c.h.b16 %v8557
        %v9288 = vunpack.c.l.b16 %v8558
        %v9289 = vunpack.c.h.b16 %v8558
        %v9290 = vunpack.c.l.b16 %v8559
        %v9291 = vunpack.c.h.b16 %v8559
        %v9292 = vunpack.c.l.b16 %v8560
        %v9293 = vunpack.c.h.b16 %v8560
        %v9294 = vunpack.c.l.b16 %v8561
        %v9295 = vunpack.c.h.b16 %v8561
        %v9296 = vunpack.c.l.b16 %v8562
        %v9297 = vunpack.c.h.b16 %v8562
        %v9298 = vunpack.c.l.b16 %v8563
        %v9299 = vunpack.c.h.b16 %v8563
        %v9300 = vunpack.c.l.b16 %v8564
        %v9301 = vunpack.c.h.b16 %v8564
        %v9302 = vunpack.c.l.b16 %v8565
        %v9303 = vunpack.c.h.b16 %v8565
        %v9304 = vunpack.c.l.b16 %v8566
        %v9305 = vunpack.c.h.b16 %v8566
        %v9306 = vunpack.c.l.b16 %v8567
        %v9307 = vunpack.c.h.b16 %v8567
        %v9308 = vunpack.c.l.b16 %v8568
        %v9309 = vunpack.c.h.b16 %v8568
        %v9310 = vunpack.c.l.b16 %v8569
        %v9311 = vunpack.c.h.b16 %v8569
        %v9312 = vunpack.c.l.b16 %v8570
        %v9313 = vunpack.c.h.b16 %v8570
        %v9314 = vunpack.c.l.b16 %v8571
        %v9315 = vunpack.c.h.b16 %v8571
        %v9316 = vunpack.c.l.b16 %v8572
        %v9317 = vunpack.c.h.b16 %v8572
        %v9318 = vunpack.c.l.b16 %v8573
        %v9319 = vunpack.c.h.b16 %v8573
        %v9320 = vunpack.c.l.b16 %v8574
        %v9321 = vunpack.c.h.b16 %v8574
        %v9322 = vunpack.c.l.b16 %v8575
        %v9323 = vunpack.c.h.b16 %v8575
        %v9324 = vunpack.c.l.b16 %v8576
        %v9325 = vunpack.c.h.b16 %v8576
        %v9326 = vunpack.c.l.b16 %v8577
        %v9327 = vunpack.c.h.b16 %v8577
        %v9328 = vunpack.c.l.b16 %v8578
        %v9329 = vunpack.c.h.b16 %v8578
        %v9330 = vunpack.c.l.b16 %v8579
        %v9331 = vunpack.c.h.b16 %v8579
        %v9332 = vunpack.c.l.b16 %v8580
        %v9333 = vunpack.c.h.b16 %v8580
        %v9334 = vunpack.c.l.b16 %v8581
        %v9335 = vunpack.c.h.b16 %v8581
        %v9336 = vunpack.c.l.b16 %v8582
        %v9337 = vunpack.c.h.b16 %v8582
        %v9338 = vunpack.c.l.b16 %v8583
        %v9339 = vunpack.c.h.b16 %v8583
        %v9340 = vunpack.c.l.b16 %v8584
        %v9341 = vunpack.c.h.b16 %v8584
        %v9342 = vunpack.c.l.b16 %v8585
        %v9343 = vunpack.c.h.b16 %v8585
        %v9344 = vunpack.c.l.b16 %v8586
        %v9345 = vunpack.c.h.b16 %v8586
        %v9346 = vunpack.c.l.b16 %v8587
        %v9347 = vunpack.c.h.b16 %v8587
        %v9348 = vunpack.c.l.b16 %v8588
        %v9349 = vunpack.c.h.b16 %v8588
        %v9350 = vunpack.c.l.b16 %v8589
        %v9351 = vunpack.c.h.b16 %v8589
        %v9352 = vunpack.c.l.b16 %v8590
        %v9353 = vunpack.c.h.b16 %v8590
        %v9354 = vunpack.c.l.b16 %v8591
        %v9355 = vunpack.c.h.b16 %v8591
        %v9356 = vunpack.c.l.b16 %v8592
        %v9357 = vunpack.c.h.b16 %v8592
        %v9358 = vunpack.c.l.b16 %v8593
        %v9359 = vunpack.c.h.b16 %v8593
        %v9360 = vunpack.c.l.b16 %v8594
        %v9361 = vunpack.c.h.b16 %v8594
        %v9362 = vunpack.c.l.b16 %v8595
        %v9363 = vunpack.c.h.b16 %v8595
        %v9364 = vunpack.c.l.b16 %v8596
        %v9365 = vunpack.c.h.b16 %v8596
        %v9366 = vunpack.c.l.b16 %v8597
        %v9367 = vunpack.c.h.b16 %v8597
        %v9368 = vunpack.c.l.b16 %v8598
        %v9369 = vunpack.c.h.b16 %v8598
        %v9370 = vunpack.c.l.b16 %v8599
        %v9371 = vunpack.c.h.b16 %v8599
        %v9372 = vunpack.c.l.b16 %v8600
        %v9373 = vunpack.c.h.b16 %v8600
        %v9374 = vunpack.c.l.b16 %v8601
        %v9375 = vunpack.c.h.b16 %v8601
        %v9376 = vunpack.c.l.b16 %v8602
        %v9377 = vunpack.c.h.b16 %v8602
        %v9378 = vunpack.c.l.b16 %v8603
        %v9379 = vunpack.c.h.b16 %v8603
        %v9380 = vunpack.c.l.b16 %v8604
        %v9381 = vunpack.c.h.b16 %v8604
        %v9382 = vunpack.c.l.b16 %v8605
        %v9383 = vunpack.c.h.b16 %v8605
        %v9384 = vunpack.c.l.b16 %v8606
        %v9385 = vunpack.c.h.b16 %v8606
        %v9386 = vunpack.c.l.b16 %v8607
        %v9387 = vunpack.c.h.b16 %v8607
        %v9388 = vunpack.c.l.b16 %v8608
        %v9389 = vunpack.c.h.b16 %v8608
        %v9390 = vunpack.c.l.b16 %v8609
        %v9391 = vunpack.c.h.b16 %v8609
        %v9392 = vunpack.c.l.b16 %v8610
        %v9393 = vunpack.c.h.b16 %v8610
        %v9394 = vunpack.c.l.b16 %v8611
        %v9395 = vunpack.c.h.b16 %v8611
        %v9396 = vunpack.c.l.b16 %v8612
        %v9397 = vunpack.c.h.b16 %v8612
        %v9398 = vunpack.c.l.b16 %v8613
        %v9399 = vunpack.c.h.b16 %v8613
        %v9400 = vunpack.c.l.b16 %v8614
        %v9401 = vunpack.c.h.b16 %v8614
        %v9402 = vunpack.c.l.b16 %v8615
        %v9403 = vunpack.c.h.b16 %v8615
        %v9404 = vunpack.c.l.b16 %v8616
        %v9405 = vunpack.c.h.b16 %v8616
        %v9406 = vunpack.c.l.b16 %v8617
        %v9407 = vunpack.c.h.b16 %v8617
        %v9408 = vunpack.c.l.b16 %v8618
        %v9409 = vunpack.c.h.b16 %v8618
        %v9410 = vunpack.c.l.b16 %v8619
        %v9411 = vunpack.c.h.b16 %v8619
        %v9412 = vunpack.c.l.b16 %v8620
        %v9413 = vunpack.c.h.b16 %v8620
        %v9414 = vunpack.c.l.b16 %v8621
        %v9415 = vunpack.c.h.b16 %v8621
        %v9416 = vunpack.c.l.b16 %v8622
        %v9417 = vunpack.c.h.b16 %v8622
        %v9418 = vunpack.c.l.b16 %v8623
        %v9419 = vunpack.c.h.b16 %v8623
        %v9420 = vunpack.c.l.b16 %v8624
        %v9421 = vunpack.c.h.b16 %v8624
        %v9422 = vunpack.c.l.b16 %v8625
        %v9423 = vunpack.c.h.b16 %v8625
        %v9424 = vunpack.c.l.b16 %v8626
        %v9425 = vunpack.c.h.b16 %v8626
        %v9426 = vunpack.c.l.b16 %v8627
        %v9427 = vunpack.c.h.b16 %v8627
        %v9428 = vunpack.c.l.b16 %v8628
        %v9429 = vunpack.c.h.b16 %v8628
        %v9430 = vunpack.c.l.b16 %v8629
        %v9431 = vunpack.c.h.b16 %v8629
        %v9432 = vunpack.c.l.b16 %v8630
        %v9433 = vunpack.c.h.b16 %v8630
        %v9434 = vunpack.c.l.b16 %v8631
        %v9435 = vunpack.c.h.b16 %v8631
        %v9436 = vunpack.c.l.b16 %v8632
        %v9437 = vunpack.c.h.b16 %v8632
        %v9438 = vunpack.c.l.b16 %v8633
        %v9439 = vunpack.c.h.b16 %v8633
        %v9440 = vunpack.c.l.b16 %v8634
        %v9441 = vunpack.c.h.b16 %v8634
        %v9442 = vunpack.c.l.b16 %v8635
        %v9443 = vunpack.c.h.b16 %v8635
        %v9444 = vunpack.c.l.b16 %v8636
        %v9445 = vunpack.c.h.b16 %v8636
        %v9446 = vunpack.c.l.b16 %v8637
        %v9447 = vunpack.c.h.b16 %v8637
        %v9448 = vunpack.c.l.b16 %v8638
        %v9449 = vunpack.c.h.b16 %v8638
        %v9450 = vunpack.c.l.b16 %v8639
        %v9451 = vunpack.c.h.b16 %v8639
        %v9452 = vunpack.c.l.b16 %v8640
        %v9453 = vunpack.c.h.b16 %v8640
        %v9454 = vunpack.c.l.b16 %v8641
        %v9455 = vunpack.c.h.b16 %v8641
        %v9456 = vunpack.c.l.b16 %v8642
        %v9457 = vunpack.c.h.b16 %v8642
        %v9458 = vunpack.c.l.b16 %v8643
        %v9459 = vunpack.c.h.b16 %v8643
        %v9460 = vunpack.c.l.b16 %v8644
        %v9461 = vunpack.c.h.b16 %v8644
        %v9462 = vunpack.c.l.b16 %v8645
        %v9463 = vunpack.c.h.b16 %v8645
        %v9464 = vunpack.c.l.b16 %v8646
        %v9465 = vunpack.c.h.b16 %v8646
        %v9466 = vunpack.c.l.b16 %v8647
        %v9467 = vunpack.c.h.b16 %v8647
        %v9468 = vunpack.c.l.b16 %v8648
        %v9469 = vunpack.c.h.b16 %v8648
        %v9470 = vunpack.c.l.b16 %v8649
        %v9471 = vunpack.c.h.b16 %v8649
        %v9472 = vunpack.c.l.b16 %v8650
        %v9473 = vunpack.c.h.b16 %v8650
        %v9474 = vunpack.c.l.b16 %v8651
        %v9475 = vunpack.c.h.b16 %v8651
        %v9476 = vunpack.c.l.b16 %v8652
        %v9477 = vunpack.c.h.b16 %v8652
        %v9478 = vunpack.c.l.b16 %v8653
        %v9479 = vunpack.c.h.b16 %v8653
        %v9480 = vunpack.c.l.b16 %v8654
        %v9481 = vunpack.c.h.b16 %v8654
        %v9482 = vunpack.c.l.b16 %v8655
        %v9483 = vunpack.c.h.b16 %v8655
        %v9484 = vunpack.c.l.b16 %v8656
        %v9485 = vunpack.c.h.b16 %v8656
        %v9486 = vunpack.c.l.b16 %v8657
        %v9487 = vunpack.c.h.b16 %v8657
        %v9488 = vunpack.c.l.b16 %v8658
        %v9489 = vunpack.c.h.b16 %v8658
        %v9490 = vunpack.c.l.b16 %v8659
        %v9491 = vunpack.c.h.b16 %v8659
        %v9492 = vunpack.c.l.b16 %v8660
        %v9493 = vunpack.c.h.b16 %v8660
        %v9494 = vunpack.c.l.b16 %v8661
        %v9495 = vunpack.c.h.b16 %v8661
        %v9496 = vunpack.c.l.b16 %v8662
        %v9497 = vunpack.c.h.b16 %v8662
        %v9498 = vunpack.c.l.b16 %v8663
        %v9499 = vunpack.c.h.b16 %v8663
        %v9500 = vunpack.c.l.b16 %v8664
        %v9501 = vunpack.c.h.b16 %v8664
        %v9502 = vunpack.c.l.b16 %v8665
        %v9503 = vunpack.c.h.b16 %v8665
        %v9504 = vunpack.c.l.b16 %v8666
        %v9505 = vunpack.c.h.b16 %v8666
        %v9506 = vunpack.c.l.b16 %v8667
        %v9507 = vunpack.c.h.b16 %v8667
        %v9508 = vunpack.c.l.b16 %v8668
        %v9509 = vunpack.c.h.b16 %v8668
        %v9510 = vunpack.c.l.b16 %v8669
        %v9511 = vunpack.c.h.b16 %v8669
        %v9512 = vunpack.c.l.b16 %v8670
        %v9513 = vunpack.c.h.b16 %v8670
        %v9514 = vunpack.c.l.b16 %v8671
        %v9515 = vunpack.c.h.b16 %v8671
        %v9516 = vunpack.c.l.b16 %v8672
        %v9517 = vunpack.c.h.b16 %v8672
        %v9518 = vunpack.c.l.b16 %v8673
        %v9519 = vunpack.c.h.b16 %v8673
        %v9520 = vunpack.c.l.b16 %v8674
        %v9521 = vunpack.c.h.b16 %v8674
        %v9522 = vunpack.c.l.b16 %v8675
        %v9523 = vunpack.c.h.b16 %v8675
        %v9524 = vunpack.c.l.b16 %v8676
        %v9525 = vunpack.c.h.b16 %v8676
        %v9526 = vunpack.c.l.b16 %v8677
        %v9527 = vunpack.c.h.b16 %v8677
        %v9528 = vunpack.c.l.b16 %v8678
        %v9529 = vunpack.c.h.b16 %v8678
        %v9530 = vunpack.c.l.b16 %v8679
        %v9531 = vunpack.c.h.b16 %v8679
        %v9532 = vunpack.c.l.b16 %v8680
        %v9533 = vunpack.c.h.b16 %v8680
        %v9534 = vunpack.c.l.b16 %v8681
        %v9535 = vunpack.c.h.b16 %v8681
        %v9536 = vunpack.c.l.b16 %v8682
        %v9537 = vunpack.c.h.b16 %v8682
        %v9538 = vunpack.c.l.b16 %v8683
        %v9539 = vunpack.c.h.b16 %v8683
        %v9540 = vunpack.c.l.b16 %v8684
        %v9541 = vunpack.c.h.b16 %v8684
        %v9542 = vunpack.c.l.b16 %v8685
        %v9543 = vunpack.c.h.b16 %v8685
        %v9544 = vunpack.c.l.b16 %v8686
        %v9545 = vunpack.c.h.b16 %v8686
        %v9546 = vunpack.c.l.b16 %v8687
        %v9547 = vunpack.c.h.b16 %v8687
        %v9548 = vunpack.c.l.b16 %v8688
        %v9549 = vunpack.c.h.b16 %v8688
        %v9550 = vunpack.c.l.b16 %v8689
        %v9551 = vunpack.c.h.b16 %v8689
        %v9552 = vunpack.c.l.b16 %v8690
        %v9553 = vunpack.c.h.b16 %v8690
        %v9554 = vunpack.c.l.b16 %v8691
        %v9555 = vunpack.c.h.b16 %v8691
        %v9556 = vpack.c.b16 %v8998, %v8980
        %v9557 = vpack.c.b16 %v8999, %v8981
        %v9558 = vpack.c.b16 %v9000, %v8982
        %v9559 = vpack.c.b16 %v9001, %v8983
        %v9560 = vpack.c.b16 %v9002, %v8984
        %v9561 = vpack.c.b16 %v9003, %v8985
        %v9562 = vpack.c.b16 %v9004, %v8986
        %v9563 = vpack.c.b16 %v9005, %v8987
        %v9564 = vpack.c.b16 %v9006, %v8988
        %v9565 = vpack.c.b16 %v9007, %v8989
        %v9566 = vpack.c.b16 %v9008, %v8990
        %v9567 = vpack.c.b16 %v9009, %v8991
        %v9568 = vpack.c.b16 %v9010, %v8992
        %v9569 = vpack.c.b16 %v9011, %v8993
        %v9570 = vpack.c.b16 %v9012, %v8994
        %v9571 = vpack.c.b16 %v9013, %v8995
        %v9572 = vpack.c.b16 %v9014, %v8996
        %v9573 = vpack.c.b16 %v9015, %v8997
        %v9574 = vpack.c.b16 %v9034, %v9016
        %v9575 = vpack.c.b16 %v9035, %v9017
        %v9576 = vpack.c.b16 %v9036, %v9018
        %v9577 = vpack.c.b16 %v9037, %v9019
        %v9578 = vpack.c.b16 %v9038, %v9020
        %v9579 = vpack.c.b16 %v9039, %v9021
        %v9580 = vpack.c.b16 %v9040, %v9022
        %v9581 = vpack.c.b16 %v9041, %v9023
        %v9582 = vpack.c.b16 %v9042, %v9024
        %v9583 = vpack.c.b16 %v9043, %v9025
        %v9584 = vpack.c.b16 %v9044, %v9026
        %v9585 = vpack.c.b16 %v9045, %v9027
        %v9586 = vpack.c.b16 %v9046, %v9028
        %v9587 = vpack.c.b16 %v9047, %v9029
        %v9588 = vpack.c.b16 %v9048, %v9030
        %v9589 = vpack.c.b16 %v9049, %v9031
        %v9590 = vpack.c.b16 %v9050, %v9032
        %v9591 = vpack.c.b16 %v9051, %v9033
        %v9592 = vpack.c.b16 %v9070, %v9052
        %v9593 = vpack.c.b16 %v9071, %v9053
        %v9594 = vpack.c.b16 %v9072, %v9054
        %v9595 = vpack.c.b16 %v9073, %v9055
        %v9596 = vpack.c.b16 %v9074, %v9056
        %v9597 = vpack.c.b16 %v9075, %v9057
        %v9598 = vpack.c.b16 %v9076, %v9058
        %v9599 = vpack.c.b16 %v9077, %v9059
        %v9600 = vpack.c.b16 %v9078, %v9060
        %v9601 = vpack.c.b16 %v9079, %v9061
        %v9602 = vpack.c.b16 %v9080, %v9062
        %v9603 = vpack.c.b16 %v9081, %v9063
        %v9604 = vpack.c.b16 %v9082, %v9064
        %v9605 = vpack.c.b16 %v9083, %v9065
        %v9606 = vpack.c.b16 %v9084, %v9066
        %v9607 = vpack.c.b16 %v9085, %v9067
        %v9608 = vpack.c.b16 %v9086, %v9068
        %v9609 = vpack.c.b16 %v9087, %v9069
        %v9610 = vpack.c.b16 %v9106, %v9088
        %v9611 = vpack.c.b16 %v9107, %v9089
        %v9612 = vpack.c.b16 %v9108, %v9090
        %v9613 = vpack.c.b16 %v9109, %v9091
        %v9614 = vpack.c.b16 %v9110, %v9092
        %v9615 = vpack.c.b16 %v9111, %v9093
        %v9616 = vpack.c.b16 %v9112, %v9094
        %v9617 = vpack.c.b16 %v9113, %v9095
        %v9618 = vpack.c.b16 %v9114, %v9096
        %v9619 = vpack.c.b16 %v9115, %v9097
        %v9620 = vpack.c.b16 %v9116, %v9098
        %v9621 = vpack.c.b16 %v9117, %v9099
        %v9622 = vpack.c.b16 %v9118, %v9100
        %v9623 = vpack.c.b16 %v9119, %v9101
        %v9624 = vpack.c.b16 %v9120, %v9102
        %v9625 = vpack.c.b16 %v9121, %v9103
        %v9626 = vpack.c.b16 %v9122, %v9104
        %v9627 = vpack.c.b16 %v9123, %v9105
        %v9628 = vpack.c.b16 %v9142, %v9124
        %v9629 = vpack.c.b16 %v9143, %v9125
        %v9630 = vpack.c.b16 %v9144, %v9126
        %v9631 = vpack.c.b16 %v9145, %v9127
        %v9632 = vpack.c.b16 %v9146, %v9128
        %v9633 = vpack.c.b16 %v9147, %v9129
        %v9634 = vpack.c.b16 %v9148, %v9130
        %v9635 = vpack.c.b16 %v9149, %v9131
        %v9636 = vpack.c.b16 %v9150, %v9132
        %v9637 = vpack.c.b16 %v9151, %v9133
        %v9638 = vpack.c.b16 %v9152, %v9134
        %v9639 = vpack.c.b16 %v9153, %v9135
        %v9640 = vpack.c.b16 %v9154, %v9136
        %v9641 = vpack.c.b16 %v9155, %v9137
        %v9642 = vpack.c.b16 %v9156, %v9138
        %v9643 = vpack.c.b16 %v9157, %v9139
        %v9644 = vpack.c.b16 %v9158, %v9140
        %v9645 = vpack.c.b16 %v9159, %v9141
        %v9646 = vpack.c.b16 %v9178, %v9160
        %v9647 = vpack.c.b16 %v9179, %v9161
        %v9648 = vpack.c.b16 %v9180, %v9162
        %v9649 = vpack.c.b16 %v9181, %v9163
        %v9650 = vpack.c.b16 %v9182, %v9164
        %v9651 = vpack.c.b16 %v9183, %v9165
        %v9652 = vpack.c.b16 %v9184, %v9166
        %v9653 = vpack.c.b16 %v9185, %v9167
        %v9654 = vpack.c.b16 %v9186, %v9168
        %v9655 = vpack.c.b16 %v9187, %v9169
        %v9656 = vpack.c.b16 %v9188, %v9170
        %v9657 = vpack.c.b16 %v9189, %v9171
        %v9658 = vpack.c.b16 %v9190, %v9172
        %v9659 = vpack.c.b16 %v9191, %v9173
        %v9660 = vpack.c.b16 %v9192, %v9174
        %v9661 = vpack.c.b16 %v9193, %v9175
        %v9662 = vpack.c.b16 %v9194, %v9176
        %v9663 = vpack.c.b16 %v9195, %v9177
        %v9664 = vpack.c.b16 %v9214, %v9196
        %v9665 = vpack.c.b16 %v9215, %v9197
        %v9666 = vpack.c.b16 %v9216, %v9198
        %v9667 = vpack.c.b16 %v9217, %v9199
        %v9668 = vpack.c.b16 %v9218, %v9200
        %v9669 = vpack.c.b16 %v9219, %v9201
        %v9670 = vpack.c.b16 %v9220, %v9202
        %v9671 = vpack.c.b16 %v9221, %v9203
        %v9672 = vpack.c.b16 %v9222, %v9204
        %v9673 = vpack.c.b16 %v9223, %v9205
        %v9674 = vpack.c.b16 %v9224, %v9206
        %v9675 = vpack.c.b16 %v9225, %v9207
        %v9676 = vpack.c.b16 %v9226, %v9208
        %v9677 = vpack.c.b16 %v9227, %v9209
        %v9678 = vpack.c.b16 %v9228, %v9210
        %v9679 = vpack.c.b16 %v9229, %v9211
        %v9680 = vpack.c.b16 %v9230, %v9212
        %v9681 = vpack.c.b16 %v9231, %v9213
        %v9682 = vpack.c.b16 %v9250, %v9232
        %v9683 = vpack.c.b16 %v9251, %v9233
        %v9684 = vpack.c.b16 %v9252, %v9234
        %v9685 = vpack.c.b16 %v9253, %v9235
        %v9686 = vpack.c.b16 %v9254, %v9236
        %v9687 = vpack.c.b16 %v9255, %v9237
        %v9688 = vpack.c.b16 %v9256, %v9238
        %v9689 = vpack.c.b16 %v9257, %v9239
        %v9690 = vpack.c.b16 %v9258, %v9240
        %v9691 = vpack.c.b16 %v9259, %v9241
        %v9692 = vpack.c.b16 %v9260, %v9242
        %v9693 = vpack.c.b16 %v9261, %v9243
        %v9694 = vpack.c.b16 %v9262, %v9244
        %v9695 = vpack.c.b16 %v9263, %v9245
        %v9696 = vpack.c.b16 %v9264, %v9246
        %v9697 = vpack.c.b16 %v9265, %v9247
        %v9698 = vpack.c.b16 %v9266, %v9248
        %v9699 = vpack.c.b16 %v9267, %v9249
        %v9700 = vpack.c.b16 %v9286, %v9268
        %v9701 = vpack.c.b16 %v9287, %v9269
        %v9702 = vpack.c.b16 %v9288, %v9270
        %v9703 = vpack.c.b16 %v9289, %v9271
        %v9704 = vpack.c.b16 %v9290, %v9272
        %v9705 = vpack.c.b16 %v9291, %v9273
        %v9706 = vpack.c.b16 %v9292, %v9274
        %v9707 = vpack.c.b16 %v9293, %v9275
        %v9708 = vpack.c.b16 %v9294, %v9276
        %v9709 = vpack.c.b16 %v9295, %v9277
        %v9710 = vpack.c.b16 %v9296, %v9278
        %v9711 = vpack.c.b16 %v9297, %v9279
        %v9712 = vpack.c.b16 %v9298, %v9280
        %v9713 = vpack.c.b16 %v9299, %v9281
        %v9714 = vpack.c.b16 %v9300, %v9282
        %v9715 = vpack.c.b16 %v9301, %v9283
        %v9716 = vpack.c.b16 %v9302, %v9284
        %v9717 = vpack.c.b16 %v9303, %v9285
        %v9718 = vpack.c.b16 %v9322, %v9304
        %v9719 = vpack.c.b16 %v9323, %v9305
        %v9720 = vpack.c.b16 %v9324, %v9306
        %v9721 = vpack.c.b16 %v9325, %v9307
        %v9722 = vpack.c.b16 %v9326, %v9308
        %v9723 = vpack.c.b16 %v9327, %v9309
        %v9724 = vpack.c.b16 %v9328, %v9310
        %v9725 = vpack.c.b16 %v9329, %v9311
        %v9726 = vpack.c.b16 %v9330, %v9312
        %v9727 = vpack.c.b16 %v9331, %v9313
        %v9728 = vpack.c.b16 %v9332, %v9314
        %v9729 = vpack.c.b16 %v9333, %v9315
        %v9730 = vpack.c.b16 %v9334, %v9316
        %v9731 = vpack.c.b16 %v9335, %v9317
        %v9732 = vpack.c.b16 %v9336, %v9318
        %v9733 = vpack.c.b16 %v9337, %v9319
        %v9734 = vpack.c.b16 %v9338, %v9320
        %v9735 = vpack.c.b16 %v9339, %v9321
        %v9736 = vpack.c.b16 %v9358, %v9340
        %v9737 = vpack.c.b16 %v9359, %v9341
        %v9738 = vpack.c.b16 %v9360, %v9342
        %v9739 = vpack.c.b16 %v9361, %v9343
        %v9740 = vpack.c.b16 %v9362, %v9344
        %v9741 = vpack.c.b16 %v9363, %v9345
        %v9742 = vpack.c.b16 %v9364, %v9346
        %v9743 = vpack.c.b16 %v9365, %v9347
        %v9744 = vpack.c.b16 %v9366, %v9348
        %v9745 = vpack.c.b16 %v9367, %v9349
        %v9746 = vpack.c.b16 %v9368, %v9350
        %v9747 = vpack.c.b16 %v9369, %v9351
        %v9748 = vpack.c.b16 %v9370, %v9352
        %v9749 = vpack.c.b16 %v9371, %v9353
        %v9750 = vpack.c.b16 %v9372, %v9354
        %v9751 = vpack.c.b16 %v9373, %v9355
        %v9752 = vpack.c.b16 %v9374, %v9356
        %v9753 = vpack.c.b16 %v9375, %v9357
        %v9754 = vpack.c.b16 %v9394, %v9376
        %v9755 = vpack.c.b16 %v9395, %v9377
        %v9756 = vpack.c.b16 %v9396, %v9378
        %v9757 = vpack.c.b16 %v9397, %v9379
        %v9758 = vpack.c.b16 %v9398, %v9380
        %v9759 = vpack.c.b16 %v9399, %v9381
        %v9760 = vpack.c.b16 %v9400, %v9382
        %v9761 = vpack.c.b16 %v9401, %v9383
        %v9762 = vpack.c.b16 %v9402, %v9384
        %v9763 = vpack.c.b16 %v9403, %v9385
        %v9764 = vpack.c.b16 %v9404, %v9386
        %v9765 = vpack.c.b16 %v9405, %v9387
        %v9766 = vpack.c.b16 %v9406, %v9388
        %v9767 = vpack.c.b16 %v9407, %v9389
        %v9768 = vpack.c.b16 %v9408, %v9390
        %v9769 = vpack.c.b16 %v9409, %v9391
        %v9770 = vpack.c.b16 %v9410, %v9392
        %v9771 = vpack.c.b16 %v9411, %v9393
        %v9772 = vpack.c.b16 %v9430, %v9412
        %v9773 = vpack.c.b16 %v9431, %v9413
        %v9774 = vpack.c.b16 %v9432, %v9414
        %v9775 = vpack.c.b16 %v9433, %v9415
        %v9776 = vpack.c.b16 %v9434, %v9416
        %v9777 = vpack.c.b16 %v9435, %v9417
        %v9778 = vpack.c.b16 %v9436, %v9418
        %v9779 = vpack.c.b16 %v9437, %v9419
        %v9780 = vpack.c.b16 %v9438, %v9420
        %v9781 = vpack.c.b16 %v9439, %v9421
        %v9782 = vpack.c.b16 %v9440, %v9422
        %v9783 = vpack.c.b16 %v9441, %v9423
        %v9784 = vpack.c.b16 %v9442, %v9424
        %v9785 = vpack.c.b16 %v9443, %v9425
        %v9786 = vpack.c.b16 %v9444, %v9426
        %v9787 = vpack.c.b16 %v9445, %v9427
        %v9788 = vpack.c.b16 %v9446, %v9428
        %v9789 = vpack.c.b16 %v9447, %v9429
        %v9790 = vpack.c.b16 %v9466, %v9448
        %v9791 = vpack.c.b16 %v9467, %v9449
        %v9792 = vpack.c.b16 %v9468, %v9450
        %v9793 = vpack.c.b16 %v9469, %v9451
        %v9794 = vpack.c.b16 %v9470, %v9452
        %v9795 = vpack.c.b16 %v9471, %v9453
        %v9796 = vpack.c.b16 %v9472, %v9454
        %v9797 = vpack.c.b16 %v9473, %v9455
        %v9798 = vpack.c.b16 %v9474, %v9456
        %v9799 = vpack.c.b16 %v9475, %v9457
        %v9800 = vpack.c.b16 %v9476, %v9458
        %v9801 = vpack.c.b16 %v9477, %v9459
        %v9802 = vpack.c.b16 %v9478, %v9460
        %v9803 = vpack.c.b16 %v9479, %v9461
        %v9804 = vpack.c.b16 %v9480, %v9462
        %v9805 = vpack.c.b16 %v9481, %v9463
        %v9806 = vpack.c.b16 %v9482, %v9464
        %v9807 = vpack.c.b16 %v9483, %v9465
        %v9808 = vpack.c.b16 %v9502, %v9484
        %v9809 = vpack.c.b16 %v9503, %v9485
        %v9810 = vpack.c.b16 %v9504, %v9486
        %v9811 = vpack.c.b16 %v9505, %v9487
        %v9812 = vpack.c.b16 %v9506, %v9488
        %v9813 = vpack.c.b16 %v9507, %v9489
        %v9814 = vpack.c.b16 %v9508, %v9490
        %v9815 = vpack.c.b16 %v9509, %v9491
        %v9816 = vpack.c.b16 %v9510, %v9492
        %v9817 = vpack.c.b16 %v9511, %v9493
        %v9818 = vpack.c.b16 %v9512, %v9494
        %v9819 = vpack.c.b16 %v9513, %v9495
        %v9820 = vpack.c.b16 %v9514, %v9496
        %v9821 = vpack.c.b16 %v9515, %v9497
        %v9822 = vpack.c.b16 %v9516, %v9498
        %v9823 = vpack.c.b16 %v9517, %v9499
        %v9824 = vpack.c.b16 %v9518, %v9500
        %v9825 = vpack.c.b16 %v9519, %v9501
        %v9826 = vpack.c.b16 %v9538, %v9520
        %v9827 = vpack.c.b16 %v9539, %v9521
        %v9828 = vpack.c.b16 %v9540, %v9522
        %v9829 = vpack.c.b16 %v9541, %v9523
        %v9830 = vpack.c.b16 %v9542, %v9524
        %v9831 = vpack.c.b16 %v9543, %v9525
        %v9832 = vpack.c.b16 %v9544, %v9526
        %v9833 = vpack.c.b16 %v9545, %v9527
        %v9834 = vpack.c.b16 %v9546, %v9528
        %v9835 = vpack.c.b16 %v9547, %v9529
        %v9836 = vpack.c.b16 %v9548, %v9530
        %v9837 = vpack.c.b16 %v9549, %v9531
        %v9838 = vpack.c.b16 %v9550, %v9532
        %v9839 = vpack.c.b16 %v9551, %v9533
        %v9840 = vpack.c.b16 %v9552, %v9534
        %v9841 = vpack.c.b16 %v9553, %v9535
        %v9842 = vpack.c.b16 %v9554, %v9536
        %v9843 = vpack.c.b16 %v9555, %v9537
        %10132 = vmatpush.bf16.msra.mxu0 %v9682
        %10133 = vmatpush.bf16.msra.mxu0 %v9664
        %10134 = vmatpush.bf16.msra.mxu0 %v9646
        %10135 = vmatpush.bf16.msra.mxu0 %v9628
        %10136 = vmatpush.bf16.msra.mxu0 %v9610
        %10137 = vmatpush.bf16.msra.mxu0 %v9592
        %10138 = vmatpush.bf16.msra.mxu0 %v9574
        %10139 = vmatpush.bf16.msra.mxu0 %v9556
        %10140 = vmatmul.bf16.gmra.mxu0 %v8402
        %v10141 = vpop.f32.mrf.mxu0
        %v10142 = vadd.f32 0.0, %v10141
        %v10143 = vpop.f32.mrf.mxu0
        %10144 = vdwg.mxu0
        %10145 = vmatpush.bf16.msra.mxu0 %v9826
        %10146 = vmatpush.bf16.msra.mxu0 %v9808
        %10147 = vmatpush.bf16.msra.mxu0 %v9790
        %10148 = vmatpush.bf16.msra.mxu0 %v9772
        %10149 = vmatpush.bf16.msra.mxu0 %v9754
        %10150 = vmatpush.bf16.msra.mxu0 %v9736
        %10151 = vmatpush.bf16.msra.mxu0 %v9718
        %10152 = vmatpush.bf16.msra.mxu0 %v9700
        %10153 = vmatmul.bf16.gmra.mxu0 %v8403
        %v10154 = vpop.f32.mrf.mxu0
        %v10155 = vadd.f32 %v10142, %v10154
        %v10156 = vpop.f32.mrf.mxu0
        %10157 = vdwg.mxu0
        %10158 = vmatpush.bf16.msra.mxu0 %v9683
        %10159 = vmatpush.bf16.msra.mxu0 %v9665
        %10160 = vmatpush.bf16.msra.mxu0 %v9647
        %10161 = vmatpush.bf16.msra.mxu0 %v9629
        %10162 = vmatpush.bf16.msra.mxu0 %v9611
        %10163 = vmatpush.bf16.msra.mxu0 %v9593
        %10164 = vmatpush.bf16.msra.mxu0 %v9575
        %10165 = vmatpush.bf16.msra.mxu0 %v9557
        %10166 = vmatmul.bf16.gmra.mxu0 %v8402
        %v10167 = vpop.f32.mrf.mxu0
        %v10168 = vadd.f32 0.0, %v10167
        %v10169 = vpop.f32.mrf.mxu0
        %10170 = vdwg.mxu0
        %10171 = vmatpush.bf16.msra.mxu0 %v9827
        %10172 = vmatpush.bf16.msra.mxu0 %v9809
        %10173 = vmatpush.bf16.msra.mxu0 %v9791
        %10174 = vmatpush.bf16.msra.mxu0 %v9773
        %10175 = vmatpush.bf16.msra.mxu0 %v9755
        %10176 = vmatpush.bf16.msra.mxu0 %v9737
        %10177 = vmatpush.bf16.msra.mxu0 %v9719
        %10178 = vmatpush.bf16.msra.mxu0 %v9701
        %10179 = vmatmul.bf16.gmra.mxu0 %v8403
        %v10180 = vpop.f32.mrf.mxu0
        %v10181 = vadd.f32 %v10168, %v10180
        %v10182 = vpop.f32.mrf.mxu0
        %10183 = vdwg.mxu0
        %10184 = vmatpush.bf16.msra.mxu0 %v9684
        %10185 = vmatpush.bf16.msra.mxu0 %v9666
        %10186 = vmatpush.bf16.msra.mxu0 %v9648
        %10187 = vmatpush.bf16.msra.mxu0 %v9630
        %10188 = vmatpush.bf16.msra.mxu0 %v9612
        %10189 = vmatpush.bf16.msra.mxu0 %v9594
        %10190 = vmatpush.bf16.msra.mxu0 %v9576
        %10191 = vmatpush.bf16.msra.mxu0 %v9558
        %10192 = vmatmul.bf16.gmra.mxu0 %v8402
        %v10193 = vpop.f32.mrf.mxu0
        %v10194 = vadd.f32 0.0, %v10193
        %v10195 = vpop.f32.mrf.mxu0
        %10196 = vdwg.mxu0
        %10197 = vmatpush.bf16.msra.mxu0 %v9828
        %10198 = vmatpush.bf16.msra.mxu0 %v9810
        %10199 = vmatpush.bf16.msra.mxu0 %v9792
        %10200 = vmatpush.bf16.msra.mxu0 %v9774
        %10201 = vmatpush.bf16.msra.mxu0 %v9756
        %10202 = vmatpush.bf16.msra.mxu0 %v9738
        %10203 = vmatpush.bf16.msra.mxu0 %v9720
        %10204 = vmatpush.bf16.msra.mxu0 %v9702
        %10205 = vmatmul.bf16.gmra.mxu0 %v8403
        %v10206 = vpop.f32.mrf.mxu0
        %v10207 = vadd.f32 %v10194, %v10206
        %v10208 = vpop.f32.mrf.mxu0
        %10209 = vdwg.mxu0
        %10210 = vmatpush.bf16.msra.mxu0 %v9685
        %10211 = vmatpush.bf16.msra.mxu0 %v9667
        %10212 = vmatpush.bf16.msra.mxu0 %v9649
        %10213 = vmatpush.bf16.msra.mxu0 %v9631
        %10214 = vmatpush.bf16.msra.mxu0 %v9613
        %10215 = vmatpush.bf16.msra.mxu0 %v9595
        %10216 = vmatpush.bf16.msra.mxu0 %v9577
        %10217 = vmatpush.bf16.msra.mxu0 %v9559
        %10218 = vmatmul.bf16.gmra.mxu0 %v8402
        %v10219 = vpop.f32.mrf.mxu0
        %v10220 = vadd.f32 0.0, %v10219
        %v10221 = vpop.f32.mrf.mxu0
        %10222 = vdwg.mxu0
        %10223 = vmatpush.bf16.msra.mxu0 %v9829
        %10224 = vmatpush.bf16.msra.mxu0 %v9811
        %10225 = vmatpush.bf16.msra.mxu0 %v9793
        %10226 = vmatpush.bf16.msra.mxu0 %v9775
        %10227 = vmatpush.bf16.msra.mxu0 %v9757
        %10228 = vmatpush.bf16.msra.mxu0 %v9739
        %10229 = vmatpush.bf16.msra.mxu0 %v9721
        %10230 = vmatpush.bf16.msra.mxu0 %v9703
        %10231 = vmatmul.bf16.gmra.mxu0 %v8403
        %v10232 = vpop.f32.mrf.mxu0
        %v10233 = vadd.f32 %v10220, %v10232
        %v10234 = vpop.f32.mrf.mxu0
        %10235 = vdwg.mxu0
        %10236 = vmatpush.bf16.msra.mxu0 %v9686
        %10237 = vmatpush.bf16.msra.mxu0 %v9668
        %10238 = vmatpush.bf16.msra.mxu0 %v9650
        %10239 = vmatpush.bf16.msra.mxu0 %v9632
        %10240 = vmatpush.bf16.msra.mxu0 %v9614
        %10241 = vmatpush.bf16.msra.mxu0 %v9596
        %10242 = vmatpush.bf16.msra.mxu0 %v9578
        %10243 = vmatpush.bf16.msra.mxu0 %v9560
        %10244 = vmatmul.bf16.gmra.mxu0 %v8402
        %v10245 = vpop.f32.mrf.mxu0
        %v10246 = vadd.f32 0.0, %v10245
        %v10247 = vpop.f32.mrf.mxu0
        %10248 = vdwg.mxu0
        %10249 = vmatpush.bf16.msra.mxu0 %v9830
        %10250 = vmatpush.bf16.msra.mxu0 %v9812
        %10251 = vmatpush.bf16.msra.mxu0 %v9794
        %10252 = vmatpush.bf16.msra.mxu0 %v9776
        %10253 = vmatpush.bf16.msra.mxu0 %v9758
        %10254 = vmatpush.bf16.msra.mxu0 %v9740
        %10255 = vmatpush.bf16.msra.mxu0 %v9722
        %10256 = vmatpush.bf16.msra.mxu0 %v9704
        %10257 = vmatmul.bf16.gmra.mxu0 %v8403
        %v10258 = vpop.f32.mrf.mxu0
        %v10259 = vadd.f32 %v10246, %v10258
        %v10260 = vpop.f32.mrf.mxu0
        %10261 = vdwg.mxu0
        %10262 = vmatpush.bf16.msra.mxu0 %v9687
        %10263 = vmatpush.bf16.msra.mxu0 %v9669
        %10264 = vmatpush.bf16.msra.mxu0 %v9651
        %10265 = vmatpush.bf16.msra.mxu0 %v9633
        %10266 = vmatpush.bf16.msra.mxu0 %v9615
        %10267 = vmatpush.bf16.msra.mxu0 %v9597
        %10268 = vmatpush.bf16.msra.mxu0 %v9579
        %10269 = vmatpush.bf16.msra.mxu0 %v9561
        %10270 = vmatmul.bf16.gmra.mxu0 %v8402
        %v10271 = vpop.f32.mrf.mxu0
        %v10272 = vadd.f32 0.0, %v10271
        %v10273 = vpop.f32.mrf.mxu0
        %10274 = vdwg.mxu0
        %10275 = vmatpush.bf16.msra.mxu0 %v9831
        %10276 = vmatpush.bf16.msra.mxu0 %v9813
        %10277 = vmatpush.bf16.msra.mxu0 %v9795
        %10278 = vmatpush.bf16.msra.mxu0 %v9777
        %10279 = vmatpush.bf16.msra.mxu0 %v9759
        %10280 = vmatpush.bf16.msra.mxu0 %v9741
        %10281 = vmatpush.bf16.msra.mxu0 %v9723
        %10282 = vmatpush.bf16.msra.mxu0 %v9705
        %10283 = vmatmul.bf16.gmra.mxu0 %v8403
        %v10284 = vpop.f32.mrf.mxu0
        %v10285 = vadd.f32 %v10272, %v10284
        %v10286 = vpop.f32.mrf.mxu0
        %10287 = vdwg.mxu0
        %10288 = vmatpush.bf16.msra.mxu0 %v9688
        %10289 = vmatpush.bf16.msra.mxu0 %v9670
        %10290 = vmatpush.bf16.msra.mxu0 %v9652
        %10291 = vmatpush.bf16.msra.mxu0 %v9634
        %10292 = vmatpush.bf16.msra.mxu0 %v9616
        %10293 = vmatpush.bf16.msra.mxu0 %v9598
        %10294 = vmatpush.bf16.msra.mxu0 %v9580
        %10295 = vmatpush.bf16.msra.mxu0 %v9562
        %10296 = vmatmul.bf16.gmra.mxu0 %v8402
        %v10297 = vpop.f32.mrf.mxu0
        %v10298 = vadd.f32 0.0, %v10297
        %v10299 = vpop.f32.mrf.mxu0
        %10300 = vdwg.mxu0
        %10301 = vmatpush.bf16.msra.mxu0 %v9832
        %10302 = vmatpush.bf16.msra.mxu0 %v9814
        %10303 = vmatpush.bf16.msra.mxu0 %v9796
        %10304 = vmatpush.bf16.msra.mxu0 %v9778
        %10305 = vmatpush.bf16.msra.mxu0 %v9760
        %10306 = vmatpush.bf16.msra.mxu0 %v9742
        %10307 = vmatpush.bf16.msra.mxu0 %v9724
        %10308 = vmatpush.bf16.msra.mxu0 %v9706
        %10309 = vmatmul.bf16.gmra.mxu0 %v8403
        %v10310 = vpop.f32.mrf.mxu0
        %v10311 = vadd.f32 %v10298, %v10310
        %v10312 = vpop.f32.mrf.mxu0
        %10313 = vdwg.mxu0
        %10314 = vmatpush.bf16.msra.mxu0 %v9689
        %10315 = vmatpush.bf16.msra.mxu0 %v9671
        %10316 = vmatpush.bf16.msra.mxu0 %v9653
        %10317 = vmatpush.bf16.msra.mxu0 %v9635
        %10318 = vmatpush.bf16.msra.mxu0 %v9617
        %10319 = vmatpush.bf16.msra.mxu0 %v9599
        %10320 = vmatpush.bf16.msra.mxu0 %v9581
        %10321 = vmatpush.bf16.msra.mxu0 %v9563
        %10322 = vmatmul.bf16.gmra.mxu0 %v8402
        %v10323 = vpop.f32.mrf.mxu0
        %v10324 = vadd.f32 0.0, %v10323
        %v10325 = vpop.f32.mrf.mxu0
        %10326 = vdwg.mxu0
        %10327 = vmatpush.bf16.msra.mxu0 %v9833
        %10328 = vmatpush.bf16.msra.mxu0 %v9815
        %10329 = vmatpush.bf16.msra.mxu0 %v9797
        %10330 = vmatpush.bf16.msra.mxu0 %v9779
        %10331 = vmatpush.bf16.msra.mxu0 %v9761
        %10332 = vmatpush.bf16.msra.mxu0 %v9743
        %10333 = vmatpush.bf16.msra.mxu0 %v9725
        %10334 = vmatpush.bf16.msra.mxu0 %v9707
        %10335 = vmatmul.bf16.gmra.mxu0 %v8403
        %v10336 = vpop.f32.mrf.mxu0
        %v10337 = vadd.f32 %v10324, %v10336
        %v10338 = vpop.f32.mrf.mxu0
        %10339 = vdwg.mxu0
        %10340 = vmatpush.bf16.msra.mxu0 %v9690
        %10341 = vmatpush.bf16.msra.mxu0 %v9672
        %10342 = vmatpush.bf16.msra.mxu0 %v9654
        %10343 = vmatpush.bf16.msra.mxu0 %v9636
        %10344 = vmatpush.bf16.msra.mxu0 %v9618
        %10345 = vmatpush.bf16.msra.mxu0 %v9600
        %10346 = vmatpush.bf16.msra.mxu0 %v9582
        %10347 = vmatpush.bf16.msra.mxu0 %v9564
        %10348 = vmatmul.bf16.gmra.mxu0 %v8402
        %v10349 = vpop.f32.mrf.mxu0
        %v10350 = vadd.f32 0.0, %v10349
        %v10351 = vpop.f32.mrf.mxu0
        %10352 = vdwg.mxu0
        %10353 = vmatpush.bf16.msra.mxu0 %v9834
        %10354 = vmatpush.bf16.msra.mxu0 %v9816
        %10355 = vmatpush.bf16.msra.mxu0 %v9798
        %10356 = vmatpush.bf16.msra.mxu0 %v9780
        %10357 = vmatpush.bf16.msra.mxu0 %v9762
        %10358 = vmatpush.bf16.msra.mxu0 %v9744
        %10359 = vmatpush.bf16.msra.mxu0 %v9726
        %10360 = vmatpush.bf16.msra.mxu0 %v9708
        %10361 = vmatmul.bf16.gmra.mxu0 %v8403
        %v10362 = vpop.f32.mrf.mxu0
        %v10363 = vadd.f32 %v10350, %v10362
        %v10364 = vpop.f32.mrf.mxu0
        %10365 = vdwg.mxu0
        %10366 = vmatpush.bf16.msra.mxu0 %v9691
        %10367 = vmatpush.bf16.msra.mxu0 %v9673
        %10368 = vmatpush.bf16.msra.mxu0 %v9655
        %10369 = vmatpush.bf16.msra.mxu0 %v9637
        %10370 = vmatpush.bf16.msra.mxu0 %v9619
        %10371 = vmatpush.bf16.msra.mxu0 %v9601
        %10372 = vmatpush.bf16.msra.mxu0 %v9583
        %10373 = vmatpush.bf16.msra.mxu0 %v9565
        %10374 = vmatmul.bf16.gmra.mxu0 %v8402
        %v10375 = vpop.f32.mrf.mxu0
        %v10376 = vadd.f32 0.0, %v10375
        %v10377 = vpop.f32.mrf.mxu0
        %10378 = vdwg.mxu0
        %10379 = vmatpush.bf16.msra.mxu0 %v9835
        %10380 = vmatpush.bf16.msra.mxu0 %v9817
        %10381 = vmatpush.bf16.msra.mxu0 %v9799
        %10382 = vmatpush.bf16.msra.mxu0 %v9781
        %10383 = vmatpush.bf16.msra.mxu0 %v9763
        %10384 = vmatpush.bf16.msra.mxu0 %v9745
        %10385 = vmatpush.bf16.msra.mxu0 %v9727
        %10386 = vmatpush.bf16.msra.mxu0 %v9709
        %10387 = vmatmul.bf16.gmra.mxu0 %v8403
        %v10388 = vpop.f32.mrf.mxu0
        %v10389 = vadd.f32 %v10376, %v10388
        %v10390 = vpop.f32.mrf.mxu0
        %10391 = vdwg.mxu0
        %10392 = vmatpush.bf16.msra.mxu0 %v9692
        %10393 = vmatpush.bf16.msra.mxu0 %v9674
        %10394 = vmatpush.bf16.msra.mxu0 %v9656
        %10395 = vmatpush.bf16.msra.mxu0 %v9638
        %10396 = vmatpush.bf16.msra.mxu0 %v9620
        %10397 = vmatpush.bf16.msra.mxu0 %v9602
        %10398 = vmatpush.bf16.msra.mxu0 %v9584
        %10399 = vmatpush.bf16.msra.mxu0 %v9566
        %10400 = vmatmul.bf16.gmra.mxu0 %v8402
        %v10401 = vpop.f32.mrf.mxu0
        %v10402 = vadd.f32 0.0, %v10401
        %v10403 = vpop.f32.mrf.mxu0
        %10404 = vdwg.mxu0
        %10405 = vmatpush.bf16.msra.mxu0 %v9836
        %10406 = vmatpush.bf16.msra.mxu0 %v9818
        %10407 = vmatpush.bf16.msra.mxu0 %v9800
        %10408 = vmatpush.bf16.msra.mxu0 %v9782
        %10409 = vmatpush.bf16.msra.mxu0 %v9764
        %10410 = vmatpush.bf16.msra.mxu0 %v9746
        %10411 = vmatpush.bf16.msra.mxu0 %v9728
        %10412 = vmatpush.bf16.msra.mxu0 %v9710
        %10413 = vmatmul.bf16.gmra.mxu0 %v8403
        %v10414 = vpop.f32.mrf.mxu0
        %v10415 = vadd.f32 %v10402, %v10414
        %v10416 = vpop.f32.mrf.mxu0
        %10417 = vdwg.mxu0
        %10418 = vmatpush.bf16.msra.mxu0 %v9693
        %10419 = vmatpush.bf16.msra.mxu0 %v9675
        %10420 = vmatpush.bf16.msra.mxu0 %v9657
        %10421 = vmatpush.bf16.msra.mxu0 %v9639
        %10422 = vmatpush.bf16.msra.mxu0 %v9621
        %10423 = vmatpush.bf16.msra.mxu0 %v9603
        %10424 = vmatpush.bf16.msra.mxu0 %v9585
        %10425 = vmatpush.bf16.msra.mxu0 %v9567
        %10426 = vmatmul.bf16.gmra.mxu0 %v8402
        %v10427 = vpop.f32.mrf.mxu0
        %v10428 = vadd.f32 0.0, %v10427
        %v10429 = vpop.f32.mrf.mxu0
        %10430 = vdwg.mxu0
        %10431 = vmatpush.bf16.msra.mxu0 %v9837
        %10432 = vmatpush.bf16.msra.mxu0 %v9819
        %10433 = vmatpush.bf16.msra.mxu0 %v9801
        %10434 = vmatpush.bf16.msra.mxu0 %v9783
        %10435 = vmatpush.bf16.msra.mxu0 %v9765
        %10436 = vmatpush.bf16.msra.mxu0 %v9747
        %10437 = vmatpush.bf16.msra.mxu0 %v9729
        %10438 = vmatpush.bf16.msra.mxu0 %v9711
        %10439 = vmatmul.bf16.gmra.mxu0 %v8403
        %v10440 = vpop.f32.mrf.mxu0
        %v10441 = vadd.f32 %v10428, %v10440
        %v10442 = vpop.f32.mrf.mxu0
        %10443 = vdwg.mxu0
        %10444 = vmatpush.bf16.msra.mxu0 %v9694
        %10445 = vmatpush.bf16.msra.mxu0 %v9676
        %10446 = vmatpush.bf16.msra.mxu0 %v9658
        %10447 = vmatpush.bf16.msra.mxu0 %v9640
        %10448 = vmatpush.bf16.msra.mxu0 %v9622
        %10449 = vmatpush.bf16.msra.mxu0 %v9604
        %10450 = vmatpush.bf16.msra.mxu0 %v9586
        %10451 = vmatpush.bf16.msra.mxu0 %v9568
        %10452 = vmatmul.bf16.gmra.mxu0 %v8402
        %v10453 = vpop.f32.mrf.mxu0
        %v10454 = vadd.f32 0.0, %v10453
        %v10455 = vpop.f32.mrf.mxu0
        %10456 = vdwg.mxu0
        %10457 = vmatpush.bf16.msra.mxu0 %v9838
        %10458 = vmatpush.bf16.msra.mxu0 %v9820
        %10459 = vmatpush.bf16.msra.mxu0 %v9802
        %10460 = vmatpush.bf16.msra.mxu0 %v9784
        %10461 = vmatpush.bf16.msra.mxu0 %v9766
        %10462 = vmatpush.bf16.msra.mxu0 %v9748
        %10463 = vmatpush.bf16.msra.mxu0 %v9730
        %10464 = vmatpush.bf16.msra.mxu0 %v9712
        %10465 = vmatmul.bf16.gmra.mxu0 %v8403
        %v10466 = vpop.f32.mrf.mxu0
        %v10467 = vadd.f32 %v10454, %v10466
        %v10468 = vpop.f32.mrf.mxu0
        %10469 = vdwg.mxu0
        %10470 = vmatpush.bf16.msra.mxu0 %v9695
        %10471 = vmatpush.bf16.msra.mxu0 %v9677
        %10472 = vmatpush.bf16.msra.mxu0 %v9659
        %10473 = vmatpush.bf16.msra.mxu0 %v9641
        %10474 = vmatpush.bf16.msra.mxu0 %v9623
        %10475 = vmatpush.bf16.msra.mxu0 %v9605
        %10476 = vmatpush.bf16.msra.mxu0 %v9587
        %10477 = vmatpush.bf16.msra.mxu0 %v9569
        %10478 = vmatmul.bf16.gmra.mxu0 %v8402
        %v10479 = vpop.f32.mrf.mxu0
        %v10480 = vadd.f32 0.0, %v10479
        %v10481 = vpop.f32.mrf.mxu0
        %10482 = vdwg.mxu0
        %10483 = vmatpush.bf16.msra.mxu0 %v9839
        %10484 = vmatpush.bf16.msra.mxu0 %v9821
        %10485 = vmatpush.bf16.msra.mxu0 %v9803
        %10486 = vmatpush.bf16.msra.mxu0 %v9785
        %10487 = vmatpush.bf16.msra.mxu0 %v9767
        %10488 = vmatpush.bf16.msra.mxu0 %v9749
        %10489 = vmatpush.bf16.msra.mxu0 %v9731
        %10490 = vmatpush.bf16.msra.mxu0 %v9713
        %10491 = vmatmul.bf16.gmra.mxu0 %v8403
        %v10492 = vpop.f32.mrf.mxu0
        %v10493 = vadd.f32 %v10480, %v10492
        %v10494 = vpop.f32.mrf.mxu0
        %10495 = vdwg.mxu0
        %10496 = vmatpush.bf16.msra.mxu0 %v9696
        %10497 = vmatpush.bf16.msra.mxu0 %v9678
        %10498 = vmatpush.bf16.msra.mxu0 %v9660
        %10499 = vmatpush.bf16.msra.mxu0 %v9642
        %10500 = vmatpush.bf16.msra.mxu0 %v9624
        %10501 = vmatpush.bf16.msra.mxu0 %v9606
        %10502 = vmatpush.bf16.msra.mxu0 %v9588
        %10503 = vmatpush.bf16.msra.mxu0 %v9570
        %10504 = vmatmul.bf16.gmra.mxu0 %v8402
        %v10505 = vpop.f32.mrf.mxu0
        %v10506 = vadd.f32 0.0, %v10505
        %v10507 = vpop.f32.mrf.mxu0
        %10508 = vdwg.mxu0
        %10509 = vmatpush.bf16.msra.mxu0 %v9840
        %10510 = vmatpush.bf16.msra.mxu0 %v9822
        %10511 = vmatpush.bf16.msra.mxu0 %v9804
        %10512 = vmatpush.bf16.msra.mxu0 %v9786
        %10513 = vmatpush.bf16.msra.mxu0 %v9768
        %10514 = vmatpush.bf16.msra.mxu0 %v9750
        %10515 = vmatpush.bf16.msra.mxu0 %v9732
        %10516 = vmatpush.bf16.msra.mxu0 %v9714
        %10517 = vmatmul.bf16.gmra.mxu0 %v8403
        %v10518 = vpop.f32.mrf.mxu0
        %v10519 = vadd.f32 %v10506, %v10518
        %v10520 = vpop.f32.mrf.mxu0
        %10521 = vdwg.mxu0
        %10522 = vmatpush.bf16.msra.mxu0 %v9697
        %10523 = vmatpush.bf16.msra.mxu0 %v9679
        %10524 = vmatpush.bf16.msra.mxu0 %v9661
        %10525 = vmatpush.bf16.msra.mxu0 %v9643
        %10526 = vmatpush.bf16.msra.mxu0 %v9625
        %10527 = vmatpush.bf16.msra.mxu0 %v9607
        %10528 = vmatpush.bf16.msra.mxu0 %v9589
        %10529 = vmatpush.bf16.msra.mxu0 %v9571
        %10530 = vmatmul.bf16.gmra.mxu0 %v8402
        %v10531 = vpop.f32.mrf.mxu0
        %v10532 = vadd.f32 0.0, %v10531
        %v10533 = vpop.f32.mrf.mxu0
        %10534 = vdwg.mxu0
        %10535 = vmatpush.bf16.msra.mxu0 %v9841
        %10536 = vmatpush.bf16.msra.mxu0 %v9823
        %10537 = vmatpush.bf16.msra.mxu0 %v9805
        %10538 = vmatpush.bf16.msra.mxu0 %v9787
        %10539 = vmatpush.bf16.msra.mxu0 %v9769
        %10540 = vmatpush.bf16.msra.mxu0 %v9751
        %10541 = vmatpush.bf16.msra.mxu0 %v9733
        %10542 = vmatpush.bf16.msra.mxu0 %v9715
        %10543 = vmatmul.bf16.gmra.mxu0 %v8403
        %v10544 = vpop.f32.mrf.mxu0
        %v10545 = vadd.f32 %v10532, %v10544
        %v10546 = vpop.f32.mrf.mxu0
        %10547 = vdwg.mxu0
        %10548 = vmatpush.bf16.msra.mxu0 %v9698
        %10549 = vmatpush.bf16.msra.mxu0 %v9680
        %10550 = vmatpush.bf16.msra.mxu0 %v9662
        %10551 = vmatpush.bf16.msra.mxu0 %v9644
        %10552 = vmatpush.bf16.msra.mxu0 %v9626
        %10553 = vmatpush.bf16.msra.mxu0 %v9608
        %10554 = vmatpush.bf16.msra.mxu0 %v9590
        %10555 = vmatpush.bf16.msra.mxu0 %v9572
        %10556 = vmatmul.bf16.gmra.mxu0 %v8402
        %v10557 = vpop.f32.mrf.mxu0
        %v10558 = vadd.f32 0.0, %v10557
        %v10559 = vpop.f32.mrf.mxu0
        %10560 = vdwg.mxu0
        %10561 = vmatpush.bf16.msra.mxu0 %v9842
        %10562 = vmatpush.bf16.msra.mxu0 %v9824
        %10563 = vmatpush.bf16.msra.mxu0 %v9806
        %10564 = vmatpush.bf16.msra.mxu0 %v9788
        %10565 = vmatpush.bf16.msra.mxu0 %v9770
        %10566 = vmatpush.bf16.msra.mxu0 %v9752
        %10567 = vmatpush.bf16.msra.mxu0 %v9734
        %10568 = vmatpush.bf16.msra.mxu0 %v9716
        %10569 = vmatmul.bf16.gmra.mxu0 %v8403
        %v10570 = vpop.f32.mrf.mxu0
        %v10571 = vadd.f32 %v10558, %v10570
        %v10572 = vpop.f32.mrf.mxu0
        %10573 = vdwg.mxu0
        %10574 = vmatpush.bf16.msra.mxu0 %v9699
        %10575 = vmatpush.bf16.msra.mxu0 %v9681
        %10576 = vmatpush.bf16.msra.mxu0 %v9663
        %10577 = vmatpush.bf16.msra.mxu0 %v9645
        %10578 = vmatpush.bf16.msra.mxu0 %v9627
        %10579 = vmatpush.bf16.msra.mxu0 %v9609
        %10580 = vmatpush.bf16.msra.mxu0 %v9591
        %10581 = vmatpush.bf16.msra.mxu0 %v9573
        %10582 = vmatmul.bf16.gmra.mxu0 %v8402
        %v10583 = vpop.f32.mrf.mxu0
        %v10584 = vadd.f32 0.0, %v10583
        %v10585 = vpop.f32.mrf.mxu0
        %10586 = vdwg.mxu0
        %10587 = vmatpush.bf16.msra.mxu0 %v9843
        %10588 = vmatpush.bf16.msra.mxu0 %v9825
        %10589 = vmatpush.bf16.msra.mxu0 %v9807
        %10590 = vmatpush.bf16.msra.mxu0 %v9789
        %10591 = vmatpush.bf16.msra.mxu0 %v9771
        %10592 = vmatpush.bf16.msra.mxu0 %v9753
        %10593 = vmatpush.bf16.msra.mxu0 %v9735
        %10594 = vmatpush.bf16.msra.mxu0 %v9717
        %10595 = vmatmul.bf16.gmra.mxu0 %v8403
        %v10596 = vpop.f32.mrf.mxu0
        %v10597 = vadd.f32 %v10584, %v10596
        %v10598 = vpop.f32.mrf.mxu0
        %10599 = vdwg.mxu0
        %v10600 = vpack.c.bf16 %v10207, %v10155
        %v10601 = vpack.c.bf16 %v10233, %v10181
        %v10602 = vpack.c.bf16 %v10311, %v10259
        %v10603 = vpack.c.bf16 %v10337, %v10285
        %v10604 = vpack.c.bf16 %v10415, %v10363
        %v10605 = vpack.c.bf16 %v10441, %v10389
        %v10606 = vpack.c.bf16 %v10519, %v10467
        %v10607 = vpack.c.bf16 %v10545, %v10493
        %v10608 = vpack.c.bf16 %v10571, %v10571
        %v10609 = vpack.c.bf16 %v10597, %v10597
        %10611 = vset.pattern.permute.xlu0 0
        %10612 = vperm.xlu0 %10611, %v8401
        %v10613 = vpop.permute.xlu0 %10612
        %v10615 = vperm.slane %v10613, 0
        %v10617 = vsel %vm4264, %v8400, 0
        %v10620 = vsel %vm4268, %v10608, 0
        %v10623 = vsel %vm4268, %v10609, 0
        %10625 = vmatpush.bf16.msra.mxu0 0
        %10626 = vmatpush.bf16.msra.mxu0 0
        %10627 = vmatpush.bf16.msra.mxu0 0
        %10628 = vmatpush.bf16.msra.mxu0 %v10620
        %10629 = vmatpush.bf16.msra.mxu0 %v10606
        %10630 = vmatpush.bf16.msra.mxu0 %v10604
        %10631 = vmatpush.bf16.msra.mxu0 %v10602
        %10632 = vmatpush.bf16.msra.mxu0 %v10600
        %10633 = vmatmul.bf16.gmra.mxu0 %v10617
        %v10634 = vpop.f32.mrf.mxu0
        %v10635 = vadd.f32 %v10615, %v10634
        %v10636 = vpop.f32.mrf.mxu0
        %10637 = vdwg.mxu0
        %10638 = vmatpush.bf16.msra.mxu0 0
        %10639 = vmatpush.bf16.msra.mxu0 0
        %10640 = vmatpush.bf16.msra.mxu0 0
        %10641 = vmatpush.bf16.msra.mxu0 %v10623
        %10642 = vmatpush.bf16.msra.mxu0 %v10607
        %10643 = vmatpush.bf16.msra.mxu0 %v10605
        %10644 = vmatpush.bf16.msra.mxu0 %v10603
        %10645 = vmatpush.bf16.msra.mxu0 %v10601
        %10646 = vmatmul.bf16.gmra.mxu0 %v10617
        %v10647 = vpop.f32.mrf.mxu0
        %v10648 = vadd.f32 %v10615, %v10647
        %v10649 = vpop.f32.mrf.mxu0
        %10650 = vdwg.mxu0
        %v10653 = vrot.slane %v10648, 7
        %vm10654 = vcmask 1040384
        %v10655 = vsel %vm10654, %v10635, %v10653
        %v10657 = vadd.f32 %v803, %v10655
        %v10658 = vlaneseq
        %vm10659 = vcmp.ge.s32.totalorder %v10658, 0
        %vm10660 = vcmp.lt.s32.totalorder %v10658, 256
        %vm10661 = vmand %vm10659, %vm10660
        %10662 = vst.msk [vmem:[%s801] sm:$0x3] %vm10661, %v10657
        %p10663 = scmp.lt.s32.totalorder %s40, 1
        %s10664 = scalar_select %p10663, %s40, 1
        %s10665 = smul.addr %s10664, 2
        %s10666 = scalar_lea.vmem %s24, %s10665
        // Predicated region
        $region140: #{_lambda_.1} parent=115 // pred_check
          %p10667 = pneg %p567
        $region141: #{_lambda_.1} parent=115 // pred_check_branch
          %10669 = sbr.rel (%p10667) target = $region143
        $region142: #{_lambda_.1} parent=115 // pred_region
          _
        $region143: #{_lambda_.1} parent=115 // pred_fallthru
          _
      $region116: #{_lambda_.1} parent=5 // pred_fallthru
        _
      %p10670 = scmp.le.s32.totalorder 2, %s35
      // Predicated region
      $region144: #{_lambda_.1} parent=5 // pred_check
        %p10671 = pneg %p10670
      $region145: #{_lambda_.1} parent=5 // pred_check_branch
        %10673 = sbr.rel (%p10671) target = $region147
      $region146: #{_lambda_.1} parent=5 // pred_region
        %s10674 = ssub.s32 %s35, 2
        // Predicated region
        $region148: #{_lambda_.1} parent=146 // pred_check
          %p10675 = pneg %p573
        $region149: #{_lambda_.1} parent=146 // pred_check_branch
          %10677 = sbr.rel (%p10675) target = $region151
        $region150: #{_lambda_.1} parent=146 // pred_region
          %p10678 = scmp.lt.s32.totalorder %s41, 1
          %s10679 = scalar_select %p10678, %s41, 1
          %s10680 = smul.addr %s10679, 2
          %s10681 = scalar_lea.vmem %s24, %s10680
        $region151: #{_lambda_.1} parent=146 // pred_fallthru
          _
      $region147: #{_lambda_.1} parent=5 // pred_fallthru
        _
    $region6: #{_lambda_.1} parent=1 // loop_footer
      %s39 = sadd.s32 1, %s35
    $region7: #{_lambda_.1} parent=1 // loop_footer_branch
      %34 = sbr.rel target = $region3
    $region8: #{_lambda_.1} parent=1 // loop_exit
      _
    %10682 = vsyncpa [#allocation4], 1
    %s10683 = scalar_lea.sflag [#allocation4], 1
    %10684 = vsyncpa %s10683, 1
    %10685 = vsyncpa [#allocation6], 1
    %10686 = vsyncpa [#allocation9], 1

</llo_original>
